<compile_context>
chip_gen: v7x
topology: tpu7x:2x2x1
jax: 0.10.0
libtpu: 0.0.40
codegen_flags: <defaults>
</compile_context>

<pallas_src>
import functools
import math

import numpy as np
import jax
import jax.numpy as jnp
from jax.experimental import pallas as pl
from jax.experimental.pallas import tpu as pltpu


# Row layout of the packed per-model `params` operand (f32, shape (9 + 2*D, D)).
(ROW_BVO, ROW_B2, ROW_LN1W, ROW_LN1B, ROW_LN2W, ROW_LN2B,
 ROW_ALPHA, ROW_BETA, ROW_INV) = range(9)
ROW_WVO = 9          # rows [9, 9+D)   : I + Wv^T @ Wo^T (residual folded in)
#                      rows [9+D, 9+2D): identity, used to transpose the output on the MXU


# ----------------------------------------------------------------------------
# Kernel: one batch tile of TM rows per grid step; weights resident in VMEM.
# ----------------------------------------------------------------------------
def encoder_kernel(x_ref, t_ref, params_ref, big_ref, out_ref, *, n_layers):
    TM, D = x_ref.shape

    # ---- parameters: slice the Refs directly (sublane-offset loads) ----
    bvo   = params_ref[ROW_BVO:ROW_BVO + 1, :]
    b2    = params_ref[ROW_B2:ROW_B2 + 1, :]
    ln1w  = params_ref[ROW_LN1W:ROW_LN1W + 1, :]
    ln1b  = params_ref[ROW_LN1B:ROW_LN1B + 1, :]
    ln2w  = params_ref[ROW_LN2W:ROW_LN2W + 1, :]
    ln2b  = params_ref[ROW_LN2B:ROW_LN2B + 1, :]
    alpha = params_ref[ROW_ALPHA:ROW_ALPHA + 1, :]
    beta  = params_ref[ROW_BETA:ROW_BETA + 1, :]
    inv   = params_ref[ROW_INV:ROW_INV + 1, :]
    wvo_rows = [params_ref[ROW_WVO + k:ROW_WVO + k + 1, :] for k in range(D)]
    eye   = params_ref[ROW_WVO + D:ROW_WVO + 2 * D, :]              # (D, D) identity

    # FFN weights stay bf16 (MXU-native); only the single b1 row is widened.
    w1 = big_ref[0:D, :]                                            # (D, DFF) bf16 == W1^T
    w2 = big_ref[D:2 * D, :]                                        # (D, DFF) bf16 == W2
    b1 = big_ref[2 * D:2 * D + 1, :].astype(jnp.float32)            # (1, DFF) f32

    # ---- PositionalEncoder, computed in-kernel (per-row t) ----
    ang = t_ref[...] * inv                                          # (TM,1)*(1,D) -> (TM,D)
    col = jax.lax.broadcasted_iota(jnp.int32, (TM, D), 1)
    pe = jnp.where(col % 2 == 0, jnp.sin(ang), jnp.cos(ang))
    x = x_ref[...] * jnp.float32(math.sqrt(D)) + pe                 # (TM, D) f32

    def layer_norm(v, w, b, eps):
        mu = jnp.mean(v, axis=-1, keepdims=True)
        var = jnp.mean((v - mu) * (v - mu), axis=-1, keepdims=True)
        return (v - mu) * jax.lax.rsqrt(var + jnp.float32(eps)) * w + b

    # All N layers share identical weights (clone() == deepcopy of one layer).
    # TODO(synk): switch to lax.fori_loop(..., unroll=True) if n_layers grows large.
    for _ in range(n_layers):
        # Self-attention (degenerate: per-row seq_len == 1 -> softmax(1x1) == 1):
        #   x + attn(x) == x @ (I + Wv^T Wo^T) + (bv Wo^T + bo)   [folded on host]
        # DxD mat-vec via VPU broadcast-FMAs: exact f32, no MXU round-trip.
        pre = jnp.zeros_like(x) + bvo
        for k in range(D):
            pre = pre + x[:, k:k + 1] * wvo_rows[k]
        x = layer_norm(pre, ln1w, ln1b, 1e-5)

        # Feed-forward: linear2(relu(linear1(x))); bf16 MXU operands, f32 accumulate.
        h = jnp.dot(x.astype(jnp.bfloat16), w1,
                    preferred_element_type=jnp.float32) + b1        # (TM, DFF)
        h = jnp.maximum(h, jnp.float32(0.0))
        ff = jax.lax.dot_general(                                   # h @ W2^T (rhs lane-dense)
            h.astype(jnp.bfloat16), w2,
            dimension_numbers=(((1,), (1,)), ((), ())),
            preferred_element_type=jnp.float32) + b2                # (TM, D)
        x = layer_norm(x + ff, ln2w, ln2b, 1e-5)

    # Custom Norm: alpha * (x - mean) / (std_unbiased + 1e-6) + beta  (torch.std: /(D-1))
    mu = jnp.mean(x, axis=-1, keepdims=True)
    var_unb = jnp.sum((x - mu) * (x - mu), axis=-1, keepdims=True) / jnp.float32(D - 1)
    y = alpha * (x - mu) / (jnp.sqrt(var_unb) + jnp.float32(1e-6)) + beta   # (TM, D)

    # Lane-dense output: write (D, TM).  Transpose via identity contraction on the MXU.
    out_ref[...] = jax.lax.dot_general(
        eye, y, dimension_numbers=(((1,), (1,)), ((), ())),
        preferred_element_type=jnp.float32)                         # (D, TM)


# ----------------------------------------------------------------------------
# Host-side glue: parameter construction, packing, batched forward wrapper.
# ----------------------------------------------------------------------------
def init_params(key, d_model=4, dim_feedforward=2048):
    """Synthetic init of ONE TransformerEncoderLayer + Norm (layers share weights)."""
    ks = jax.random.split(key, 8)
    s = 0.1
    return dict(
        d_model=d_model, dff=dim_feedforward,
        wqkv=jax.random.normal(ks[0], (3 * d_model, d_model), jnp.float32) * s,
        bqkv=jax.random.normal(ks[1], (3 * d_model,), jnp.float32) * s,
        wo=jax.random.normal(ks[2], (d_model, d_model), jnp.float32) * s,
        bo=jax.random.normal(ks[3], (d_model,), jnp.float32) * s,
        w1=jax.random.normal(ks[4], (dim_feedforward, d_model), jnp.float32) * s,
        b1=jax.random.normal(ks[5], (dim_feedforward,), jnp.float32) * s,
        w2=jax.random.normal(ks[6], (d_model, dim_feedforward), jnp.float32) * s,
        b2=jax.random.normal(ks[7], (d_model,), jnp.float32) * s,
        ln1w=jnp.ones((d_model,), jnp.float32),
        ln1b=jnp.zeros((d_model,), jnp.float32),
        ln2w=jnp.ones((d_model,), jnp.float32),
        ln2b=jnp.zeros((d_model,), jnp.float32),
        alpha=jnp.ones((d_model,), jnp.float32),
        beta=jnp.zeros((d_model,), jnp.float32),
    )


def pack_params(raw):
    """Fold + pack parameters into the two kernel operands (done once at init)."""
    D, DFF = raw["d_model"], raw["dff"]

    # Large FFN weights in bf16, lane-dense (last dim = DFF).
    w1_bf = raw["w1"].astype(jnp.bfloat16)                           # (DFF, D)
    w2_bf = raw["w2"].astype(jnp.bfloat16)                           # (D, DFF)
    b1_bf = raw["b1"].astype(jnp.bfloat16)
    big = jnp.concatenate([w1_bf.T, w2_bf, b1_bf.reshape(1, DFF)], axis=0)  # (2D+1, DFF)

    # Fold V- and out-projection + residual identity (valid because each forward is a
    # single-token sequence -> softmax over the 1x1 score is exactly 1).
    wv = np.asarray(raw["wqkv"])[2 * D:3 * D]
    bv = np.asarray(raw["bqkv"])[2 * D:3 * D]
    wo = np.asarray(raw["wo"])
    bo = np.asarray(raw["bo"])
    wvo_res = np.eye(D, dtype=np.float32) + wv.T @ wo.T              # x @ wvo_res == x + v@Wo^T
    bvo = bv.reshape(1, D) @ wo.T + bo.reshape(1, D)

    j = np.arange(D, dtype=np.float32)
    inv = (10000.0 ** (-2.0 * j / D)).reshape(1, D).astype(np.float32)

    params = np.concatenate([
        bvo,
        np.asarray(raw["b2"]).reshape(1, D),
        np.asarray(raw["ln1w"]).reshape(1, D), np.asarray(raw["ln1b"]).reshape(1, D),
        np.asarray(raw["ln2w"]).reshape(1, D), np.asarray(raw["ln2b"]).reshape(1, D),
        np.asarray(raw["alpha"]).reshape(1, D), np.asarray(raw["beta"]).reshape(1, D),
        inv,
        wvo_res,
        np.eye(D, dtype=np.float32),
    ], axis=0).astype(np.float32)                                    # (9 + 2D, D)
    return jnp.asarray(params), big


def _pallas_encoder(src2d, t2d, params, big, *, n_layers, block_m):
    B, D = src2d.shape
    NP = params.shape[0]
    NB, DFF = big.shape
    return pl.pallas_call(
        functools.partial(encoder_kernel, n_layers=n_layers),
        out_shape=jax.ShapeDtypeStruct((D, B), jnp.float32),
        grid_spec=pltpu.PrefetchScalarGridSpec(
            num_scalar_prefetch=0,
            grid=(B // block_m,),
            in_specs=[
                pl.BlockSpec((block_m, D), lambda i: (i, 0)),        # x tile
                pl.BlockSpec((block_m, 1), lambda i: (i, 0)),        # per-row t
                pl.BlockSpec((NP, D), lambda i: (0, 0)),             # params (resident)
                pl.BlockSpec((NB, DFF), lambda i: (0, 0)),           # FFN weights (resident)
            ],
            out_specs=pl.BlockSpec((D, block_m), lambda i: (0, i)),  # lane-dense output
        ),
        compiler_params=pltpu.CompilerParams(
            dimension_semantics=("parallel",)),                      # both v7x TensorCores
    )(src2d, t2d, params, big)


@functools.partial(jax.jit, static_argnames=("n_layers", "block_m"))
def encoder_forward(src, t, params, big, *, n_layers, block_m=128):
    """Row b of `src` with scalar t[b]  ==  Encoder()(src_b, t_b).
    Returns the lane-dense (D, B) slab; transpose outside the hot path if needed."""
    B, D = src.shape
    src = src.astype(jnp.float32)
    t = jnp.asarray(t, jnp.float32).reshape(B, 1)
    pad = (-B) % block_m
    if pad:
        src = jnp.pad(src, ((0, pad), (0, 0)))
        t = jnp.pad(t, ((0, pad), (0, 0)))
    out = _pallas_encoder(src, t, params, big, n_layers=n_layers, block_m=block_m)
    return out[:, :B]


# ----------------------------------------------------------------------------
# Pure-JAX reference: full (unfolded) attention incl. softmax, same math as the
# PyTorch module, using the bf16-rounded FFN weights / casts the kernel uses.
# ----------------------------------------------------------------------------
def positional_encoding_ref(d_model, t):
    j = jnp.arange(d_model, dtype=jnp.float32)
    inv = jnp.power(jnp.float32(10000.0), -2.0 * j / d_model)
    ang = t[:, None] * inv[None, :]
    return jnp.where((jnp.arange(d_model) % 2 == 0)[None, :], jnp.sin(ang), jnp.cos(ang))


def encoder_reference(src, t, raw, n_layers):
    D = raw["d_model"]
    x = src.astype(jnp.float32) * math.sqrt(D) + positional_encoding_ref(D, t)

    wq, wk, wv = raw["wqkv"][0:D], raw["wqkv"][D:2 * D], raw["wqkv"][2 * D:3 * D]
    bq, bk, bv = raw["bqkv"][0:D], raw["bqkv"][D:2 * D], raw["bqkv"][2 * D:3 * D]
    w1 = raw["w1"].astype(jnp.bfloat16)                              # (DFF, D)
    b1 = raw["b1"].astype(jnp.bfloat16).astype(jnp.float32)
    w2 = raw["w2"].astype(jnp.bfloat16)                              # (D, DFF)

    def ln(v, w, b, eps):
        mu = v.mean(-1, keepdims=True)
        var = ((v - mu) ** 2).mean(-1, keepdims=True)
        return (v - mu) * jax.lax.rsqrt(var + eps) * w + b

    for _ in range(n_layers):
        q = x @ wq.T + bq
        k = x @ wk.T + bk
        v = x @ wv.T + bv
        s = (q * k).sum(-1, keepdims=True) / math.sqrt(D)            # (B,1): 1x1 score per row
        p = jax.nn.softmax(s, axis=-1)                               # == 1 (length-1 sequence)
        attn = (p * v) @ raw["wo"].T + raw["bo"]
        x = ln(x + attn, raw["ln1w"], raw["ln1b"], 1e-5)

        h = jnp.dot(x.astype(jnp.bfloat16), w1.T,
                    preferred_element_type=jnp.float32) + b1
        h = jnp.maximum(h, 0.0)
        ff = jnp.dot(h.astype(jnp.bfloat16), w2.T,
                     preferred_element_type=jnp.float32) + raw["b2"]
        x = ln(x + ff, raw["ln2w"], raw["ln2b"], 1e-5)

    mu = x.mean(-1, keepdims=True)
    std = jnp.sqrt(((x - mu) ** 2).sum(-1, keepdims=True) / (D - 1))
    return raw["alpha"] * (x - mu) / (std + 1e-6) + raw["beta"]


if __name__ == "__main__":
    FEATURE_SIZE = 4   # source PositionalEncoder needs an even d_model (see note above)
    N_LAYERS = 2
    DFF = 2048         # nn.TransformerEncoderLayer default dim_feedforward
    BATCH = 256        # independent (src, t) pairs -> 2 grid tiles of 128 rows

    key = jax.random.PRNGKey(0)
    pkey, xkey, tkey = jax.random.split(key, 3)

    raw = init_params(pkey, d_model=FEATURE_SIZE, dim_feedforward=DFF)
    params, big = pack_params(raw)

    src = jax.random.normal(xkey, (BATCH, FEATURE_SIZE), jnp.float32)
    t = jax.random.uniform(tkey, (BATCH,), jnp.float32, minval=0.0, maxval=10.0)

    out = encoder_forward(src, t, params, big, n_layers=N_LAYERS)     # (D, BATCH)
    out = jax.block_until_ready(out)

    ref = encoder_reference(src, t, raw, N_LAYERS)                    # (BATCH, D)
    np.testing.assert_allclose(np.asarray(out), np.asarray(ref).T, rtol=2e-3, atol=2e-3)

    # Original single-token module interface (padded to one tile internally).
    out1 = encoder_forward(src[:1], t[:1], params, big, n_layers=N_LAYERS)
    out1 = jax.block_until_ready(out1)
    np.testing.assert_allclose(np.asarray(out1)[:, 0], np.asarray(ref)[0],
                               rtol=2e-3, atol=2e-3)

    print("KERNEL_OK")
</pallas_src>

<mosaic_0001>
module attributes {stable_mosaic.version = 11 : i64} {
  func.func @encoder_kernel(%arg0: i32, %arg1: memref<128x4xf32, #tpu.memory_space<vmem>>, %arg2: memref<128x1xf32, #tpu.memory_space<vmem>>, %arg3: memref<17x4xf32, #tpu.memory_space<vmem>>, %arg4: memref<9x2048xbf16, #tpu.memory_space<vmem>>, %arg5: memref<4x128xf32, #tpu.memory_space<vmem>>) attributes {dimension_semantics = [#tpu.dimension_semantics<parallel>], iteration_bounds = array<i64: 2>, scalar_prefetch = 0 : i64, scratch_operands = 0 : i64, tpu.core_type = #tpu.core_type<tc>, window_params = [{transform_indices = @transform_0, window_bounds = array<i64: 128, 4>}, {transform_indices = @transform_1, window_bounds = array<i64: 128, 1>}, {pipeline_mode = #tpu.pipeline_mode<synchronous>, transform_indices = @transform_2, window_bounds = array<i64: 17, 4>}, {pipeline_mode = #tpu.pipeline_mode<synchronous>, transform_indices = @transform_3, window_bounds = array<i64: 9, 2048>}, {transform_indices = @transform_4, window_bounds = array<i64: 4, 128>}]} {
    %c0 = arith.constant 0 : index
    %c0_0 = arith.constant 0 : index
    %0 = vector.load %arg3[%c0, %c0_0] : memref<17x4xf32, #tpu.memory_space<vmem>>, vector<1x4xf32>
    %c1 = arith.constant 1 : index
    %c0_1 = arith.constant 0 : index
    %1 = vector.load %arg3[%c1, %c0_1] : memref<17x4xf32, #tpu.memory_space<vmem>>, vector<1x4xf32>
    %c2 = arith.constant 2 : index
    %c0_2 = arith.constant 0 : index
    %2 = vector.load %arg3[%c2, %c0_2] : memref<17x4xf32, #tpu.memory_space<vmem>>, vector<1x4xf32>
    %c3 = arith.constant 3 : index
    %c0_3 = arith.constant 0 : index
    %3 = vector.load %arg3[%c3, %c0_3] : memref<17x4xf32, #tpu.memory_space<vmem>>, vector<1x4xf32>
    %c4 = arith.constant 4 : index
    %c0_4 = arith.constant 0 : index
    %4 = vector.load %arg3[%c4, %c0_4] : memref<17x4xf32, #tpu.memory_space<vmem>>, vector<1x4xf32>
    %c5 = arith.constant 5 : index
    %c0_5 = arith.constant 0 : index
    %5 = vector.load %arg3[%c5, %c0_5] : memref<17x4xf32, #tpu.memory_space<vmem>>, vector<1x4xf32>
    %c6 = arith.constant 6 : index
    %c0_6 = arith.constant 0 : index
    %6 = vector.load %arg3[%c6, %c0_6] : memref<17x4xf32, #tpu.memory_space<vmem>>, vector<1x4xf32>
    %c7 = arith.constant 7 : index
    %c0_7 = arith.constant 0 : index
    %7 = vector.load %arg3[%c7, %c0_7] : memref<17x4xf32, #tpu.memory_space<vmem>>, vector<1x4xf32>
    %c8 = arith.constant 8 : index
    %c0_8 = arith.constant 0 : index
    %8 = vector.load %arg3[%c8, %c0_8] : memref<17x4xf32, #tpu.memory_space<vmem>>, vector<1x4xf32>
    %c9 = arith.constant 9 : index
    %c0_9 = arith.constant 0 : index
    %9 = vector.load %arg3[%c9, %c0_9] : memref<17x4xf32, #tpu.memory_space<vmem>>, vector<1x4xf32>
    %c10 = arith.constant 10 : index
    %c0_10 = arith.constant 0 : index
    %10 = vector.load %arg3[%c10, %c0_10] : memref<17x4xf32, #tpu.memory_space<vmem>>, vector<1x4xf32>
    %c11 = arith.constant 11 : index
    %c0_11 = arith.constant 0 : index
    %11 = vector.load %arg3[%c11, %c0_11] : memref<17x4xf32, #tpu.memory_space<vmem>>, vector<1x4xf32>
    %c12 = arith.constant 12 : index
    %c0_12 = arith.constant 0 : index
    %12 = vector.load %arg3[%c12, %c0_12] : memref<17x4xf32, #tpu.memory_space<vmem>>, vector<1x4xf32>
    %c13 = arith.constant 13 : index
    %c0_13 = arith.constant 0 : index
    %13 = vector.load %arg3[%c13, %c0_13] : memref<17x4xf32, #tpu.memory_space<vmem>>, vector<4x4xf32>
    %c0_14 = arith.constant 0 : index
    %c0_15 = arith.constant 0 : index
    %14 = vector.load %arg4[%c0_14, %c0_15] : memref<9x2048xbf16, #tpu.memory_space<vmem>>, vector<4x2048xbf16>
    %c4_16 = arith.constant 4 : index
    %c0_17 = arith.constant 0 : index
    %15 = vector.load %arg4[%c4_16, %c0_17] : memref<9x2048xbf16, #tpu.memory_space<vmem>>, vector<4x2048xbf16>
    %c8_18 = arith.constant 8 : index
    %c0_19 = arith.constant 0 : index
    %16 = vector.load %arg4[%c8_18, %c0_19] : memref<9x2048xbf16, #tpu.memory_space<vmem>>, vector<1x2048xbf16>
    %17 = arith.extf %16 : vector<1x2048xbf16> to vector<1x2048xf32>
    %c0_20 = arith.constant 0 : index
    %c0_21 = arith.constant 0 : index
    %18 = vector.load %arg2[%c0_20, %c0_21] : memref<128x1xf32, #tpu.memory_space<vmem>>, vector<128x1xf32>
    %19 = vector.broadcast %18 : vector<128x1xf32> to vector<128x4xf32>
    %20 = vector.broadcast %8 : vector<1x4xf32> to vector<128x4xf32>
    %21 = arith.mulf %19, %20 : vector<128x4xf32>
    %22 = tpu.iota {dimensions = array<i32: 1>} : vector<128x4xi32>
    %c2_i32 = arith.constant 2 : i32
    %c0_i32 = arith.constant 0 : i32
    %23 = arith.cmpi eq, %c2_i32, %c0_i32 : i32
    %c1_i32 = arith.constant 1 : i32
    %24 = arith.select %23, %c1_i32, %c2_i32 : i32
    %25 = vector.broadcast %24 : i32 to vector<128x4xi32>
    %26 = arith.remsi %22, %25 : vector<128x4xi32>
    %c0_i32_22 = arith.constant 0 : i32
    %27 = vector.broadcast %c0_i32_22 : i32 to vector<128x4xi32>
    %28 = arith.cmpi ne, %26, %27 : vector<128x4xi32>
    %c0_i32_23 = arith.constant 0 : i32
    %29 = vector.broadcast %c0_i32_23 : i32 to vector<128x4xi32>
    %30 = arith.cmpi slt, %26, %29 : vector<128x4xi32>
    %c0_i32_24 = arith.constant 0 : i32
    %31 = arith.cmpi slt, %24, %c0_i32_24 : i32
    %32 = vector.broadcast %31 : i1 to vector<128x4xi1>
    %33 = vector.broadcast %32 : vector<128x4xi1> to vector<128x4xi1>
    %34 = arith.xori %30, %33 : vector<128x4xi1>
    %35 = arith.andi %34, %28 : vector<128x4xi1>
    %36 = vector.broadcast %24 : i32 to vector<128x4xi32>
    %37 = arith.addi %26, %36 : vector<128x4xi32>
    %38 = arith.select %35, %37, %26 : vector<128x4xi1>, vector<128x4xi32>
    %c0_i32_25 = arith.constant 0 : i32
    %39 = vector.broadcast %c0_i32_25 : i32 to vector<128x4xi32>
    %40 = arith.cmpi eq, %38, %39 : vector<128x4xi32>
    %41 = math.sin %21 : vector<128x4xf32>
    %42 = math.cos %21 : vector<128x4xf32>
    %43 = arith.select %40, %41, %42 : vector<128x4xi1>, vector<128x4xf32>
    %c0_26 = arith.constant 0 : index
    %c0_27 = arith.constant 0 : index
    %44 = vector.load %arg1[%c0_26, %c0_27] : memref<128x4xf32, #tpu.memory_space<vmem>>, vector<128x4xf32>
    %cst = arith.constant 2.000000e+00 : f32
    %45 = vector.broadcast %cst : f32 to vector<128x4xf32>
    %46 = arith.mulf %44, %45 : vector<128x4xf32>
    %47 = arith.addf %46, %43 : vector<128x4xf32>
    %cst_28 = arith.constant 0.000000e+00 : f32
    %48 = vector.broadcast %cst_28 : f32 to vector<128x4xf32>
    %49 = vector.broadcast %0 : vector<1x4xf32> to vector<128x4xf32>
    %50 = arith.addf %48, %49 : vector<128x4xf32>
    %51 = vector.extract_strided_slice %47 {offsets = [0, 0], sizes = [128, 1], strides = [1, 1]} : vector<128x4xf32> to vector<128x1xf32>
    %52 = vector.broadcast %51 : vector<128x1xf32> to vector<128x4xf32>
    %53 = vector.broadcast %9 : vector<1x4xf32> to vector<128x4xf32>
    %54 = arith.mulf %52, %53 : vector<128x4xf32>
    %55 = arith.addf %50, %54 : vector<128x4xf32>
    %56 = vector.extract_strided_slice %47 {offsets = [0, 1], sizes = [128, 1], strides = [1, 1]} : vector<128x4xf32> to vector<128x1xf32>
    %57 = vector.broadcast %56 : vector<128x1xf32> to vector<128x4xf32>
    %58 = vector.broadcast %10 : vector<1x4xf32> to vector<128x4xf32>
    %59 = arith.mulf %57, %58 : vector<128x4xf32>
    %60 = arith.addf %55, %59 : vector<128x4xf32>
    %61 = vector.extract_strided_slice %47 {offsets = [0, 2], sizes = [128, 1], strides = [1, 1]} : vector<128x4xf32> to vector<128x1xf32>
    %62 = vector.broadcast %61 : vector<128x1xf32> to vector<128x4xf32>
    %63 = vector.broadcast %11 : vector<1x4xf32> to vector<128x4xf32>
    %64 = arith.mulf %62, %63 : vector<128x4xf32>
    %65 = arith.addf %60, %64 : vector<128x4xf32>
    %66 = vector.extract_strided_slice %47 {offsets = [0, 3], sizes = [128, 1], strides = [1, 1]} : vector<128x4xf32> to vector<128x1xf32>
    %67 = vector.broadcast %66 : vector<128x1xf32> to vector<128x4xf32>
    %68 = vector.broadcast %12 : vector<1x4xf32> to vector<128x4xf32>
    %69 = arith.mulf %67, %68 : vector<128x4xf32>
    %70 = arith.addf %65, %69 : vector<128x4xf32>
    %cst_29 = arith.constant dense<0.000000e+00> : vector<128xf32>
    %71 = vector.multi_reduction <add>, %70, %cst_29 [1] : vector<128x4xf32> to vector<128xf32>
    %72 = vector.shape_cast %71 : vector<128xf32> to vector<128x1xf32>
    %cst_30 = arith.constant 4.000000e+00 : f32
    %73 = vector.broadcast %cst_30 : f32 to vector<128x1xf32>
    %74 = arith.divf %72, %73 : vector<128x1xf32>
    %75 = vector.broadcast %74 : vector<128x1xf32> to vector<128x4xf32>
    %76 = arith.subf %70, %75 : vector<128x4xf32>
    %77 = vector.broadcast %74 : vector<128x1xf32> to vector<128x4xf32>
    %78 = arith.subf %70, %77 : vector<128x4xf32>
    %79 = arith.mulf %76, %78 : vector<128x4xf32>
    %cst_31 = arith.constant dense<0.000000e+00> : vector<128xf32>
    %80 = vector.multi_reduction <add>, %79, %cst_31 [1] : vector<128x4xf32> to vector<128xf32>
    %81 = vector.shape_cast %80 : vector<128xf32> to vector<128x1xf32>
    %cst_32 = arith.constant 4.000000e+00 : f32
    %82 = vector.broadcast %cst_32 : f32 to vector<128x1xf32>
    %83 = arith.divf %81, %82 : vector<128x1xf32>
    %84 = vector.broadcast %74 : vector<128x1xf32> to vector<128x4xf32>
    %85 = arith.subf %70, %84 : vector<128x4xf32>
    %cst_33 = arith.constant 9.99999974E-6 : f32
    %86 = vector.broadcast %cst_33 : f32 to vector<128x1xf32>
    %87 = arith.addf %83, %86 : vector<128x1xf32>
    %88 = math.rsqrt %87 : vector<128x1xf32>
    %89 = vector.broadcast %88 : vector<128x1xf32> to vector<128x4xf32>
    %90 = arith.mulf %85, %89 : vector<128x4xf32>
    %91 = vector.broadcast %2 : vector<1x4xf32> to vector<128x4xf32>
    %92 = arith.mulf %90, %91 : vector<128x4xf32>
    %93 = vector.broadcast %3 : vector<1x4xf32> to vector<128x4xf32>
    %94 = arith.addf %92, %93 : vector<128x4xf32>
    %95 = arith.truncf %94 : vector<128x4xf32> to vector<128x4xbf16>
    %cst_34 = arith.constant dense<0.000000e+00> : vector<128x2048xf32>
    %96 = tpu.matmul %95, %14, %cst_34 {dimension_numbers = #tpu.dot_dimension_numbers<[1], [0], [0], [1], [0, 0, 1, 1], [], []>} : vector<128x4xbf16>, vector<4x2048xbf16>, vector<128x2048xf32> -> vector<128x2048xf32>
    %97 = vector.broadcast %17 : vector<1x2048xf32> to vector<128x2048xf32>
    %98 = arith.addf %96, %97 : vector<128x2048xf32>
    %cst_35 = arith.constant 0.000000e+00 : f32
    %99 = vector.broadcast %cst_35 : f32 to vector<128x2048xf32>
    %100 = arith.maximumf %98, %99 : vector<128x2048xf32>
    %101 = arith.truncf %100 : vector<128x2048xf32> to vector<128x2048xbf16>
    %cst_36 = arith.constant dense<0.000000e+00> : vector<128x4xf32>
    %102 = tpu.matmul %101, %15, %cst_36 {dimension_numbers = #tpu.dot_dimension_numbers<[1], [1], [0], [0], [0, 0, 1, 0], [], []>} : vector<128x2048xbf16>, vector<4x2048xbf16>, vector<128x4xf32> -> vector<128x4xf32>
    %103 = vector.broadcast %1 : vector<1x4xf32> to vector<128x4xf32>
    %104 = arith.addf %102, %103 : vector<128x4xf32>
    %105 = arith.addf %94, %104 : vector<128x4xf32>
    %cst_37 = arith.constant dense<0.000000e+00> : vector<128xf32>
    %106 = vector.multi_reduction <add>, %105, %cst_37 [1] : vector<128x4xf32> to vector<128xf32>
    %107 = vector.shape_cast %106 : vector<128xf32> to vector<128x1xf32>
    %cst_38 = arith.constant 4.000000e+00 : f32
    %108 = vector.broadcast %cst_38 : f32 to vector<128x1xf32>
    %109 = arith.divf %107, %108 : vector<128x1xf32>
    %110 = vector.broadcast %109 : vector<128x1xf32> to vector<128x4xf32>
    %111 = arith.subf %105, %110 : vector<128x4xf32>
    %112 = vector.broadcast %109 : vector<128x1xf32> to vector<128x4xf32>
    %113 = arith.subf %105, %112 : vector<128x4xf32>
    %114 = arith.mulf %111, %113 : vector<128x4xf32>
    %cst_39 = arith.constant dense<0.000000e+00> : vector<128xf32>
    %115 = vector.multi_reduction <add>, %114, %cst_39 [1] : vector<128x4xf32> to vector<128xf32>
    %116 = vector.shape_cast %115 : vector<128xf32> to vector<128x1xf32>
    %cst_40 = arith.constant 4.000000e+00 : f32
    %117 = vector.broadcast %cst_40 : f32 to vector<128x1xf32>
    %118 = arith.divf %116, %117 : vector<128x1xf32>
    %119 = vector.broadcast %109 : vector<128x1xf32> to vector<128x4xf32>
    %120 = arith.subf %105, %119 : vector<128x4xf32>
    %cst_41 = arith.constant 9.99999974E-6 : f32
    %121 = vector.broadcast %cst_41 : f32 to vector<128x1xf32>
    %122 = arith.addf %118, %121 : vector<128x1xf32>
    %123 = math.rsqrt %122 : vector<128x1xf32>
    %124 = vector.broadcast %123 : vector<128x1xf32> to vector<128x4xf32>
    %125 = arith.mulf %120, %124 : vector<128x4xf32>
    %126 = vector.broadcast %4 : vector<1x4xf32> to vector<128x4xf32>
    %127 = arith.mulf %125, %126 : vector<128x4xf32>
    %128 = vector.broadcast %5 : vector<1x4xf32> to vector<128x4xf32>
    %129 = arith.addf %127, %128 : vector<128x4xf32>
    %cst_42 = arith.constant 0.000000e+00 : f32
    %130 = vector.broadcast %cst_42 : f32 to vector<128x4xf32>
    %131 = vector.broadcast %0 : vector<1x4xf32> to vector<128x4xf32>
    %132 = arith.addf %130, %131 : vector<128x4xf32>
    %133 = vector.extract_strided_slice %129 {offsets = [0, 0], sizes = [128, 1], strides = [1, 1]} : vector<128x4xf32> to vector<128x1xf32>
    %134 = vector.broadcast %133 : vector<128x1xf32> to vector<128x4xf32>
    %135 = vector.broadcast %9 : vector<1x4xf32> to vector<128x4xf32>
    %136 = arith.mulf %134, %135 : vector<128x4xf32>
    %137 = arith.addf %132, %136 : vector<128x4xf32>
    %138 = vector.extract_strided_slice %129 {offsets = [0, 1], sizes = [128, 1], strides = [1, 1]} : vector<128x4xf32> to vector<128x1xf32>
    %139 = vector.broadcast %138 : vector<128x1xf32> to vector<128x4xf32>
    %140 = vector.broadcast %10 : vector<1x4xf32> to vector<128x4xf32>
    %141 = arith.mulf %139, %140 : vector<128x4xf32>
    %142 = arith.addf %137, %141 : vector<128x4xf32>
    %143 = vector.extract_strided_slice %129 {offsets = [0, 2], sizes = [128, 1], strides = [1, 1]} : vector<128x4xf32> to vector<128x1xf32>
    %144 = vector.broadcast %143 : vector<128x1xf32> to vector<128x4xf32>
    %145 = vector.broadcast %11 : vector<1x4xf32> to vector<128x4xf32>
    %146 = arith.mulf %144, %145 : vector<128x4xf32>
    %147 = arith.addf %142, %146 : vector<128x4xf32>
    %148 = vector.extract_strided_slice %129 {offsets = [0, 3], sizes = [128, 1], strides = [1, 1]} : vector<128x4xf32> to vector<128x1xf32>
    %149 = vector.broadcast %148 : vector<128x1xf32> to vector<128x4xf32>
    %150 = vector.broadcast %12 : vector<1x4xf32> to vector<128x4xf32>
    %151 = arith.mulf %149, %150 : vector<128x4xf32>
    %152 = arith.addf %147, %151 : vector<128x4xf32>
    %cst_43 = arith.constant dense<0.000000e+00> : vector<128xf32>
    %153 = vector.multi_reduction <add>, %152, %cst_43 [1] : vector<128x4xf32> to vector<128xf32>
    %154 = vector.shape_cast %153 : vector<128xf32> to vector<128x1xf32>
    %cst_44 = arith.constant 4.000000e+00 : f32
    %155 = vector.broadcast %cst_44 : f32 to vector<128x1xf32>
    %156 = arith.divf %154, %155 : vector<128x1xf32>
    %157 = vector.broadcast %156 : vector<128x1xf32> to vector<128x4xf32>
    %158 = arith.subf %152, %157 : vector<128x4xf32>
    %159 = vector.broadcast %156 : vector<128x1xf32> to vector<128x4xf32>
    %160 = arith.subf %152, %159 : vector<128x4xf32>
    %161 = arith.mulf %158, %160 : vector<128x4xf32>
    %cst_45 = arith.constant dense<0.000000e+00> : vector<128xf32>
    %162 = vector.multi_reduction <add>, %161, %cst_45 [1] : vector<128x4xf32> to vector<128xf32>
    %163 = vector.shape_cast %162 : vector<128xf32> to vector<128x1xf32>
    %cst_46 = arith.constant 4.000000e+00 : f32
    %164 = vector.broadcast %cst_46 : f32 to vector<128x1xf32>
    %165 = arith.divf %163, %164 : vector<128x1xf32>
    %166 = vector.broadcast %156 : vector<128x1xf32> to vector<128x4xf32>
    %167 = arith.subf %152, %166 : vector<128x4xf32>
    %cst_47 = arith.constant 9.99999974E-6 : f32
    %168 = vector.broadcast %cst_47 : f32 to vector<128x1xf32>
    %169 = arith.addf %165, %168 : vector<128x1xf32>
    %170 = math.rsqrt %169 : vector<128x1xf32>
    %171 = vector.broadcast %170 : vector<128x1xf32> to vector<128x4xf32>
    %172 = arith.mulf %167, %171 : vector<128x4xf32>
    %173 = vector.broadcast %2 : vector<1x4xf32> to vector<128x4xf32>
    %174 = arith.mulf %172, %173 : vector<128x4xf32>
    %175 = vector.broadcast %3 : vector<1x4xf32> to vector<128x4xf32>
    %176 = arith.addf %174, %175 : vector<128x4xf32>
    %177 = arith.truncf %176 : vector<128x4xf32> to vector<128x4xbf16>
    %cst_48 = arith.constant dense<0.000000e+00> : vector<128x2048xf32>
    %178 = tpu.matmul %177, %14, %cst_48 {dimension_numbers = #tpu.dot_dimension_numbers<[1], [0], [0], [1], [0, 0, 1, 1], [], []>} : vector<128x4xbf16>, vector<4x2048xbf16>, vector<128x2048xf32> -> vector<128x2048xf32>
    %179 = vector.broadcast %17 : vector<1x2048xf32> to vector<128x2048xf32>
    %180 = arith.addf %178, %179 : vector<128x2048xf32>
    %cst_49 = arith.constant 0.000000e+00 : f32
    %181 = vector.broadcast %cst_49 : f32 to vector<128x2048xf32>
    %182 = arith.maximumf %180, %181 : vector<128x2048xf32>
    %183 = arith.truncf %182 : vector<128x2048xf32> to vector<128x2048xbf16>
    %cst_50 = arith.constant dense<0.000000e+00> : vector<128x4xf32>
    %184 = tpu.matmul %183, %15, %cst_50 {dimension_numbers = #tpu.dot_dimension_numbers<[1], [1], [0], [0], [0, 0, 1, 0], [], []>} : vector<128x2048xbf16>, vector<4x2048xbf16>, vector<128x4xf32> -> vector<128x4xf32>
    %185 = vector.broadcast %1 : vector<1x4xf32> to vector<128x4xf32>
    %186 = arith.addf %184, %185 : vector<128x4xf32>
    %187 = arith.addf %176, %186 : vector<128x4xf32>
    %cst_51 = arith.constant dense<0.000000e+00> : vector<128xf32>
    %188 = vector.multi_reduction <add>, %187, %cst_51 [1] : vector<128x4xf32> to vector<128xf32>
    %189 = vector.shape_cast %188 : vector<128xf32> to vector<128x1xf32>
    %cst_52 = arith.constant 4.000000e+00 : f32
    %190 = vector.broadcast %cst_52 : f32 to vector<128x1xf32>
    %191 = arith.divf %189, %190 : vector<128x1xf32>
    %192 = vector.broadcast %191 : vector<128x1xf32> to vector<128x4xf32>
    %193 = arith.subf %187, %192 : vector<128x4xf32>
    %194 = vector.broadcast %191 : vector<128x1xf32> to vector<128x4xf32>
    %195 = arith.subf %187, %194 : vector<128x4xf32>
    %196 = arith.mulf %193, %195 : vector<128x4xf32>
    %cst_53 = arith.constant dense<0.000000e+00> : vector<128xf32>
    %197 = vector.multi_reduction <add>, %196, %cst_53 [1] : vector<128x4xf32> to vector<128xf32>
    %198 = vector.shape_cast %197 : vector<128xf32> to vector<128x1xf32>
    %cst_54 = arith.constant 4.000000e+00 : f32
    %199 = vector.broadcast %cst_54 : f32 to vector<128x1xf32>
    %200 = arith.divf %198, %199 : vector<128x1xf32>
    %201 = vector.broadcast %191 : vector<128x1xf32> to vector<128x4xf32>
    %202 = arith.subf %187, %201 : vector<128x4xf32>
    %cst_55 = arith.constant 9.99999974E-6 : f32
    %203 = vector.broadcast %cst_55 : f32 to vector<128x1xf32>
    %204 = arith.addf %200, %203 : vector<128x1xf32>
    %205 = math.rsqrt %204 : vector<128x1xf32>
    %206 = vector.broadcast %205 : vector<128x1xf32> to vector<128x4xf32>
    %207 = arith.mulf %202, %206 : vector<128x4xf32>
    %208 = vector.broadcast %4 : vector<1x4xf32> to vector<128x4xf32>
    %209 = arith.mulf %207, %208 : vector<128x4xf32>
    %210 = vector.broadcast %5 : vector<1x4xf32> to vector<128x4xf32>
    %211 = arith.addf %209, %210 : vector<128x4xf32>
    %cst_56 = arith.constant dense<0.000000e+00> : vector<128xf32>
    %212 = vector.multi_reduction <add>, %211, %cst_56 [1] : vector<128x4xf32> to vector<128xf32>
    %213 = vector.shape_cast %212 : vector<128xf32> to vector<128x1xf32>
    %cst_57 = arith.constant 4.000000e+00 : f32
    %214 = vector.broadcast %cst_57 : f32 to vector<128x1xf32>
    %215 = arith.divf %213, %214 : vector<128x1xf32>
    %216 = vector.broadcast %215 : vector<128x1xf32> to vector<128x4xf32>
    %217 = arith.subf %211, %216 : vector<128x4xf32>
    %218 = vector.broadcast %215 : vector<128x1xf32> to vector<128x4xf32>
    %219 = arith.subf %211, %218 : vector<128x4xf32>
    %220 = arith.mulf %217, %219 : vector<128x4xf32>
    %cst_58 = arith.constant dense<0.000000e+00> : vector<128xf32>
    %221 = vector.multi_reduction <add>, %220, %cst_58 [1] : vector<128x4xf32> to vector<128xf32>
    %222 = vector.shape_cast %221 : vector<128xf32> to vector<128x1xf32>
    %cst_59 = arith.constant 3.000000e+00 : f32
    %223 = vector.broadcast %cst_59 : f32 to vector<128x1xf32>
    %224 = arith.divf %222, %223 : vector<128x1xf32>
    %225 = vector.broadcast %215 : vector<128x1xf32> to vector<128x4xf32>
    %226 = arith.subf %211, %225 : vector<128x4xf32>
    %227 = vector.broadcast %6 : vector<1x4xf32> to vector<128x4xf32>
    %228 = arith.mulf %227, %226 : vector<128x4xf32>
    %229 = math.sqrt %224 : vector<128x1xf32>
    %cst_60 = arith.constant 9.99999997E-7 : f32
    %230 = vector.broadcast %cst_60 : f32 to vector<128x1xf32>
    %231 = arith.addf %229, %230 : vector<128x1xf32>
    %232 = vector.broadcast %231 : vector<128x1xf32> to vector<128x4xf32>
    %233 = arith.divf %228, %232 : vector<128x4xf32>
    %234 = vector.broadcast %7 : vector<1x4xf32> to vector<128x4xf32>
    %235 = arith.addf %233, %234 : vector<128x4xf32>
    %cst_61 = arith.constant dense<0.000000e+00> : vector<4x128xf32>
    %236 = tpu.matmul %13, %235, %cst_61 {dimension_numbers = #tpu.dot_dimension_numbers<[1], [1], [0], [0], [0, 0, 1, 0], [], []>} : vector<4x4xf32>, vector<128x4xf32>, vector<4x128xf32> -> vector<4x128xf32>
    %c0_62 = arith.constant 0 : index
    %c0_63 = arith.constant 0 : index
    %237 = vector.load %arg5[%c0_62, %c0_63] : memref<4x128xf32, #tpu.memory_space<vmem>>, vector<4x128xf32>
    tpu.vector_store %arg5[%c0_62, %c0_63], %236 {strides = array<i32>} : memref<4x128xf32, #tpu.memory_space<vmem>>, vector<4x128xf32>,
    return
  }
  func.func @transform_0(%arg0: i32) -> (i32, i32) {
    %c0_i32 = arith.constant 0 : i32
    %c0_i32_0 = arith.constant 0 : i32
    return %arg0, %c0_i32 : i32, i32
  }
  func.func @transform_1(%arg0: i32) -> (i32, i32) {
    %c0_i32 = arith.constant 0 : i32
    %c0_i32_0 = arith.constant 0 : i32
    return %arg0, %c0_i32 : i32, i32
  }
  func.func @transform_2(%arg0: i32) -> (i32, i32) {
    %c0_i32 = arith.constant 0 : i32
    %c0_i32_0 = arith.constant 0 : i32
    %c0_i32_1 = arith.constant 0 : i32
    return %c0_i32, %c0_i32_0 : i32, i32
  }
  func.func @transform_3(%arg0: i32) -> (i32, i32) {
    %c0_i32 = arith.constant 0 : i32
    %c0_i32_0 = arith.constant 0 : i32
    %c0_i32_1 = arith.constant 0 : i32
    return %c0_i32, %c0_i32_0 : i32, i32
  }
  func.func @transform_4(%arg0: i32) -> (i32, i32) {
    %c0_i32 = arith.constant 0 : i32
    %c0_i32_0 = arith.constant 0 : i32
    return %c0_i32, %arg0 : i32, i32
  }
}

</mosaic_0001>

<llo_original>
// kernel: encoder_forward.1
$region0: #{encoder_forward.1}
  #allocation0 [shape = 'u32[]', space=smem, size = 0x4, offset = 0x4, fixed_abs, tag = 'smem constant byte address 0x4 - core index']
  #allocation1 [shape = 'u32[144,128]{1,0:T(1,128)}', space=vmem, size = 0x12000, scoped, tag = 'internal scratch']
  %s0 = inlined_call_operand.vmem [shape: f32[256,4], index: 0, kind: input, shape index: {}]
  %s1 = inlined_call_operand.vmem [shape: f32[256,1], index: 1, kind: input, shape index: {}]
  %s2 = inlined_call_operand.vmem [shape: f32[17,4], index: 2, kind: input, shape index: {}]
  %s3 = inlined_call_operand.vmem [shape: bf16[9,2048], index: 3, kind: input, shape index: {}]
  %s4 = inlined_call_operand.hbm [shape: f32[4,256], index: 4, kind: output, shape index: {}]
  %s5 = sld [smem:[#allocation0]]
  $region49: #{encoder_forward.1} parent=0
    _
  %s7 = ssub.s32 1, %s5
  %s8 = scalar_select 0, %s7, %s5
  $region1: #{encoder_forward.1} parent=0
    #allocation2 [shape = 'u8[4096]{0}', space=vmem, size = 0x1000, scoped, tag = 'output window, operand 0']
    #allocation3 [shape = 's32[2]{0}', space=sflag, size = 0x8, scoped, tag = 'scoped memory for encoder_forward.1']
    %9 = vsyncpa [#allocation3], 0
    %s10 = scalar_lea.sflag [#allocation3], 1
    %11 = vsyncpa %s10, 0
    loop: start=0, step=1, limit=4
    $region2: #{encoder_forward.1} parent=1 // loop_pre_header
      _
    $region3: #{encoder_forward.1} parent=1 // loop_header
      %s13 = sphi 0, %s17
      %p14 = scmp.ge.s32.totalorder %s13, 4
      %s23 = sphi 0, %s25
      %s26 = sphi 0, %s23
      %s27 = sphi 0, %s26
      %s43 = sphi 0, %s27
      %s49 = sphi 0, %s51
      %s52 = sphi 0, %s49
      %s53 = sphi 0, %s52
      %s69 = sphi 0, %s53
      %s73 = sphi 0, %s73
      %s75 = sphi 0, %s73
      %s76 = sphi 0, %s75
      %s90 = sphi 0, %s76
      %s94 = sphi 0, %s94
      %s96 = sphi 0, %s94
      %s97 = sphi 0, %s96
      %s111 = sphi 0, %s97
      %s117 = sphi 0, %s119
      %s120 = sphi 0, %s117
      %s121 = sphi 0, %s120
      %s137 = sphi 0, %s121
    $region4: #{encoder_forward.1} parent=1 // loop_header_branch
      %16 = sbr.rel (%p14) target = $region8
    $region5: #{encoder_forward.1} parent=1 // loop_body
      %s18 = ssub.s32 %s13, 1
      %s19 = ssub.s32 %s13, 2
      %s20 = sadd.s32 %s13, 1
      %s21 = ssub.s32 %s13, %s20
      %p22 = scmp.eq.s32.totalorder %s21, 0
      %s24 = sadd.s32 %s23, 1
      %s25 = scalar_select %p22, %s23, %s24
      %p28 = pneg %p22
      %p29 = scmp.eq.s32.totalorder %s13, 1
      %p30 = por %p28, %p29
      %p31 = scmp.ne.s32.totalorder %s23, %s26
      %p32 = scmp.eq.s32.totalorder %s13, 0
      %p33 = por %p31, %p32
      %p34 = scmp.ne.s32.totalorder %s23, %s26
      %p35 = scmp.eq.s32.totalorder %s18, 1
      %p36 = por %p34, %p35
      %p37 = scmp.ne.s32.totalorder %s26, %s27
      %p38 = scmp.eq.s32.totalorder %s18, 0
      %p39 = por %p37, %p38
      %p40 = scmp.ne.s32.totalorder %s26, %s27
      %p41 = scmp.eq.s32.totalorder %s19, 1
      %p42 = por %p40, %p41
      %p44 = scmp.ne.s32.totalorder %s27, %s43
      %p45 = scmp.eq.s32.totalorder %s19, 0
      %p46 = por %p44, %p45
      %s47 = ssub.s32 %s13, %s20
      %p48 = scmp.eq.s32.totalorder %s47, 0
      %s50 = sadd.s32 %s49, 1
      %s51 = scalar_select %p48, %s49, %s50
      %p54 = pneg %p48
      %p55 = scmp.eq.s32.totalorder %s13, 1
      %p56 = por %p54, %p55
      %p57 = scmp.ne.s32.totalorder %s49, %s52
      %p58 = scmp.eq.s32.totalorder %s13, 0
      %p59 = por %p57, %p58
      %p60 = scmp.ne.s32.totalorder %s49, %s52
      %p61 = scmp.eq.s32.totalorder %s18, 1
      %p62 = por %p60, %p61
      %p63 = scmp.ne.s32.totalorder %s52, %s53
      %p64 = scmp.eq.s32.totalorder %s18, 0
      %p65 = por %p63, %p64
      %p66 = scmp.ne.s32.totalorder %s52, %s53
      %p67 = scmp.eq.s32.totalorder %s19, 1
      %p68 = por %p66, %p67
      %p70 = scmp.ne.s32.totalorder %s53, %s69
      %p71 = scmp.eq.s32.totalorder %s19, 0
      %p72 = por %p70, %p71
      %s74 = sadd.s32 %s73, 1
      %p77 = scmp.eq.s32.totalorder %s13, 1
      %p78 = scmp.ne.s32.totalorder %s73, %s75
      %p79 = scmp.eq.s32.totalorder %s13, 0
      %p80 = por %p78, %p79
      %p81 = scmp.ne.s32.totalorder %s73, %s75
      %p82 = scmp.eq.s32.totalorder %s18, 1
      %p83 = por %p81, %p82
      %p84 = scmp.ne.s32.totalorder %s75, %s76
      %p85 = scmp.eq.s32.totalorder %s18, 0
      %p86 = por %p84, %p85
      %p87 = scmp.ne.s32.totalorder %s75, %s76
      %p88 = scmp.eq.s32.totalorder %s19, 1
      %p89 = por %p87, %p88
      %p91 = scmp.ne.s32.totalorder %s76, %s90
      %p92 = scmp.eq.s32.totalorder %s19, 0
      %p93 = por %p91, %p92
      %s95 = sadd.s32 %s94, 1
      %p98 = scmp.eq.s32.totalorder %s13, 1
      %p99 = scmp.ne.s32.totalorder %s94, %s96
      %p100 = scmp.eq.s32.totalorder %s13, 0
      %p101 = por %p99, %p100
      %p102 = scmp.ne.s32.totalorder %s94, %s96
      %p103 = scmp.eq.s32.totalorder %s18, 1
      %p104 = por %p102, %p103
      %p105 = scmp.ne.s32.totalorder %s96, %s97
      %p106 = scmp.eq.s32.totalorder %s18, 0
      %p107 = por %p105, %p106
      %p108 = scmp.ne.s32.totalorder %s96, %s97
      %p109 = scmp.eq.s32.totalorder %s19, 1
      %p110 = por %p108, %p109
      %p112 = scmp.ne.s32.totalorder %s97, %s111
      %p113 = scmp.eq.s32.totalorder %s19, 0
      %p114 = por %p112, %p113
      %s115 = ssub.s32 %s13, %s20
      %p116 = scmp.eq.s32.totalorder %s115, 0
      %s118 = sadd.s32 %s117, 1
      %s119 = scalar_select %p116, %s117, %s118
      %p122 = pneg %p116
      %p123 = scmp.eq.s32.totalorder %s13, 1
      %p124 = por %p122, %p123
      %p125 = scmp.ne.s32.totalorder %s117, %s120
      %p126 = scmp.eq.s32.totalorder %s13, 0
      %p127 = por %p125, %p126
      %p128 = scmp.ne.s32.totalorder %s117, %s120
      %p129 = scmp.eq.s32.totalorder %s18, 1
      %p130 = por %p128, %p129
      %p131 = scmp.ne.s32.totalorder %s120, %s121
      %p132 = scmp.eq.s32.totalorder %s18, 0
      %p133 = por %p131, %p132
      %p134 = scmp.ne.s32.totalorder %s120, %s121
      %p135 = scmp.eq.s32.totalorder %s19, 1
      %p136 = por %p134, %p135
      %p138 = scmp.ne.s32.totalorder %s121, %s137
      %p139 = scmp.eq.s32.totalorder %s19, 0
      %p140 = por %p138, %p139
      %p141 = scmp.le.s32.totalorder 1, %s13
      %p142 = scmp.lt.s32.totalorder %s13, 3
      %p143 = pnand %p141, %p142
      %p144 = pneg %p143
      // Predicated region
      $region9: #{encoder_forward.1} parent=5 // pred_check
        _
      $region10: #{encoder_forward.1} parent=5 // pred_check_branch
        %146 = sbr.rel (%p143) target = $region12
      $region11: #{encoder_forward.1} parent=5 // pred_region
        %s147 = ssub.s32 %s13, 1
        // Predicated region
        $region13: #{encoder_forward.1} parent=11 // pred_check
          %p148 = pneg %p86
        $region14: #{encoder_forward.1} parent=11 // pred_check_branch
          %150 = sbr.rel (%p148) target = $region16
        $region15: #{encoder_forward.1} parent=11 // pred_region
          _
        $region16: #{encoder_forward.1} parent=11 // pred_fallthru
          _
        // Predicated region
        $region17: #{encoder_forward.1} parent=11 // pred_check
          %p151 = pneg %p107
        $region18: #{encoder_forward.1} parent=11 // pred_check_branch
          %153 = sbr.rel (%p151) target = $region20
        $region19: #{encoder_forward.1} parent=11 // pred_region
          _
        $region20: #{encoder_forward.1} parent=11 // pred_fallthru
          _
      $region12: #{encoder_forward.1} parent=5 // pred_fallthru
        _
      %p154 = scmp.lt.s32.totalorder %s13, 2
      // Predicated region
      $region21: #{encoder_forward.1} parent=5 // pred_check
        %p155 = pneg %p154
      $region22: #{encoder_forward.1} parent=5 // pred_check_branch
        %157 = sbr.rel (%p155) target = $region24
      $region23: #{encoder_forward.1} parent=5 // pred_region
        // Predicated region
        $region25: #{encoder_forward.1} parent=23 // pred_check
          %p158 = pneg %p33
        $region26: #{encoder_forward.1} parent=23 // pred_check_branch
          %160 = sbr.rel (%p158) target = $region28
        $region27: #{encoder_forward.1} parent=23 // pred_region
          %s161 = smul.u32 16, %s13
          %p162 = scmp.lt.s32.totalorder %s161, 31
          %s163 = scalar_select %p162, %s161, 31
          %s164 = smul.addr %s163, 8
          %s165 = scalar_lea.vmem %s0, %s164
          %s166 = smul.u32 16, %s13
        $region28: #{encoder_forward.1} parent=23 // pred_fallthru
          _
        // Predicated region
        $region29: #{encoder_forward.1} parent=23 // pred_check
          %p167 = pneg %p59
        $region30: #{encoder_forward.1} parent=23 // pred_check_branch
          %169 = sbr.rel (%p167) target = $region32
        $region31: #{encoder_forward.1} parent=23 // pred_region
          %s170 = smul.u32 16, %s13
          %p171 = scmp.lt.s32.totalorder %s170, 31
          %s172 = scalar_select %p171, %s170, 31
          %s173 = smul.addr %s172, 8
          %s174 = scalar_lea.vmem %s1, %s173
          %s175 = smul.u32 16, %s13
        $region32: #{encoder_forward.1} parent=23 // pred_fallthru
          _
      $region24: #{encoder_forward.1} parent=5 // pred_fallthru
        _
      %p176 = scmp.le.s32.totalorder 1, %s13
      %p177 = scmp.lt.s32.totalorder %s13, 3
      %p178 = pnand %p176, %p177
      %p179 = pneg %p178
      // Predicated region
      $region33: #{encoder_forward.1} parent=5 // pred_check
        _
      $region34: #{encoder_forward.1} parent=5 // pred_check_branch
        %181 = sbr.rel (%p178) target = $region36
      $region35: #{encoder_forward.1} parent=5 // pred_region
        %s182 = ssub.s32 %s13, 1
        %s183 = smul.u32 16, %s18
        %p184 = scmp.lt.s32.totalorder %s183, 31
        %s185 = scalar_select %p184, %s183, 31
        %s186 = smul.addr %s185, 8
        %s187 = scalar_lea.vmem %s0, %s186
        %p188 = pneg %p39
        %p189 = pneg %p36
        %s190 = smul.u32 16, %s18
        %p191 = scmp.lt.s32.totalorder %s190, 31
        %s192 = scalar_select %p191, %s190, 31
        %s193 = smul.addr %s192, 8
        %s194 = scalar_lea.vmem %s1, %s193
        %p195 = pneg %p65
        %p196 = pneg %p62
        %p197 = pneg %p86
        %p198 = pneg %p83
        %p199 = pneg %p107
        %p200 = pneg %p104
        %p201 = pneg %p133
        %p202 = pneg %p130
        %s203 = sand.u32 %s120, 1
        %s204 = scalar_lea.sflag [#allocation3], %s203
        %s205 = sand.u32 %s120, 1
        %s206 = smul.addr %s205, 4
        %s207 = scalar_lea.vmem [#allocation2], %s206
        %s208 = smul.u32 16, %s18
        %p209 = scmp.lt.s32.totalorder %s208, 31
        %s210 = scalar_select %p209, %s208, 31
        %s211 = smul.addr %s210, 8
        %s212 = scalar_lea.vmem %s0, %s211
        %s213 = smul.u32 16, %s18
        %s214 = smul.u32 16, %s18
        %p215 = scmp.lt.s32.totalorder %s214, 31
        %s216 = scalar_select %p215, %s214, 31
        %s217 = smul.addr %s216, 8
        %s218 = scalar_lea.vmem %s1, %s217
        %s219 = smul.u32 16, %s18
        %v221 = vld [vmem:[%s2] sm:$0x1]
        %v222 = vld [vmem:[%s2 + $0x1] sm:$0x1]
        %v223 = vld [vmem:[%s2 + $0x2] sm:$0x1]
        %v224 = vld [vmem:[%s2 + $0x3] sm:$0x1]
        %v225 = vld [vmem:[%s2 + $0x4] sm:$0x1]
        %v226 = vld [vmem:[%s2 + $0x5] sm:$0x1]
        %v227 = vld [vmem:[%s2 + $0x6] sm:$0x1]
        %v228 = vld [vmem:[%s2 + $0x7] sm:$0x1]
        %v229 = vld [vmem:[%s2 + $0x8] sm:$0x1]
        %v230 = vld [vmem:[%s2 + $0x9] sm:$0x1]
        %v231 = vld [vmem:[%s2 + $0xa] sm:$0x1]
        %v232 = vld [vmem:[%s2 + $0xb] sm:$0x1]
        %v233 = vld [vmem:[%s2 + $0xc] sm:$0x1]
        %v234 = vld [vmem:[%s2 + $0xd] sm:$0xf]
        %v235 = vld [vmem:[%s3] sm:$0x33]
        %v236 = vld [vmem:[%s3 + $0x8] sm:$0x33]
        %v237 = vld [vmem:[%s3 + $0x10] sm:$0x33]
        %v238 = vld [vmem:[%s3 + $0x18] sm:$0x33]
        %v239 = vld [vmem:[%s3 + $0x20] sm:$0x33]
        %v240 = vld [vmem:[%s3 + $0x28] sm:$0x33]
        %v241 = vld [vmem:[%s3 + $0x30] sm:$0x33]
        %v242 = vld [vmem:[%s3 + $0x38] sm:$0x33]
        %v243 = vld [vmem:[%s3] sm:$0xcc]
        %v244 = vld [vmem:[%s3 + $0x8] sm:$0xcc]
        %v245 = vld [vmem:[%s3 + $0x10] sm:$0xcc]
        %v246 = vld [vmem:[%s3 + $0x18] sm:$0xcc]
        %v247 = vld [vmem:[%s3 + $0x20] sm:$0xcc]
        %v248 = vld [vmem:[%s3 + $0x28] sm:$0xcc]
        %v249 = vld [vmem:[%s3 + $0x30] sm:$0xcc]
        %v250 = vld [vmem:[%s3 + $0x38] sm:$0xcc]
        %v251 = vld [vmem:[%s3 + $0x40] sm:$0x11]
        %v252 = vld [vmem:[%s3 + $0x48] sm:$0x11]
        %v253 = vld [vmem:[%s3 + $0x50] sm:$0x11]
        %v254 = vld [vmem:[%s3 + $0x58] sm:$0x11]
        %v255 = vld [vmem:[%s3 + $0x60] sm:$0x11]
        %v256 = vld [vmem:[%s3 + $0x68] sm:$0x11]
        %v257 = vld [vmem:[%s3 + $0x70] sm:$0x11]
        %v258 = vld [vmem:[%s3 + $0x78] sm:$0x11]
        %v259 = vunpack.c.l.bf16 %v251
        %v260 = vunpack.c.h.bf16 %v251
        %v261 = vunpack.c.l.bf16 %v252
        %v262 = vunpack.c.h.bf16 %v252
        %v263 = vunpack.c.l.bf16 %v253
        %v264 = vunpack.c.h.bf16 %v253
        %v265 = vunpack.c.l.bf16 %v254
        %v266 = vunpack.c.h.bf16 %v254
        %v267 = vunpack.c.l.bf16 %v255
        %v268 = vunpack.c.h.bf16 %v255
        %v269 = vunpack.c.l.bf16 %v256
        %v270 = vunpack.c.h.bf16 %v256
        %v271 = vunpack.c.l.bf16 %v257
        %v272 = vunpack.c.h.bf16 %v257
        %v273 = vunpack.c.l.bf16 %v258
        %v274 = vunpack.c.h.bf16 %v258
        %v275 = vld [vmem:[%s218] sm:$0xff]
        %v276 = vld [vmem:[%s218 + $0x8] sm:$0xff]
        %v277 = vld [vmem:[%s218 + $0x10] sm:$0xff]
        %v278 = vld [vmem:[%s218 + $0x18] sm:$0xff]
        %v279 = vld [vmem:[%s218 + $0x20] sm:$0xff]
        %v280 = vld [vmem:[%s218 + $0x28] sm:$0xff]
        %v281 = vld [vmem:[%s218 + $0x30] sm:$0xff]
        %v282 = vld [vmem:[%s218 + $0x38] sm:$0xff]
        %v283 = vld [vmem:[%s218 + $0x40] sm:$0xff]
        %v284 = vld [vmem:[%s218 + $0x48] sm:$0xff]
        %v285 = vld [vmem:[%s218 + $0x50] sm:$0xff]
        %v286 = vld [vmem:[%s218 + $0x58] sm:$0xff]
        %v287 = vld [vmem:[%s218 + $0x60] sm:$0xff]
        %v288 = vld [vmem:[%s218 + $0x68] sm:$0xff]
        %v289 = vld [vmem:[%s218 + $0x70] sm:$0xff]
        %v290 = vld [vmem:[%s218 + $0x78] sm:$0xff]
        %292 = vset.pattern.permute.xlu0 0
        %293 = vperm.xlu0 %292, %v275
        %v294 = vpop.permute.xlu0 %293
        %297 = vset.pattern.permute.xlu0 0
        %298 = vperm.xlu0 %297, %v276
        %v299 = vpop.permute.xlu0 %298
        %302 = vset.pattern.permute.xlu0 0
        %303 = vperm.xlu0 %302, %v277
        %v304 = vpop.permute.xlu0 %303
        %307 = vset.pattern.permute.xlu0 0
        %308 = vperm.xlu0 %307, %v278
        %v309 = vpop.permute.xlu0 %308
        %312 = vset.pattern.permute.xlu0 0
        %313 = vperm.xlu0 %312, %v279
        %v314 = vpop.permute.xlu0 %313
        %317 = vset.pattern.permute.xlu0 0
        %318 = vperm.xlu0 %317, %v280
        %v319 = vpop.permute.xlu0 %318
        %322 = vset.pattern.permute.xlu0 0
        %323 = vperm.xlu0 %322, %v281
        %v324 = vpop.permute.xlu0 %323
        %327 = vset.pattern.permute.xlu0 0
        %328 = vperm.xlu0 %327, %v282
        %v329 = vpop.permute.xlu0 %328
        %332 = vset.pattern.permute.xlu0 0
        %333 = vperm.xlu0 %332, %v283
        %v334 = vpop.permute.xlu0 %333
        %337 = vset.pattern.permute.xlu0 0
        %338 = vperm.xlu0 %337, %v284
        %v339 = vpop.permute.xlu0 %338
        %342 = vset.pattern.permute.xlu0 0
        %343 = vperm.xlu0 %342, %v285
        %v344 = vpop.permute.xlu0 %343
        %347 = vset.pattern.permute.xlu0 0
        %348 = vperm.xlu0 %347, %v286
        %v349 = vpop.permute.xlu0 %348
        %352 = vset.pattern.permute.xlu0 0
        %353 = vperm.xlu0 %352, %v287
        %v354 = vpop.permute.xlu0 %353
        %357 = vset.pattern.permute.xlu0 0
        %358 = vperm.xlu0 %357, %v288
        %v359 = vpop.permute.xlu0 %358
        %362 = vset.pattern.permute.xlu0 0
        %363 = vperm.xlu0 %362, %v289
        %v364 = vpop.permute.xlu0 %363
        %367 = vset.pattern.permute.xlu0 0
        %368 = vperm.xlu0 %367, %v290
        %v369 = vpop.permute.xlu0 %368
        %v371 = vlaneseq
        %v372 = vshrl.u32 %v371, 7
        %v373 = vsub.s32 0, %v372
        %v374 = vrot.slane %v229, %v373
        %v375 = vmul.f32 %v294, %v374
        %v376 = vmul.f32 %v299, %v374
        %v377 = vmul.f32 %v304, %v374
        %v378 = vmul.f32 %v309, %v374
        %v379 = vmul.f32 %v314, %v374
        %v380 = vmul.f32 %v319, %v374
        %v381 = vmul.f32 %v324, %v374
        %v382 = vmul.f32 %v329, %v374
        %v383 = vmul.f32 %v334, %v374
        %v384 = vmul.f32 %v339, %v374
        %v385 = vmul.f32 %v344, %v374
        %v386 = vmul.f32 %v349, %v374
        %v387 = vmul.f32 %v354, %v374
        %v388 = vmul.f32 %v359, %v374
        %v389 = vmul.f32 %v364, %v374
        %v390 = vmul.f32 %v369, %v374
        %v391 = vlaneseq
        %v392 = vand.u32 %v391, 127
        %vm393 = vcmp.lt.s32.totalorder %v392, 0
        %v394 = vsub.s32 0, %v392
        %v395 = vsel %vm393, %v394, %v392
        %v396 = vshrl.u32 %v395, 1
        %v397 = vand.u32 %v395, 1
        %v398 = vsub.s32 0, %v397
        %v399 = vsel %vm393, %v398, %v397
        %vm400 = vcmp.ne.s32.totalorder %v399, 0
        %vm401 = vcmp.lt.s32.totalorder %v399, 0
        %vm402 = vmand %vm401, %vm400
        %v403 = vadd.s32 %v399, 2
        %v404 = vsel %vm402, %v403, %v399
        %vm405 = vcmp.eq.s32.totalorder %v404, 0
        %v406 = vand.u32 2147483647, %v375
        %vm407 = vcmp.le.f32.partialorder %v406, 0.7853982
        %vm408 = vcmp.lt.s32.totalorder %v375, 0
        %v409 = vand.u32 %v375, 2139095040
        %v410 = vshrl.u32 %v409, 23
        %v411 = vsub.s32 %v410, 127
        %v412 = vand.u32 2147483647, %v375
        %v413 = vand.u32 %v412, 8388607
        %v414 = vor.u32 %v413, 8388608
        %v415 = vsub.s32 0, %v414
        %v416 = vadd.s32 %v411, 1
        %vm417 = vcmp.gt.s32.totalorder %v416, 0
        %v418 = vsel %vm417, %v416, 0
        %v419 = vshrl.u32 %v418, 5
        %v420 = vand.u32 %v418, 31
        %v421 = vsub.s32 32, %v420
        %v422 = vshrl.u32 683565275, %v421
        %v423 = vshll.u32 683565275, %v420
        %v424 = vshrl.u32 2475754826, %v421
        %v425 = vor.u32 %v423, %v424
        %v426 = vshll.u32 2475754826, %v420
        %v427 = vshrl.u32 2131351028, %v421
        %v428 = vor.u32 %v426, %v427
        %v429 = vshll.u32 2131351028, %v420
        %v430 = vshrl.u32 2102212464, %v421
        %v431 = vor.u32 %v429, %v430
        %v432 = vshll.u32 2102212464, %v420
        %v433 = vshrl.u32 920167782, %v421
        %v434 = vor.u32 %v432, %v433
        %v435 = vshll.u32 920167782, %v420
        %v436 = vshrl.u32 1326507024, %v421
        %v437 = vor.u32 %v435, %v436
        %vm438 = vcmp.lt.s32.totalorder %v419, 1
        %vm439 = vcmp.lt.s32.totalorder %v419, 2
        %vm440 = vcmp.lt.s32.totalorder %v419, 3
        %vm441 = vcmp.lt.s32.totalorder %v419, 4
        %v442 = vsel %vm438, %v422, %v425
        %v443 = vsel %vm441, %v431, 2102212464
        %v444 = vsel %vm440, %v428, %v443
        %v445 = vsel %vm439, %v442, %v444
        %v446 = vsel %vm438, %v425, %v428
        %v447 = vsel %vm441, %v434, 920167782
        %v448 = vsel %vm440, %v431, %v447
        %v449 = vsel %vm439, %v446, %v448
        %v450 = vsel %vm438, %v428, %v431
        %v451 = vsel %vm441, %v437, 1326507024
        %v452 = vsel %vm440, %v434, %v451
        %v453 = vsel %vm439, %v450, %v452
        %v454 = vshll.u32 %v414, 8
        %v455 = vmul.u32.u64.compose %v454, %v453
        %v456 = vextract.low.u32 %v455
        %v457 = vextract.high.u32 %v455
        %v458 = vmul.u32.u64.compose %v454, %v449
        %v459 = vextract.low.u32 %v458
        %v460 = vextract.high.u32 %v458
        %v461 = vmul.u32 %v454, %v445
        %v462 = vadd.s32 %v457, %v459
        %vm463 = vc.u32 %v457, %v459
        %v464 = vadd.s32 %v460, 1
        %v465 = vsel %vm463, %v464, %v460
        %v466 = vadd.s32 %v461, %v465
        %v467 = vadd.s32 %v466, 536870912
        %v468 = vshrl.u32 %v467, 30
        %v469 = vshll.u32 %v468, 30
        %v470 = vsub.s32 %v466, %v469
        %vm471 = vcmp.lt.s32.totalorder %v470, 0
        %v472 = vsub.s32 0, %v470
        %v473 = vsel %vm471, %v472, %v470
        %v474 = vclz %v473
        %v475 = vsub.s32 %v474, 2
        %vm476 = vcmp.gt.s32.totalorder 0, %v475
        %v477 = vsel %vm476, 0, %v475
        %v478 = vsub.s32 32, %v477
        %v479 = vshll.u32 %v470, %v477
        %v480 = vshrl.u32 %v462, %v478
        %v481 = vor.u32 %v479, %v480
        %v482 = vsub.s32 4294967266, %v477
        %v483 = vadd.s32 %v482, 127
        %v484 = vshll.u32 %v483, 23
        %v485 = vor.u32 4788187, %v484
        %v486 = vand.u32 2147483647, %v485
        %v488 = vcvt.s32.f32 %v481
        %v489 = vmul.f32 %v488, %v486
        %v490 = vxor.u32 %v489, 2147483648
        %v491 = vsel %vm408, %v490, %v489
        %v492 = vsub.s32 4, %v468
        %v493 = vsel %vm408, %v492, %v468
        %v494 = vsel %vm407, %v375, %v491
        %v495 = vsel %vm407, 0, %v493
        %v496 = vcosq.f32.pop %v494
        %v497 = vsinq.f32.pop %v494
        %vm498 = vweird.f32 %v375
        %v499 = vadd.s32 %v495, 3
        %v500 = vand.u32 %v499, 3
        %vm501 = vcmp.lt.s32.totalorder %v500, 2
        %vm502 = vcmp.eq.s32.totalorder %v500, 0
        %v503 = vxor.u32 %v497, 2147483648
        %v504 = vsel %vm502, %v496, %v503
        %vm505 = vcmp.eq.s32.totalorder %v500, 2
        %v506 = vxor.u32 %v496, 2147483648
        %v507 = vsel %vm505, %v506, %v497
        %v508 = vsel %vm501, %v504, %v507
        %v509 = vsel %vm498, nan, %v508
        %v510 = vand.u32 2147483647, %v376
        %vm511 = vcmp.le.f32.partialorder %v510, 0.7853982
        %vm512 = vcmp.lt.s32.totalorder %v376, 0
        %v513 = vand.u32 %v376, 2139095040
        %v514 = vshrl.u32 %v513, 23
        %v515 = vsub.s32 %v514, 127
        %v516 = vand.u32 2147483647, %v376
        %v517 = vand.u32 %v516, 8388607
        %v518 = vor.u32 %v517, 8388608
        %v519 = vsub.s32 0, %v518
        %v520 = vadd.s32 %v515, 1
        %vm521 = vcmp.gt.s32.totalorder %v520, 0
        %v522 = vsel %vm521, %v520, 0
        %v523 = vshrl.u32 %v522, 5
        %v524 = vand.u32 %v522, 31
        %v525 = vsub.s32 32, %v524
        %v526 = vshrl.u32 683565275, %v525
        %v527 = vshll.u32 683565275, %v524
        %v528 = vshrl.u32 2475754826, %v525
        %v529 = vor.u32 %v527, %v528
        %v530 = vshll.u32 2475754826, %v524
        %v531 = vshrl.u32 2131351028, %v525
        %v532 = vor.u32 %v530, %v531
        %v533 = vshll.u32 2131351028, %v524
        %v534 = vshrl.u32 2102212464, %v525
        %v535 = vor.u32 %v533, %v534
        %v536 = vshll.u32 2102212464, %v524
        %v537 = vshrl.u32 920167782, %v525
        %v538 = vor.u32 %v536, %v537
        %v539 = vshll.u32 920167782, %v524
        %v540 = vshrl.u32 1326507024, %v525
        %v541 = vor.u32 %v539, %v540
        %vm542 = vcmp.lt.s32.totalorder %v523, 1
        %vm543 = vcmp.lt.s32.totalorder %v523, 2
        %vm544 = vcmp.lt.s32.totalorder %v523, 3
        %vm545 = vcmp.lt.s32.totalorder %v523, 4
        %v546 = vsel %vm542, %v526, %v529
        %v547 = vsel %vm545, %v535, 2102212464
        %v548 = vsel %vm544, %v532, %v547
        %v549 = vsel %vm543, %v546, %v548
        %v550 = vsel %vm542, %v529, %v532
        %v551 = vsel %vm545, %v538, 920167782
        %v552 = vsel %vm544, %v535, %v551
        %v553 = vsel %vm543, %v550, %v552
        %v554 = vsel %vm542, %v532, %v535
        %v555 = vsel %vm545, %v541, 1326507024
        %v556 = vsel %vm544, %v538, %v555
        %v557 = vsel %vm543, %v554, %v556
        %v558 = vshll.u32 %v518, 8
        %v559 = vmul.u32.u64.compose %v558, %v557
        %v560 = vextract.low.u32 %v559
        %v561 = vextract.high.u32 %v559
        %v562 = vmul.u32.u64.compose %v558, %v553
        %v563 = vextract.low.u32 %v562
        %v564 = vextract.high.u32 %v562
        %v565 = vmul.u32 %v558, %v549
        %v566 = vadd.s32 %v561, %v563
        %vm567 = vc.u32 %v561, %v563
        %v568 = vadd.s32 %v564, 1
        %v569 = vsel %vm567, %v568, %v564
        %v570 = vadd.s32 %v565, %v569
        %v571 = vadd.s32 %v570, 536870912
        %v572 = vshrl.u32 %v571, 30
        %v573 = vshll.u32 %v572, 30
        %v574 = vsub.s32 %v570, %v573
        %vm575 = vcmp.lt.s32.totalorder %v574, 0
        %v576 = vsub.s32 0, %v574
        %v577 = vsel %vm575, %v576, %v574
        %v578 = vclz %v577
        %v579 = vsub.s32 %v578, 2
        %vm580 = vcmp.gt.s32.totalorder 0, %v579
        %v581 = vsel %vm580, 0, %v579
        %v582 = vsub.s32 32, %v581
        %v583 = vshll.u32 %v574, %v581
        %v584 = vshrl.u32 %v566, %v582
        %v585 = vor.u32 %v583, %v584
        %v586 = vsub.s32 4294967266, %v581
        %v587 = vadd.s32 %v586, 127
        %v588 = vshll.u32 %v587, 23
        %v589 = vor.u32 4788187, %v588
        %v590 = vand.u32 2147483647, %v589
        %v592 = vcvt.s32.f32 %v585
        %v593 = vmul.f32 %v592, %v590
        %v594 = vxor.u32 %v593, 2147483648
        %v595 = vsel %vm512, %v594, %v593
        %v596 = vsub.s32 4, %v572
        %v597 = vsel %vm512, %v596, %v572
        %v598 = vsel %vm511, %v376, %v595
        %v599 = vsel %vm511, 0, %v597
        %v600 = vcosq.f32.pop %v598
        %v601 = vsinq.f32.pop %v598
        %vm602 = vweird.f32 %v376
        %v603 = vadd.s32 %v599, 3
        %v604 = vand.u32 %v603, 3
        %vm605 = vcmp.lt.s32.totalorder %v604, 2
        %vm606 = vcmp.eq.s32.totalorder %v604, 0
        %v607 = vxor.u32 %v601, 2147483648
        %v608 = vsel %vm606, %v600, %v607
        %vm609 = vcmp.eq.s32.totalorder %v604, 2
        %v610 = vxor.u32 %v600, 2147483648
        %v611 = vsel %vm609, %v610, %v601
        %v612 = vsel %vm605, %v608, %v611
        %v613 = vsel %vm602, nan, %v612
        %v614 = vand.u32 2147483647, %v377
        %vm615 = vcmp.le.f32.partialorder %v614, 0.7853982
        %vm616 = vcmp.lt.s32.totalorder %v377, 0
        %v617 = vand.u32 %v377, 2139095040
        %v618 = vshrl.u32 %v617, 23
        %v619 = vsub.s32 %v618, 127
        %v620 = vand.u32 2147483647, %v377
        %v621 = vand.u32 %v620, 8388607
        %v622 = vor.u32 %v621, 8388608
        %v623 = vsub.s32 0, %v622
        %v624 = vadd.s32 %v619, 1
        %vm625 = vcmp.gt.s32.totalorder %v624, 0
        %v626 = vsel %vm625, %v624, 0
        %v627 = vshrl.u32 %v626, 5
        %v628 = vand.u32 %v626, 31
        %v629 = vsub.s32 32, %v628
        %v630 = vshrl.u32 683565275, %v629
        %v631 = vshll.u32 683565275, %v628
        %v632 = vshrl.u32 2475754826, %v629
        %v633 = vor.u32 %v631, %v632
        %v634 = vshll.u32 2475754826, %v628
        %v635 = vshrl.u32 2131351028, %v629
        %v636 = vor.u32 %v634, %v635
        %v637 = vshll.u32 2131351028, %v628
        %v638 = vshrl.u32 2102212464, %v629
        %v639 = vor.u32 %v637, %v638
        %v640 = vshll.u32 2102212464, %v628
        %v641 = vshrl.u32 920167782, %v629
        %v642 = vor.u32 %v640, %v641
        %v643 = vshll.u32 920167782, %v628
        %v644 = vshrl.u32 1326507024, %v629
        %v645 = vor.u32 %v643, %v644
        %vm646 = vcmp.lt.s32.totalorder %v627, 1
        %vm647 = vcmp.lt.s32.totalorder %v627, 2
        %vm648 = vcmp.lt.s32.totalorder %v627, 3
        %vm649 = vcmp.lt.s32.totalorder %v627, 4
        %v650 = vsel %vm646, %v630, %v633
        %v651 = vsel %vm649, %v639, 2102212464
        %v652 = vsel %vm648, %v636, %v651
        %v653 = vsel %vm647, %v650, %v652
        %v654 = vsel %vm646, %v633, %v636
        %v655 = vsel %vm649, %v642, 920167782
        %v656 = vsel %vm648, %v639, %v655
        %v657 = vsel %vm647, %v654, %v656
        %v658 = vsel %vm646, %v636, %v639
        %v659 = vsel %vm649, %v645, 1326507024
        %v660 = vsel %vm648, %v642, %v659
        %v661 = vsel %vm647, %v658, %v660
        %v662 = vshll.u32 %v622, 8
        %v663 = vmul.u32.u64.compose %v662, %v661
        %v664 = vextract.low.u32 %v663
        %v665 = vextract.high.u32 %v663
        %v666 = vmul.u32.u64.compose %v662, %v657
        %v667 = vextract.low.u32 %v666
        %v668 = vextract.high.u32 %v666
        %v669 = vmul.u32 %v662, %v653
        %v670 = vadd.s32 %v665, %v667
        %vm671 = vc.u32 %v665, %v667
        %v672 = vadd.s32 %v668, 1
        %v673 = vsel %vm671, %v672, %v668
        %v674 = vadd.s32 %v669, %v673
        %v675 = vadd.s32 %v674, 536870912
        %v676 = vshrl.u32 %v675, 30
        %v677 = vshll.u32 %v676, 30
        %v678 = vsub.s32 %v674, %v677
        %vm679 = vcmp.lt.s32.totalorder %v678, 0
        %v680 = vsub.s32 0, %v678
        %v681 = vsel %vm679, %v680, %v678
        %v682 = vclz %v681
        %v683 = vsub.s32 %v682, 2
        %vm684 = vcmp.gt.s32.totalorder 0, %v683
        %v685 = vsel %vm684, 0, %v683
        %v686 = vsub.s32 32, %v685
        %v687 = vshll.u32 %v678, %v685
        %v688 = vshrl.u32 %v670, %v686
        %v689 = vor.u32 %v687, %v688
        %v690 = vsub.s32 4294967266, %v685
        %v691 = vadd.s32 %v690, 127
        %v692 = vshll.u32 %v691, 23
        %v693 = vor.u32 4788187, %v692
        %v694 = vand.u32 2147483647, %v693
        %v696 = vcvt.s32.f32 %v689
        %v697 = vmul.f32 %v696, %v694
        %v698 = vxor.u32 %v697, 2147483648
        %v699 = vsel %vm616, %v698, %v697
        %v700 = vsub.s32 4, %v676
        %v701 = vsel %vm616, %v700, %v676
        %v702 = vsel %vm615, %v377, %v699
        %v703 = vsel %vm615, 0, %v701
        %v704 = vcosq.f32.pop %v702
        %v705 = vsinq.f32.pop %v702
        %vm706 = vweird.f32 %v377
        %v707 = vadd.s32 %v703, 3
        %v708 = vand.u32 %v707, 3
        %vm709 = vcmp.lt.s32.totalorder %v708, 2
        %vm710 = vcmp.eq.s32.totalorder %v708, 0
        %v711 = vxor.u32 %v705, 2147483648
        %v712 = vsel %vm710, %v704, %v711
        %vm713 = vcmp.eq.s32.totalorder %v708, 2
        %v714 = vxor.u32 %v704, 2147483648
        %v715 = vsel %vm713, %v714, %v705
        %v716 = vsel %vm709, %v712, %v715
        %v717 = vsel %vm706, nan, %v716
        %v718 = vand.u32 2147483647, %v378
        %vm719 = vcmp.le.f32.partialorder %v718, 0.7853982
        %vm720 = vcmp.lt.s32.totalorder %v378, 0
        %v721 = vand.u32 %v378, 2139095040
        %v722 = vshrl.u32 %v721, 23
        %v723 = vsub.s32 %v722, 127
        %v724 = vand.u32 2147483647, %v378
        %v725 = vand.u32 %v724, 8388607
        %v726 = vor.u32 %v725, 8388608
        %v727 = vsub.s32 0, %v726
        %v728 = vadd.s32 %v723, 1
        %vm729 = vcmp.gt.s32.totalorder %v728, 0
        %v730 = vsel %vm729, %v728, 0
        %v731 = vshrl.u32 %v730, 5
        %v732 = vand.u32 %v730, 31
        %v733 = vsub.s32 32, %v732
        %v734 = vshrl.u32 683565275, %v733
        %v735 = vshll.u32 683565275, %v732
        %v736 = vshrl.u32 2475754826, %v733
        %v737 = vor.u32 %v735, %v736
        %v738 = vshll.u32 2475754826, %v732
        %v739 = vshrl.u32 2131351028, %v733
        %v740 = vor.u32 %v738, %v739
        %v741 = vshll.u32 2131351028, %v732
        %v742 = vshrl.u32 2102212464, %v733
        %v743 = vor.u32 %v741, %v742
        %v744 = vshll.u32 2102212464, %v732
        %v745 = vshrl.u32 920167782, %v733
        %v746 = vor.u32 %v744, %v745
        %v747 = vshll.u32 920167782, %v732
        %v748 = vshrl.u32 1326507024, %v733
        %v749 = vor.u32 %v747, %v748
        %vm750 = vcmp.lt.s32.totalorder %v731, 1
        %vm751 = vcmp.lt.s32.totalorder %v731, 2
        %vm752 = vcmp.lt.s32.totalorder %v731, 3
        %vm753 = vcmp.lt.s32.totalorder %v731, 4
        %v754 = vsel %vm750, %v734, %v737
        %v755 = vsel %vm753, %v743, 2102212464
        %v756 = vsel %vm752, %v740, %v755
        %v757 = vsel %vm751, %v754, %v756
        %v758 = vsel %vm750, %v737, %v740
        %v759 = vsel %vm753, %v746, 920167782
        %v760 = vsel %vm752, %v743, %v759
        %v761 = vsel %vm751, %v758, %v760
        %v762 = vsel %vm750, %v740, %v743
        %v763 = vsel %vm753, %v749, 1326507024
        %v764 = vsel %vm752, %v746, %v763
        %v765 = vsel %vm751, %v762, %v764
        %v766 = vshll.u32 %v726, 8
        %v767 = vmul.u32.u64.compose %v766, %v765
        %v768 = vextract.low.u32 %v767
        %v769 = vextract.high.u32 %v767
        %v770 = vmul.u32.u64.compose %v766, %v761
        %v771 = vextract.low.u32 %v770
        %v772 = vextract.high.u32 %v770
        %v773 = vmul.u32 %v766, %v757
        %v774 = vadd.s32 %v769, %v771
        %vm775 = vc.u32 %v769, %v771
        %v776 = vadd.s32 %v772, 1
        %v777 = vsel %vm775, %v776, %v772
        %v778 = vadd.s32 %v773, %v777
        %v779 = vadd.s32 %v778, 536870912
        %v780 = vshrl.u32 %v779, 30
        %v781 = vshll.u32 %v780, 30
        %v782 = vsub.s32 %v778, %v781
        %vm783 = vcmp.lt.s32.totalorder %v782, 0
        %v784 = vsub.s32 0, %v782
        %v785 = vsel %vm783, %v784, %v782
        %v786 = vclz %v785
        %v787 = vsub.s32 %v786, 2
        %vm788 = vcmp.gt.s32.totalorder 0, %v787
        %v789 = vsel %vm788, 0, %v787
        %v790 = vsub.s32 32, %v789
        %v791 = vshll.u32 %v782, %v789
        %v792 = vshrl.u32 %v774, %v790
        %v793 = vor.u32 %v791, %v792
        %v794 = vsub.s32 4294967266, %v789
        %v795 = vadd.s32 %v794, 127
        %v796 = vshll.u32 %v795, 23
        %v797 = vor.u32 4788187, %v796
        %v798 = vand.u32 2147483647, %v797
        %v800 = vcvt.s32.f32 %v793
        %v801 = vmul.f32 %v800, %v798
        %v802 = vxor.u32 %v801, 2147483648
        %v803 = vsel %vm720, %v802, %v801
        %v804 = vsub.s32 4, %v780
        %v805 = vsel %vm720, %v804, %v780
        %v806 = vsel %vm719, %v378, %v803
        %v807 = vsel %vm719, 0, %v805
        %v808 = vcosq.f32.pop %v806
        %v809 = vsinq.f32.pop %v806
        %vm810 = vweird.f32 %v378
        %v811 = vadd.s32 %v807, 3
        %v812 = vand.u32 %v811, 3
        %vm813 = vcmp.lt.s32.totalorder %v812, 2
        %vm814 = vcmp.eq.s32.totalorder %v812, 0
        %v815 = vxor.u32 %v809, 2147483648
        %v816 = vsel %vm814, %v808, %v815
        %vm817 = vcmp.eq.s32.totalorder %v812, 2
        %v818 = vxor.u32 %v808, 2147483648
        %v819 = vsel %vm817, %v818, %v809
        %v820 = vsel %vm813, %v816, %v819
        %v821 = vsel %vm810, nan, %v820
        %v822 = vand.u32 2147483647, %v379
        %vm823 = vcmp.le.f32.partialorder %v822, 0.7853982
        %vm824 = vcmp.lt.s32.totalorder %v379, 0
        %v825 = vand.u32 %v379, 2139095040
        %v826 = vshrl.u32 %v825, 23
        %v827 = vsub.s32 %v826, 127
        %v828 = vand.u32 2147483647, %v379
        %v829 = vand.u32 %v828, 8388607
        %v830 = vor.u32 %v829, 8388608
        %v831 = vsub.s32 0, %v830
        %v832 = vadd.s32 %v827, 1
        %vm833 = vcmp.gt.s32.totalorder %v832, 0
        %v834 = vsel %vm833, %v832, 0
        %v835 = vshrl.u32 %v834, 5
        %v836 = vand.u32 %v834, 31
        %v837 = vsub.s32 32, %v836
        %v838 = vshrl.u32 683565275, %v837
        %v839 = vshll.u32 683565275, %v836
        %v840 = vshrl.u32 2475754826, %v837
        %v841 = vor.u32 %v839, %v840
        %v842 = vshll.u32 2475754826, %v836
        %v843 = vshrl.u32 2131351028, %v837
        %v844 = vor.u32 %v842, %v843
        %v845 = vshll.u32 2131351028, %v836
        %v846 = vshrl.u32 2102212464, %v837
        %v847 = vor.u32 %v845, %v846
        %v848 = vshll.u32 2102212464, %v836
        %v849 = vshrl.u32 920167782, %v837
        %v850 = vor.u32 %v848, %v849
        %v851 = vshll.u32 920167782, %v836
        %v852 = vshrl.u32 1326507024, %v837
        %v853 = vor.u32 %v851, %v852
        %vm854 = vcmp.lt.s32.totalorder %v835, 1
        %vm855 = vcmp.lt.s32.totalorder %v835, 2
        %vm856 = vcmp.lt.s32.totalorder %v835, 3
        %vm857 = vcmp.lt.s32.totalorder %v835, 4
        %v858 = vsel %vm854, %v838, %v841
        %v859 = vsel %vm857, %v847, 2102212464
        %v860 = vsel %vm856, %v844, %v859
        %v861 = vsel %vm855, %v858, %v860
        %v862 = vsel %vm854, %v841, %v844
        %v863 = vsel %vm857, %v850, 920167782
        %v864 = vsel %vm856, %v847, %v863
        %v865 = vsel %vm855, %v862, %v864
        %v866 = vsel %vm854, %v844, %v847
        %v867 = vsel %vm857, %v853, 1326507024
        %v868 = vsel %vm856, %v850, %v867
        %v869 = vsel %vm855, %v866, %v868
        %v870 = vshll.u32 %v830, 8
        %v871 = vmul.u32.u64.compose %v870, %v869
        %v872 = vextract.low.u32 %v871
        %v873 = vextract.high.u32 %v871
        %v874 = vmul.u32.u64.compose %v870, %v865
        %v875 = vextract.low.u32 %v874
        %v876 = vextract.high.u32 %v874
        %v877 = vmul.u32 %v870, %v861
        %v878 = vadd.s32 %v873, %v875
        %vm879 = vc.u32 %v873, %v875
        %v880 = vadd.s32 %v876, 1
        %v881 = vsel %vm879, %v880, %v876
        %v882 = vadd.s32 %v877, %v881
        %v883 = vadd.s32 %v882, 536870912
        %v884 = vshrl.u32 %v883, 30
        %v885 = vshll.u32 %v884, 30
        %v886 = vsub.s32 %v882, %v885
        %vm887 = vcmp.lt.s32.totalorder %v886, 0
        %v888 = vsub.s32 0, %v886
        %v889 = vsel %vm887, %v888, %v886
        %v890 = vclz %v889
        %v891 = vsub.s32 %v890, 2
        %vm892 = vcmp.gt.s32.totalorder 0, %v891
        %v893 = vsel %vm892, 0, %v891
        %v894 = vsub.s32 32, %v893
        %v895 = vshll.u32 %v886, %v893
        %v896 = vshrl.u32 %v878, %v894
        %v897 = vor.u32 %v895, %v896
        %v898 = vsub.s32 4294967266, %v893
        %v899 = vadd.s32 %v898, 127
        %v900 = vshll.u32 %v899, 23
        %v901 = vor.u32 4788187, %v900
        %v902 = vand.u32 2147483647, %v901
        %v904 = vcvt.s32.f32 %v897
        %v905 = vmul.f32 %v904, %v902
        %v906 = vxor.u32 %v905, 2147483648
        %v907 = vsel %vm824, %v906, %v905
        %v908 = vsub.s32 4, %v884
        %v909 = vsel %vm824, %v908, %v884
        %v910 = vsel %vm823, %v379, %v907
        %v911 = vsel %vm823, 0, %v909
        %v912 = vcosq.f32.pop %v910
        %v913 = vsinq.f32.pop %v910
        %vm914 = vweird.f32 %v379
        %v915 = vadd.s32 %v911, 3
        %v916 = vand.u32 %v915, 3
        %vm917 = vcmp.lt.s32.totalorder %v916, 2
        %vm918 = vcmp.eq.s32.totalorder %v916, 0
        %v919 = vxor.u32 %v913, 2147483648
        %v920 = vsel %vm918, %v912, %v919
        %vm921 = vcmp.eq.s32.totalorder %v916, 2
        %v922 = vxor.u32 %v912, 2147483648
        %v923 = vsel %vm921, %v922, %v913
        %v924 = vsel %vm917, %v920, %v923
        %v925 = vsel %vm914, nan, %v924
        %v926 = vand.u32 2147483647, %v380
        %vm927 = vcmp.le.f32.partialorder %v926, 0.7853982
        %vm928 = vcmp.lt.s32.totalorder %v380, 0
        %v929 = vand.u32 %v380, 2139095040
        %v930 = vshrl.u32 %v929, 23
        %v931 = vsub.s32 %v930, 127
        %v932 = vand.u32 2147483647, %v380
        %v933 = vand.u32 %v932, 8388607
        %v934 = vor.u32 %v933, 8388608
        %v935 = vsub.s32 0, %v934
        %v936 = vadd.s32 %v931, 1
        %vm937 = vcmp.gt.s32.totalorder %v936, 0
        %v938 = vsel %vm937, %v936, 0
        %v939 = vshrl.u32 %v938, 5
        %v940 = vand.u32 %v938, 31
        %v941 = vsub.s32 32, %v940
        %v942 = vshrl.u32 683565275, %v941
        %v943 = vshll.u32 683565275, %v940
        %v944 = vshrl.u32 2475754826, %v941
        %v945 = vor.u32 %v943, %v944
        %v946 = vshll.u32 2475754826, %v940
        %v947 = vshrl.u32 2131351028, %v941
        %v948 = vor.u32 %v946, %v947
        %v949 = vshll.u32 2131351028, %v940
        %v950 = vshrl.u32 2102212464, %v941
        %v951 = vor.u32 %v949, %v950
        %v952 = vshll.u32 2102212464, %v940
        %v953 = vshrl.u32 920167782, %v941
        %v954 = vor.u32 %v952, %v953
        %v955 = vshll.u32 920167782, %v940
        %v956 = vshrl.u32 1326507024, %v941
        %v957 = vor.u32 %v955, %v956
        %vm958 = vcmp.lt.s32.totalorder %v939, 1
        %vm959 = vcmp.lt.s32.totalorder %v939, 2
        %vm960 = vcmp.lt.s32.totalorder %v939, 3
        %vm961 = vcmp.lt.s32.totalorder %v939, 4
        %v962 = vsel %vm958, %v942, %v945
        %v963 = vsel %vm961, %v951, 2102212464
        %v964 = vsel %vm960, %v948, %v963
        %v965 = vsel %vm959, %v962, %v964
        %v966 = vsel %vm958, %v945, %v948
        %v967 = vsel %vm961, %v954, 920167782
        %v968 = vsel %vm960, %v951, %v967
        %v969 = vsel %vm959, %v966, %v968
        %v970 = vsel %vm958, %v948, %v951
        %v971 = vsel %vm961, %v957, 1326507024
        %v972 = vsel %vm960, %v954, %v971
        %v973 = vsel %vm959, %v970, %v972
        %v974 = vshll.u32 %v934, 8
        %v975 = vmul.u32.u64.compose %v974, %v973
        %v976 = vextract.low.u32 %v975
        %v977 = vextract.high.u32 %v975
        %v978 = vmul.u32.u64.compose %v974, %v969
        %v979 = vextract.low.u32 %v978
        %v980 = vextract.high.u32 %v978
        %v981 = vmul.u32 %v974, %v965
        %v982 = vadd.s32 %v977, %v979
        %vm983 = vc.u32 %v977, %v979
        %v984 = vadd.s32 %v980, 1
        %v985 = vsel %vm983, %v984, %v980
        %v986 = vadd.s32 %v981, %v985
        %v987 = vadd.s32 %v986, 536870912
        %v988 = vshrl.u32 %v987, 30
        %v989 = vshll.u32 %v988, 30
        %v990 = vsub.s32 %v986, %v989
        %vm991 = vcmp.lt.s32.totalorder %v990, 0
        %v992 = vsub.s32 0, %v990
        %v993 = vsel %vm991, %v992, %v990
        %v994 = vclz %v993
        %v995 = vsub.s32 %v994, 2
        %vm996 = vcmp.gt.s32.totalorder 0, %v995
        %v997 = vsel %vm996, 0, %v995
        %v998 = vsub.s32 32, %v997
        %v999 = vshll.u32 %v990, %v997
        %v1000 = vshrl.u32 %v982, %v998
        %v1001 = vor.u32 %v999, %v1000
        %v1002 = vsub.s32 4294967266, %v997
        %v1003 = vadd.s32 %v1002, 127
        %v1004 = vshll.u32 %v1003, 23
        %v1005 = vor.u32 4788187, %v1004
        %v1006 = vand.u32 2147483647, %v1005
        %v1008 = vcvt.s32.f32 %v1001
        %v1009 = vmul.f32 %v1008, %v1006
        %v1010 = vxor.u32 %v1009, 2147483648
        %v1011 = vsel %vm928, %v1010, %v1009
        %v1012 = vsub.s32 4, %v988
        %v1013 = vsel %vm928, %v1012, %v988
        %v1014 = vsel %vm927, %v380, %v1011
        %v1015 = vsel %vm927, 0, %v1013
        %v1016 = vcosq.f32.pop %v1014
        %v1017 = vsinq.f32.pop %v1014
        %vm1018 = vweird.f32 %v380
        %v1019 = vadd.s32 %v1015, 3
        %v1020 = vand.u32 %v1019, 3
        %vm1021 = vcmp.lt.s32.totalorder %v1020, 2
        %vm1022 = vcmp.eq.s32.totalorder %v1020, 0
        %v1023 = vxor.u32 %v1017, 2147483648
        %v1024 = vsel %vm1022, %v1016, %v1023
        %vm1025 = vcmp.eq.s32.totalorder %v1020, 2
        %v1026 = vxor.u32 %v1016, 2147483648
        %v1027 = vsel %vm1025, %v1026, %v1017
        %v1028 = vsel %vm1021, %v1024, %v1027
        %v1029 = vsel %vm1018, nan, %v1028
        %v1030 = vand.u32 2147483647, %v381
        %vm1031 = vcmp.le.f32.partialorder %v1030, 0.7853982
        %vm1032 = vcmp.lt.s32.totalorder %v381, 0
        %v1033 = vand.u32 %v381, 2139095040
        %v1034 = vshrl.u32 %v1033, 23
        %v1035 = vsub.s32 %v1034, 127
        %v1036 = vand.u32 2147483647, %v381
        %v1037 = vand.u32 %v1036, 8388607
        %v1038 = vor.u32 %v1037, 8388608
        %v1039 = vsub.s32 0, %v1038
        %v1040 = vadd.s32 %v1035, 1
        %vm1041 = vcmp.gt.s32.totalorder %v1040, 0
        %v1042 = vsel %vm1041, %v1040, 0
        %v1043 = vshrl.u32 %v1042, 5
        %v1044 = vand.u32 %v1042, 31
        %v1045 = vsub.s32 32, %v1044
        %v1046 = vshrl.u32 683565275, %v1045
        %v1047 = vshll.u32 683565275, %v1044
        %v1048 = vshrl.u32 2475754826, %v1045
        %v1049 = vor.u32 %v1047, %v1048
        %v1050 = vshll.u32 2475754826, %v1044
        %v1051 = vshrl.u32 2131351028, %v1045
        %v1052 = vor.u32 %v1050, %v1051
        %v1053 = vshll.u32 2131351028, %v1044
        %v1054 = vshrl.u32 2102212464, %v1045
        %v1055 = vor.u32 %v1053, %v1054
        %v1056 = vshll.u32 2102212464, %v1044
        %v1057 = vshrl.u32 920167782, %v1045
        %v1058 = vor.u32 %v1056, %v1057
        %v1059 = vshll.u32 920167782, %v1044
        %v1060 = vshrl.u32 1326507024, %v1045
        %v1061 = vor.u32 %v1059, %v1060
        %vm1062 = vcmp.lt.s32.totalorder %v1043, 1
        %vm1063 = vcmp.lt.s32.totalorder %v1043, 2
        %vm1064 = vcmp.lt.s32.totalorder %v1043, 3
        %vm1065 = vcmp.lt.s32.totalorder %v1043, 4
        %v1066 = vsel %vm1062, %v1046, %v1049
        %v1067 = vsel %vm1065, %v1055, 2102212464
        %v1068 = vsel %vm1064, %v1052, %v1067
        %v1069 = vsel %vm1063, %v1066, %v1068
        %v1070 = vsel %vm1062, %v1049, %v1052
        %v1071 = vsel %vm1065, %v1058, 920167782
        %v1072 = vsel %vm1064, %v1055, %v1071
        %v1073 = vsel %vm1063, %v1070, %v1072
        %v1074 = vsel %vm1062, %v1052, %v1055
        %v1075 = vsel %vm1065, %v1061, 1326507024
        %v1076 = vsel %vm1064, %v1058, %v1075
        %v1077 = vsel %vm1063, %v1074, %v1076
        %v1078 = vshll.u32 %v1038, 8
        %v1079 = vmul.u32.u64.compose %v1078, %v1077
        %v1080 = vextract.low.u32 %v1079
        %v1081 = vextract.high.u32 %v1079
        %v1082 = vmul.u32.u64.compose %v1078, %v1073
        %v1083 = vextract.low.u32 %v1082
        %v1084 = vextract.high.u32 %v1082
        %v1085 = vmul.u32 %v1078, %v1069
        %v1086 = vadd.s32 %v1081, %v1083
        %vm1087 = vc.u32 %v1081, %v1083
        %v1088 = vadd.s32 %v1084, 1
        %v1089 = vsel %vm1087, %v1088, %v1084
        %v1090 = vadd.s32 %v1085, %v1089
        %v1091 = vadd.s32 %v1090, 536870912
        %v1092 = vshrl.u32 %v1091, 30
        %v1093 = vshll.u32 %v1092, 30
        %v1094 = vsub.s32 %v1090, %v1093
        %vm1095 = vcmp.lt.s32.totalorder %v1094, 0
        %v1096 = vsub.s32 0, %v1094
        %v1097 = vsel %vm1095, %v1096, %v1094
        %v1098 = vclz %v1097
        %v1099 = vsub.s32 %v1098, 2
        %vm1100 = vcmp.gt.s32.totalorder 0, %v1099
        %v1101 = vsel %vm1100, 0, %v1099
        %v1102 = vsub.s32 32, %v1101
        %v1103 = vshll.u32 %v1094, %v1101
        %v1104 = vshrl.u32 %v1086, %v1102
        %v1105 = vor.u32 %v1103, %v1104
        %v1106 = vsub.s32 4294967266, %v1101
        %v1107 = vadd.s32 %v1106, 127
        %v1108 = vshll.u32 %v1107, 23
        %v1109 = vor.u32 4788187, %v1108
        %v1110 = vand.u32 2147483647, %v1109
        %v1112 = vcvt.s32.f32 %v1105
        %v1113 = vmul.f32 %v1112, %v1110
        %v1114 = vxor.u32 %v1113, 2147483648
        %v1115 = vsel %vm1032, %v1114, %v1113
        %v1116 = vsub.s32 4, %v1092
        %v1117 = vsel %vm1032, %v1116, %v1092
        %v1118 = vsel %vm1031, %v381, %v1115
        %v1119 = vsel %vm1031, 0, %v1117
        %v1120 = vcosq.f32.pop %v1118
        %v1121 = vsinq.f32.pop %v1118
        %vm1122 = vweird.f32 %v381
        %v1123 = vadd.s32 %v1119, 3
        %v1124 = vand.u32 %v1123, 3
        %vm1125 = vcmp.lt.s32.totalorder %v1124, 2
        %vm1126 = vcmp.eq.s32.totalorder %v1124, 0
        %v1127 = vxor.u32 %v1121, 2147483648
        %v1128 = vsel %vm1126, %v1120, %v1127
        %vm1129 = vcmp.eq.s32.totalorder %v1124, 2
        %v1130 = vxor.u32 %v1120, 2147483648
        %v1131 = vsel %vm1129, %v1130, %v1121
        %v1132 = vsel %vm1125, %v1128, %v1131
        %v1133 = vsel %vm1122, nan, %v1132
        %v1134 = vand.u32 2147483647, %v382
        %vm1135 = vcmp.le.f32.partialorder %v1134, 0.7853982
        %vm1136 = vcmp.lt.s32.totalorder %v382, 0
        %v1137 = vand.u32 %v382, 2139095040
        %v1138 = vshrl.u32 %v1137, 23
        %v1139 = vsub.s32 %v1138, 127
        %v1140 = vand.u32 2147483647, %v382
        %v1141 = vand.u32 %v1140, 8388607
        %v1142 = vor.u32 %v1141, 8388608
        %v1143 = vsub.s32 0, %v1142
        %v1144 = vadd.s32 %v1139, 1
        %vm1145 = vcmp.gt.s32.totalorder %v1144, 0
        %v1146 = vsel %vm1145, %v1144, 0
        %v1147 = vshrl.u32 %v1146, 5
        %v1148 = vand.u32 %v1146, 31
        %v1149 = vsub.s32 32, %v1148
        %v1150 = vshrl.u32 683565275, %v1149
        %v1151 = vshll.u32 683565275, %v1148
        %v1152 = vshrl.u32 2475754826, %v1149
        %v1153 = vor.u32 %v1151, %v1152
        %v1154 = vshll.u32 2475754826, %v1148
        %v1155 = vshrl.u32 2131351028, %v1149
        %v1156 = vor.u32 %v1154, %v1155
        %v1157 = vshll.u32 2131351028, %v1148
        %v1158 = vshrl.u32 2102212464, %v1149
        %v1159 = vor.u32 %v1157, %v1158
        %v1160 = vshll.u32 2102212464, %v1148
        %v1161 = vshrl.u32 920167782, %v1149
        %v1162 = vor.u32 %v1160, %v1161
        %v1163 = vshll.u32 920167782, %v1148
        %v1164 = vshrl.u32 1326507024, %v1149
        %v1165 = vor.u32 %v1163, %v1164
        %vm1166 = vcmp.lt.s32.totalorder %v1147, 1
        %vm1167 = vcmp.lt.s32.totalorder %v1147, 2
        %vm1168 = vcmp.lt.s32.totalorder %v1147, 3
        %vm1169 = vcmp.lt.s32.totalorder %v1147, 4
        %v1170 = vsel %vm1166, %v1150, %v1153
        %v1171 = vsel %vm1169, %v1159, 2102212464
        %v1172 = vsel %vm1168, %v1156, %v1171
        %v1173 = vsel %vm1167, %v1170, %v1172
        %v1174 = vsel %vm1166, %v1153, %v1156
        %v1175 = vsel %vm1169, %v1162, 920167782
        %v1176 = vsel %vm1168, %v1159, %v1175
        %v1177 = vsel %vm1167, %v1174, %v1176
        %v1178 = vsel %vm1166, %v1156, %v1159
        %v1179 = vsel %vm1169, %v1165, 1326507024
        %v1180 = vsel %vm1168, %v1162, %v1179
        %v1181 = vsel %vm1167, %v1178, %v1180
        %v1182 = vshll.u32 %v1142, 8
        %v1183 = vmul.u32.u64.compose %v1182, %v1181
        %v1184 = vextract.low.u32 %v1183
        %v1185 = vextract.high.u32 %v1183
        %v1186 = vmul.u32.u64.compose %v1182, %v1177
        %v1187 = vextract.low.u32 %v1186
        %v1188 = vextract.high.u32 %v1186
        %v1189 = vmul.u32 %v1182, %v1173
        %v1190 = vadd.s32 %v1185, %v1187
        %vm1191 = vc.u32 %v1185, %v1187
        %v1192 = vadd.s32 %v1188, 1
        %v1193 = vsel %vm1191, %v1192, %v1188
        %v1194 = vadd.s32 %v1189, %v1193
        %v1195 = vadd.s32 %v1194, 536870912
        %v1196 = vshrl.u32 %v1195, 30
        %v1197 = vshll.u32 %v1196, 30
        %v1198 = vsub.s32 %v1194, %v1197
        %vm1199 = vcmp.lt.s32.totalorder %v1198, 0
        %v1200 = vsub.s32 0, %v1198
        %v1201 = vsel %vm1199, %v1200, %v1198
        %v1202 = vclz %v1201
        %v1203 = vsub.s32 %v1202, 2
        %vm1204 = vcmp.gt.s32.totalorder 0, %v1203
        %v1205 = vsel %vm1204, 0, %v1203
        %v1206 = vsub.s32 32, %v1205
        %v1207 = vshll.u32 %v1198, %v1205
        %v1208 = vshrl.u32 %v1190, %v1206
        %v1209 = vor.u32 %v1207, %v1208
        %v1210 = vsub.s32 4294967266, %v1205
        %v1211 = vadd.s32 %v1210, 127
        %v1212 = vshll.u32 %v1211, 23
        %v1213 = vor.u32 4788187, %v1212
        %v1214 = vand.u32 2147483647, %v1213
        %v1216 = vcvt.s32.f32 %v1209
        %v1217 = vmul.f32 %v1216, %v1214
        %v1218 = vxor.u32 %v1217, 2147483648
        %v1219 = vsel %vm1136, %v1218, %v1217
        %v1220 = vsub.s32 4, %v1196
        %v1221 = vsel %vm1136, %v1220, %v1196
        %v1222 = vsel %vm1135, %v382, %v1219
        %v1223 = vsel %vm1135, 0, %v1221
        %v1224 = vcosq.f32.pop %v1222
        %v1225 = vsinq.f32.pop %v1222
        %vm1226 = vweird.f32 %v382
        %v1227 = vadd.s32 %v1223, 3
        %v1228 = vand.u32 %v1227, 3
        %vm1229 = vcmp.lt.s32.totalorder %v1228, 2
        %vm1230 = vcmp.eq.s32.totalorder %v1228, 0
        %v1231 = vxor.u32 %v1225, 2147483648
        %v1232 = vsel %vm1230, %v1224, %v1231
        %vm1233 = vcmp.eq.s32.totalorder %v1228, 2
        %v1234 = vxor.u32 %v1224, 2147483648
        %v1235 = vsel %vm1233, %v1234, %v1225
        %v1236 = vsel %vm1229, %v1232, %v1235
        %v1237 = vsel %vm1226, nan, %v1236
        %v1238 = vand.u32 2147483647, %v383
        %vm1239 = vcmp.le.f32.partialorder %v1238, 0.7853982
        %vm1240 = vcmp.lt.s32.totalorder %v383, 0
        %v1241 = vand.u32 %v383, 2139095040
        %v1242 = vshrl.u32 %v1241, 23
        %v1243 = vsub.s32 %v1242, 127
        %v1244 = vand.u32 2147483647, %v383
        %v1245 = vand.u32 %v1244, 8388607
        %v1246 = vor.u32 %v1245, 8388608
        %v1247 = vsub.s32 0, %v1246
        %v1248 = vadd.s32 %v1243, 1
        %vm1249 = vcmp.gt.s32.totalorder %v1248, 0
        %v1250 = vsel %vm1249, %v1248, 0
        %v1251 = vshrl.u32 %v1250, 5
        %v1252 = vand.u32 %v1250, 31
        %v1253 = vsub.s32 32, %v1252
        %v1254 = vshrl.u32 683565275, %v1253
        %v1255 = vshll.u32 683565275, %v1252
        %v1256 = vshrl.u32 2475754826, %v1253
        %v1257 = vor.u32 %v1255, %v1256
        %v1258 = vshll.u32 2475754826, %v1252
        %v1259 = vshrl.u32 2131351028, %v1253
        %v1260 = vor.u32 %v1258, %v1259
        %v1261 = vshll.u32 2131351028, %v1252
        %v1262 = vshrl.u32 2102212464, %v1253
        %v1263 = vor.u32 %v1261, %v1262
        %v1264 = vshll.u32 2102212464, %v1252
        %v1265 = vshrl.u32 920167782, %v1253
        %v1266 = vor.u32 %v1264, %v1265
        %v1267 = vshll.u32 920167782, %v1252
        %v1268 = vshrl.u32 1326507024, %v1253
        %v1269 = vor.u32 %v1267, %v1268
        %vm1270 = vcmp.lt.s32.totalorder %v1251, 1
        %vm1271 = vcmp.lt.s32.totalorder %v1251, 2
        %vm1272 = vcmp.lt.s32.totalorder %v1251, 3
        %vm1273 = vcmp.lt.s32.totalorder %v1251, 4
        %v1274 = vsel %vm1270, %v1254, %v1257
        %v1275 = vsel %vm1273, %v1263, 2102212464
        %v1276 = vsel %vm1272, %v1260, %v1275
        %v1277 = vsel %vm1271, %v1274, %v1276
        %v1278 = vsel %vm1270, %v1257, %v1260
        %v1279 = vsel %vm1273, %v1266, 920167782
        %v1280 = vsel %vm1272, %v1263, %v1279
        %v1281 = vsel %vm1271, %v1278, %v1280
        %v1282 = vsel %vm1270, %v1260, %v1263
        %v1283 = vsel %vm1273, %v1269, 1326507024
        %v1284 = vsel %vm1272, %v1266, %v1283
        %v1285 = vsel %vm1271, %v1282, %v1284
        %v1286 = vshll.u32 %v1246, 8
        %v1287 = vmul.u32.u64.compose %v1286, %v1285
        %v1288 = vextract.low.u32 %v1287
        %v1289 = vextract.high.u32 %v1287
        %v1290 = vmul.u32.u64.compose %v1286, %v1281
        %v1291 = vextract.low.u32 %v1290
        %v1292 = vextract.high.u32 %v1290
        %v1293 = vmul.u32 %v1286, %v1277
        %v1294 = vadd.s32 %v1289, %v1291
        %vm1295 = vc.u32 %v1289, %v1291
        %v1296 = vadd.s32 %v1292, 1
        %v1297 = vsel %vm1295, %v1296, %v1292
        %v1298 = vadd.s32 %v1293, %v1297
        %v1299 = vadd.s32 %v1298, 536870912
        %v1300 = vshrl.u32 %v1299, 30
        %v1301 = vshll.u32 %v1300, 30
        %v1302 = vsub.s32 %v1298, %v1301
        %vm1303 = vcmp.lt.s32.totalorder %v1302, 0
        %v1304 = vsub.s32 0, %v1302
        %v1305 = vsel %vm1303, %v1304, %v1302
        %v1306 = vclz %v1305
        %v1307 = vsub.s32 %v1306, 2
        %vm1308 = vcmp.gt.s32.totalorder 0, %v1307
        %v1309 = vsel %vm1308, 0, %v1307
        %v1310 = vsub.s32 32, %v1309
        %v1311 = vshll.u32 %v1302, %v1309
        %v1312 = vshrl.u32 %v1294, %v1310
        %v1313 = vor.u32 %v1311, %v1312
        %v1314 = vsub.s32 4294967266, %v1309
        %v1315 = vadd.s32 %v1314, 127
        %v1316 = vshll.u32 %v1315, 23
        %v1317 = vor.u32 4788187, %v1316
        %v1318 = vand.u32 2147483647, %v1317
        %v1320 = vcvt.s32.f32 %v1313
        %v1321 = vmul.f32 %v1320, %v1318
        %v1322 = vxor.u32 %v1321, 2147483648
        %v1323 = vsel %vm1240, %v1322, %v1321
        %v1324 = vsub.s32 4, %v1300
        %v1325 = vsel %vm1240, %v1324, %v1300
        %v1326 = vsel %vm1239, %v383, %v1323
        %v1327 = vsel %vm1239, 0, %v1325
        %v1328 = vcosq.f32.pop %v1326
        %v1329 = vsinq.f32.pop %v1326
        %vm1330 = vweird.f32 %v383
        %v1331 = vadd.s32 %v1327, 3
        %v1332 = vand.u32 %v1331, 3
        %vm1333 = vcmp.lt.s32.totalorder %v1332, 2
        %vm1334 = vcmp.eq.s32.totalorder %v1332, 0
        %v1335 = vxor.u32 %v1329, 2147483648
        %v1336 = vsel %vm1334, %v1328, %v1335
        %vm1337 = vcmp.eq.s32.totalorder %v1332, 2
        %v1338 = vxor.u32 %v1328, 2147483648
        %v1339 = vsel %vm1337, %v1338, %v1329
        %v1340 = vsel %vm1333, %v1336, %v1339
        %v1341 = vsel %vm1330, nan, %v1340
        %v1342 = vand.u32 2147483647, %v384
        %vm1343 = vcmp.le.f32.partialorder %v1342, 0.7853982
        %vm1344 = vcmp.lt.s32.totalorder %v384, 0
        %v1345 = vand.u32 %v384, 2139095040
        %v1346 = vshrl.u32 %v1345, 23
        %v1347 = vsub.s32 %v1346, 127
        %v1348 = vand.u32 2147483647, %v384
        %v1349 = vand.u32 %v1348, 8388607
        %v1350 = vor.u32 %v1349, 8388608
        %v1351 = vsub.s32 0, %v1350
        %v1352 = vadd.s32 %v1347, 1
        %vm1353 = vcmp.gt.s32.totalorder %v1352, 0
        %v1354 = vsel %vm1353, %v1352, 0
        %v1355 = vshrl.u32 %v1354, 5
        %v1356 = vand.u32 %v1354, 31
        %v1357 = vsub.s32 32, %v1356
        %v1358 = vshrl.u32 683565275, %v1357
        %v1359 = vshll.u32 683565275, %v1356
        %v1360 = vshrl.u32 2475754826, %v1357
        %v1361 = vor.u32 %v1359, %v1360
        %v1362 = vshll.u32 2475754826, %v1356
        %v1363 = vshrl.u32 2131351028, %v1357
        %v1364 = vor.u32 %v1362, %v1363
        %v1365 = vshll.u32 2131351028, %v1356
        %v1366 = vshrl.u32 2102212464, %v1357
        %v1367 = vor.u32 %v1365, %v1366
        %v1368 = vshll.u32 2102212464, %v1356
        %v1369 = vshrl.u32 920167782, %v1357
        %v1370 = vor.u32 %v1368, %v1369
        %v1371 = vshll.u32 920167782, %v1356
        %v1372 = vshrl.u32 1326507024, %v1357
        %v1373 = vor.u32 %v1371, %v1372
        %vm1374 = vcmp.lt.s32.totalorder %v1355, 1
        %vm1375 = vcmp.lt.s32.totalorder %v1355, 2
        %vm1376 = vcmp.lt.s32.totalorder %v1355, 3
        %vm1377 = vcmp.lt.s32.totalorder %v1355, 4
        %v1378 = vsel %vm1374, %v1358, %v1361
        %v1379 = vsel %vm1377, %v1367, 2102212464
        %v1380 = vsel %vm1376, %v1364, %v1379
        %v1381 = vsel %vm1375, %v1378, %v1380
        %v1382 = vsel %vm1374, %v1361, %v1364
        %v1383 = vsel %vm1377, %v1370, 920167782
        %v1384 = vsel %vm1376, %v1367, %v1383
        %v1385 = vsel %vm1375, %v1382, %v1384
        %v1386 = vsel %vm1374, %v1364, %v1367
        %v1387 = vsel %vm1377, %v1373, 1326507024
        %v1388 = vsel %vm1376, %v1370, %v1387
        %v1389 = vsel %vm1375, %v1386, %v1388
        %v1390 = vshll.u32 %v1350, 8
        %v1391 = vmul.u32.u64.compose %v1390, %v1389
        %v1392 = vextract.low.u32 %v1391
        %v1393 = vextract.high.u32 %v1391
        %v1394 = vmul.u32.u64.compose %v1390, %v1385
        %v1395 = vextract.low.u32 %v1394
        %v1396 = vextract.high.u32 %v1394
        %v1397 = vmul.u32 %v1390, %v1381
        %v1398 = vadd.s32 %v1393, %v1395
        %vm1399 = vc.u32 %v1393, %v1395
        %v1400 = vadd.s32 %v1396, 1
        %v1401 = vsel %vm1399, %v1400, %v1396
        %v1402 = vadd.s32 %v1397, %v1401
        %v1403 = vadd.s32 %v1402, 536870912
        %v1404 = vshrl.u32 %v1403, 30
        %v1405 = vshll.u32 %v1404, 30
        %v1406 = vsub.s32 %v1402, %v1405
        %vm1407 = vcmp.lt.s32.totalorder %v1406, 0
        %v1408 = vsub.s32 0, %v1406
        %v1409 = vsel %vm1407, %v1408, %v1406
        %v1410 = vclz %v1409
        %v1411 = vsub.s32 %v1410, 2
        %vm1412 = vcmp.gt.s32.totalorder 0, %v1411
        %v1413 = vsel %vm1412, 0, %v1411
        %v1414 = vsub.s32 32, %v1413
        %v1415 = vshll.u32 %v1406, %v1413
        %v1416 = vshrl.u32 %v1398, %v1414
        %v1417 = vor.u32 %v1415, %v1416
        %v1418 = vsub.s32 4294967266, %v1413
        %v1419 = vadd.s32 %v1418, 127
        %v1420 = vshll.u32 %v1419, 23
        %v1421 = vor.u32 4788187, %v1420
        %v1422 = vand.u32 2147483647, %v1421
        %v1424 = vcvt.s32.f32 %v1417
        %v1425 = vmul.f32 %v1424, %v1422
        %v1426 = vxor.u32 %v1425, 2147483648
        %v1427 = vsel %vm1344, %v1426, %v1425
        %v1428 = vsub.s32 4, %v1404
        %v1429 = vsel %vm1344, %v1428, %v1404
        %v1430 = vsel %vm1343, %v384, %v1427
        %v1431 = vsel %vm1343, 0, %v1429
        %v1432 = vcosq.f32.pop %v1430
        %v1433 = vsinq.f32.pop %v1430
        %vm1434 = vweird.f32 %v384
        %v1435 = vadd.s32 %v1431, 3
        %v1436 = vand.u32 %v1435, 3
        %vm1437 = vcmp.lt.s32.totalorder %v1436, 2
        %vm1438 = vcmp.eq.s32.totalorder %v1436, 0
        %v1439 = vxor.u32 %v1433, 2147483648
        %v1440 = vsel %vm1438, %v1432, %v1439
        %vm1441 = vcmp.eq.s32.totalorder %v1436, 2
        %v1442 = vxor.u32 %v1432, 2147483648
        %v1443 = vsel %vm1441, %v1442, %v1433
        %v1444 = vsel %vm1437, %v1440, %v1443
        %v1445 = vsel %vm1434, nan, %v1444
        %v1446 = vand.u32 2147483647, %v385
        %vm1447 = vcmp.le.f32.partialorder %v1446, 0.7853982
        %vm1448 = vcmp.lt.s32.totalorder %v385, 0
        %v1449 = vand.u32 %v385, 2139095040
        %v1450 = vshrl.u32 %v1449, 23
        %v1451 = vsub.s32 %v1450, 127
        %v1452 = vand.u32 2147483647, %v385
        %v1453 = vand.u32 %v1452, 8388607
        %v1454 = vor.u32 %v1453, 8388608
        %v1455 = vsub.s32 0, %v1454
        %v1456 = vadd.s32 %v1451, 1
        %vm1457 = vcmp.gt.s32.totalorder %v1456, 0
        %v1458 = vsel %vm1457, %v1456, 0
        %v1459 = vshrl.u32 %v1458, 5
        %v1460 = vand.u32 %v1458, 31
        %v1461 = vsub.s32 32, %v1460
        %v1462 = vshrl.u32 683565275, %v1461
        %v1463 = vshll.u32 683565275, %v1460
        %v1464 = vshrl.u32 2475754826, %v1461
        %v1465 = vor.u32 %v1463, %v1464
        %v1466 = vshll.u32 2475754826, %v1460
        %v1467 = vshrl.u32 2131351028, %v1461
        %v1468 = vor.u32 %v1466, %v1467
        %v1469 = vshll.u32 2131351028, %v1460
        %v1470 = vshrl.u32 2102212464, %v1461
        %v1471 = vor.u32 %v1469, %v1470
        %v1472 = vshll.u32 2102212464, %v1460
        %v1473 = vshrl.u32 920167782, %v1461
        %v1474 = vor.u32 %v1472, %v1473
        %v1475 = vshll.u32 920167782, %v1460
        %v1476 = vshrl.u32 1326507024, %v1461
        %v1477 = vor.u32 %v1475, %v1476
        %vm1478 = vcmp.lt.s32.totalorder %v1459, 1
        %vm1479 = vcmp.lt.s32.totalorder %v1459, 2
        %vm1480 = vcmp.lt.s32.totalorder %v1459, 3
        %vm1481 = vcmp.lt.s32.totalorder %v1459, 4
        %v1482 = vsel %vm1478, %v1462, %v1465
        %v1483 = vsel %vm1481, %v1471, 2102212464
        %v1484 = vsel %vm1480, %v1468, %v1483
        %v1485 = vsel %vm1479, %v1482, %v1484
        %v1486 = vsel %vm1478, %v1465, %v1468
        %v1487 = vsel %vm1481, %v1474, 920167782
        %v1488 = vsel %vm1480, %v1471, %v1487
        %v1489 = vsel %vm1479, %v1486, %v1488
        %v1490 = vsel %vm1478, %v1468, %v1471
        %v1491 = vsel %vm1481, %v1477, 1326507024
        %v1492 = vsel %vm1480, %v1474, %v1491
        %v1493 = vsel %vm1479, %v1490, %v1492
        %v1494 = vshll.u32 %v1454, 8
        %v1495 = vmul.u32.u64.compose %v1494, %v1493
        %v1496 = vextract.low.u32 %v1495
        %v1497 = vextract.high.u32 %v1495
        %v1498 = vmul.u32.u64.compose %v1494, %v1489
        %v1499 = vextract.low.u32 %v1498
        %v1500 = vextract.high.u32 %v1498
        %v1501 = vmul.u32 %v1494, %v1485
        %v1502 = vadd.s32 %v1497, %v1499
        %vm1503 = vc.u32 %v1497, %v1499
        %v1504 = vadd.s32 %v1500, 1
        %v1505 = vsel %vm1503, %v1504, %v1500
        %v1506 = vadd.s32 %v1501, %v1505
        %v1507 = vadd.s32 %v1506, 536870912
        %v1508 = vshrl.u32 %v1507, 30
        %v1509 = vshll.u32 %v1508, 30
        %v1510 = vsub.s32 %v1506, %v1509
        %vm1511 = vcmp.lt.s32.totalorder %v1510, 0
        %v1512 = vsub.s32 0, %v1510
        %v1513 = vsel %vm1511, %v1512, %v1510
        %v1514 = vclz %v1513
        %v1515 = vsub.s32 %v1514, 2
        %vm1516 = vcmp.gt.s32.totalorder 0, %v1515
        %v1517 = vsel %vm1516, 0, %v1515
        %v1518 = vsub.s32 32, %v1517
        %v1519 = vshll.u32 %v1510, %v1517
        %v1520 = vshrl.u32 %v1502, %v1518
        %v1521 = vor.u32 %v1519, %v1520
        %v1522 = vsub.s32 4294967266, %v1517
        %v1523 = vadd.s32 %v1522, 127
        %v1524 = vshll.u32 %v1523, 23
        %v1525 = vor.u32 4788187, %v1524
        %v1526 = vand.u32 2147483647, %v1525
        %v1528 = vcvt.s32.f32 %v1521
        %v1529 = vmul.f32 %v1528, %v1526
        %v1530 = vxor.u32 %v1529, 2147483648
        %v1531 = vsel %vm1448, %v1530, %v1529
        %v1532 = vsub.s32 4, %v1508
        %v1533 = vsel %vm1448, %v1532, %v1508
        %v1534 = vsel %vm1447, %v385, %v1531
        %v1535 = vsel %vm1447, 0, %v1533
        %v1536 = vcosq.f32.pop %v1534
        %v1537 = vsinq.f32.pop %v1534
        %vm1538 = vweird.f32 %v385
        %v1539 = vadd.s32 %v1535, 3
        %v1540 = vand.u32 %v1539, 3
        %vm1541 = vcmp.lt.s32.totalorder %v1540, 2
        %vm1542 = vcmp.eq.s32.totalorder %v1540, 0
        %v1543 = vxor.u32 %v1537, 2147483648
        %v1544 = vsel %vm1542, %v1536, %v1543
        %vm1545 = vcmp.eq.s32.totalorder %v1540, 2
        %v1546 = vxor.u32 %v1536, 2147483648
        %v1547 = vsel %vm1545, %v1546, %v1537
        %v1548 = vsel %vm1541, %v1544, %v1547
        %v1549 = vsel %vm1538, nan, %v1548
        %v1550 = vand.u32 2147483647, %v386
        %vm1551 = vcmp.le.f32.partialorder %v1550, 0.7853982
        %vm1552 = vcmp.lt.s32.totalorder %v386, 0
        %v1553 = vand.u32 %v386, 2139095040
        %v1554 = vshrl.u32 %v1553, 23
        %v1555 = vsub.s32 %v1554, 127
        %v1556 = vand.u32 2147483647, %v386
        %v1557 = vand.u32 %v1556, 8388607
        %v1558 = vor.u32 %v1557, 8388608
        %v1559 = vsub.s32 0, %v1558
        %v1560 = vadd.s32 %v1555, 1
        %vm1561 = vcmp.gt.s32.totalorder %v1560, 0
        %v1562 = vsel %vm1561, %v1560, 0
        %v1563 = vshrl.u32 %v1562, 5
        %v1564 = vand.u32 %v1562, 31
        %v1565 = vsub.s32 32, %v1564
        %v1566 = vshrl.u32 683565275, %v1565
        %v1567 = vshll.u32 683565275, %v1564
        %v1568 = vshrl.u32 2475754826, %v1565
        %v1569 = vor.u32 %v1567, %v1568
        %v1570 = vshll.u32 2475754826, %v1564
        %v1571 = vshrl.u32 2131351028, %v1565
        %v1572 = vor.u32 %v1570, %v1571
        %v1573 = vshll.u32 2131351028, %v1564
        %v1574 = vshrl.u32 2102212464, %v1565
        %v1575 = vor.u32 %v1573, %v1574
        %v1576 = vshll.u32 2102212464, %v1564
        %v1577 = vshrl.u32 920167782, %v1565
        %v1578 = vor.u32 %v1576, %v1577
        %v1579 = vshll.u32 920167782, %v1564
        %v1580 = vshrl.u32 1326507024, %v1565
        %v1581 = vor.u32 %v1579, %v1580
        %vm1582 = vcmp.lt.s32.totalorder %v1563, 1
        %vm1583 = vcmp.lt.s32.totalorder %v1563, 2
        %vm1584 = vcmp.lt.s32.totalorder %v1563, 3
        %vm1585 = vcmp.lt.s32.totalorder %v1563, 4
        %v1586 = vsel %vm1582, %v1566, %v1569
        %v1587 = vsel %vm1585, %v1575, 2102212464
        %v1588 = vsel %vm1584, %v1572, %v1587
        %v1589 = vsel %vm1583, %v1586, %v1588
        %v1590 = vsel %vm1582, %v1569, %v1572
        %v1591 = vsel %vm1585, %v1578, 920167782
        %v1592 = vsel %vm1584, %v1575, %v1591
        %v1593 = vsel %vm1583, %v1590, %v1592
        %v1594 = vsel %vm1582, %v1572, %v1575
        %v1595 = vsel %vm1585, %v1581, 1326507024
        %v1596 = vsel %vm1584, %v1578, %v1595
        %v1597 = vsel %vm1583, %v1594, %v1596
        %v1598 = vshll.u32 %v1558, 8
        %v1599 = vmul.u32.u64.compose %v1598, %v1597
        %v1600 = vextract.low.u32 %v1599
        %v1601 = vextract.high.u32 %v1599
        %v1602 = vmul.u32.u64.compose %v1598, %v1593
        %v1603 = vextract.low.u32 %v1602
        %v1604 = vextract.high.u32 %v1602
        %v1605 = vmul.u32 %v1598, %v1589
        %v1606 = vadd.s32 %v1601, %v1603
        %vm1607 = vc.u32 %v1601, %v1603
        %v1608 = vadd.s32 %v1604, 1
        %v1609 = vsel %vm1607, %v1608, %v1604
        %v1610 = vadd.s32 %v1605, %v1609
        %v1611 = vadd.s32 %v1610, 536870912
        %v1612 = vshrl.u32 %v1611, 30
        %v1613 = vshll.u32 %v1612, 30
        %v1614 = vsub.s32 %v1610, %v1613
        %vm1615 = vcmp.lt.s32.totalorder %v1614, 0
        %v1616 = vsub.s32 0, %v1614
        %v1617 = vsel %vm1615, %v1616, %v1614
        %v1618 = vclz %v1617
        %v1619 = vsub.s32 %v1618, 2
        %vm1620 = vcmp.gt.s32.totalorder 0, %v1619
        %v1621 = vsel %vm1620, 0, %v1619
        %v1622 = vsub.s32 32, %v1621
        %v1623 = vshll.u32 %v1614, %v1621
        %v1624 = vshrl.u32 %v1606, %v1622
        %v1625 = vor.u32 %v1623, %v1624
        %v1626 = vsub.s32 4294967266, %v1621
        %v1627 = vadd.s32 %v1626, 127
        %v1628 = vshll.u32 %v1627, 23
        %v1629 = vor.u32 4788187, %v1628
        %v1630 = vand.u32 2147483647, %v1629
        %v1632 = vcvt.s32.f32 %v1625
        %v1633 = vmul.f32 %v1632, %v1630
        %v1634 = vxor.u32 %v1633, 2147483648
        %v1635 = vsel %vm1552, %v1634, %v1633
        %v1636 = vsub.s32 4, %v1612
        %v1637 = vsel %vm1552, %v1636, %v1612
        %v1638 = vsel %vm1551, %v386, %v1635
        %v1639 = vsel %vm1551, 0, %v1637
        %v1640 = vcosq.f32.pop %v1638
        %v1641 = vsinq.f32.pop %v1638
        %vm1642 = vweird.f32 %v386
        %v1643 = vadd.s32 %v1639, 3
        %v1644 = vand.u32 %v1643, 3
        %vm1645 = vcmp.lt.s32.totalorder %v1644, 2
        %vm1646 = vcmp.eq.s32.totalorder %v1644, 0
        %v1647 = vxor.u32 %v1641, 2147483648
        %v1648 = vsel %vm1646, %v1640, %v1647
        %vm1649 = vcmp.eq.s32.totalorder %v1644, 2
        %v1650 = vxor.u32 %v1640, 2147483648
        %v1651 = vsel %vm1649, %v1650, %v1641
        %v1652 = vsel %vm1645, %v1648, %v1651
        %v1653 = vsel %vm1642, nan, %v1652
        %v1654 = vand.u32 2147483647, %v387
        %vm1655 = vcmp.le.f32.partialorder %v1654, 0.7853982
        %vm1656 = vcmp.lt.s32.totalorder %v387, 0
        %v1657 = vand.u32 %v387, 2139095040
        %v1658 = vshrl.u32 %v1657, 23
        %v1659 = vsub.s32 %v1658, 127
        %v1660 = vand.u32 2147483647, %v387
        %v1661 = vand.u32 %v1660, 8388607
        %v1662 = vor.u32 %v1661, 8388608
        %v1663 = vsub.s32 0, %v1662
        %v1664 = vadd.s32 %v1659, 1
        %vm1665 = vcmp.gt.s32.totalorder %v1664, 0
        %v1666 = vsel %vm1665, %v1664, 0
        %v1667 = vshrl.u32 %v1666, 5
        %v1668 = vand.u32 %v1666, 31
        %v1669 = vsub.s32 32, %v1668
        %v1670 = vshrl.u32 683565275, %v1669
        %v1671 = vshll.u32 683565275, %v1668
        %v1672 = vshrl.u32 2475754826, %v1669
        %v1673 = vor.u32 %v1671, %v1672
        %v1674 = vshll.u32 2475754826, %v1668
        %v1675 = vshrl.u32 2131351028, %v1669
        %v1676 = vor.u32 %v1674, %v1675
        %v1677 = vshll.u32 2131351028, %v1668
        %v1678 = vshrl.u32 2102212464, %v1669
        %v1679 = vor.u32 %v1677, %v1678
        %v1680 = vshll.u32 2102212464, %v1668
        %v1681 = vshrl.u32 920167782, %v1669
        %v1682 = vor.u32 %v1680, %v1681
        %v1683 = vshll.u32 920167782, %v1668
        %v1684 = vshrl.u32 1326507024, %v1669
        %v1685 = vor.u32 %v1683, %v1684
        %vm1686 = vcmp.lt.s32.totalorder %v1667, 1
        %vm1687 = vcmp.lt.s32.totalorder %v1667, 2
        %vm1688 = vcmp.lt.s32.totalorder %v1667, 3
        %vm1689 = vcmp.lt.s32.totalorder %v1667, 4
        %v1690 = vsel %vm1686, %v1670, %v1673
        %v1691 = vsel %vm1689, %v1679, 2102212464
        %v1692 = vsel %vm1688, %v1676, %v1691
        %v1693 = vsel %vm1687, %v1690, %v1692
        %v1694 = vsel %vm1686, %v1673, %v1676
        %v1695 = vsel %vm1689, %v1682, 920167782
        %v1696 = vsel %vm1688, %v1679, %v1695
        %v1697 = vsel %vm1687, %v1694, %v1696
        %v1698 = vsel %vm1686, %v1676, %v1679
        %v1699 = vsel %vm1689, %v1685, 1326507024
        %v1700 = vsel %vm1688, %v1682, %v1699
        %v1701 = vsel %vm1687, %v1698, %v1700
        %v1702 = vshll.u32 %v1662, 8
        %v1703 = vmul.u32.u64.compose %v1702, %v1701
        %v1704 = vextract.low.u32 %v1703
        %v1705 = vextract.high.u32 %v1703
        %v1706 = vmul.u32.u64.compose %v1702, %v1697
        %v1707 = vextract.low.u32 %v1706
        %v1708 = vextract.high.u32 %v1706
        %v1709 = vmul.u32 %v1702, %v1693
        %v1710 = vadd.s32 %v1705, %v1707
        %vm1711 = vc.u32 %v1705, %v1707
        %v1712 = vadd.s32 %v1708, 1
        %v1713 = vsel %vm1711, %v1712, %v1708
        %v1714 = vadd.s32 %v1709, %v1713
        %v1715 = vadd.s32 %v1714, 536870912
        %v1716 = vshrl.u32 %v1715, 30
        %v1717 = vshll.u32 %v1716, 30
        %v1718 = vsub.s32 %v1714, %v1717
        %vm1719 = vcmp.lt.s32.totalorder %v1718, 0
        %v1720 = vsub.s32 0, %v1718
        %v1721 = vsel %vm1719, %v1720, %v1718
        %v1722 = vclz %v1721
        %v1723 = vsub.s32 %v1722, 2
        %vm1724 = vcmp.gt.s32.totalorder 0, %v1723
        %v1725 = vsel %vm1724, 0, %v1723
        %v1726 = vsub.s32 32, %v1725
        %v1727 = vshll.u32 %v1718, %v1725
        %v1728 = vshrl.u32 %v1710, %v1726
        %v1729 = vor.u32 %v1727, %v1728
        %v1730 = vsub.s32 4294967266, %v1725
        %v1731 = vadd.s32 %v1730, 127
        %v1732 = vshll.u32 %v1731, 23
        %v1733 = vor.u32 4788187, %v1732
        %v1734 = vand.u32 2147483647, %v1733
        %v1736 = vcvt.s32.f32 %v1729
        %v1737 = vmul.f32 %v1736, %v1734
        %v1738 = vxor.u32 %v1737, 2147483648
        %v1739 = vsel %vm1656, %v1738, %v1737
        %v1740 = vsub.s32 4, %v1716
        %v1741 = vsel %vm1656, %v1740, %v1716
        %v1742 = vsel %vm1655, %v387, %v1739
        %v1743 = vsel %vm1655, 0, %v1741
        %v1744 = vcosq.f32.pop %v1742
        %v1745 = vsinq.f32.pop %v1742
        %vm1746 = vweird.f32 %v387
        %v1747 = vadd.s32 %v1743, 3
        %v1748 = vand.u32 %v1747, 3
        %vm1749 = vcmp.lt.s32.totalorder %v1748, 2
        %vm1750 = vcmp.eq.s32.totalorder %v1748, 0
        %v1751 = vxor.u32 %v1745, 2147483648
        %v1752 = vsel %vm1750, %v1744, %v1751
        %vm1753 = vcmp.eq.s32.totalorder %v1748, 2
        %v1754 = vxor.u32 %v1744, 2147483648
        %v1755 = vsel %vm1753, %v1754, %v1745
        %v1756 = vsel %vm1749, %v1752, %v1755
        %v1757 = vsel %vm1746, nan, %v1756
        %v1758 = vand.u32 2147483647, %v388
        %vm1759 = vcmp.le.f32.partialorder %v1758, 0.7853982
        %vm1760 = vcmp.lt.s32.totalorder %v388, 0
        %v1761 = vand.u32 %v388, 2139095040
        %v1762 = vshrl.u32 %v1761, 23
        %v1763 = vsub.s32 %v1762, 127
        %v1764 = vand.u32 2147483647, %v388
        %v1765 = vand.u32 %v1764, 8388607
        %v1766 = vor.u32 %v1765, 8388608
        %v1767 = vsub.s32 0, %v1766
        %v1768 = vadd.s32 %v1763, 1
        %vm1769 = vcmp.gt.s32.totalorder %v1768, 0
        %v1770 = vsel %vm1769, %v1768, 0
        %v1771 = vshrl.u32 %v1770, 5
        %v1772 = vand.u32 %v1770, 31
        %v1773 = vsub.s32 32, %v1772
        %v1774 = vshrl.u32 683565275, %v1773
        %v1775 = vshll.u32 683565275, %v1772
        %v1776 = vshrl.u32 2475754826, %v1773
        %v1777 = vor.u32 %v1775, %v1776
        %v1778 = vshll.u32 2475754826, %v1772
        %v1779 = vshrl.u32 2131351028, %v1773
        %v1780 = vor.u32 %v1778, %v1779
        %v1781 = vshll.u32 2131351028, %v1772
        %v1782 = vshrl.u32 2102212464, %v1773
        %v1783 = vor.u32 %v1781, %v1782
        %v1784 = vshll.u32 2102212464, %v1772
        %v1785 = vshrl.u32 920167782, %v1773
        %v1786 = vor.u32 %v1784, %v1785
        %v1787 = vshll.u32 920167782, %v1772
        %v1788 = vshrl.u32 1326507024, %v1773
        %v1789 = vor.u32 %v1787, %v1788
        %vm1790 = vcmp.lt.s32.totalorder %v1771, 1
        %vm1791 = vcmp.lt.s32.totalorder %v1771, 2
        %vm1792 = vcmp.lt.s32.totalorder %v1771, 3
        %vm1793 = vcmp.lt.s32.totalorder %v1771, 4
        %v1794 = vsel %vm1790, %v1774, %v1777
        %v1795 = vsel %vm1793, %v1783, 2102212464
        %v1796 = vsel %vm1792, %v1780, %v1795
        %v1797 = vsel %vm1791, %v1794, %v1796
        %v1798 = vsel %vm1790, %v1777, %v1780
        %v1799 = vsel %vm1793, %v1786, 920167782
        %v1800 = vsel %vm1792, %v1783, %v1799
        %v1801 = vsel %vm1791, %v1798, %v1800
        %v1802 = vsel %vm1790, %v1780, %v1783
        %v1803 = vsel %vm1793, %v1789, 1326507024
        %v1804 = vsel %vm1792, %v1786, %v1803
        %v1805 = vsel %vm1791, %v1802, %v1804
        %v1806 = vshll.u32 %v1766, 8
        %v1807 = vmul.u32.u64.compose %v1806, %v1805
        %v1808 = vextract.low.u32 %v1807
        %v1809 = vextract.high.u32 %v1807
        %v1810 = vmul.u32.u64.compose %v1806, %v1801
        %v1811 = vextract.low.u32 %v1810
        %v1812 = vextract.high.u32 %v1810
        %v1813 = vmul.u32 %v1806, %v1797
        %v1814 = vadd.s32 %v1809, %v1811
        %vm1815 = vc.u32 %v1809, %v1811
        %v1816 = vadd.s32 %v1812, 1
        %v1817 = vsel %vm1815, %v1816, %v1812
        %v1818 = vadd.s32 %v1813, %v1817
        %v1819 = vadd.s32 %v1818, 536870912
        %v1820 = vshrl.u32 %v1819, 30
        %v1821 = vshll.u32 %v1820, 30
        %v1822 = vsub.s32 %v1818, %v1821
        %vm1823 = vcmp.lt.s32.totalorder %v1822, 0
        %v1824 = vsub.s32 0, %v1822
        %v1825 = vsel %vm1823, %v1824, %v1822
        %v1826 = vclz %v1825
        %v1827 = vsub.s32 %v1826, 2
        %vm1828 = vcmp.gt.s32.totalorder 0, %v1827
        %v1829 = vsel %vm1828, 0, %v1827
        %v1830 = vsub.s32 32, %v1829
        %v1831 = vshll.u32 %v1822, %v1829
        %v1832 = vshrl.u32 %v1814, %v1830
        %v1833 = vor.u32 %v1831, %v1832
        %v1834 = vsub.s32 4294967266, %v1829
        %v1835 = vadd.s32 %v1834, 127
        %v1836 = vshll.u32 %v1835, 23
        %v1837 = vor.u32 4788187, %v1836
        %v1838 = vand.u32 2147483647, %v1837
        %v1840 = vcvt.s32.f32 %v1833
        %v1841 = vmul.f32 %v1840, %v1838
        %v1842 = vxor.u32 %v1841, 2147483648
        %v1843 = vsel %vm1760, %v1842, %v1841
        %v1844 = vsub.s32 4, %v1820
        %v1845 = vsel %vm1760, %v1844, %v1820
        %v1846 = vsel %vm1759, %v388, %v1843
        %v1847 = vsel %vm1759, 0, %v1845
        %v1848 = vcosq.f32.pop %v1846
        %v1849 = vsinq.f32.pop %v1846
        %vm1850 = vweird.f32 %v388
        %v1851 = vadd.s32 %v1847, 3
        %v1852 = vand.u32 %v1851, 3
        %vm1853 = vcmp.lt.s32.totalorder %v1852, 2
        %vm1854 = vcmp.eq.s32.totalorder %v1852, 0
        %v1855 = vxor.u32 %v1849, 2147483648
        %v1856 = vsel %vm1854, %v1848, %v1855
        %vm1857 = vcmp.eq.s32.totalorder %v1852, 2
        %v1858 = vxor.u32 %v1848, 2147483648
        %v1859 = vsel %vm1857, %v1858, %v1849
        %v1860 = vsel %vm1853, %v1856, %v1859
        %v1861 = vsel %vm1850, nan, %v1860
        %v1862 = vand.u32 2147483647, %v389
        %vm1863 = vcmp.le.f32.partialorder %v1862, 0.7853982
        %vm1864 = vcmp.lt.s32.totalorder %v389, 0
        %v1865 = vand.u32 %v389, 2139095040
        %v1866 = vshrl.u32 %v1865, 23
        %v1867 = vsub.s32 %v1866, 127
        %v1868 = vand.u32 2147483647, %v389
        %v1869 = vand.u32 %v1868, 8388607
        %v1870 = vor.u32 %v1869, 8388608
        %v1871 = vsub.s32 0, %v1870
        %v1872 = vadd.s32 %v1867, 1
        %vm1873 = vcmp.gt.s32.totalorder %v1872, 0
        %v1874 = vsel %vm1873, %v1872, 0
        %v1875 = vshrl.u32 %v1874, 5
        %v1876 = vand.u32 %v1874, 31
        %v1877 = vsub.s32 32, %v1876
        %v1878 = vshrl.u32 683565275, %v1877
        %v1879 = vshll.u32 683565275, %v1876
        %v1880 = vshrl.u32 2475754826, %v1877
        %v1881 = vor.u32 %v1879, %v1880
        %v1882 = vshll.u32 2475754826, %v1876
        %v1883 = vshrl.u32 2131351028, %v1877
        %v1884 = vor.u32 %v1882, %v1883
        %v1885 = vshll.u32 2131351028, %v1876
        %v1886 = vshrl.u32 2102212464, %v1877
        %v1887 = vor.u32 %v1885, %v1886
        %v1888 = vshll.u32 2102212464, %v1876
        %v1889 = vshrl.u32 920167782, %v1877
        %v1890 = vor.u32 %v1888, %v1889
        %v1891 = vshll.u32 920167782, %v1876
        %v1892 = vshrl.u32 1326507024, %v1877
        %v1893 = vor.u32 %v1891, %v1892
        %vm1894 = vcmp.lt.s32.totalorder %v1875, 1
        %vm1895 = vcmp.lt.s32.totalorder %v1875, 2
        %vm1896 = vcmp.lt.s32.totalorder %v1875, 3
        %vm1897 = vcmp.lt.s32.totalorder %v1875, 4
        %v1898 = vsel %vm1894, %v1878, %v1881
        %v1899 = vsel %vm1897, %v1887, 2102212464
        %v1900 = vsel %vm1896, %v1884, %v1899
        %v1901 = vsel %vm1895, %v1898, %v1900
        %v1902 = vsel %vm1894, %v1881, %v1884
        %v1903 = vsel %vm1897, %v1890, 920167782
        %v1904 = vsel %vm1896, %v1887, %v1903
        %v1905 = vsel %vm1895, %v1902, %v1904
        %v1906 = vsel %vm1894, %v1884, %v1887
        %v1907 = vsel %vm1897, %v1893, 1326507024
        %v1908 = vsel %vm1896, %v1890, %v1907
        %v1909 = vsel %vm1895, %v1906, %v1908
        %v1910 = vshll.u32 %v1870, 8
        %v1911 = vmul.u32.u64.compose %v1910, %v1909
        %v1912 = vextract.low.u32 %v1911
        %v1913 = vextract.high.u32 %v1911
        %v1914 = vmul.u32.u64.compose %v1910, %v1905
        %v1915 = vextract.low.u32 %v1914
        %v1916 = vextract.high.u32 %v1914
        %v1917 = vmul.u32 %v1910, %v1901
        %v1918 = vadd.s32 %v1913, %v1915
        %vm1919 = vc.u32 %v1913, %v1915
        %v1920 = vadd.s32 %v1916, 1
        %v1921 = vsel %vm1919, %v1920, %v1916
        %v1922 = vadd.s32 %v1917, %v1921
        %v1923 = vadd.s32 %v1922, 536870912
        %v1924 = vshrl.u32 %v1923, 30
        %v1925 = vshll.u32 %v1924, 30
        %v1926 = vsub.s32 %v1922, %v1925
        %vm1927 = vcmp.lt.s32.totalorder %v1926, 0
        %v1928 = vsub.s32 0, %v1926
        %v1929 = vsel %vm1927, %v1928, %v1926
        %v1930 = vclz %v1929
        %v1931 = vsub.s32 %v1930, 2
        %vm1932 = vcmp.gt.s32.totalorder 0, %v1931
        %v1933 = vsel %vm1932, 0, %v1931
        %v1934 = vsub.s32 32, %v1933
        %v1935 = vshll.u32 %v1926, %v1933
        %v1936 = vshrl.u32 %v1918, %v1934
        %v1937 = vor.u32 %v1935, %v1936
        %v1938 = vsub.s32 4294967266, %v1933
        %v1939 = vadd.s32 %v1938, 127
        %v1940 = vshll.u32 %v1939, 23
        %v1941 = vor.u32 4788187, %v1940
        %v1942 = vand.u32 2147483647, %v1941
        %v1944 = vcvt.s32.f32 %v1937
        %v1945 = vmul.f32 %v1944, %v1942
        %v1946 = vxor.u32 %v1945, 2147483648
        %v1947 = vsel %vm1864, %v1946, %v1945
        %v1948 = vsub.s32 4, %v1924
        %v1949 = vsel %vm1864, %v1948, %v1924
        %v1950 = vsel %vm1863, %v389, %v1947
        %v1951 = vsel %vm1863, 0, %v1949
        %v1952 = vcosq.f32.pop %v1950
        %v1953 = vsinq.f32.pop %v1950
        %vm1954 = vweird.f32 %v389
        %v1955 = vadd.s32 %v1951, 3
        %v1956 = vand.u32 %v1955, 3
        %vm1957 = vcmp.lt.s32.totalorder %v1956, 2
        %vm1958 = vcmp.eq.s32.totalorder %v1956, 0
        %v1959 = vxor.u32 %v1953, 2147483648
        %v1960 = vsel %vm1958, %v1952, %v1959
        %vm1961 = vcmp.eq.s32.totalorder %v1956, 2
        %v1962 = vxor.u32 %v1952, 2147483648
        %v1963 = vsel %vm1961, %v1962, %v1953
        %v1964 = vsel %vm1957, %v1960, %v1963
        %v1965 = vsel %vm1954, nan, %v1964
        %v1966 = vand.u32 2147483647, %v390
        %vm1967 = vcmp.le.f32.partialorder %v1966, 0.7853982
        %vm1968 = vcmp.lt.s32.totalorder %v390, 0
        %v1969 = vand.u32 %v390, 2139095040
        %v1970 = vshrl.u32 %v1969, 23
        %v1971 = vsub.s32 %v1970, 127
        %v1972 = vand.u32 2147483647, %v390
        %v1973 = vand.u32 %v1972, 8388607
        %v1974 = vor.u32 %v1973, 8388608
        %v1975 = vsub.s32 0, %v1974
        %v1976 = vadd.s32 %v1971, 1
        %vm1977 = vcmp.gt.s32.totalorder %v1976, 0
        %v1978 = vsel %vm1977, %v1976, 0
        %v1979 = vshrl.u32 %v1978, 5
        %v1980 = vand.u32 %v1978, 31
        %v1981 = vsub.s32 32, %v1980
        %v1982 = vshrl.u32 683565275, %v1981
        %v1983 = vshll.u32 683565275, %v1980
        %v1984 = vshrl.u32 2475754826, %v1981
        %v1985 = vor.u32 %v1983, %v1984
        %v1986 = vshll.u32 2475754826, %v1980
        %v1987 = vshrl.u32 2131351028, %v1981
        %v1988 = vor.u32 %v1986, %v1987
        %v1989 = vshll.u32 2131351028, %v1980
        %v1990 = vshrl.u32 2102212464, %v1981
        %v1991 = vor.u32 %v1989, %v1990
        %v1992 = vshll.u32 2102212464, %v1980
        %v1993 = vshrl.u32 920167782, %v1981
        %v1994 = vor.u32 %v1992, %v1993
        %v1995 = vshll.u32 920167782, %v1980
        %v1996 = vshrl.u32 1326507024, %v1981
        %v1997 = vor.u32 %v1995, %v1996
        %vm1998 = vcmp.lt.s32.totalorder %v1979, 1
        %vm1999 = vcmp.lt.s32.totalorder %v1979, 2
        %vm2000 = vcmp.lt.s32.totalorder %v1979, 3
        %vm2001 = vcmp.lt.s32.totalorder %v1979, 4
        %v2002 = vsel %vm1998, %v1982, %v1985
        %v2003 = vsel %vm2001, %v1991, 2102212464
        %v2004 = vsel %vm2000, %v1988, %v2003
        %v2005 = vsel %vm1999, %v2002, %v2004
        %v2006 = vsel %vm1998, %v1985, %v1988
        %v2007 = vsel %vm2001, %v1994, 920167782
        %v2008 = vsel %vm2000, %v1991, %v2007
        %v2009 = vsel %vm1999, %v2006, %v2008
        %v2010 = vsel %vm1998, %v1988, %v1991
        %v2011 = vsel %vm2001, %v1997, 1326507024
        %v2012 = vsel %vm2000, %v1994, %v2011
        %v2013 = vsel %vm1999, %v2010, %v2012
        %v2014 = vshll.u32 %v1974, 8
        %v2015 = vmul.u32.u64.compose %v2014, %v2013
        %v2016 = vextract.low.u32 %v2015
        %v2017 = vextract.high.u32 %v2015
        %v2018 = vmul.u32.u64.compose %v2014, %v2009
        %v2019 = vextract.low.u32 %v2018
        %v2020 = vextract.high.u32 %v2018
        %v2021 = vmul.u32 %v2014, %v2005
        %v2022 = vadd.s32 %v2017, %v2019
        %vm2023 = vc.u32 %v2017, %v2019
        %v2024 = vadd.s32 %v2020, 1
        %v2025 = vsel %vm2023, %v2024, %v2020
        %v2026 = vadd.s32 %v2021, %v2025
        %v2027 = vadd.s32 %v2026, 536870912
        %v2028 = vshrl.u32 %v2027, 30
        %v2029 = vshll.u32 %v2028, 30
        %v2030 = vsub.s32 %v2026, %v2029
        %vm2031 = vcmp.lt.s32.totalorder %v2030, 0
        %v2032 = vsub.s32 0, %v2030
        %v2033 = vsel %vm2031, %v2032, %v2030
        %v2034 = vclz %v2033
        %v2035 = vsub.s32 %v2034, 2
        %vm2036 = vcmp.gt.s32.totalorder 0, %v2035
        %v2037 = vsel %vm2036, 0, %v2035
        %v2038 = vsub.s32 32, %v2037
        %v2039 = vshll.u32 %v2030, %v2037
        %v2040 = vshrl.u32 %v2022, %v2038
        %v2041 = vor.u32 %v2039, %v2040
        %v2042 = vsub.s32 4294967266, %v2037
        %v2043 = vadd.s32 %v2042, 127
        %v2044 = vshll.u32 %v2043, 23
        %v2045 = vor.u32 4788187, %v2044
        %v2046 = vand.u32 2147483647, %v2045
        %v2048 = vcvt.s32.f32 %v2041
        %v2049 = vmul.f32 %v2048, %v2046
        %v2050 = vxor.u32 %v2049, 2147483648
        %v2051 = vsel %vm1968, %v2050, %v2049
        %v2052 = vsub.s32 4, %v2028
        %v2053 = vsel %vm1968, %v2052, %v2028
        %v2054 = vsel %vm1967, %v390, %v2051
        %v2055 = vsel %vm1967, 0, %v2053
        %v2056 = vcosq.f32.pop %v2054
        %v2057 = vsinq.f32.pop %v2054
        %vm2058 = vweird.f32 %v390
        %v2059 = vadd.s32 %v2055, 3
        %v2060 = vand.u32 %v2059, 3
        %vm2061 = vcmp.lt.s32.totalorder %v2060, 2
        %vm2062 = vcmp.eq.s32.totalorder %v2060, 0
        %v2063 = vxor.u32 %v2057, 2147483648
        %v2064 = vsel %vm2062, %v2056, %v2063
        %vm2065 = vcmp.eq.s32.totalorder %v2060, 2
        %v2066 = vxor.u32 %v2056, 2147483648
        %v2067 = vsel %vm2065, %v2066, %v2057
        %v2068 = vsel %vm2061, %v2064, %v2067
        %v2069 = vsel %vm2058, nan, %v2068
        %v2070 = vand.u32 2147483647, %v375
        %vm2071 = vcmp.le.f32.partialorder %v2070, 0.7853982
        %vm2072 = vcmp.lt.s32.totalorder %v375, 0
        %v2073 = vand.u32 %v375, 2139095040
        %v2074 = vshrl.u32 %v2073, 23
        %v2075 = vsub.s32 %v2074, 127
        %v2076 = vand.u32 2147483647, %v375
        %v2077 = vand.u32 %v2076, 8388607
        %v2078 = vor.u32 %v2077, 8388608
        %v2079 = vsub.s32 0, %v2078
        %v2080 = vadd.s32 %v2075, 1
        %vm2081 = vcmp.gt.s32.totalorder %v2080, 0
        %v2082 = vsel %vm2081, %v2080, 0
        %v2083 = vshrl.u32 %v2082, 5
        %v2084 = vand.u32 %v2082, 31
        %v2085 = vsub.s32 32, %v2084
        %v2086 = vshrl.u32 683565275, %v2085
        %v2087 = vshll.u32 683565275, %v2084
        %v2088 = vshrl.u32 2475754826, %v2085
        %v2089 = vor.u32 %v2087, %v2088
        %v2090 = vshll.u32 2475754826, %v2084
        %v2091 = vshrl.u32 2131351028, %v2085
        %v2092 = vor.u32 %v2090, %v2091
        %v2093 = vshll.u32 2131351028, %v2084
        %v2094 = vshrl.u32 2102212464, %v2085
        %v2095 = vor.u32 %v2093, %v2094
        %v2096 = vshll.u32 2102212464, %v2084
        %v2097 = vshrl.u32 920167782, %v2085
        %v2098 = vor.u32 %v2096, %v2097
        %v2099 = vshll.u32 920167782, %v2084
        %v2100 = vshrl.u32 1326507024, %v2085
        %v2101 = vor.u32 %v2099, %v2100
        %vm2102 = vcmp.lt.s32.totalorder %v2083, 1
        %vm2103 = vcmp.lt.s32.totalorder %v2083, 2
        %vm2104 = vcmp.lt.s32.totalorder %v2083, 3
        %vm2105 = vcmp.lt.s32.totalorder %v2083, 4
        %v2106 = vsel %vm2102, %v2086, %v2089
        %v2107 = vsel %vm2105, %v2095, 2102212464
        %v2108 = vsel %vm2104, %v2092, %v2107
        %v2109 = vsel %vm2103, %v2106, %v2108
        %v2110 = vsel %vm2102, %v2089, %v2092
        %v2111 = vsel %vm2105, %v2098, 920167782
        %v2112 = vsel %vm2104, %v2095, %v2111
        %v2113 = vsel %vm2103, %v2110, %v2112
        %v2114 = vsel %vm2102, %v2092, %v2095
        %v2115 = vsel %vm2105, %v2101, 1326507024
        %v2116 = vsel %vm2104, %v2098, %v2115
        %v2117 = vsel %vm2103, %v2114, %v2116
        %v2118 = vshll.u32 %v2078, 8
        %v2119 = vmul.u32.u64.compose %v2118, %v2117
        %v2120 = vextract.low.u32 %v2119
        %v2121 = vextract.high.u32 %v2119
        %v2122 = vmul.u32.u64.compose %v2118, %v2113
        %v2123 = vextract.low.u32 %v2122
        %v2124 = vextract.high.u32 %v2122
        %v2125 = vmul.u32 %v2118, %v2109
        %v2126 = vadd.s32 %v2121, %v2123
        %vm2127 = vc.u32 %v2121, %v2123
        %v2128 = vadd.s32 %v2124, 1
        %v2129 = vsel %vm2127, %v2128, %v2124
        %v2130 = vadd.s32 %v2125, %v2129
        %v2131 = vadd.s32 %v2130, 536870912
        %v2132 = vshrl.u32 %v2131, 30
        %v2133 = vshll.u32 %v2132, 30
        %v2134 = vsub.s32 %v2130, %v2133
        %vm2135 = vcmp.lt.s32.totalorder %v2134, 0
        %v2136 = vsub.s32 0, %v2134
        %v2137 = vsel %vm2135, %v2136, %v2134
        %v2138 = vclz %v2137
        %v2139 = vsub.s32 %v2138, 2
        %vm2140 = vcmp.gt.s32.totalorder 0, %v2139
        %v2141 = vsel %vm2140, 0, %v2139
        %v2142 = vsub.s32 32, %v2141
        %v2143 = vshll.u32 %v2134, %v2141
        %v2144 = vshrl.u32 %v2126, %v2142
        %v2145 = vor.u32 %v2143, %v2144
        %v2146 = vsub.s32 4294967266, %v2141
        %v2147 = vadd.s32 %v2146, 127
        %v2148 = vshll.u32 %v2147, 23
        %v2149 = vor.u32 4788187, %v2148
        %v2150 = vand.u32 2147483647, %v2149
        %v2152 = vcvt.s32.f32 %v2145
        %v2153 = vmul.f32 %v2152, %v2150
        %v2154 = vxor.u32 %v2153, 2147483648
        %v2155 = vsel %vm2072, %v2154, %v2153
        %v2156 = vsub.s32 4, %v2132
        %v2157 = vsel %vm2072, %v2156, %v2132
        %v2158 = vsel %vm2071, %v375, %v2155
        %v2159 = vsel %vm2071, 0, %v2157
        %v2160 = vcosq.f32.pop %v2158
        %v2161 = vsinq.f32.pop %v2158
        %vm2162 = vweird.f32 %v375
        %v2163 = vand.u32 %v2159, 3
        %vm2164 = vcmp.lt.s32.totalorder %v2163, 2
        %vm2165 = vcmp.eq.s32.totalorder %v2163, 0
        %v2166 = vxor.u32 %v2161, 2147483648
        %v2167 = vsel %vm2165, %v2160, %v2166
        %vm2168 = vcmp.eq.s32.totalorder %v2163, 2
        %v2169 = vxor.u32 %v2160, 2147483648
        %v2170 = vsel %vm2168, %v2169, %v2161
        %v2171 = vsel %vm2164, %v2167, %v2170
        %v2172 = vsel %vm2162, nan, %v2171
        %v2173 = vand.u32 2147483647, %v376
        %vm2174 = vcmp.le.f32.partialorder %v2173, 0.7853982
        %vm2175 = vcmp.lt.s32.totalorder %v376, 0
        %v2176 = vand.u32 %v376, 2139095040
        %v2177 = vshrl.u32 %v2176, 23
        %v2178 = vsub.s32 %v2177, 127
        %v2179 = vand.u32 2147483647, %v376
        %v2180 = vand.u32 %v2179, 8388607
        %v2181 = vor.u32 %v2180, 8388608
        %v2182 = vsub.s32 0, %v2181
        %v2183 = vadd.s32 %v2178, 1
        %vm2184 = vcmp.gt.s32.totalorder %v2183, 0
        %v2185 = vsel %vm2184, %v2183, 0
        %v2186 = vshrl.u32 %v2185, 5
        %v2187 = vand.u32 %v2185, 31
        %v2188 = vsub.s32 32, %v2187
        %v2189 = vshrl.u32 683565275, %v2188
        %v2190 = vshll.u32 683565275, %v2187
        %v2191 = vshrl.u32 2475754826, %v2188
        %v2192 = vor.u32 %v2190, %v2191
        %v2193 = vshll.u32 2475754826, %v2187
        %v2194 = vshrl.u32 2131351028, %v2188
        %v2195 = vor.u32 %v2193, %v2194
        %v2196 = vshll.u32 2131351028, %v2187
        %v2197 = vshrl.u32 2102212464, %v2188
        %v2198 = vor.u32 %v2196, %v2197
        %v2199 = vshll.u32 2102212464, %v2187
        %v2200 = vshrl.u32 920167782, %v2188
        %v2201 = vor.u32 %v2199, %v2200
        %v2202 = vshll.u32 920167782, %v2187
        %v2203 = vshrl.u32 1326507024, %v2188
        %v2204 = vor.u32 %v2202, %v2203
        %vm2205 = vcmp.lt.s32.totalorder %v2186, 1
        %vm2206 = vcmp.lt.s32.totalorder %v2186, 2
        %vm2207 = vcmp.lt.s32.totalorder %v2186, 3
        %vm2208 = vcmp.lt.s32.totalorder %v2186, 4
        %v2209 = vsel %vm2205, %v2189, %v2192
        %v2210 = vsel %vm2208, %v2198, 2102212464
        %v2211 = vsel %vm2207, %v2195, %v2210
        %v2212 = vsel %vm2206, %v2209, %v2211
        %v2213 = vsel %vm2205, %v2192, %v2195
        %v2214 = vsel %vm2208, %v2201, 920167782
        %v2215 = vsel %vm2207, %v2198, %v2214
        %v2216 = vsel %vm2206, %v2213, %v2215
        %v2217 = vsel %vm2205, %v2195, %v2198
        %v2218 = vsel %vm2208, %v2204, 1326507024
        %v2219 = vsel %vm2207, %v2201, %v2218
        %v2220 = vsel %vm2206, %v2217, %v2219
        %v2221 = vshll.u32 %v2181, 8
        %v2222 = vmul.u32.u64.compose %v2221, %v2220
        %v2223 = vextract.low.u32 %v2222
        %v2224 = vextract.high.u32 %v2222
        %v2225 = vmul.u32.u64.compose %v2221, %v2216
        %v2226 = vextract.low.u32 %v2225
        %v2227 = vextract.high.u32 %v2225
        %v2228 = vmul.u32 %v2221, %v2212
        %v2229 = vadd.s32 %v2224, %v2226
        %vm2230 = vc.u32 %v2224, %v2226
        %v2231 = vadd.s32 %v2227, 1
        %v2232 = vsel %vm2230, %v2231, %v2227
        %v2233 = vadd.s32 %v2228, %v2232
        %v2234 = vadd.s32 %v2233, 536870912
        %v2235 = vshrl.u32 %v2234, 30
        %v2236 = vshll.u32 %v2235, 30
        %v2237 = vsub.s32 %v2233, %v2236
        %vm2238 = vcmp.lt.s32.totalorder %v2237, 0
        %v2239 = vsub.s32 0, %v2237
        %v2240 = vsel %vm2238, %v2239, %v2237
        %v2241 = vclz %v2240
        %v2242 = vsub.s32 %v2241, 2
        %vm2243 = vcmp.gt.s32.totalorder 0, %v2242
        %v2244 = vsel %vm2243, 0, %v2242
        %v2245 = vsub.s32 32, %v2244
        %v2246 = vshll.u32 %v2237, %v2244
        %v2247 = vshrl.u32 %v2229, %v2245
        %v2248 = vor.u32 %v2246, %v2247
        %v2249 = vsub.s32 4294967266, %v2244
        %v2250 = vadd.s32 %v2249, 127
        %v2251 = vshll.u32 %v2250, 23
        %v2252 = vor.u32 4788187, %v2251
        %v2253 = vand.u32 2147483647, %v2252
        %v2255 = vcvt.s32.f32 %v2248
        %v2256 = vmul.f32 %v2255, %v2253
        %v2257 = vxor.u32 %v2256, 2147483648
        %v2258 = vsel %vm2175, %v2257, %v2256
        %v2259 = vsub.s32 4, %v2235
        %v2260 = vsel %vm2175, %v2259, %v2235
        %v2261 = vsel %vm2174, %v376, %v2258
        %v2262 = vsel %vm2174, 0, %v2260
        %v2263 = vcosq.f32.pop %v2261
        %v2264 = vsinq.f32.pop %v2261
        %vm2265 = vweird.f32 %v376
        %v2266 = vand.u32 %v2262, 3
        %vm2267 = vcmp.lt.s32.totalorder %v2266, 2
        %vm2268 = vcmp.eq.s32.totalorder %v2266, 0
        %v2269 = vxor.u32 %v2264, 2147483648
        %v2270 = vsel %vm2268, %v2263, %v2269
        %vm2271 = vcmp.eq.s32.totalorder %v2266, 2
        %v2272 = vxor.u32 %v2263, 2147483648
        %v2273 = vsel %vm2271, %v2272, %v2264
        %v2274 = vsel %vm2267, %v2270, %v2273
        %v2275 = vsel %vm2265, nan, %v2274
        %v2276 = vand.u32 2147483647, %v377
        %vm2277 = vcmp.le.f32.partialorder %v2276, 0.7853982
        %vm2278 = vcmp.lt.s32.totalorder %v377, 0
        %v2279 = vand.u32 %v377, 2139095040
        %v2280 = vshrl.u32 %v2279, 23
        %v2281 = vsub.s32 %v2280, 127
        %v2282 = vand.u32 2147483647, %v377
        %v2283 = vand.u32 %v2282, 8388607
        %v2284 = vor.u32 %v2283, 8388608
        %v2285 = vsub.s32 0, %v2284
        %v2286 = vadd.s32 %v2281, 1
        %vm2287 = vcmp.gt.s32.totalorder %v2286, 0
        %v2288 = vsel %vm2287, %v2286, 0
        %v2289 = vshrl.u32 %v2288, 5
        %v2290 = vand.u32 %v2288, 31
        %v2291 = vsub.s32 32, %v2290
        %v2292 = vshrl.u32 683565275, %v2291
        %v2293 = vshll.u32 683565275, %v2290
        %v2294 = vshrl.u32 2475754826, %v2291
        %v2295 = vor.u32 %v2293, %v2294
        %v2296 = vshll.u32 2475754826, %v2290
        %v2297 = vshrl.u32 2131351028, %v2291
        %v2298 = vor.u32 %v2296, %v2297
        %v2299 = vshll.u32 2131351028, %v2290
        %v2300 = vshrl.u32 2102212464, %v2291
        %v2301 = vor.u32 %v2299, %v2300
        %v2302 = vshll.u32 2102212464, %v2290
        %v2303 = vshrl.u32 920167782, %v2291
        %v2304 = vor.u32 %v2302, %v2303
        %v2305 = vshll.u32 920167782, %v2290
        %v2306 = vshrl.u32 1326507024, %v2291
        %v2307 = vor.u32 %v2305, %v2306
        %vm2308 = vcmp.lt.s32.totalorder %v2289, 1
        %vm2309 = vcmp.lt.s32.totalorder %v2289, 2
        %vm2310 = vcmp.lt.s32.totalorder %v2289, 3
        %vm2311 = vcmp.lt.s32.totalorder %v2289, 4
        %v2312 = vsel %vm2308, %v2292, %v2295
        %v2313 = vsel %vm2311, %v2301, 2102212464
        %v2314 = vsel %vm2310, %v2298, %v2313
        %v2315 = vsel %vm2309, %v2312, %v2314
        %v2316 = vsel %vm2308, %v2295, %v2298
        %v2317 = vsel %vm2311, %v2304, 920167782
        %v2318 = vsel %vm2310, %v2301, %v2317
        %v2319 = vsel %vm2309, %v2316, %v2318
        %v2320 = vsel %vm2308, %v2298, %v2301
        %v2321 = vsel %vm2311, %v2307, 1326507024
        %v2322 = vsel %vm2310, %v2304, %v2321
        %v2323 = vsel %vm2309, %v2320, %v2322
        %v2324 = vshll.u32 %v2284, 8
        %v2325 = vmul.u32.u64.compose %v2324, %v2323
        %v2326 = vextract.low.u32 %v2325
        %v2327 = vextract.high.u32 %v2325
        %v2328 = vmul.u32.u64.compose %v2324, %v2319
        %v2329 = vextract.low.u32 %v2328
        %v2330 = vextract.high.u32 %v2328
        %v2331 = vmul.u32 %v2324, %v2315
        %v2332 = vadd.s32 %v2327, %v2329
        %vm2333 = vc.u32 %v2327, %v2329
        %v2334 = vadd.s32 %v2330, 1
        %v2335 = vsel %vm2333, %v2334, %v2330
        %v2336 = vadd.s32 %v2331, %v2335
        %v2337 = vadd.s32 %v2336, 536870912
        %v2338 = vshrl.u32 %v2337, 30
        %v2339 = vshll.u32 %v2338, 30
        %v2340 = vsub.s32 %v2336, %v2339
        %vm2341 = vcmp.lt.s32.totalorder %v2340, 0
        %v2342 = vsub.s32 0, %v2340
        %v2343 = vsel %vm2341, %v2342, %v2340
        %v2344 = vclz %v2343
        %v2345 = vsub.s32 %v2344, 2
        %vm2346 = vcmp.gt.s32.totalorder 0, %v2345
        %v2347 = vsel %vm2346, 0, %v2345
        %v2348 = vsub.s32 32, %v2347
        %v2349 = vshll.u32 %v2340, %v2347
        %v2350 = vshrl.u32 %v2332, %v2348
        %v2351 = vor.u32 %v2349, %v2350
        %v2352 = vsub.s32 4294967266, %v2347
        %v2353 = vadd.s32 %v2352, 127
        %v2354 = vshll.u32 %v2353, 23
        %v2355 = vor.u32 4788187, %v2354
        %v2356 = vand.u32 2147483647, %v2355
        %v2358 = vcvt.s32.f32 %v2351
        %v2359 = vmul.f32 %v2358, %v2356
        %v2360 = vxor.u32 %v2359, 2147483648
        %v2361 = vsel %vm2278, %v2360, %v2359
        %v2362 = vsub.s32 4, %v2338
        %v2363 = vsel %vm2278, %v2362, %v2338
        %v2364 = vsel %vm2277, %v377, %v2361
        %v2365 = vsel %vm2277, 0, %v2363
        %v2366 = vcosq.f32.pop %v2364
        %v2367 = vsinq.f32.pop %v2364
        %vm2368 = vweird.f32 %v377
        %v2369 = vand.u32 %v2365, 3
        %vm2370 = vcmp.lt.s32.totalorder %v2369, 2
        %vm2371 = vcmp.eq.s32.totalorder %v2369, 0
        %v2372 = vxor.u32 %v2367, 2147483648
        %v2373 = vsel %vm2371, %v2366, %v2372
        %vm2374 = vcmp.eq.s32.totalorder %v2369, 2
        %v2375 = vxor.u32 %v2366, 2147483648
        %v2376 = vsel %vm2374, %v2375, %v2367
        %v2377 = vsel %vm2370, %v2373, %v2376
        %v2378 = vsel %vm2368, nan, %v2377
        %v2379 = vand.u32 2147483647, %v378
        %vm2380 = vcmp.le.f32.partialorder %v2379, 0.7853982
        %vm2381 = vcmp.lt.s32.totalorder %v378, 0
        %v2382 = vand.u32 %v378, 2139095040
        %v2383 = vshrl.u32 %v2382, 23
        %v2384 = vsub.s32 %v2383, 127
        %v2385 = vand.u32 2147483647, %v378
        %v2386 = vand.u32 %v2385, 8388607
        %v2387 = vor.u32 %v2386, 8388608
        %v2388 = vsub.s32 0, %v2387
        %v2389 = vadd.s32 %v2384, 1
        %vm2390 = vcmp.gt.s32.totalorder %v2389, 0
        %v2391 = vsel %vm2390, %v2389, 0
        %v2392 = vshrl.u32 %v2391, 5
        %v2393 = vand.u32 %v2391, 31
        %v2394 = vsub.s32 32, %v2393
        %v2395 = vshrl.u32 683565275, %v2394
        %v2396 = vshll.u32 683565275, %v2393
        %v2397 = vshrl.u32 2475754826, %v2394
        %v2398 = vor.u32 %v2396, %v2397
        %v2399 = vshll.u32 2475754826, %v2393
        %v2400 = vshrl.u32 2131351028, %v2394
        %v2401 = vor.u32 %v2399, %v2400
        %v2402 = vshll.u32 2131351028, %v2393
        %v2403 = vshrl.u32 2102212464, %v2394
        %v2404 = vor.u32 %v2402, %v2403
        %v2405 = vshll.u32 2102212464, %v2393
        %v2406 = vshrl.u32 920167782, %v2394
        %v2407 = vor.u32 %v2405, %v2406
        %v2408 = vshll.u32 920167782, %v2393
        %v2409 = vshrl.u32 1326507024, %v2394
        %v2410 = vor.u32 %v2408, %v2409
        %vm2411 = vcmp.lt.s32.totalorder %v2392, 1
        %vm2412 = vcmp.lt.s32.totalorder %v2392, 2
        %vm2413 = vcmp.lt.s32.totalorder %v2392, 3
        %vm2414 = vcmp.lt.s32.totalorder %v2392, 4
        %v2415 = vsel %vm2411, %v2395, %v2398
        %v2416 = vsel %vm2414, %v2404, 2102212464
        %v2417 = vsel %vm2413, %v2401, %v2416
        %v2418 = vsel %vm2412, %v2415, %v2417
        %v2419 = vsel %vm2411, %v2398, %v2401
        %v2420 = vsel %vm2414, %v2407, 920167782
        %v2421 = vsel %vm2413, %v2404, %v2420
        %v2422 = vsel %vm2412, %v2419, %v2421
        %v2423 = vsel %vm2411, %v2401, %v2404
        %v2424 = vsel %vm2414, %v2410, 1326507024
        %v2425 = vsel %vm2413, %v2407, %v2424
        %v2426 = vsel %vm2412, %v2423, %v2425
        %v2427 = vshll.u32 %v2387, 8
        %v2428 = vmul.u32.u64.compose %v2427, %v2426
        %v2429 = vextract.low.u32 %v2428
        %v2430 = vextract.high.u32 %v2428
        %v2431 = vmul.u32.u64.compose %v2427, %v2422
        %v2432 = vextract.low.u32 %v2431
        %v2433 = vextract.high.u32 %v2431
        %v2434 = vmul.u32 %v2427, %v2418
        %v2435 = vadd.s32 %v2430, %v2432
        %vm2436 = vc.u32 %v2430, %v2432
        %v2437 = vadd.s32 %v2433, 1
        %v2438 = vsel %vm2436, %v2437, %v2433
        %v2439 = vadd.s32 %v2434, %v2438
        %v2440 = vadd.s32 %v2439, 536870912
        %v2441 = vshrl.u32 %v2440, 30
        %v2442 = vshll.u32 %v2441, 30
        %v2443 = vsub.s32 %v2439, %v2442
        %vm2444 = vcmp.lt.s32.totalorder %v2443, 0
        %v2445 = vsub.s32 0, %v2443
        %v2446 = vsel %vm2444, %v2445, %v2443
        %v2447 = vclz %v2446
        %v2448 = vsub.s32 %v2447, 2
        %vm2449 = vcmp.gt.s32.totalorder 0, %v2448
        %v2450 = vsel %vm2449, 0, %v2448
        %v2451 = vsub.s32 32, %v2450
        %v2452 = vshll.u32 %v2443, %v2450
        %v2453 = vshrl.u32 %v2435, %v2451
        %v2454 = vor.u32 %v2452, %v2453
        %v2455 = vsub.s32 4294967266, %v2450
        %v2456 = vadd.s32 %v2455, 127
        %v2457 = vshll.u32 %v2456, 23
        %v2458 = vor.u32 4788187, %v2457
        %v2459 = vand.u32 2147483647, %v2458
        %v2461 = vcvt.s32.f32 %v2454
        %v2462 = vmul.f32 %v2461, %v2459
        %v2463 = vxor.u32 %v2462, 2147483648
        %v2464 = vsel %vm2381, %v2463, %v2462
        %v2465 = vsub.s32 4, %v2441
        %v2466 = vsel %vm2381, %v2465, %v2441
        %v2467 = vsel %vm2380, %v378, %v2464
        %v2468 = vsel %vm2380, 0, %v2466
        %v2469 = vcosq.f32.pop %v2467
        %v2470 = vsinq.f32.pop %v2467
        %vm2471 = vweird.f32 %v378
        %v2472 = vand.u32 %v2468, 3
        %vm2473 = vcmp.lt.s32.totalorder %v2472, 2
        %vm2474 = vcmp.eq.s32.totalorder %v2472, 0
        %v2475 = vxor.u32 %v2470, 2147483648
        %v2476 = vsel %vm2474, %v2469, %v2475
        %vm2477 = vcmp.eq.s32.totalorder %v2472, 2
        %v2478 = vxor.u32 %v2469, 2147483648
        %v2479 = vsel %vm2477, %v2478, %v2470
        %v2480 = vsel %vm2473, %v2476, %v2479
        %v2481 = vsel %vm2471, nan, %v2480
        %v2482 = vand.u32 2147483647, %v379
        %vm2483 = vcmp.le.f32.partialorder %v2482, 0.7853982
        %vm2484 = vcmp.lt.s32.totalorder %v379, 0
        %v2485 = vand.u32 %v379, 2139095040
        %v2486 = vshrl.u32 %v2485, 23
        %v2487 = vsub.s32 %v2486, 127
        %v2488 = vand.u32 2147483647, %v379
        %v2489 = vand.u32 %v2488, 8388607
        %v2490 = vor.u32 %v2489, 8388608
        %v2491 = vsub.s32 0, %v2490
        %v2492 = vadd.s32 %v2487, 1
        %vm2493 = vcmp.gt.s32.totalorder %v2492, 0
        %v2494 = vsel %vm2493, %v2492, 0
        %v2495 = vshrl.u32 %v2494, 5
        %v2496 = vand.u32 %v2494, 31
        %v2497 = vsub.s32 32, %v2496
        %v2498 = vshrl.u32 683565275, %v2497
        %v2499 = vshll.u32 683565275, %v2496
        %v2500 = vshrl.u32 2475754826, %v2497
        %v2501 = vor.u32 %v2499, %v2500
        %v2502 = vshll.u32 2475754826, %v2496
        %v2503 = vshrl.u32 2131351028, %v2497
        %v2504 = vor.u32 %v2502, %v2503
        %v2505 = vshll.u32 2131351028, %v2496
        %v2506 = vshrl.u32 2102212464, %v2497
        %v2507 = vor.u32 %v2505, %v2506
        %v2508 = vshll.u32 2102212464, %v2496
        %v2509 = vshrl.u32 920167782, %v2497
        %v2510 = vor.u32 %v2508, %v2509
        %v2511 = vshll.u32 920167782, %v2496
        %v2512 = vshrl.u32 1326507024, %v2497
        %v2513 = vor.u32 %v2511, %v2512
        %vm2514 = vcmp.lt.s32.totalorder %v2495, 1
        %vm2515 = vcmp.lt.s32.totalorder %v2495, 2
        %vm2516 = vcmp.lt.s32.totalorder %v2495, 3
        %vm2517 = vcmp.lt.s32.totalorder %v2495, 4
        %v2518 = vsel %vm2514, %v2498, %v2501
        %v2519 = vsel %vm2517, %v2507, 2102212464
        %v2520 = vsel %vm2516, %v2504, %v2519
        %v2521 = vsel %vm2515, %v2518, %v2520
        %v2522 = vsel %vm2514, %v2501, %v2504
        %v2523 = vsel %vm2517, %v2510, 920167782
        %v2524 = vsel %vm2516, %v2507, %v2523
        %v2525 = vsel %vm2515, %v2522, %v2524
        %v2526 = vsel %vm2514, %v2504, %v2507
        %v2527 = vsel %vm2517, %v2513, 1326507024
        %v2528 = vsel %vm2516, %v2510, %v2527
        %v2529 = vsel %vm2515, %v2526, %v2528
        %v2530 = vshll.u32 %v2490, 8
        %v2531 = vmul.u32.u64.compose %v2530, %v2529
        %v2532 = vextract.low.u32 %v2531
        %v2533 = vextract.high.u32 %v2531
        %v2534 = vmul.u32.u64.compose %v2530, %v2525
        %v2535 = vextract.low.u32 %v2534
        %v2536 = vextract.high.u32 %v2534
        %v2537 = vmul.u32 %v2530, %v2521
        %v2538 = vadd.s32 %v2533, %v2535
        %vm2539 = vc.u32 %v2533, %v2535
        %v2540 = vadd.s32 %v2536, 1
        %v2541 = vsel %vm2539, %v2540, %v2536
        %v2542 = vadd.s32 %v2537, %v2541
        %v2543 = vadd.s32 %v2542, 536870912
        %v2544 = vshrl.u32 %v2543, 30
        %v2545 = vshll.u32 %v2544, 30
        %v2546 = vsub.s32 %v2542, %v2545
        %vm2547 = vcmp.lt.s32.totalorder %v2546, 0
        %v2548 = vsub.s32 0, %v2546
        %v2549 = vsel %vm2547, %v2548, %v2546
        %v2550 = vclz %v2549
        %v2551 = vsub.s32 %v2550, 2
        %vm2552 = vcmp.gt.s32.totalorder 0, %v2551
        %v2553 = vsel %vm2552, 0, %v2551
        %v2554 = vsub.s32 32, %v2553
        %v2555 = vshll.u32 %v2546, %v2553
        %v2556 = vshrl.u32 %v2538, %v2554
        %v2557 = vor.u32 %v2555, %v2556
        %v2558 = vsub.s32 4294967266, %v2553
        %v2559 = vadd.s32 %v2558, 127
        %v2560 = vshll.u32 %v2559, 23
        %v2561 = vor.u32 4788187, %v2560
        %v2562 = vand.u32 2147483647, %v2561
        %v2564 = vcvt.s32.f32 %v2557
        %v2565 = vmul.f32 %v2564, %v2562
        %v2566 = vxor.u32 %v2565, 2147483648
        %v2567 = vsel %vm2484, %v2566, %v2565
        %v2568 = vsub.s32 4, %v2544
        %v2569 = vsel %vm2484, %v2568, %v2544
        %v2570 = vsel %vm2483, %v379, %v2567
        %v2571 = vsel %vm2483, 0, %v2569
        %v2572 = vcosq.f32.pop %v2570
        %v2573 = vsinq.f32.pop %v2570
        %vm2574 = vweird.f32 %v379
        %v2575 = vand.u32 %v2571, 3
        %vm2576 = vcmp.lt.s32.totalorder %v2575, 2
        %vm2577 = vcmp.eq.s32.totalorder %v2575, 0
        %v2578 = vxor.u32 %v2573, 2147483648
        %v2579 = vsel %vm2577, %v2572, %v2578
        %vm2580 = vcmp.eq.s32.totalorder %v2575, 2
        %v2581 = vxor.u32 %v2572, 2147483648
        %v2582 = vsel %vm2580, %v2581, %v2573
        %v2583 = vsel %vm2576, %v2579, %v2582
        %v2584 = vsel %vm2574, nan, %v2583
        %v2585 = vand.u32 2147483647, %v380
        %vm2586 = vcmp.le.f32.partialorder %v2585, 0.7853982
        %vm2587 = vcmp.lt.s32.totalorder %v380, 0
        %v2588 = vand.u32 %v380, 2139095040
        %v2589 = vshrl.u32 %v2588, 23
        %v2590 = vsub.s32 %v2589, 127
        %v2591 = vand.u32 2147483647, %v380
        %v2592 = vand.u32 %v2591, 8388607
        %v2593 = vor.u32 %v2592, 8388608
        %v2594 = vsub.s32 0, %v2593
        %v2595 = vadd.s32 %v2590, 1
        %vm2596 = vcmp.gt.s32.totalorder %v2595, 0
        %v2597 = vsel %vm2596, %v2595, 0
        %v2598 = vshrl.u32 %v2597, 5
        %v2599 = vand.u32 %v2597, 31
        %v2600 = vsub.s32 32, %v2599
        %v2601 = vshrl.u32 683565275, %v2600
        %v2602 = vshll.u32 683565275, %v2599
        %v2603 = vshrl.u32 2475754826, %v2600
        %v2604 = vor.u32 %v2602, %v2603
        %v2605 = vshll.u32 2475754826, %v2599
        %v2606 = vshrl.u32 2131351028, %v2600
        %v2607 = vor.u32 %v2605, %v2606
        %v2608 = vshll.u32 2131351028, %v2599
        %v2609 = vshrl.u32 2102212464, %v2600
        %v2610 = vor.u32 %v2608, %v2609
        %v2611 = vshll.u32 2102212464, %v2599
        %v2612 = vshrl.u32 920167782, %v2600
        %v2613 = vor.u32 %v2611, %v2612
        %v2614 = vshll.u32 920167782, %v2599
        %v2615 = vshrl.u32 1326507024, %v2600
        %v2616 = vor.u32 %v2614, %v2615
        %vm2617 = vcmp.lt.s32.totalorder %v2598, 1
        %vm2618 = vcmp.lt.s32.totalorder %v2598, 2
        %vm2619 = vcmp.lt.s32.totalorder %v2598, 3
        %vm2620 = vcmp.lt.s32.totalorder %v2598, 4
        %v2621 = vsel %vm2617, %v2601, %v2604
        %v2622 = vsel %vm2620, %v2610, 2102212464
        %v2623 = vsel %vm2619, %v2607, %v2622
        %v2624 = vsel %vm2618, %v2621, %v2623
        %v2625 = vsel %vm2617, %v2604, %v2607
        %v2626 = vsel %vm2620, %v2613, 920167782
        %v2627 = vsel %vm2619, %v2610, %v2626
        %v2628 = vsel %vm2618, %v2625, %v2627
        %v2629 = vsel %vm2617, %v2607, %v2610
        %v2630 = vsel %vm2620, %v2616, 1326507024
        %v2631 = vsel %vm2619, %v2613, %v2630
        %v2632 = vsel %vm2618, %v2629, %v2631
        %v2633 = vshll.u32 %v2593, 8
        %v2634 = vmul.u32.u64.compose %v2633, %v2632
        %v2635 = vextract.low.u32 %v2634
        %v2636 = vextract.high.u32 %v2634
        %v2637 = vmul.u32.u64.compose %v2633, %v2628
        %v2638 = vextract.low.u32 %v2637
        %v2639 = vextract.high.u32 %v2637
        %v2640 = vmul.u32 %v2633, %v2624
        %v2641 = vadd.s32 %v2636, %v2638
        %vm2642 = vc.u32 %v2636, %v2638
        %v2643 = vadd.s32 %v2639, 1
        %v2644 = vsel %vm2642, %v2643, %v2639
        %v2645 = vadd.s32 %v2640, %v2644
        %v2646 = vadd.s32 %v2645, 536870912
        %v2647 = vshrl.u32 %v2646, 30
        %v2648 = vshll.u32 %v2647, 30
        %v2649 = vsub.s32 %v2645, %v2648
        %vm2650 = vcmp.lt.s32.totalorder %v2649, 0
        %v2651 = vsub.s32 0, %v2649
        %v2652 = vsel %vm2650, %v2651, %v2649
        %v2653 = vclz %v2652
        %v2654 = vsub.s32 %v2653, 2
        %vm2655 = vcmp.gt.s32.totalorder 0, %v2654
        %v2656 = vsel %vm2655, 0, %v2654
        %v2657 = vsub.s32 32, %v2656
        %v2658 = vshll.u32 %v2649, %v2656
        %v2659 = vshrl.u32 %v2641, %v2657
        %v2660 = vor.u32 %v2658, %v2659
        %v2661 = vsub.s32 4294967266, %v2656
        %v2662 = vadd.s32 %v2661, 127
        %v2663 = vshll.u32 %v2662, 23
        %v2664 = vor.u32 4788187, %v2663
        %v2665 = vand.u32 2147483647, %v2664
        %v2667 = vcvt.s32.f32 %v2660
        %v2668 = vmul.f32 %v2667, %v2665
        %v2669 = vxor.u32 %v2668, 2147483648
        %v2670 = vsel %vm2587, %v2669, %v2668
        %v2671 = vsub.s32 4, %v2647
        %v2672 = vsel %vm2587, %v2671, %v2647
        %v2673 = vsel %vm2586, %v380, %v2670
        %v2674 = vsel %vm2586, 0, %v2672
        %v2675 = vcosq.f32.pop %v2673
        %v2676 = vsinq.f32.pop %v2673
        %vm2677 = vweird.f32 %v380
        %v2678 = vand.u32 %v2674, 3
        %vm2679 = vcmp.lt.s32.totalorder %v2678, 2
        %vm2680 = vcmp.eq.s32.totalorder %v2678, 0
        %v2681 = vxor.u32 %v2676, 2147483648
        %v2682 = vsel %vm2680, %v2675, %v2681
        %vm2683 = vcmp.eq.s32.totalorder %v2678, 2
        %v2684 = vxor.u32 %v2675, 2147483648
        %v2685 = vsel %vm2683, %v2684, %v2676
        %v2686 = vsel %vm2679, %v2682, %v2685
        %v2687 = vsel %vm2677, nan, %v2686
        %v2688 = vand.u32 2147483647, %v381
        %vm2689 = vcmp.le.f32.partialorder %v2688, 0.7853982
        %vm2690 = vcmp.lt.s32.totalorder %v381, 0
        %v2691 = vand.u32 %v381, 2139095040
        %v2692 = vshrl.u32 %v2691, 23
        %v2693 = vsub.s32 %v2692, 127
        %v2694 = vand.u32 2147483647, %v381
        %v2695 = vand.u32 %v2694, 8388607
        %v2696 = vor.u32 %v2695, 8388608
        %v2697 = vsub.s32 0, %v2696
        %v2698 = vadd.s32 %v2693, 1
        %vm2699 = vcmp.gt.s32.totalorder %v2698, 0
        %v2700 = vsel %vm2699, %v2698, 0
        %v2701 = vshrl.u32 %v2700, 5
        %v2702 = vand.u32 %v2700, 31
        %v2703 = vsub.s32 32, %v2702
        %v2704 = vshrl.u32 683565275, %v2703
        %v2705 = vshll.u32 683565275, %v2702
        %v2706 = vshrl.u32 2475754826, %v2703
        %v2707 = vor.u32 %v2705, %v2706
        %v2708 = vshll.u32 2475754826, %v2702
        %v2709 = vshrl.u32 2131351028, %v2703
        %v2710 = vor.u32 %v2708, %v2709
        %v2711 = vshll.u32 2131351028, %v2702
        %v2712 = vshrl.u32 2102212464, %v2703
        %v2713 = vor.u32 %v2711, %v2712
        %v2714 = vshll.u32 2102212464, %v2702
        %v2715 = vshrl.u32 920167782, %v2703
        %v2716 = vor.u32 %v2714, %v2715
        %v2717 = vshll.u32 920167782, %v2702
        %v2718 = vshrl.u32 1326507024, %v2703
        %v2719 = vor.u32 %v2717, %v2718
        %vm2720 = vcmp.lt.s32.totalorder %v2701, 1
        %vm2721 = vcmp.lt.s32.totalorder %v2701, 2
        %vm2722 = vcmp.lt.s32.totalorder %v2701, 3
        %vm2723 = vcmp.lt.s32.totalorder %v2701, 4
        %v2724 = vsel %vm2720, %v2704, %v2707
        %v2725 = vsel %vm2723, %v2713, 2102212464
        %v2726 = vsel %vm2722, %v2710, %v2725
        %v2727 = vsel %vm2721, %v2724, %v2726
        %v2728 = vsel %vm2720, %v2707, %v2710
        %v2729 = vsel %vm2723, %v2716, 920167782
        %v2730 = vsel %vm2722, %v2713, %v2729
        %v2731 = vsel %vm2721, %v2728, %v2730
        %v2732 = vsel %vm2720, %v2710, %v2713
        %v2733 = vsel %vm2723, %v2719, 1326507024
        %v2734 = vsel %vm2722, %v2716, %v2733
        %v2735 = vsel %vm2721, %v2732, %v2734
        %v2736 = vshll.u32 %v2696, 8
        %v2737 = vmul.u32.u64.compose %v2736, %v2735
        %v2738 = vextract.low.u32 %v2737
        %v2739 = vextract.high.u32 %v2737
        %v2740 = vmul.u32.u64.compose %v2736, %v2731
        %v2741 = vextract.low.u32 %v2740
        %v2742 = vextract.high.u32 %v2740
        %v2743 = vmul.u32 %v2736, %v2727
        %v2744 = vadd.s32 %v2739, %v2741
        %vm2745 = vc.u32 %v2739, %v2741
        %v2746 = vadd.s32 %v2742, 1
        %v2747 = vsel %vm2745, %v2746, %v2742
        %v2748 = vadd.s32 %v2743, %v2747
        %v2749 = vadd.s32 %v2748, 536870912
        %v2750 = vshrl.u32 %v2749, 30
        %v2751 = vshll.u32 %v2750, 30
        %v2752 = vsub.s32 %v2748, %v2751
        %vm2753 = vcmp.lt.s32.totalorder %v2752, 0
        %v2754 = vsub.s32 0, %v2752
        %v2755 = vsel %vm2753, %v2754, %v2752
        %v2756 = vclz %v2755
        %v2757 = vsub.s32 %v2756, 2
        %vm2758 = vcmp.gt.s32.totalorder 0, %v2757
        %v2759 = vsel %vm2758, 0, %v2757
        %v2760 = vsub.s32 32, %v2759
        %v2761 = vshll.u32 %v2752, %v2759
        %v2762 = vshrl.u32 %v2744, %v2760
        %v2763 = vor.u32 %v2761, %v2762
        %v2764 = vsub.s32 4294967266, %v2759
        %v2765 = vadd.s32 %v2764, 127
        %v2766 = vshll.u32 %v2765, 23
        %v2767 = vor.u32 4788187, %v2766
        %v2768 = vand.u32 2147483647, %v2767
        %v2770 = vcvt.s32.f32 %v2763
        %v2771 = vmul.f32 %v2770, %v2768
        %v2772 = vxor.u32 %v2771, 2147483648
        %v2773 = vsel %vm2690, %v2772, %v2771
        %v2774 = vsub.s32 4, %v2750
        %v2775 = vsel %vm2690, %v2774, %v2750
        %v2776 = vsel %vm2689, %v381, %v2773
        %v2777 = vsel %vm2689, 0, %v2775
        %v2778 = vcosq.f32.pop %v2776
        %v2779 = vsinq.f32.pop %v2776
        %vm2780 = vweird.f32 %v381
        %v2781 = vand.u32 %v2777, 3
        %vm2782 = vcmp.lt.s32.totalorder %v2781, 2
        %vm2783 = vcmp.eq.s32.totalorder %v2781, 0
        %v2784 = vxor.u32 %v2779, 2147483648
        %v2785 = vsel %vm2783, %v2778, %v2784
        %vm2786 = vcmp.eq.s32.totalorder %v2781, 2
        %v2787 = vxor.u32 %v2778, 2147483648
        %v2788 = vsel %vm2786, %v2787, %v2779
        %v2789 = vsel %vm2782, %v2785, %v2788
        %v2790 = vsel %vm2780, nan, %v2789
        %v2791 = vand.u32 2147483647, %v382
        %vm2792 = vcmp.le.f32.partialorder %v2791, 0.7853982
        %vm2793 = vcmp.lt.s32.totalorder %v382, 0
        %v2794 = vand.u32 %v382, 2139095040
        %v2795 = vshrl.u32 %v2794, 23
        %v2796 = vsub.s32 %v2795, 127
        %v2797 = vand.u32 2147483647, %v382
        %v2798 = vand.u32 %v2797, 8388607
        %v2799 = vor.u32 %v2798, 8388608
        %v2800 = vsub.s32 0, %v2799
        %v2801 = vadd.s32 %v2796, 1
        %vm2802 = vcmp.gt.s32.totalorder %v2801, 0
        %v2803 = vsel %vm2802, %v2801, 0
        %v2804 = vshrl.u32 %v2803, 5
        %v2805 = vand.u32 %v2803, 31
        %v2806 = vsub.s32 32, %v2805
        %v2807 = vshrl.u32 683565275, %v2806
        %v2808 = vshll.u32 683565275, %v2805
        %v2809 = vshrl.u32 2475754826, %v2806
        %v2810 = vor.u32 %v2808, %v2809
        %v2811 = vshll.u32 2475754826, %v2805
        %v2812 = vshrl.u32 2131351028, %v2806
        %v2813 = vor.u32 %v2811, %v2812
        %v2814 = vshll.u32 2131351028, %v2805
        %v2815 = vshrl.u32 2102212464, %v2806
        %v2816 = vor.u32 %v2814, %v2815
        %v2817 = vshll.u32 2102212464, %v2805
        %v2818 = vshrl.u32 920167782, %v2806
        %v2819 = vor.u32 %v2817, %v2818
        %v2820 = vshll.u32 920167782, %v2805
        %v2821 = vshrl.u32 1326507024, %v2806
        %v2822 = vor.u32 %v2820, %v2821
        %vm2823 = vcmp.lt.s32.totalorder %v2804, 1
        %vm2824 = vcmp.lt.s32.totalorder %v2804, 2
        %vm2825 = vcmp.lt.s32.totalorder %v2804, 3
        %vm2826 = vcmp.lt.s32.totalorder %v2804, 4
        %v2827 = vsel %vm2823, %v2807, %v2810
        %v2828 = vsel %vm2826, %v2816, 2102212464
        %v2829 = vsel %vm2825, %v2813, %v2828
        %v2830 = vsel %vm2824, %v2827, %v2829
        %v2831 = vsel %vm2823, %v2810, %v2813
        %v2832 = vsel %vm2826, %v2819, 920167782
        %v2833 = vsel %vm2825, %v2816, %v2832
        %v2834 = vsel %vm2824, %v2831, %v2833
        %v2835 = vsel %vm2823, %v2813, %v2816
        %v2836 = vsel %vm2826, %v2822, 1326507024
        %v2837 = vsel %vm2825, %v2819, %v2836
        %v2838 = vsel %vm2824, %v2835, %v2837
        %v2839 = vshll.u32 %v2799, 8
        %v2840 = vmul.u32.u64.compose %v2839, %v2838
        %v2841 = vextract.low.u32 %v2840
        %v2842 = vextract.high.u32 %v2840
        %v2843 = vmul.u32.u64.compose %v2839, %v2834
        %v2844 = vextract.low.u32 %v2843
        %v2845 = vextract.high.u32 %v2843
        %v2846 = vmul.u32 %v2839, %v2830
        %v2847 = vadd.s32 %v2842, %v2844
        %vm2848 = vc.u32 %v2842, %v2844
        %v2849 = vadd.s32 %v2845, 1
        %v2850 = vsel %vm2848, %v2849, %v2845
        %v2851 = vadd.s32 %v2846, %v2850
        %v2852 = vadd.s32 %v2851, 536870912
        %v2853 = vshrl.u32 %v2852, 30
        %v2854 = vshll.u32 %v2853, 30
        %v2855 = vsub.s32 %v2851, %v2854
        %vm2856 = vcmp.lt.s32.totalorder %v2855, 0
        %v2857 = vsub.s32 0, %v2855
        %v2858 = vsel %vm2856, %v2857, %v2855
        %v2859 = vclz %v2858
        %v2860 = vsub.s32 %v2859, 2
        %vm2861 = vcmp.gt.s32.totalorder 0, %v2860
        %v2862 = vsel %vm2861, 0, %v2860
        %v2863 = vsub.s32 32, %v2862
        %v2864 = vshll.u32 %v2855, %v2862
        %v2865 = vshrl.u32 %v2847, %v2863
        %v2866 = vor.u32 %v2864, %v2865
        %v2867 = vsub.s32 4294967266, %v2862
        %v2868 = vadd.s32 %v2867, 127
        %v2869 = vshll.u32 %v2868, 23
        %v2870 = vor.u32 4788187, %v2869
        %v2871 = vand.u32 2147483647, %v2870
        %v2873 = vcvt.s32.f32 %v2866
        %v2874 = vmul.f32 %v2873, %v2871
        %v2875 = vxor.u32 %v2874, 2147483648
        %v2876 = vsel %vm2793, %v2875, %v2874
        %v2877 = vsub.s32 4, %v2853
        %v2878 = vsel %vm2793, %v2877, %v2853
        %v2879 = vsel %vm2792, %v382, %v2876
        %v2880 = vsel %vm2792, 0, %v2878
        %v2881 = vcosq.f32.pop %v2879
        %v2882 = vsinq.f32.pop %v2879
        %vm2883 = vweird.f32 %v382
        %v2884 = vand.u32 %v2880, 3
        %vm2885 = vcmp.lt.s32.totalorder %v2884, 2
        %vm2886 = vcmp.eq.s32.totalorder %v2884, 0
        %v2887 = vxor.u32 %v2882, 2147483648
        %v2888 = vsel %vm2886, %v2881, %v2887
        %vm2889 = vcmp.eq.s32.totalorder %v2884, 2
        %v2890 = vxor.u32 %v2881, 2147483648
        %v2891 = vsel %vm2889, %v2890, %v2882
        %v2892 = vsel %vm2885, %v2888, %v2891
        %v2893 = vsel %vm2883, nan, %v2892
        %v2894 = vand.u32 2147483647, %v383
        %vm2895 = vcmp.le.f32.partialorder %v2894, 0.7853982
        %vm2896 = vcmp.lt.s32.totalorder %v383, 0
        %v2897 = vand.u32 %v383, 2139095040
        %v2898 = vshrl.u32 %v2897, 23
        %v2899 = vsub.s32 %v2898, 127
        %v2900 = vand.u32 2147483647, %v383
        %v2901 = vand.u32 %v2900, 8388607
        %v2902 = vor.u32 %v2901, 8388608
        %v2903 = vsub.s32 0, %v2902
        %v2904 = vadd.s32 %v2899, 1
        %vm2905 = vcmp.gt.s32.totalorder %v2904, 0
        %v2906 = vsel %vm2905, %v2904, 0
        %v2907 = vshrl.u32 %v2906, 5
        %v2908 = vand.u32 %v2906, 31
        %v2909 = vsub.s32 32, %v2908
        %v2910 = vshrl.u32 683565275, %v2909
        %v2911 = vshll.u32 683565275, %v2908
        %v2912 = vshrl.u32 2475754826, %v2909
        %v2913 = vor.u32 %v2911, %v2912
        %v2914 = vshll.u32 2475754826, %v2908
        %v2915 = vshrl.u32 2131351028, %v2909
        %v2916 = vor.u32 %v2914, %v2915
        %v2917 = vshll.u32 2131351028, %v2908
        %v2918 = vshrl.u32 2102212464, %v2909
        %v2919 = vor.u32 %v2917, %v2918
        %v2920 = vshll.u32 2102212464, %v2908
        %v2921 = vshrl.u32 920167782, %v2909
        %v2922 = vor.u32 %v2920, %v2921
        %v2923 = vshll.u32 920167782, %v2908
        %v2924 = vshrl.u32 1326507024, %v2909
        %v2925 = vor.u32 %v2923, %v2924
        %vm2926 = vcmp.lt.s32.totalorder %v2907, 1
        %vm2927 = vcmp.lt.s32.totalorder %v2907, 2
        %vm2928 = vcmp.lt.s32.totalorder %v2907, 3
        %vm2929 = vcmp.lt.s32.totalorder %v2907, 4
        %v2930 = vsel %vm2926, %v2910, %v2913
        %v2931 = vsel %vm2929, %v2919, 2102212464
        %v2932 = vsel %vm2928, %v2916, %v2931
        %v2933 = vsel %vm2927, %v2930, %v2932
        %v2934 = vsel %vm2926, %v2913, %v2916
        %v2935 = vsel %vm2929, %v2922, 920167782
        %v2936 = vsel %vm2928, %v2919, %v2935
        %v2937 = vsel %vm2927, %v2934, %v2936
        %v2938 = vsel %vm2926, %v2916, %v2919
        %v2939 = vsel %vm2929, %v2925, 1326507024
        %v2940 = vsel %vm2928, %v2922, %v2939
        %v2941 = vsel %vm2927, %v2938, %v2940
        %v2942 = vshll.u32 %v2902, 8
        %v2943 = vmul.u32.u64.compose %v2942, %v2941
        %v2944 = vextract.low.u32 %v2943
        %v2945 = vextract.high.u32 %v2943
        %v2946 = vmul.u32.u64.compose %v2942, %v2937
        %v2947 = vextract.low.u32 %v2946
        %v2948 = vextract.high.u32 %v2946
        %v2949 = vmul.u32 %v2942, %v2933
        %v2950 = vadd.s32 %v2945, %v2947
        %vm2951 = vc.u32 %v2945, %v2947
        %v2952 = vadd.s32 %v2948, 1
        %v2953 = vsel %vm2951, %v2952, %v2948
        %v2954 = vadd.s32 %v2949, %v2953
        %v2955 = vadd.s32 %v2954, 536870912
        %v2956 = vshrl.u32 %v2955, 30
        %v2957 = vshll.u32 %v2956, 30
        %v2958 = vsub.s32 %v2954, %v2957
        %vm2959 = vcmp.lt.s32.totalorder %v2958, 0
        %v2960 = vsub.s32 0, %v2958
        %v2961 = vsel %vm2959, %v2960, %v2958
        %v2962 = vclz %v2961
        %v2963 = vsub.s32 %v2962, 2
        %vm2964 = vcmp.gt.s32.totalorder 0, %v2963
        %v2965 = vsel %vm2964, 0, %v2963
        %v2966 = vsub.s32 32, %v2965
        %v2967 = vshll.u32 %v2958, %v2965
        %v2968 = vshrl.u32 %v2950, %v2966
        %v2969 = vor.u32 %v2967, %v2968
        %v2970 = vsub.s32 4294967266, %v2965
        %v2971 = vadd.s32 %v2970, 127
        %v2972 = vshll.u32 %v2971, 23
        %v2973 = vor.u32 4788187, %v2972
        %v2974 = vand.u32 2147483647, %v2973
        %v2976 = vcvt.s32.f32 %v2969
        %v2977 = vmul.f32 %v2976, %v2974
        %v2978 = vxor.u32 %v2977, 2147483648
        %v2979 = vsel %vm2896, %v2978, %v2977
        %v2980 = vsub.s32 4, %v2956
        %v2981 = vsel %vm2896, %v2980, %v2956
        %v2982 = vsel %vm2895, %v383, %v2979
        %v2983 = vsel %vm2895, 0, %v2981
        %v2984 = vcosq.f32.pop %v2982
        %v2985 = vsinq.f32.pop %v2982
        %vm2986 = vweird.f32 %v383
        %v2987 = vand.u32 %v2983, 3
        %vm2988 = vcmp.lt.s32.totalorder %v2987, 2
        %vm2989 = vcmp.eq.s32.totalorder %v2987, 0
        %v2990 = vxor.u32 %v2985, 2147483648
        %v2991 = vsel %vm2989, %v2984, %v2990
        %vm2992 = vcmp.eq.s32.totalorder %v2987, 2
        %v2993 = vxor.u32 %v2984, 2147483648
        %v2994 = vsel %vm2992, %v2993, %v2985
        %v2995 = vsel %vm2988, %v2991, %v2994
        %v2996 = vsel %vm2986, nan, %v2995
        %v2997 = vand.u32 2147483647, %v384
        %vm2998 = vcmp.le.f32.partialorder %v2997, 0.7853982
        %vm2999 = vcmp.lt.s32.totalorder %v384, 0
        %v3000 = vand.u32 %v384, 2139095040
        %v3001 = vshrl.u32 %v3000, 23
        %v3002 = vsub.s32 %v3001, 127
        %v3003 = vand.u32 2147483647, %v384
        %v3004 = vand.u32 %v3003, 8388607
        %v3005 = vor.u32 %v3004, 8388608
        %v3006 = vsub.s32 0, %v3005
        %v3007 = vadd.s32 %v3002, 1
        %vm3008 = vcmp.gt.s32.totalorder %v3007, 0
        %v3009 = vsel %vm3008, %v3007, 0
        %v3010 = vshrl.u32 %v3009, 5
        %v3011 = vand.u32 %v3009, 31
        %v3012 = vsub.s32 32, %v3011
        %v3013 = vshrl.u32 683565275, %v3012
        %v3014 = vshll.u32 683565275, %v3011
        %v3015 = vshrl.u32 2475754826, %v3012
        %v3016 = vor.u32 %v3014, %v3015
        %v3017 = vshll.u32 2475754826, %v3011
        %v3018 = vshrl.u32 2131351028, %v3012
        %v3019 = vor.u32 %v3017, %v3018
        %v3020 = vshll.u32 2131351028, %v3011
        %v3021 = vshrl.u32 2102212464, %v3012
        %v3022 = vor.u32 %v3020, %v3021
        %v3023 = vshll.u32 2102212464, %v3011
        %v3024 = vshrl.u32 920167782, %v3012
        %v3025 = vor.u32 %v3023, %v3024
        %v3026 = vshll.u32 920167782, %v3011
        %v3027 = vshrl.u32 1326507024, %v3012
        %v3028 = vor.u32 %v3026, %v3027
        %vm3029 = vcmp.lt.s32.totalorder %v3010, 1
        %vm3030 = vcmp.lt.s32.totalorder %v3010, 2
        %vm3031 = vcmp.lt.s32.totalorder %v3010, 3
        %vm3032 = vcmp.lt.s32.totalorder %v3010, 4
        %v3033 = vsel %vm3029, %v3013, %v3016
        %v3034 = vsel %vm3032, %v3022, 2102212464
        %v3035 = vsel %vm3031, %v3019, %v3034
        %v3036 = vsel %vm3030, %v3033, %v3035
        %v3037 = vsel %vm3029, %v3016, %v3019
        %v3038 = vsel %vm3032, %v3025, 920167782
        %v3039 = vsel %vm3031, %v3022, %v3038
        %v3040 = vsel %vm3030, %v3037, %v3039
        %v3041 = vsel %vm3029, %v3019, %v3022
        %v3042 = vsel %vm3032, %v3028, 1326507024
        %v3043 = vsel %vm3031, %v3025, %v3042
        %v3044 = vsel %vm3030, %v3041, %v3043
        %v3045 = vshll.u32 %v3005, 8
        %v3046 = vmul.u32.u64.compose %v3045, %v3044
        %v3047 = vextract.low.u32 %v3046
        %v3048 = vextract.high.u32 %v3046
        %v3049 = vmul.u32.u64.compose %v3045, %v3040
        %v3050 = vextract.low.u32 %v3049
        %v3051 = vextract.high.u32 %v3049
        %v3052 = vmul.u32 %v3045, %v3036
        %v3053 = vadd.s32 %v3048, %v3050
        %vm3054 = vc.u32 %v3048, %v3050
        %v3055 = vadd.s32 %v3051, 1
        %v3056 = vsel %vm3054, %v3055, %v3051
        %v3057 = vadd.s32 %v3052, %v3056
        %v3058 = vadd.s32 %v3057, 536870912
        %v3059 = vshrl.u32 %v3058, 30
        %v3060 = vshll.u32 %v3059, 30
        %v3061 = vsub.s32 %v3057, %v3060
        %vm3062 = vcmp.lt.s32.totalorder %v3061, 0
        %v3063 = vsub.s32 0, %v3061
        %v3064 = vsel %vm3062, %v3063, %v3061
        %v3065 = vclz %v3064
        %v3066 = vsub.s32 %v3065, 2
        %vm3067 = vcmp.gt.s32.totalorder 0, %v3066
        %v3068 = vsel %vm3067, 0, %v3066
        %v3069 = vsub.s32 32, %v3068
        %v3070 = vshll.u32 %v3061, %v3068
        %v3071 = vshrl.u32 %v3053, %v3069
        %v3072 = vor.u32 %v3070, %v3071
        %v3073 = vsub.s32 4294967266, %v3068
        %v3074 = vadd.s32 %v3073, 127
        %v3075 = vshll.u32 %v3074, 23
        %v3076 = vor.u32 4788187, %v3075
        %v3077 = vand.u32 2147483647, %v3076
        %v3079 = vcvt.s32.f32 %v3072
        %v3080 = vmul.f32 %v3079, %v3077
        %v3081 = vxor.u32 %v3080, 2147483648
        %v3082 = vsel %vm2999, %v3081, %v3080
        %v3083 = vsub.s32 4, %v3059
        %v3084 = vsel %vm2999, %v3083, %v3059
        %v3085 = vsel %vm2998, %v384, %v3082
        %v3086 = vsel %vm2998, 0, %v3084
        %v3087 = vcosq.f32.pop %v3085
        %v3088 = vsinq.f32.pop %v3085
        %vm3089 = vweird.f32 %v384
        %v3090 = vand.u32 %v3086, 3
        %vm3091 = vcmp.lt.s32.totalorder %v3090, 2
        %vm3092 = vcmp.eq.s32.totalorder %v3090, 0
        %v3093 = vxor.u32 %v3088, 2147483648
        %v3094 = vsel %vm3092, %v3087, %v3093
        %vm3095 = vcmp.eq.s32.totalorder %v3090, 2
        %v3096 = vxor.u32 %v3087, 2147483648
        %v3097 = vsel %vm3095, %v3096, %v3088
        %v3098 = vsel %vm3091, %v3094, %v3097
        %v3099 = vsel %vm3089, nan, %v3098
        %v3100 = vand.u32 2147483647, %v385
        %vm3101 = vcmp.le.f32.partialorder %v3100, 0.7853982
        %vm3102 = vcmp.lt.s32.totalorder %v385, 0
        %v3103 = vand.u32 %v385, 2139095040
        %v3104 = vshrl.u32 %v3103, 23
        %v3105 = vsub.s32 %v3104, 127
        %v3106 = vand.u32 2147483647, %v385
        %v3107 = vand.u32 %v3106, 8388607
        %v3108 = vor.u32 %v3107, 8388608
        %v3109 = vsub.s32 0, %v3108
        %v3110 = vadd.s32 %v3105, 1
        %vm3111 = vcmp.gt.s32.totalorder %v3110, 0
        %v3112 = vsel %vm3111, %v3110, 0
        %v3113 = vshrl.u32 %v3112, 5
        %v3114 = vand.u32 %v3112, 31
        %v3115 = vsub.s32 32, %v3114
        %v3116 = vshrl.u32 683565275, %v3115
        %v3117 = vshll.u32 683565275, %v3114
        %v3118 = vshrl.u32 2475754826, %v3115
        %v3119 = vor.u32 %v3117, %v3118
        %v3120 = vshll.u32 2475754826, %v3114
        %v3121 = vshrl.u32 2131351028, %v3115
        %v3122 = vor.u32 %v3120, %v3121
        %v3123 = vshll.u32 2131351028, %v3114
        %v3124 = vshrl.u32 2102212464, %v3115
        %v3125 = vor.u32 %v3123, %v3124
        %v3126 = vshll.u32 2102212464, %v3114
        %v3127 = vshrl.u32 920167782, %v3115
        %v3128 = vor.u32 %v3126, %v3127
        %v3129 = vshll.u32 920167782, %v3114
        %v3130 = vshrl.u32 1326507024, %v3115
        %v3131 = vor.u32 %v3129, %v3130
        %vm3132 = vcmp.lt.s32.totalorder %v3113, 1
        %vm3133 = vcmp.lt.s32.totalorder %v3113, 2
        %vm3134 = vcmp.lt.s32.totalorder %v3113, 3
        %vm3135 = vcmp.lt.s32.totalorder %v3113, 4
        %v3136 = vsel %vm3132, %v3116, %v3119
        %v3137 = vsel %vm3135, %v3125, 2102212464
        %v3138 = vsel %vm3134, %v3122, %v3137
        %v3139 = vsel %vm3133, %v3136, %v3138
        %v3140 = vsel %vm3132, %v3119, %v3122
        %v3141 = vsel %vm3135, %v3128, 920167782
        %v3142 = vsel %vm3134, %v3125, %v3141
        %v3143 = vsel %vm3133, %v3140, %v3142
        %v3144 = vsel %vm3132, %v3122, %v3125
        %v3145 = vsel %vm3135, %v3131, 1326507024
        %v3146 = vsel %vm3134, %v3128, %v3145
        %v3147 = vsel %vm3133, %v3144, %v3146
        %v3148 = vshll.u32 %v3108, 8
        %v3149 = vmul.u32.u64.compose %v3148, %v3147
        %v3150 = vextract.low.u32 %v3149
        %v3151 = vextract.high.u32 %v3149
        %v3152 = vmul.u32.u64.compose %v3148, %v3143
        %v3153 = vextract.low.u32 %v3152
        %v3154 = vextract.high.u32 %v3152
        %v3155 = vmul.u32 %v3148, %v3139
        %v3156 = vadd.s32 %v3151, %v3153
        %vm3157 = vc.u32 %v3151, %v3153
        %v3158 = vadd.s32 %v3154, 1
        %v3159 = vsel %vm3157, %v3158, %v3154
        %v3160 = vadd.s32 %v3155, %v3159
        %v3161 = vadd.s32 %v3160, 536870912
        %v3162 = vshrl.u32 %v3161, 30
        %v3163 = vshll.u32 %v3162, 30
        %v3164 = vsub.s32 %v3160, %v3163
        %vm3165 = vcmp.lt.s32.totalorder %v3164, 0
        %v3166 = vsub.s32 0, %v3164
        %v3167 = vsel %vm3165, %v3166, %v3164
        %v3168 = vclz %v3167
        %v3169 = vsub.s32 %v3168, 2
        %vm3170 = vcmp.gt.s32.totalorder 0, %v3169
        %v3171 = vsel %vm3170, 0, %v3169
        %v3172 = vsub.s32 32, %v3171
        %v3173 = vshll.u32 %v3164, %v3171
        %v3174 = vshrl.u32 %v3156, %v3172
        %v3175 = vor.u32 %v3173, %v3174
        %v3176 = vsub.s32 4294967266, %v3171
        %v3177 = vadd.s32 %v3176, 127
        %v3178 = vshll.u32 %v3177, 23
        %v3179 = vor.u32 4788187, %v3178
        %v3180 = vand.u32 2147483647, %v3179
        %v3182 = vcvt.s32.f32 %v3175
        %v3183 = vmul.f32 %v3182, %v3180
        %v3184 = vxor.u32 %v3183, 2147483648
        %v3185 = vsel %vm3102, %v3184, %v3183
        %v3186 = vsub.s32 4, %v3162
        %v3187 = vsel %vm3102, %v3186, %v3162
        %v3188 = vsel %vm3101, %v385, %v3185
        %v3189 = vsel %vm3101, 0, %v3187
        %v3190 = vcosq.f32.pop %v3188
        %v3191 = vsinq.f32.pop %v3188
        %vm3192 = vweird.f32 %v385
        %v3193 = vand.u32 %v3189, 3
        %vm3194 = vcmp.lt.s32.totalorder %v3193, 2
        %vm3195 = vcmp.eq.s32.totalorder %v3193, 0
        %v3196 = vxor.u32 %v3191, 2147483648
        %v3197 = vsel %vm3195, %v3190, %v3196
        %vm3198 = vcmp.eq.s32.totalorder %v3193, 2
        %v3199 = vxor.u32 %v3190, 2147483648
        %v3200 = vsel %vm3198, %v3199, %v3191
        %v3201 = vsel %vm3194, %v3197, %v3200
        %v3202 = vsel %vm3192, nan, %v3201
        %v3203 = vand.u32 2147483647, %v386
        %vm3204 = vcmp.le.f32.partialorder %v3203, 0.7853982
        %vm3205 = vcmp.lt.s32.totalorder %v386, 0
        %v3206 = vand.u32 %v386, 2139095040
        %v3207 = vshrl.u32 %v3206, 23
        %v3208 = vsub.s32 %v3207, 127
        %v3209 = vand.u32 2147483647, %v386
        %v3210 = vand.u32 %v3209, 8388607
        %v3211 = vor.u32 %v3210, 8388608
        %v3212 = vsub.s32 0, %v3211
        %v3213 = vadd.s32 %v3208, 1
        %vm3214 = vcmp.gt.s32.totalorder %v3213, 0
        %v3215 = vsel %vm3214, %v3213, 0
        %v3216 = vshrl.u32 %v3215, 5
        %v3217 = vand.u32 %v3215, 31
        %v3218 = vsub.s32 32, %v3217
        %v3219 = vshrl.u32 683565275, %v3218
        %v3220 = vshll.u32 683565275, %v3217
        %v3221 = vshrl.u32 2475754826, %v3218
        %v3222 = vor.u32 %v3220, %v3221
        %v3223 = vshll.u32 2475754826, %v3217
        %v3224 = vshrl.u32 2131351028, %v3218
        %v3225 = vor.u32 %v3223, %v3224
        %v3226 = vshll.u32 2131351028, %v3217
        %v3227 = vshrl.u32 2102212464, %v3218
        %v3228 = vor.u32 %v3226, %v3227
        %v3229 = vshll.u32 2102212464, %v3217
        %v3230 = vshrl.u32 920167782, %v3218
        %v3231 = vor.u32 %v3229, %v3230
        %v3232 = vshll.u32 920167782, %v3217
        %v3233 = vshrl.u32 1326507024, %v3218
        %v3234 = vor.u32 %v3232, %v3233
        %vm3235 = vcmp.lt.s32.totalorder %v3216, 1
        %vm3236 = vcmp.lt.s32.totalorder %v3216, 2
        %vm3237 = vcmp.lt.s32.totalorder %v3216, 3
        %vm3238 = vcmp.lt.s32.totalorder %v3216, 4
        %v3239 = vsel %vm3235, %v3219, %v3222
        %v3240 = vsel %vm3238, %v3228, 2102212464
        %v3241 = vsel %vm3237, %v3225, %v3240
        %v3242 = vsel %vm3236, %v3239, %v3241
        %v3243 = vsel %vm3235, %v3222, %v3225
        %v3244 = vsel %vm3238, %v3231, 920167782
        %v3245 = vsel %vm3237, %v3228, %v3244
        %v3246 = vsel %vm3236, %v3243, %v3245
        %v3247 = vsel %vm3235, %v3225, %v3228
        %v3248 = vsel %vm3238, %v3234, 1326507024
        %v3249 = vsel %vm3237, %v3231, %v3248
        %v3250 = vsel %vm3236, %v3247, %v3249
        %v3251 = vshll.u32 %v3211, 8
        %v3252 = vmul.u32.u64.compose %v3251, %v3250
        %v3253 = vextract.low.u32 %v3252
        %v3254 = vextract.high.u32 %v3252
        %v3255 = vmul.u32.u64.compose %v3251, %v3246
        %v3256 = vextract.low.u32 %v3255
        %v3257 = vextract.high.u32 %v3255
        %v3258 = vmul.u32 %v3251, %v3242
        %v3259 = vadd.s32 %v3254, %v3256
        %vm3260 = vc.u32 %v3254, %v3256
        %v3261 = vadd.s32 %v3257, 1
        %v3262 = vsel %vm3260, %v3261, %v3257
        %v3263 = vadd.s32 %v3258, %v3262
        %v3264 = vadd.s32 %v3263, 536870912
        %v3265 = vshrl.u32 %v3264, 30
        %v3266 = vshll.u32 %v3265, 30
        %v3267 = vsub.s32 %v3263, %v3266
        %vm3268 = vcmp.lt.s32.totalorder %v3267, 0
        %v3269 = vsub.s32 0, %v3267
        %v3270 = vsel %vm3268, %v3269, %v3267
        %v3271 = vclz %v3270
        %v3272 = vsub.s32 %v3271, 2
        %vm3273 = vcmp.gt.s32.totalorder 0, %v3272
        %v3274 = vsel %vm3273, 0, %v3272
        %v3275 = vsub.s32 32, %v3274
        %v3276 = vshll.u32 %v3267, %v3274
        %v3277 = vshrl.u32 %v3259, %v3275
        %v3278 = vor.u32 %v3276, %v3277
        %v3279 = vsub.s32 4294967266, %v3274
        %v3280 = vadd.s32 %v3279, 127
        %v3281 = vshll.u32 %v3280, 23
        %v3282 = vor.u32 4788187, %v3281
        %v3283 = vand.u32 2147483647, %v3282
        %v3285 = vcvt.s32.f32 %v3278
        %v3286 = vmul.f32 %v3285, %v3283
        %v3287 = vxor.u32 %v3286, 2147483648
        %v3288 = vsel %vm3205, %v3287, %v3286
        %v3289 = vsub.s32 4, %v3265
        %v3290 = vsel %vm3205, %v3289, %v3265
        %v3291 = vsel %vm3204, %v386, %v3288
        %v3292 = vsel %vm3204, 0, %v3290
        %v3293 = vcosq.f32.pop %v3291
        %v3294 = vsinq.f32.pop %v3291
        %vm3295 = vweird.f32 %v386
        %v3296 = vand.u32 %v3292, 3
        %vm3297 = vcmp.lt.s32.totalorder %v3296, 2
        %vm3298 = vcmp.eq.s32.totalorder %v3296, 0
        %v3299 = vxor.u32 %v3294, 2147483648
        %v3300 = vsel %vm3298, %v3293, %v3299
        %vm3301 = vcmp.eq.s32.totalorder %v3296, 2
        %v3302 = vxor.u32 %v3293, 2147483648
        %v3303 = vsel %vm3301, %v3302, %v3294
        %v3304 = vsel %vm3297, %v3300, %v3303
        %v3305 = vsel %vm3295, nan, %v3304
        %v3306 = vand.u32 2147483647, %v387
        %vm3307 = vcmp.le.f32.partialorder %v3306, 0.7853982
        %vm3308 = vcmp.lt.s32.totalorder %v387, 0
        %v3309 = vand.u32 %v387, 2139095040
        %v3310 = vshrl.u32 %v3309, 23
        %v3311 = vsub.s32 %v3310, 127
        %v3312 = vand.u32 2147483647, %v387
        %v3313 = vand.u32 %v3312, 8388607
        %v3314 = vor.u32 %v3313, 8388608
        %v3315 = vsub.s32 0, %v3314
        %v3316 = vadd.s32 %v3311, 1
        %vm3317 = vcmp.gt.s32.totalorder %v3316, 0
        %v3318 = vsel %vm3317, %v3316, 0
        %v3319 = vshrl.u32 %v3318, 5
        %v3320 = vand.u32 %v3318, 31
        %v3321 = vsub.s32 32, %v3320
        %v3322 = vshrl.u32 683565275, %v3321
        %v3323 = vshll.u32 683565275, %v3320
        %v3324 = vshrl.u32 2475754826, %v3321
        %v3325 = vor.u32 %v3323, %v3324
        %v3326 = vshll.u32 2475754826, %v3320
        %v3327 = vshrl.u32 2131351028, %v3321
        %v3328 = vor.u32 %v3326, %v3327
        %v3329 = vshll.u32 2131351028, %v3320
        %v3330 = vshrl.u32 2102212464, %v3321
        %v3331 = vor.u32 %v3329, %v3330
        %v3332 = vshll.u32 2102212464, %v3320
        %v3333 = vshrl.u32 920167782, %v3321
        %v3334 = vor.u32 %v3332, %v3333
        %v3335 = vshll.u32 920167782, %v3320
        %v3336 = vshrl.u32 1326507024, %v3321
        %v3337 = vor.u32 %v3335, %v3336
        %vm3338 = vcmp.lt.s32.totalorder %v3319, 1
        %vm3339 = vcmp.lt.s32.totalorder %v3319, 2
        %vm3340 = vcmp.lt.s32.totalorder %v3319, 3
        %vm3341 = vcmp.lt.s32.totalorder %v3319, 4
        %v3342 = vsel %vm3338, %v3322, %v3325
        %v3343 = vsel %vm3341, %v3331, 2102212464
        %v3344 = vsel %vm3340, %v3328, %v3343
        %v3345 = vsel %vm3339, %v3342, %v3344
        %v3346 = vsel %vm3338, %v3325, %v3328
        %v3347 = vsel %vm3341, %v3334, 920167782
        %v3348 = vsel %vm3340, %v3331, %v3347
        %v3349 = vsel %vm3339, %v3346, %v3348
        %v3350 = vsel %vm3338, %v3328, %v3331
        %v3351 = vsel %vm3341, %v3337, 1326507024
        %v3352 = vsel %vm3340, %v3334, %v3351
        %v3353 = vsel %vm3339, %v3350, %v3352
        %v3354 = vshll.u32 %v3314, 8
        %v3355 = vmul.u32.u64.compose %v3354, %v3353
        %v3356 = vextract.low.u32 %v3355
        %v3357 = vextract.high.u32 %v3355
        %v3358 = vmul.u32.u64.compose %v3354, %v3349
        %v3359 = vextract.low.u32 %v3358
        %v3360 = vextract.high.u32 %v3358
        %v3361 = vmul.u32 %v3354, %v3345
        %v3362 = vadd.s32 %v3357, %v3359
        %vm3363 = vc.u32 %v3357, %v3359
        %v3364 = vadd.s32 %v3360, 1
        %v3365 = vsel %vm3363, %v3364, %v3360
        %v3366 = vadd.s32 %v3361, %v3365
        %v3367 = vadd.s32 %v3366, 536870912
        %v3368 = vshrl.u32 %v3367, 30
        %v3369 = vshll.u32 %v3368, 30
        %v3370 = vsub.s32 %v3366, %v3369
        %vm3371 = vcmp.lt.s32.totalorder %v3370, 0
        %v3372 = vsub.s32 0, %v3370
        %v3373 = vsel %vm3371, %v3372, %v3370
        %v3374 = vclz %v3373
        %v3375 = vsub.s32 %v3374, 2
        %vm3376 = vcmp.gt.s32.totalorder 0, %v3375
        %v3377 = vsel %vm3376, 0, %v3375
        %v3378 = vsub.s32 32, %v3377
        %v3379 = vshll.u32 %v3370, %v3377
        %v3380 = vshrl.u32 %v3362, %v3378
        %v3381 = vor.u32 %v3379, %v3380
        %v3382 = vsub.s32 4294967266, %v3377
        %v3383 = vadd.s32 %v3382, 127
        %v3384 = vshll.u32 %v3383, 23
        %v3385 = vor.u32 4788187, %v3384
        %v3386 = vand.u32 2147483647, %v3385
        %v3388 = vcvt.s32.f32 %v3381
        %v3389 = vmul.f32 %v3388, %v3386
        %v3390 = vxor.u32 %v3389, 2147483648
        %v3391 = vsel %vm3308, %v3390, %v3389
        %v3392 = vsub.s32 4, %v3368
        %v3393 = vsel %vm3308, %v3392, %v3368
        %v3394 = vsel %vm3307, %v387, %v3391
        %v3395 = vsel %vm3307, 0, %v3393
        %v3396 = vcosq.f32.pop %v3394
        %v3397 = vsinq.f32.pop %v3394
        %vm3398 = vweird.f32 %v387
        %v3399 = vand.u32 %v3395, 3
        %vm3400 = vcmp.lt.s32.totalorder %v3399, 2
        %vm3401 = vcmp.eq.s32.totalorder %v3399, 0
        %v3402 = vxor.u32 %v3397, 2147483648
        %v3403 = vsel %vm3401, %v3396, %v3402
        %vm3404 = vcmp.eq.s32.totalorder %v3399, 2
        %v3405 = vxor.u32 %v3396, 2147483648
        %v3406 = vsel %vm3404, %v3405, %v3397
        %v3407 = vsel %vm3400, %v3403, %v3406
        %v3408 = vsel %vm3398, nan, %v3407
        %v3409 = vand.u32 2147483647, %v388
        %vm3410 = vcmp.le.f32.partialorder %v3409, 0.7853982
        %vm3411 = vcmp.lt.s32.totalorder %v388, 0
        %v3412 = vand.u32 %v388, 2139095040
        %v3413 = vshrl.u32 %v3412, 23
        %v3414 = vsub.s32 %v3413, 127
        %v3415 = vand.u32 2147483647, %v388
        %v3416 = vand.u32 %v3415, 8388607
        %v3417 = vor.u32 %v3416, 8388608
        %v3418 = vsub.s32 0, %v3417
        %v3419 = vadd.s32 %v3414, 1
        %vm3420 = vcmp.gt.s32.totalorder %v3419, 0
        %v3421 = vsel %vm3420, %v3419, 0
        %v3422 = vshrl.u32 %v3421, 5
        %v3423 = vand.u32 %v3421, 31
        %v3424 = vsub.s32 32, %v3423
        %v3425 = vshrl.u32 683565275, %v3424
        %v3426 = vshll.u32 683565275, %v3423
        %v3427 = vshrl.u32 2475754826, %v3424
        %v3428 = vor.u32 %v3426, %v3427
        %v3429 = vshll.u32 2475754826, %v3423
        %v3430 = vshrl.u32 2131351028, %v3424
        %v3431 = vor.u32 %v3429, %v3430
        %v3432 = vshll.u32 2131351028, %v3423
        %v3433 = vshrl.u32 2102212464, %v3424
        %v3434 = vor.u32 %v3432, %v3433
        %v3435 = vshll.u32 2102212464, %v3423
        %v3436 = vshrl.u32 920167782, %v3424
        %v3437 = vor.u32 %v3435, %v3436
        %v3438 = vshll.u32 920167782, %v3423
        %v3439 = vshrl.u32 1326507024, %v3424
        %v3440 = vor.u32 %v3438, %v3439
        %vm3441 = vcmp.lt.s32.totalorder %v3422, 1
        %vm3442 = vcmp.lt.s32.totalorder %v3422, 2
        %vm3443 = vcmp.lt.s32.totalorder %v3422, 3
        %vm3444 = vcmp.lt.s32.totalorder %v3422, 4
        %v3445 = vsel %vm3441, %v3425, %v3428
        %v3446 = vsel %vm3444, %v3434, 2102212464
        %v3447 = vsel %vm3443, %v3431, %v3446
        %v3448 = vsel %vm3442, %v3445, %v3447
        %v3449 = vsel %vm3441, %v3428, %v3431
        %v3450 = vsel %vm3444, %v3437, 920167782
        %v3451 = vsel %vm3443, %v3434, %v3450
        %v3452 = vsel %vm3442, %v3449, %v3451
        %v3453 = vsel %vm3441, %v3431, %v3434
        %v3454 = vsel %vm3444, %v3440, 1326507024
        %v3455 = vsel %vm3443, %v3437, %v3454
        %v3456 = vsel %vm3442, %v3453, %v3455
        %v3457 = vshll.u32 %v3417, 8
        %v3458 = vmul.u32.u64.compose %v3457, %v3456
        %v3459 = vextract.low.u32 %v3458
        %v3460 = vextract.high.u32 %v3458
        %v3461 = vmul.u32.u64.compose %v3457, %v3452
        %v3462 = vextract.low.u32 %v3461
        %v3463 = vextract.high.u32 %v3461
        %v3464 = vmul.u32 %v3457, %v3448
        %v3465 = vadd.s32 %v3460, %v3462
        %vm3466 = vc.u32 %v3460, %v3462
        %v3467 = vadd.s32 %v3463, 1
        %v3468 = vsel %vm3466, %v3467, %v3463
        %v3469 = vadd.s32 %v3464, %v3468
        %v3470 = vadd.s32 %v3469, 536870912
        %v3471 = vshrl.u32 %v3470, 30
        %v3472 = vshll.u32 %v3471, 30
        %v3473 = vsub.s32 %v3469, %v3472
        %vm3474 = vcmp.lt.s32.totalorder %v3473, 0
        %v3475 = vsub.s32 0, %v3473
        %v3476 = vsel %vm3474, %v3475, %v3473
        %v3477 = vclz %v3476
        %v3478 = vsub.s32 %v3477, 2
        %vm3479 = vcmp.gt.s32.totalorder 0, %v3478
        %v3480 = vsel %vm3479, 0, %v3478
        %v3481 = vsub.s32 32, %v3480
        %v3482 = vshll.u32 %v3473, %v3480
        %v3483 = vshrl.u32 %v3465, %v3481
        %v3484 = vor.u32 %v3482, %v3483
        %v3485 = vsub.s32 4294967266, %v3480
        %v3486 = vadd.s32 %v3485, 127
        %v3487 = vshll.u32 %v3486, 23
        %v3488 = vor.u32 4788187, %v3487
        %v3489 = vand.u32 2147483647, %v3488
        %v3491 = vcvt.s32.f32 %v3484
        %v3492 = vmul.f32 %v3491, %v3489
        %v3493 = vxor.u32 %v3492, 2147483648
        %v3494 = vsel %vm3411, %v3493, %v3492
        %v3495 = vsub.s32 4, %v3471
        %v3496 = vsel %vm3411, %v3495, %v3471
        %v3497 = vsel %vm3410, %v388, %v3494
        %v3498 = vsel %vm3410, 0, %v3496
        %v3499 = vcosq.f32.pop %v3497
        %v3500 = vsinq.f32.pop %v3497
        %vm3501 = vweird.f32 %v388
        %v3502 = vand.u32 %v3498, 3
        %vm3503 = vcmp.lt.s32.totalorder %v3502, 2
        %vm3504 = vcmp.eq.s32.totalorder %v3502, 0
        %v3505 = vxor.u32 %v3500, 2147483648
        %v3506 = vsel %vm3504, %v3499, %v3505
        %vm3507 = vcmp.eq.s32.totalorder %v3502, 2
        %v3508 = vxor.u32 %v3499, 2147483648
        %v3509 = vsel %vm3507, %v3508, %v3500
        %v3510 = vsel %vm3503, %v3506, %v3509
        %v3511 = vsel %vm3501, nan, %v3510
        %v3512 = vand.u32 2147483647, %v389
        %vm3513 = vcmp.le.f32.partialorder %v3512, 0.7853982
        %vm3514 = vcmp.lt.s32.totalorder %v389, 0
        %v3515 = vand.u32 %v389, 2139095040
        %v3516 = vshrl.u32 %v3515, 23
        %v3517 = vsub.s32 %v3516, 127
        %v3518 = vand.u32 2147483647, %v389
        %v3519 = vand.u32 %v3518, 8388607
        %v3520 = vor.u32 %v3519, 8388608
        %v3521 = vsub.s32 0, %v3520
        %v3522 = vadd.s32 %v3517, 1
        %vm3523 = vcmp.gt.s32.totalorder %v3522, 0
        %v3524 = vsel %vm3523, %v3522, 0
        %v3525 = vshrl.u32 %v3524, 5
        %v3526 = vand.u32 %v3524, 31
        %v3527 = vsub.s32 32, %v3526
        %v3528 = vshrl.u32 683565275, %v3527
        %v3529 = vshll.u32 683565275, %v3526
        %v3530 = vshrl.u32 2475754826, %v3527
        %v3531 = vor.u32 %v3529, %v3530
        %v3532 = vshll.u32 2475754826, %v3526
        %v3533 = vshrl.u32 2131351028, %v3527
        %v3534 = vor.u32 %v3532, %v3533
        %v3535 = vshll.u32 2131351028, %v3526
        %v3536 = vshrl.u32 2102212464, %v3527
        %v3537 = vor.u32 %v3535, %v3536
        %v3538 = vshll.u32 2102212464, %v3526
        %v3539 = vshrl.u32 920167782, %v3527
        %v3540 = vor.u32 %v3538, %v3539
        %v3541 = vshll.u32 920167782, %v3526
        %v3542 = vshrl.u32 1326507024, %v3527
        %v3543 = vor.u32 %v3541, %v3542
        %vm3544 = vcmp.lt.s32.totalorder %v3525, 1
        %vm3545 = vcmp.lt.s32.totalorder %v3525, 2
        %vm3546 = vcmp.lt.s32.totalorder %v3525, 3
        %vm3547 = vcmp.lt.s32.totalorder %v3525, 4
        %v3548 = vsel %vm3544, %v3528, %v3531
        %v3549 = vsel %vm3547, %v3537, 2102212464
        %v3550 = vsel %vm3546, %v3534, %v3549
        %v3551 = vsel %vm3545, %v3548, %v3550
        %v3552 = vsel %vm3544, %v3531, %v3534
        %v3553 = vsel %vm3547, %v3540, 920167782
        %v3554 = vsel %vm3546, %v3537, %v3553
        %v3555 = vsel %vm3545, %v3552, %v3554
        %v3556 = vsel %vm3544, %v3534, %v3537
        %v3557 = vsel %vm3547, %v3543, 1326507024
        %v3558 = vsel %vm3546, %v3540, %v3557
        %v3559 = vsel %vm3545, %v3556, %v3558
        %v3560 = vshll.u32 %v3520, 8
        %v3561 = vmul.u32.u64.compose %v3560, %v3559
        %v3562 = vextract.low.u32 %v3561
        %v3563 = vextract.high.u32 %v3561
        %v3564 = vmul.u32.u64.compose %v3560, %v3555
        %v3565 = vextract.low.u32 %v3564
        %v3566 = vextract.high.u32 %v3564
        %v3567 = vmul.u32 %v3560, %v3551
        %v3568 = vadd.s32 %v3563, %v3565
        %vm3569 = vc.u32 %v3563, %v3565
        %v3570 = vadd.s32 %v3566, 1
        %v3571 = vsel %vm3569, %v3570, %v3566
        %v3572 = vadd.s32 %v3567, %v3571
        %v3573 = vadd.s32 %v3572, 536870912
        %v3574 = vshrl.u32 %v3573, 30
        %v3575 = vshll.u32 %v3574, 30
        %v3576 = vsub.s32 %v3572, %v3575
        %vm3577 = vcmp.lt.s32.totalorder %v3576, 0
        %v3578 = vsub.s32 0, %v3576
        %v3579 = vsel %vm3577, %v3578, %v3576
        %v3580 = vclz %v3579
        %v3581 = vsub.s32 %v3580, 2
        %vm3582 = vcmp.gt.s32.totalorder 0, %v3581
        %v3583 = vsel %vm3582, 0, %v3581
        %v3584 = vsub.s32 32, %v3583
        %v3585 = vshll.u32 %v3576, %v3583
        %v3586 = vshrl.u32 %v3568, %v3584
        %v3587 = vor.u32 %v3585, %v3586
        %v3588 = vsub.s32 4294967266, %v3583
        %v3589 = vadd.s32 %v3588, 127
        %v3590 = vshll.u32 %v3589, 23
        %v3591 = vor.u32 4788187, %v3590
        %v3592 = vand.u32 2147483647, %v3591
        %v3594 = vcvt.s32.f32 %v3587
        %v3595 = vmul.f32 %v3594, %v3592
        %v3596 = vxor.u32 %v3595, 2147483648
        %v3597 = vsel %vm3514, %v3596, %v3595
        %v3598 = vsub.s32 4, %v3574
        %v3599 = vsel %vm3514, %v3598, %v3574
        %v3600 = vsel %vm3513, %v389, %v3597
        %v3601 = vsel %vm3513, 0, %v3599
        %v3602 = vcosq.f32.pop %v3600
        %v3603 = vsinq.f32.pop %v3600
        %vm3604 = vweird.f32 %v389
        %v3605 = vand.u32 %v3601, 3
        %vm3606 = vcmp.lt.s32.totalorder %v3605, 2
        %vm3607 = vcmp.eq.s32.totalorder %v3605, 0
        %v3608 = vxor.u32 %v3603, 2147483648
        %v3609 = vsel %vm3607, %v3602, %v3608
        %vm3610 = vcmp.eq.s32.totalorder %v3605, 2
        %v3611 = vxor.u32 %v3602, 2147483648
        %v3612 = vsel %vm3610, %v3611, %v3603
        %v3613 = vsel %vm3606, %v3609, %v3612
        %v3614 = vsel %vm3604, nan, %v3613
        %v3615 = vand.u32 2147483647, %v390
        %vm3616 = vcmp.le.f32.partialorder %v3615, 0.7853982
        %vm3617 = vcmp.lt.s32.totalorder %v390, 0
        %v3618 = vand.u32 %v390, 2139095040
        %v3619 = vshrl.u32 %v3618, 23
        %v3620 = vsub.s32 %v3619, 127
        %v3621 = vand.u32 2147483647, %v390
        %v3622 = vand.u32 %v3621, 8388607
        %v3623 = vor.u32 %v3622, 8388608
        %v3624 = vsub.s32 0, %v3623
        %v3625 = vadd.s32 %v3620, 1
        %vm3626 = vcmp.gt.s32.totalorder %v3625, 0
        %v3627 = vsel %vm3626, %v3625, 0
        %v3628 = vshrl.u32 %v3627, 5
        %v3629 = vand.u32 %v3627, 31
        %v3630 = vsub.s32 32, %v3629
        %v3631 = vshrl.u32 683565275, %v3630
        %v3632 = vshll.u32 683565275, %v3629
        %v3633 = vshrl.u32 2475754826, %v3630
        %v3634 = vor.u32 %v3632, %v3633
        %v3635 = vshll.u32 2475754826, %v3629
        %v3636 = vshrl.u32 2131351028, %v3630
        %v3637 = vor.u32 %v3635, %v3636
        %v3638 = vshll.u32 2131351028, %v3629
        %v3639 = vshrl.u32 2102212464, %v3630
        %v3640 = vor.u32 %v3638, %v3639
        %v3641 = vshll.u32 2102212464, %v3629
        %v3642 = vshrl.u32 920167782, %v3630
        %v3643 = vor.u32 %v3641, %v3642
        %v3644 = vshll.u32 920167782, %v3629
        %v3645 = vshrl.u32 1326507024, %v3630
        %v3646 = vor.u32 %v3644, %v3645
        %vm3647 = vcmp.lt.s32.totalorder %v3628, 1
        %vm3648 = vcmp.lt.s32.totalorder %v3628, 2
        %vm3649 = vcmp.lt.s32.totalorder %v3628, 3
        %vm3650 = vcmp.lt.s32.totalorder %v3628, 4
        %v3651 = vsel %vm3647, %v3631, %v3634
        %v3652 = vsel %vm3650, %v3640, 2102212464
        %v3653 = vsel %vm3649, %v3637, %v3652
        %v3654 = vsel %vm3648, %v3651, %v3653
        %v3655 = vsel %vm3647, %v3634, %v3637
        %v3656 = vsel %vm3650, %v3643, 920167782
        %v3657 = vsel %vm3649, %v3640, %v3656
        %v3658 = vsel %vm3648, %v3655, %v3657
        %v3659 = vsel %vm3647, %v3637, %v3640
        %v3660 = vsel %vm3650, %v3646, 1326507024
        %v3661 = vsel %vm3649, %v3643, %v3660
        %v3662 = vsel %vm3648, %v3659, %v3661
        %v3663 = vshll.u32 %v3623, 8
        %v3664 = vmul.u32.u64.compose %v3663, %v3662
        %v3665 = vextract.low.u32 %v3664
        %v3666 = vextract.high.u32 %v3664
        %v3667 = vmul.u32.u64.compose %v3663, %v3658
        %v3668 = vextract.low.u32 %v3667
        %v3669 = vextract.high.u32 %v3667
        %v3670 = vmul.u32 %v3663, %v3654
        %v3671 = vadd.s32 %v3666, %v3668
        %vm3672 = vc.u32 %v3666, %v3668
        %v3673 = vadd.s32 %v3669, 1
        %v3674 = vsel %vm3672, %v3673, %v3669
        %v3675 = vadd.s32 %v3670, %v3674
        %v3676 = vadd.s32 %v3675, 536870912
        %v3677 = vshrl.u32 %v3676, 30
        %v3678 = vshll.u32 %v3677, 30
        %v3679 = vsub.s32 %v3675, %v3678
        %vm3680 = vcmp.lt.s32.totalorder %v3679, 0
        %v3681 = vsub.s32 0, %v3679
        %v3682 = vsel %vm3680, %v3681, %v3679
        %v3683 = vclz %v3682
        %v3684 = vsub.s32 %v3683, 2
        %vm3685 = vcmp.gt.s32.totalorder 0, %v3684
        %v3686 = vsel %vm3685, 0, %v3684
        %v3687 = vsub.s32 32, %v3686
        %v3688 = vshll.u32 %v3679, %v3686
        %v3689 = vshrl.u32 %v3671, %v3687
        %v3690 = vor.u32 %v3688, %v3689
        %v3691 = vsub.s32 4294967266, %v3686
        %v3692 = vadd.s32 %v3691, 127
        %v3693 = vshll.u32 %v3692, 23
        %v3694 = vor.u32 4788187, %v3693
        %v3695 = vand.u32 2147483647, %v3694
        %v3697 = vcvt.s32.f32 %v3690
        %v3698 = vmul.f32 %v3697, %v3695
        %v3699 = vxor.u32 %v3698, 2147483648
        %v3700 = vsel %vm3617, %v3699, %v3698
        %v3701 = vsub.s32 4, %v3677
        %v3702 = vsel %vm3617, %v3701, %v3677
        %v3703 = vsel %vm3616, %v390, %v3700
        %v3704 = vsel %vm3616, 0, %v3702
        %v3705 = vcosq.f32.pop %v3703
        %v3706 = vsinq.f32.pop %v3703
        %vm3707 = vweird.f32 %v390
        %v3708 = vand.u32 %v3704, 3
        %vm3709 = vcmp.lt.s32.totalorder %v3708, 2
        %vm3710 = vcmp.eq.s32.totalorder %v3708, 0
        %v3711 = vxor.u32 %v3706, 2147483648
        %v3712 = vsel %vm3710, %v3705, %v3711
        %vm3713 = vcmp.eq.s32.totalorder %v3708, 2
        %v3714 = vxor.u32 %v3705, 2147483648
        %v3715 = vsel %vm3713, %v3714, %v3706
        %v3716 = vsel %vm3709, %v3712, %v3715
        %v3717 = vsel %vm3707, nan, %v3716
        %v3718 = vsel %vm405, %v509, %v2172
        %v3719 = vsel %vm405, %v613, %v2275
        %v3720 = vsel %vm405, %v717, %v2378
        %v3721 = vsel %vm405, %v821, %v2481
        %v3722 = vsel %vm405, %v925, %v2584
        %v3723 = vsel %vm405, %v1029, %v2687
        %v3724 = vsel %vm405, %v1133, %v2790
        %v3725 = vsel %vm405, %v1237, %v2893
        %v3726 = vsel %vm405, %v1341, %v2996
        %v3727 = vsel %vm405, %v1445, %v3099
        %v3728 = vsel %vm405, %v1549, %v3202
        %v3729 = vsel %vm405, %v1653, %v3305
        %v3730 = vsel %vm405, %v1757, %v3408
        %v3731 = vsel %vm405, %v1861, %v3511
        %v3732 = vsel %vm405, %v1965, %v3614
        %v3733 = vsel %vm405, %v2069, %v3717
        %v3734 = vld [vmem:[%s212] sm:$0xff]
        %v3735 = vld [vmem:[%s212 + $0x8] sm:$0xff]
        %v3736 = vld [vmem:[%s212 + $0x10] sm:$0xff]
        %v3737 = vld [vmem:[%s212 + $0x18] sm:$0xff]
        %v3738 = vld [vmem:[%s212 + $0x20] sm:$0xff]
        %v3739 = vld [vmem:[%s212 + $0x28] sm:$0xff]
        %v3740 = vld [vmem:[%s212 + $0x30] sm:$0xff]
        %v3741 = vld [vmem:[%s212 + $0x38] sm:$0xff]
        %v3742 = vld [vmem:[%s212 + $0x40] sm:$0xff]
        %v3743 = vld [vmem:[%s212 + $0x48] sm:$0xff]
        %v3744 = vld [vmem:[%s212 + $0x50] sm:$0xff]
        %v3745 = vld [vmem:[%s212 + $0x58] sm:$0xff]
        %v3746 = vld [vmem:[%s212 + $0x60] sm:$0xff]
        %v3747 = vld [vmem:[%s212 + $0x68] sm:$0xff]
        %v3748 = vld [vmem:[%s212 + $0x70] sm:$0xff]
        %v3749 = vld [vmem:[%s212 + $0x78] sm:$0xff]
        %v3750 = vmul.f32 %v3734, 2.0
        %v3751 = vmul.f32 %v3735, 2.0
        %v3752 = vmul.f32 %v3736, 2.0
        %v3753 = vmul.f32 %v3737, 2.0
        %v3754 = vmul.f32 %v3738, 2.0
        %v3755 = vmul.f32 %v3739, 2.0
        %v3756 = vmul.f32 %v3740, 2.0
        %v3757 = vmul.f32 %v3741, 2.0
        %v3758 = vmul.f32 %v3742, 2.0
        %v3759 = vmul.f32 %v3743, 2.0
        %v3760 = vmul.f32 %v3744, 2.0
        %v3761 = vmul.f32 %v3745, 2.0
        %v3762 = vmul.f32 %v3746, 2.0
        %v3763 = vmul.f32 %v3747, 2.0
        %v3764 = vmul.f32 %v3748, 2.0
        %v3765 = vmul.f32 %v3749, 2.0
        %v3766 = vadd.f32 %v3750, %v3718
        %v3767 = vadd.f32 %v3751, %v3719
        %v3768 = vadd.f32 %v3752, %v3720
        %v3769 = vadd.f32 %v3753, %v3721
        %v3770 = vadd.f32 %v3754, %v3722
        %v3771 = vadd.f32 %v3755, %v3723
        %v3772 = vadd.f32 %v3756, %v3724
        %v3773 = vadd.f32 %v3757, %v3725
        %v3774 = vadd.f32 %v3758, %v3726
        %v3775 = vadd.f32 %v3759, %v3727
        %v3776 = vadd.f32 %v3760, %v3728
        %v3777 = vadd.f32 %v3761, %v3729
        %v3778 = vadd.f32 %v3762, %v3730
        %v3779 = vadd.f32 %v3763, %v3731
        %v3780 = vadd.f32 %v3764, %v3732
        %v3781 = vadd.f32 %v3765, %v3733
        %v3782 = vlaneseq
        %v3783 = vshrl.u32 %v3782, 7
        %v3784 = vsub.s32 0, %v3783
        %v3785 = vrot.slane %v221, %v3784
        %v3786 = vadd.f32 %v3785, 0.0
        %3788 = vset.pattern.permute.xlu0 0
        %3789 = vperm.xlu0 %3788, %v3766
        %v3790 = vpop.permute.xlu0 %3789
        %3793 = vset.pattern.permute.xlu0 0
        %3794 = vperm.xlu0 %3793, %v3767
        %v3795 = vpop.permute.xlu0 %3794
        %3798 = vset.pattern.permute.xlu0 0
        %3799 = vperm.xlu0 %3798, %v3768
        %v3800 = vpop.permute.xlu0 %3799
        %3803 = vset.pattern.permute.xlu0 0
        %3804 = vperm.xlu0 %3803, %v3769
        %v3805 = vpop.permute.xlu0 %3804
        %3808 = vset.pattern.permute.xlu0 0
        %3809 = vperm.xlu0 %3808, %v3770
        %v3810 = vpop.permute.xlu0 %3809
        %3813 = vset.pattern.permute.xlu0 0
        %3814 = vperm.xlu0 %3813, %v3771
        %v3815 = vpop.permute.xlu0 %3814
        %3818 = vset.pattern.permute.xlu0 0
        %3819 = vperm.xlu0 %3818, %v3772
        %v3820 = vpop.permute.xlu0 %3819
        %3823 = vset.pattern.permute.xlu0 0
        %3824 = vperm.xlu0 %3823, %v3773
        %v3825 = vpop.permute.xlu0 %3824
        %3828 = vset.pattern.permute.xlu0 0
        %3829 = vperm.xlu0 %3828, %v3774
        %v3830 = vpop.permute.xlu0 %3829
        %3833 = vset.pattern.permute.xlu0 0
        %3834 = vperm.xlu0 %3833, %v3775
        %v3835 = vpop.permute.xlu0 %3834
        %3838 = vset.pattern.permute.xlu0 0
        %3839 = vperm.xlu0 %3838, %v3776
        %v3840 = vpop.permute.xlu0 %3839
        %3843 = vset.pattern.permute.xlu0 0
        %3844 = vperm.xlu0 %3843, %v3777
        %v3845 = vpop.permute.xlu0 %3844
        %3848 = vset.pattern.permute.xlu0 0
        %3849 = vperm.xlu0 %3848, %v3778
        %v3850 = vpop.permute.xlu0 %3849
        %3853 = vset.pattern.permute.xlu0 0
        %3854 = vperm.xlu0 %3853, %v3779
        %v3855 = vpop.permute.xlu0 %3854
        %3858 = vset.pattern.permute.xlu0 0
        %3859 = vperm.xlu0 %3858, %v3780
        %v3860 = vpop.permute.xlu0 %3859
        %3863 = vset.pattern.permute.xlu0 0
        %3864 = vperm.xlu0 %3863, %v3781
        %v3865 = vpop.permute.xlu0 %3864
        %v3867 = vlaneseq
        %v3868 = vshrl.u32 %v3867, 7
        %v3869 = vsub.s32 0, %v3868
        %v3870 = vrot.slane %v230, %v3869
        %v3871 = vmul.f32 %v3790, %v3870
        %v3872 = vmul.f32 %v3795, %v3870
        %v3873 = vmul.f32 %v3800, %v3870
        %v3874 = vmul.f32 %v3805, %v3870
        %v3875 = vmul.f32 %v3810, %v3870
        %v3876 = vmul.f32 %v3815, %v3870
        %v3877 = vmul.f32 %v3820, %v3870
        %v3878 = vmul.f32 %v3825, %v3870
        %v3879 = vmul.f32 %v3830, %v3870
        %v3880 = vmul.f32 %v3835, %v3870
        %v3881 = vmul.f32 %v3840, %v3870
        %v3882 = vmul.f32 %v3845, %v3870
        %v3883 = vmul.f32 %v3850, %v3870
        %v3884 = vmul.f32 %v3855, %v3870
        %v3885 = vmul.f32 %v3860, %v3870
        %v3886 = vmul.f32 %v3865, %v3870
        %v3887 = vadd.f32 %v3786, %v3871
        %v3888 = vadd.f32 %v3786, %v3872
        %v3889 = vadd.f32 %v3786, %v3873
        %v3890 = vadd.f32 %v3786, %v3874
        %v3891 = vadd.f32 %v3786, %v3875
        %v3892 = vadd.f32 %v3786, %v3876
        %v3893 = vadd.f32 %v3786, %v3877
        %v3894 = vadd.f32 %v3786, %v3878
        %v3895 = vadd.f32 %v3786, %v3879
        %v3896 = vadd.f32 %v3786, %v3880
        %v3897 = vadd.f32 %v3786, %v3881
        %v3898 = vadd.f32 %v3786, %v3882
        %v3899 = vadd.f32 %v3786, %v3883
        %v3900 = vadd.f32 %v3786, %v3884
        %v3901 = vadd.f32 %v3786, %v3885
        %v3902 = vadd.f32 %v3786, %v3886
        %3903 = vset.pattern.permute.xlu0 1
        %3904 = vperm.xlu0 %3903, %v3766
        %v3905 = vpop.permute.xlu0 %3904
        %3907 = vset.pattern.permute.xlu0 1
        %3908 = vperm.xlu0 %3907, %v3767
        %v3909 = vpop.permute.xlu0 %3908
        %3911 = vset.pattern.permute.xlu0 1
        %3912 = vperm.xlu0 %3911, %v3768
        %v3913 = vpop.permute.xlu0 %3912
        %3915 = vset.pattern.permute.xlu0 1
        %3916 = vperm.xlu0 %3915, %v3769
        %v3917 = vpop.permute.xlu0 %3916
        %3919 = vset.pattern.permute.xlu0 1
        %3920 = vperm.xlu0 %3919, %v3770
        %v3921 = vpop.permute.xlu0 %3920
        %3923 = vset.pattern.permute.xlu0 1
        %3924 = vperm.xlu0 %3923, %v3771
        %v3925 = vpop.permute.xlu0 %3924
        %3927 = vset.pattern.permute.xlu0 1
        %3928 = vperm.xlu0 %3927, %v3772
        %v3929 = vpop.permute.xlu0 %3928
        %3931 = vset.pattern.permute.xlu0 1
        %3932 = vperm.xlu0 %3931, %v3773
        %v3933 = vpop.permute.xlu0 %3932
        %3935 = vset.pattern.permute.xlu0 1
        %3936 = vperm.xlu0 %3935, %v3774
        %v3937 = vpop.permute.xlu0 %3936
        %3939 = vset.pattern.permute.xlu0 1
        %3940 = vperm.xlu0 %3939, %v3775
        %v3941 = vpop.permute.xlu0 %3940
        %3943 = vset.pattern.permute.xlu0 1
        %3944 = vperm.xlu0 %3943, %v3776
        %v3945 = vpop.permute.xlu0 %3944
        %3947 = vset.pattern.permute.xlu0 1
        %3948 = vperm.xlu0 %3947, %v3777
        %v3949 = vpop.permute.xlu0 %3948
        %3951 = vset.pattern.permute.xlu0 1
        %3952 = vperm.xlu0 %3951, %v3778
        %v3953 = vpop.permute.xlu0 %3952
        %3955 = vset.pattern.permute.xlu0 1
        %3956 = vperm.xlu0 %3955, %v3779
        %v3957 = vpop.permute.xlu0 %3956
        %3959 = vset.pattern.permute.xlu0 1
        %3960 = vperm.xlu0 %3959, %v3780
        %v3961 = vpop.permute.xlu0 %3960
        %3963 = vset.pattern.permute.xlu0 1
        %3964 = vperm.xlu0 %3963, %v3781
        %v3965 = vpop.permute.xlu0 %3964
        %v3967 = vlaneseq
        %v3968 = vshrl.u32 %v3967, 7
        %v3969 = vsub.s32 0, %v3968
        %v3970 = vrot.slane %v231, %v3969
        %v3971 = vmul.f32 %v3905, %v3970
        %v3972 = vmul.f32 %v3909, %v3970
        %v3973 = vmul.f32 %v3913, %v3970
        %v3974 = vmul.f32 %v3917, %v3970
        %v3975 = vmul.f32 %v3921, %v3970
        %v3976 = vmul.f32 %v3925, %v3970
        %v3977 = vmul.f32 %v3929, %v3970
        %v3978 = vmul.f32 %v3933, %v3970
        %v3979 = vmul.f32 %v3937, %v3970
        %v3980 = vmul.f32 %v3941, %v3970
        %v3981 = vmul.f32 %v3945, %v3970
        %v3982 = vmul.f32 %v3949, %v3970
        %v3983 = vmul.f32 %v3953, %v3970
        %v3984 = vmul.f32 %v3957, %v3970
        %v3985 = vmul.f32 %v3961, %v3970
        %v3986 = vmul.f32 %v3965, %v3970
        %v3987 = vadd.f32 %v3887, %v3971
        %v3988 = vadd.f32 %v3888, %v3972
        %v3989 = vadd.f32 %v3889, %v3973
        %v3990 = vadd.f32 %v3890, %v3974
        %v3991 = vadd.f32 %v3891, %v3975
        %v3992 = vadd.f32 %v3892, %v3976
        %v3993 = vadd.f32 %v3893, %v3977
        %v3994 = vadd.f32 %v3894, %v3978
        %v3995 = vadd.f32 %v3895, %v3979
        %v3996 = vadd.f32 %v3896, %v3980
        %v3997 = vadd.f32 %v3897, %v3981
        %v3998 = vadd.f32 %v3898, %v3982
        %v3999 = vadd.f32 %v3899, %v3983
        %v4000 = vadd.f32 %v3900, %v3984
        %v4001 = vadd.f32 %v3901, %v3985
        %v4002 = vadd.f32 %v3902, %v3986
        %4003 = vset.pattern.permute.xlu0 2
        %4004 = vperm.xlu0 %4003, %v3766
        %v4005 = vpop.permute.xlu0 %4004
        %4007 = vset.pattern.permute.xlu0 2
        %4008 = vperm.xlu0 %4007, %v3767
        %v4009 = vpop.permute.xlu0 %4008
        %4011 = vset.pattern.permute.xlu0 2
        %4012 = vperm.xlu0 %4011, %v3768
        %v4013 = vpop.permute.xlu0 %4012
        %4015 = vset.pattern.permute.xlu0 2
        %4016 = vperm.xlu0 %4015, %v3769
        %v4017 = vpop.permute.xlu0 %4016
        %4019 = vset.pattern.permute.xlu0 2
        %4020 = vperm.xlu0 %4019, %v3770
        %v4021 = vpop.permute.xlu0 %4020
        %4023 = vset.pattern.permute.xlu0 2
        %4024 = vperm.xlu0 %4023, %v3771
        %v4025 = vpop.permute.xlu0 %4024
        %4027 = vset.pattern.permute.xlu0 2
        %4028 = vperm.xlu0 %4027, %v3772
        %v4029 = vpop.permute.xlu0 %4028
        %4031 = vset.pattern.permute.xlu0 2
        %4032 = vperm.xlu0 %4031, %v3773
        %v4033 = vpop.permute.xlu0 %4032
        %4035 = vset.pattern.permute.xlu0 2
        %4036 = vperm.xlu0 %4035, %v3774
        %v4037 = vpop.permute.xlu0 %4036
        %4039 = vset.pattern.permute.xlu0 2
        %4040 = vperm.xlu0 %4039, %v3775
        %v4041 = vpop.permute.xlu0 %4040
        %4043 = vset.pattern.permute.xlu0 2
        %4044 = vperm.xlu0 %4043, %v3776
        %v4045 = vpop.permute.xlu0 %4044
        %4047 = vset.pattern.permute.xlu0 2
        %4048 = vperm.xlu0 %4047, %v3777
        %v4049 = vpop.permute.xlu0 %4048
        %4051 = vset.pattern.permute.xlu0 2
        %4052 = vperm.xlu0 %4051, %v3778
        %v4053 = vpop.permute.xlu0 %4052
        %4055 = vset.pattern.permute.xlu0 2
        %4056 = vperm.xlu0 %4055, %v3779
        %v4057 = vpop.permute.xlu0 %4056
        %4059 = vset.pattern.permute.xlu0 2
        %4060 = vperm.xlu0 %4059, %v3780
        %v4061 = vpop.permute.xlu0 %4060
        %4063 = vset.pattern.permute.xlu0 2
        %4064 = vperm.xlu0 %4063, %v3781
        %v4065 = vpop.permute.xlu0 %4064
        %v4067 = vlaneseq
        %v4068 = vshrl.u32 %v4067, 7
        %v4069 = vsub.s32 0, %v4068
        %v4070 = vrot.slane %v232, %v4069
        %v4071 = vmul.f32 %v4005, %v4070
        %v4072 = vmul.f32 %v4009, %v4070
        %v4073 = vmul.f32 %v4013, %v4070
        %v4074 = vmul.f32 %v4017, %v4070
        %v4075 = vmul.f32 %v4021, %v4070
        %v4076 = vmul.f32 %v4025, %v4070
        %v4077 = vmul.f32 %v4029, %v4070
        %v4078 = vmul.f32 %v4033, %v4070
        %v4079 = vmul.f32 %v4037, %v4070
        %v4080 = vmul.f32 %v4041, %v4070
        %v4081 = vmul.f32 %v4045, %v4070
        %v4082 = vmul.f32 %v4049, %v4070
        %v4083 = vmul.f32 %v4053, %v4070
        %v4084 = vmul.f32 %v4057, %v4070
        %v4085 = vmul.f32 %v4061, %v4070
        %v4086 = vmul.f32 %v4065, %v4070
        %v4087 = vadd.f32 %v3987, %v4071
        %v4088 = vadd.f32 %v3988, %v4072
        %v4089 = vadd.f32 %v3989, %v4073
        %v4090 = vadd.f32 %v3990, %v4074
        %v4091 = vadd.f32 %v3991, %v4075
        %v4092 = vadd.f32 %v3992, %v4076
        %v4093 = vadd.f32 %v3993, %v4077
        %v4094 = vadd.f32 %v3994, %v4078
        %v4095 = vadd.f32 %v3995, %v4079
        %v4096 = vadd.f32 %v3996, %v4080
        %v4097 = vadd.f32 %v3997, %v4081
        %v4098 = vadd.f32 %v3998, %v4082
        %v4099 = vadd.f32 %v3999, %v4083
        %v4100 = vadd.f32 %v4000, %v4084
        %v4101 = vadd.f32 %v4001, %v4085
        %v4102 = vadd.f32 %v4002, %v4086
        %4103 = vset.pattern.permute.xlu0 3
        %4104 = vperm.xlu0 %4103, %v3766
        %v4105 = vpop.permute.xlu0 %4104
        %4107 = vset.pattern.permute.xlu0 3
        %4108 = vperm.xlu0 %4107, %v3767
        %v4109 = vpop.permute.xlu0 %4108
        %4111 = vset.pattern.permute.xlu0 3
        %4112 = vperm.xlu0 %4111, %v3768
        %v4113 = vpop.permute.xlu0 %4112
        %4115 = vset.pattern.permute.xlu0 3
        %4116 = vperm.xlu0 %4115, %v3769
        %v4117 = vpop.permute.xlu0 %4116
        %4119 = vset.pattern.permute.xlu0 3
        %4120 = vperm.xlu0 %4119, %v3770
        %v4121 = vpop.permute.xlu0 %4120
        %4123 = vset.pattern.permute.xlu0 3
        %4124 = vperm.xlu0 %4123, %v3771
        %v4125 = vpop.permute.xlu0 %4124
        %4127 = vset.pattern.permute.xlu0 3
        %4128 = vperm.xlu0 %4127, %v3772
        %v4129 = vpop.permute.xlu0 %4128
        %4131 = vset.pattern.permute.xlu0 3
        %4132 = vperm.xlu0 %4131, %v3773
        %v4133 = vpop.permute.xlu0 %4132
        %4135 = vset.pattern.permute.xlu0 3
        %4136 = vperm.xlu0 %4135, %v3774
        %v4137 = vpop.permute.xlu0 %4136
        %4139 = vset.pattern.permute.xlu0 3
        %4140 = vperm.xlu0 %4139, %v3775
        %v4141 = vpop.permute.xlu0 %4140
        %4143 = vset.pattern.permute.xlu0 3
        %4144 = vperm.xlu0 %4143, %v3776
        %v4145 = vpop.permute.xlu0 %4144
        %4147 = vset.pattern.permute.xlu0 3
        %4148 = vperm.xlu0 %4147, %v3777
        %v4149 = vpop.permute.xlu0 %4148
        %4151 = vset.pattern.permute.xlu0 3
        %4152 = vperm.xlu0 %4151, %v3778
        %v4153 = vpop.permute.xlu0 %4152
        %4155 = vset.pattern.permute.xlu0 3
        %4156 = vperm.xlu0 %4155, %v3779
        %v4157 = vpop.permute.xlu0 %4156
        %4159 = vset.pattern.permute.xlu0 3
        %4160 = vperm.xlu0 %4159, %v3780
        %v4161 = vpop.permute.xlu0 %4160
        %4163 = vset.pattern.permute.xlu0 3
        %4164 = vperm.xlu0 %4163, %v3781
        %v4165 = vpop.permute.xlu0 %4164
        %v4167 = vlaneseq
        %v4168 = vshrl.u32 %v4167, 7
        %v4169 = vsub.s32 0, %v4168
        %v4170 = vrot.slane %v233, %v4169
        %v4171 = vmul.f32 %v4105, %v4170
        %v4172 = vmul.f32 %v4109, %v4170
        %v4173 = vmul.f32 %v4113, %v4170
        %v4174 = vmul.f32 %v4117, %v4170
        %v4175 = vmul.f32 %v4121, %v4170
        %v4176 = vmul.f32 %v4125, %v4170
        %v4177 = vmul.f32 %v4129, %v4170
        %v4178 = vmul.f32 %v4133, %v4170
        %v4179 = vmul.f32 %v4137, %v4170
        %v4180 = vmul.f32 %v4141, %v4170
        %v4181 = vmul.f32 %v4145, %v4170
        %v4182 = vmul.f32 %v4149, %v4170
        %v4183 = vmul.f32 %v4153, %v4170
        %v4184 = vmul.f32 %v4157, %v4170
        %v4185 = vmul.f32 %v4161, %v4170
        %v4186 = vmul.f32 %v4165, %v4170
        %v4187 = vadd.f32 %v4087, %v4171
        %v4188 = vadd.f32 %v4088, %v4172
        %v4189 = vadd.f32 %v4089, %v4173
        %v4190 = vadd.f32 %v4090, %v4174
        %v4191 = vadd.f32 %v4091, %v4175
        %v4192 = vadd.f32 %v4092, %v4176
        %v4193 = vadd.f32 %v4093, %v4177
        %v4194 = vadd.f32 %v4094, %v4178
        %v4195 = vadd.f32 %v4095, %v4179
        %v4196 = vadd.f32 %v4096, %v4180
        %v4197 = vadd.f32 %v4097, %v4181
        %v4198 = vadd.f32 %v4098, %v4182
        %v4199 = vadd.f32 %v4099, %v4183
        %v4200 = vadd.f32 %v4100, %v4184
        %v4201 = vadd.f32 %v4101, %v4185
        %v4202 = vadd.f32 %v4102, %v4186
        %vm4203 = vcmask 31744
        %v4204 = vsel %vm4203, %v4187, 0.0
        %4205 = vadd.xlane.f32.xlu0 %v4204
        %v4206 = vpop.xlane.xlu0 %4205
        %v4207 = vsel %vm4203, %v4188, 0.0
        %4208 = vadd.xlane.f32.xlu0 %v4207
        %v4209 = vpop.xlane.xlu0 %4208
        %v4210 = vsel %vm4203, %v4189, 0.0
        %4211 = vadd.xlane.f32.xlu0 %v4210
        %v4212 = vpop.xlane.xlu0 %4211
        %v4213 = vsel %vm4203, %v4190, 0.0
        %4214 = vadd.xlane.f32.xlu0 %v4213
        %v4215 = vpop.xlane.xlu0 %4214
        %v4216 = vsel %vm4203, %v4191, 0.0
        %4217 = vadd.xlane.f32.xlu0 %v4216
        %v4218 = vpop.xlane.xlu0 %4217
        %v4219 = vsel %vm4203, %v4192, 0.0
        %4220 = vadd.xlane.f32.xlu0 %v4219
        %v4221 = vpop.xlane.xlu0 %4220
        %v4222 = vsel %vm4203, %v4193, 0.0
        %4223 = vadd.xlane.f32.xlu0 %v4222
        %v4224 = vpop.xlane.xlu0 %4223
        %v4225 = vsel %vm4203, %v4194, 0.0
        %4226 = vadd.xlane.f32.xlu0 %v4225
        %v4227 = vpop.xlane.xlu0 %4226
        %v4228 = vsel %vm4203, %v4195, 0.0
        %4229 = vadd.xlane.f32.xlu0 %v4228
        %v4230 = vpop.xlane.xlu0 %4229
        %v4231 = vsel %vm4203, %v4196, 0.0
        %4232 = vadd.xlane.f32.xlu0 %v4231
        %v4233 = vpop.xlane.xlu0 %4232
        %v4234 = vsel %vm4203, %v4197, 0.0
        %4235 = vadd.xlane.f32.xlu0 %v4234
        %v4236 = vpop.xlane.xlu0 %4235
        %v4237 = vsel %vm4203, %v4198, 0.0
        %4238 = vadd.xlane.f32.xlu0 %v4237
        %v4239 = vpop.xlane.xlu0 %4238
        %v4240 = vsel %vm4203, %v4199, 0.0
        %4241 = vadd.xlane.f32.xlu0 %v4240
        %v4242 = vpop.xlane.xlu0 %4241
        %v4243 = vsel %vm4203, %v4200, 0.0
        %4244 = vadd.xlane.f32.xlu0 %v4243
        %v4245 = vpop.xlane.xlu0 %4244
        %v4246 = vsel %vm4203, %v4201, 0.0
        %4247 = vadd.xlane.f32.xlu0 %v4246
        %v4248 = vpop.xlane.xlu0 %4247
        %v4249 = vsel %vm4203, %v4202, 0.0
        %4250 = vadd.xlane.f32.xlu0 %v4249
        %v4251 = vpop.xlane.xlu0 %4250
        %v4252 = vrcp.pop 4.0
        %v4253 = vmul.f32 %v4206, %v4252
        %v4254 = vmul.f32 %v4209, %v4252
        %v4255 = vmul.f32 %v4212, %v4252
        %v4256 = vmul.f32 %v4215, %v4252
        %v4257 = vmul.f32 %v4218, %v4252
        %v4258 = vmul.f32 %v4221, %v4252
        %v4259 = vmul.f32 %v4224, %v4252
        %v4260 = vmul.f32 %v4227, %v4252
        %v4261 = vmul.f32 %v4230, %v4252
        %v4262 = vmul.f32 %v4233, %v4252
        %v4263 = vmul.f32 %v4236, %v4252
        %v4264 = vmul.f32 %v4239, %v4252
        %v4265 = vmul.f32 %v4242, %v4252
        %v4266 = vmul.f32 %v4245, %v4252
        %v4267 = vmul.f32 %v4248, %v4252
        %v4268 = vmul.f32 %v4251, %v4252
        %v4269 = vsub.f32 %v4187, %v4253
        %v4270 = vsub.f32 %v4188, %v4254
        %v4271 = vsub.f32 %v4189, %v4255
        %v4272 = vsub.f32 %v4190, %v4256
        %v4273 = vsub.f32 %v4191, %v4257
        %v4274 = vsub.f32 %v4192, %v4258
        %v4275 = vsub.f32 %v4193, %v4259
        %v4276 = vsub.f32 %v4194, %v4260
        %v4277 = vsub.f32 %v4195, %v4261
        %v4278 = vsub.f32 %v4196, %v4262
        %v4279 = vsub.f32 %v4197, %v4263
        %v4280 = vsub.f32 %v4198, %v4264
        %v4281 = vsub.f32 %v4199, %v4265
        %v4282 = vsub.f32 %v4200, %v4266
        %v4283 = vsub.f32 %v4201, %v4267
        %v4284 = vsub.f32 %v4202, %v4268
        %v4285 = vmul.f32 %v4269, %v4269
        %v4286 = vmul.f32 %v4270, %v4270
        %v4287 = vmul.f32 %v4271, %v4271
        %v4288 = vmul.f32 %v4272, %v4272
        %v4289 = vmul.f32 %v4273, %v4273
        %v4290 = vmul.f32 %v4274, %v4274
        %v4291 = vmul.f32 %v4275, %v4275
        %v4292 = vmul.f32 %v4276, %v4276
        %v4293 = vmul.f32 %v4277, %v4277
        %v4294 = vmul.f32 %v4278, %v4278
        %v4295 = vmul.f32 %v4279, %v4279
        %v4296 = vmul.f32 %v4280, %v4280
        %v4297 = vmul.f32 %v4281, %v4281
        %v4298 = vmul.f32 %v4282, %v4282
        %v4299 = vmul.f32 %v4283, %v4283
        %v4300 = vmul.f32 %v4284, %v4284
        %v4301 = vsel %vm4203, %v4285, 0.0
        %4302 = vadd.xlane.f32.xlu0 %v4301
        %v4303 = vpop.xlane.xlu0 %4302
        %v4304 = vsel %vm4203, %v4286, 0.0
        %4305 = vadd.xlane.f32.xlu0 %v4304
        %v4306 = vpop.xlane.xlu0 %4305
        %v4307 = vsel %vm4203, %v4287, 0.0
        %4308 = vadd.xlane.f32.xlu0 %v4307
        %v4309 = vpop.xlane.xlu0 %4308
        %v4310 = vsel %vm4203, %v4288, 0.0
        %4311 = vadd.xlane.f32.xlu0 %v4310
        %v4312 = vpop.xlane.xlu0 %4311
        %v4313 = vsel %vm4203, %v4289, 0.0
        %4314 = vadd.xlane.f32.xlu0 %v4313
        %v4315 = vpop.xlane.xlu0 %4314
        %v4316 = vsel %vm4203, %v4290, 0.0
        %4317 = vadd.xlane.f32.xlu0 %v4316
        %v4318 = vpop.xlane.xlu0 %4317
        %v4319 = vsel %vm4203, %v4291, 0.0
        %4320 = vadd.xlane.f32.xlu0 %v4319
        %v4321 = vpop.xlane.xlu0 %4320
        %v4322 = vsel %vm4203, %v4292, 0.0
        %4323 = vadd.xlane.f32.xlu0 %v4322
        %v4324 = vpop.xlane.xlu0 %4323
        %v4325 = vsel %vm4203, %v4293, 0.0
        %4326 = vadd.xlane.f32.xlu0 %v4325
        %v4327 = vpop.xlane.xlu0 %4326
        %v4328 = vsel %vm4203, %v4294, 0.0
        %4329 = vadd.xlane.f32.xlu0 %v4328
        %v4330 = vpop.xlane.xlu0 %4329
        %v4331 = vsel %vm4203, %v4295, 0.0
        %4332 = vadd.xlane.f32.xlu0 %v4331
        %v4333 = vpop.xlane.xlu0 %4332
        %v4334 = vsel %vm4203, %v4296, 0.0
        %4335 = vadd.xlane.f32.xlu0 %v4334
        %v4336 = vpop.xlane.xlu0 %4335
        %v4337 = vsel %vm4203, %v4297, 0.0
        %4338 = vadd.xlane.f32.xlu0 %v4337
        %v4339 = vpop.xlane.xlu0 %4338
        %v4340 = vsel %vm4203, %v4298, 0.0
        %4341 = vadd.xlane.f32.xlu0 %v4340
        %v4342 = vpop.xlane.xlu0 %4341
        %v4343 = vsel %vm4203, %v4299, 0.0
        %4344 = vadd.xlane.f32.xlu0 %v4343
        %v4345 = vpop.xlane.xlu0 %4344
        %v4346 = vsel %vm4203, %v4300, 0.0
        %4347 = vadd.xlane.f32.xlu0 %v4346
        %v4348 = vpop.xlane.xlu0 %4347
        %v4349 = vmul.f32 %v4303, %v4252
        %v4350 = vmul.f32 %v4306, %v4252
        %v4351 = vmul.f32 %v4309, %v4252
        %v4352 = vmul.f32 %v4312, %v4252
        %v4353 = vmul.f32 %v4315, %v4252
        %v4354 = vmul.f32 %v4318, %v4252
        %v4355 = vmul.f32 %v4321, %v4252
        %v4356 = vmul.f32 %v4324, %v4252
        %v4357 = vmul.f32 %v4327, %v4252
        %v4358 = vmul.f32 %v4330, %v4252
        %v4359 = vmul.f32 %v4333, %v4252
        %v4360 = vmul.f32 %v4336, %v4252
        %v4361 = vmul.f32 %v4339, %v4252
        %v4362 = vmul.f32 %v4342, %v4252
        %v4363 = vmul.f32 %v4345, %v4252
        %v4364 = vmul.f32 %v4348, %v4252
        %v4365 = vadd.f32 %v4349, 1e-05
        %v4366 = vadd.f32 %v4350, 1e-05
        %v4367 = vadd.f32 %v4351, 1e-05
        %v4368 = vadd.f32 %v4352, 1e-05
        %v4369 = vadd.f32 %v4353, 1e-05
        %v4370 = vadd.f32 %v4354, 1e-05
        %v4371 = vadd.f32 %v4355, 1e-05
        %v4372 = vadd.f32 %v4356, 1e-05
        %v4373 = vadd.f32 %v4357, 1e-05
        %v4374 = vadd.f32 %v4358, 1e-05
        %v4375 = vadd.f32 %v4359, 1e-05
        %v4376 = vadd.f32 %v4360, 1e-05
        %v4377 = vadd.f32 %v4361, 1e-05
        %v4378 = vadd.f32 %v4362, 1e-05
        %v4379 = vadd.f32 %v4363, 1e-05
        %v4380 = vadd.f32 %v4364, 1e-05
        %v4381 = vrsqrt.pop %v4365
        %v4382 = vrsqrt.pop %v4366
        %v4383 = vrsqrt.pop %v4367
        %v4384 = vrsqrt.pop %v4368
        %v4385 = vrsqrt.pop %v4369
        %v4386 = vrsqrt.pop %v4370
        %v4387 = vrsqrt.pop %v4371
        %v4388 = vrsqrt.pop %v4372
        %v4389 = vrsqrt.pop %v4373
        %v4390 = vrsqrt.pop %v4374
        %v4391 = vrsqrt.pop %v4375
        %v4392 = vrsqrt.pop %v4376
        %v4393 = vrsqrt.pop %v4377
        %v4394 = vrsqrt.pop %v4378
        %v4395 = vrsqrt.pop %v4379
        %v4396 = vrsqrt.pop %v4380
        %v4397 = vmul.f32 %v4269, %v4381
        %v4398 = vmul.f32 %v4270, %v4382
        %v4399 = vmul.f32 %v4271, %v4383
        %v4400 = vmul.f32 %v4272, %v4384
        %v4401 = vmul.f32 %v4273, %v4385
        %v4402 = vmul.f32 %v4274, %v4386
        %v4403 = vmul.f32 %v4275, %v4387
        %v4404 = vmul.f32 %v4276, %v4388
        %v4405 = vmul.f32 %v4277, %v4389
        %v4406 = vmul.f32 %v4278, %v4390
        %v4407 = vmul.f32 %v4279, %v4391
        %v4408 = vmul.f32 %v4280, %v4392
        %v4409 = vmul.f32 %v4281, %v4393
        %v4410 = vmul.f32 %v4282, %v4394
        %v4411 = vmul.f32 %v4283, %v4395
        %v4412 = vmul.f32 %v4284, %v4396
        %v4413 = vlaneseq
        %v4414 = vshrl.u32 %v4413, 7
        %v4415 = vsub.s32 0, %v4414
        %v4416 = vrot.slane %v223, %v4415
        %v4417 = vmul.f32 %v4397, %v4416
        %v4418 = vmul.f32 %v4398, %v4416
        %v4419 = vmul.f32 %v4399, %v4416
        %v4420 = vmul.f32 %v4400, %v4416
        %v4421 = vmul.f32 %v4401, %v4416
        %v4422 = vmul.f32 %v4402, %v4416
        %v4423 = vmul.f32 %v4403, %v4416
        %v4424 = vmul.f32 %v4404, %v4416
        %v4425 = vmul.f32 %v4405, %v4416
        %v4426 = vmul.f32 %v4406, %v4416
        %v4427 = vmul.f32 %v4407, %v4416
        %v4428 = vmul.f32 %v4408, %v4416
        %v4429 = vmul.f32 %v4409, %v4416
        %v4430 = vmul.f32 %v4410, %v4416
        %v4431 = vmul.f32 %v4411, %v4416
        %v4432 = vmul.f32 %v4412, %v4416
        %v4433 = vlaneseq
        %v4434 = vshrl.u32 %v4433, 7
        %v4435 = vsub.s32 0, %v4434
        %v4436 = vrot.slane %v224, %v4435
        %v4437 = vadd.f32 %v4417, %v4436
        %v4438 = vadd.f32 %v4418, %v4436
        %v4439 = vadd.f32 %v4419, %v4436
        %v4440 = vadd.f32 %v4420, %v4436
        %v4441 = vadd.f32 %v4421, %v4436
        %v4442 = vadd.f32 %v4422, %v4436
        %v4443 = vadd.f32 %v4423, %v4436
        %v4444 = vadd.f32 %v4424, %v4436
        %v4445 = vadd.f32 %v4425, %v4436
        %v4446 = vadd.f32 %v4426, %v4436
        %v4447 = vadd.f32 %v4427, %v4436
        %v4448 = vadd.f32 %v4428, %v4436
        %v4449 = vadd.f32 %v4429, %v4436
        %v4450 = vadd.f32 %v4430, %v4436
        %v4451 = vadd.f32 %v4431, %v4436
        %v4452 = vadd.f32 %v4432, %v4436
        %v4453 = vpack.c.bf16 %v4438, %v4437
        %v4454 = vpack.c.bf16 %v4440, %v4439
        %v4455 = vpack.c.bf16 %v4442, %v4441
        %v4456 = vpack.c.bf16 %v4444, %v4443
        %v4457 = vpack.c.bf16 %v4446, %v4445
        %v4458 = vpack.c.bf16 %v4448, %v4447
        %v4459 = vpack.c.bf16 %v4450, %v4449
        %v4460 = vpack.c.bf16 %v4452, %v4451
        %v4461 = vlaneseq
        %v4462 = vshrl.u32 %v4461, 7
        %v4463 = vsub.s32 0, %v4462
        %v4464 = vrot.slane %v259, %v4463
        %v4465 = vlaneseq
        %v4466 = vshrl.u32 %v4465, 7
        %v4467 = vsub.s32 0, %v4466
        %v4468 = vrot.slane %v260, %v4467
        %v4469 = vlaneseq
        %v4470 = vshrl.u32 %v4469, 7
        %v4471 = vsub.s32 0, %v4470
        %v4472 = vrot.slane %v261, %v4471
        %v4473 = vlaneseq
        %v4474 = vshrl.u32 %v4473, 7
        %v4475 = vsub.s32 0, %v4474
        %v4476 = vrot.slane %v262, %v4475
        %v4477 = vlaneseq
        %v4478 = vshrl.u32 %v4477, 7
        %v4479 = vsub.s32 0, %v4478
        %v4480 = vrot.slane %v263, %v4479
        %v4481 = vlaneseq
        %v4482 = vshrl.u32 %v4481, 7
        %v4483 = vsub.s32 0, %v4482
        %v4484 = vrot.slane %v264, %v4483
        %v4485 = vlaneseq
        %v4486 = vshrl.u32 %v4485, 7
        %v4487 = vsub.s32 0, %v4486
        %v4488 = vrot.slane %v265, %v4487
        %v4489 = vlaneseq
        %v4490 = vshrl.u32 %v4489, 7
        %v4491 = vsub.s32 0, %v4490
        %v4492 = vrot.slane %v266, %v4491
        %v4493 = vlaneseq
        %v4494 = vshrl.u32 %v4493, 7
        %v4495 = vsub.s32 0, %v4494
        %v4496 = vrot.slane %v267, %v4495
        %v4497 = vlaneseq
        %v4498 = vshrl.u32 %v4497, 7
        %v4499 = vsub.s32 0, %v4498
        %v4500 = vrot.slane %v268, %v4499
        %v4501 = vlaneseq
        %v4502 = vshrl.u32 %v4501, 7
        %v4503 = vsub.s32 0, %v4502
        %v4504 = vrot.slane %v269, %v4503
        %v4505 = vlaneseq
        %v4506 = vshrl.u32 %v4505, 7
        %v4507 = vsub.s32 0, %v4506
        %v4508 = vrot.slane %v270, %v4507
        %v4509 = vlaneseq
        %v4510 = vshrl.u32 %v4509, 7
        %v4511 = vsub.s32 0, %v4510
        %v4512 = vrot.slane %v271, %v4511
        %v4513 = vlaneseq
        %v4514 = vshrl.u32 %v4513, 7
        %v4515 = vsub.s32 0, %v4514
        %v4516 = vrot.slane %v272, %v4515
        %v4517 = vlaneseq
        %v4518 = vshrl.u32 %v4517, 7
        %v4519 = vsub.s32 0, %v4518
        %v4520 = vrot.slane %v273, %v4519
        %v4521 = vlaneseq
        %v4522 = vshrl.u32 %v4521, 7
        %v4523 = vsub.s32 0, %v4522
        %v4524 = vrot.slane %v274, %v4523
        %v4533 = vunpack.c.l.b16 %v235
        %v4534 = vunpack.c.h.b16 %v235
        %v4535 = vunpack.c.l.b16 %v236
        %v4536 = vunpack.c.h.b16 %v236
        %v4537 = vunpack.c.l.b16 %v237
        %v4538 = vunpack.c.h.b16 %v237
        %v4539 = vunpack.c.l.b16 %v238
        %v4540 = vunpack.c.h.b16 %v238
        %v4541 = vunpack.c.l.b16 %v239
        %v4542 = vunpack.c.h.b16 %v239
        %v4543 = vunpack.c.l.b16 %v240
        %v4544 = vunpack.c.h.b16 %v240
        %v4545 = vunpack.c.l.b16 %v241
        %v4546 = vunpack.c.h.b16 %v241
        %v4547 = vunpack.c.l.b16 %v242
        %v4548 = vunpack.c.h.b16 %v242
        %v4549 = vpack.c.b16 %v4533, %v4533
        %v4550 = vpack.c.b16 %v4534, %v4534
        %v4551 = vpack.c.b16 %v4535, %v4535
        %v4552 = vpack.c.b16 %v4536, %v4536
        %v4553 = vpack.c.b16 %v4537, %v4537
        %v4554 = vpack.c.b16 %v4538, %v4538
        %v4555 = vpack.c.b16 %v4539, %v4539
        %v4556 = vpack.c.b16 %v4540, %v4540
        %v4557 = vpack.c.b16 %v4541, %v4541
        %v4558 = vpack.c.b16 %v4542, %v4542
        %v4559 = vpack.c.b16 %v4543, %v4543
        %v4560 = vpack.c.b16 %v4544, %v4544
        %v4561 = vpack.c.b16 %v4545, %v4545
        %v4562 = vpack.c.b16 %v4546, %v4546
        %v4563 = vpack.c.b16 %v4547, %v4547
        %v4564 = vpack.c.b16 %v4548, %v4548
        %v4566 = vsel %vm4203, %v4453, 0
        %v4569 = vsel %vm4203, %v4454, 0
        %v4572 = vsel %vm4203, %v4455, 0
        %v4575 = vsel %vm4203, %v4456, 0
        %v4578 = vsel %vm4203, %v4457, 0
        %v4581 = vsel %vm4203, %v4458, 0
        %v4584 = vsel %vm4203, %v4459, 0
        %v4587 = vsel %vm4203, %v4460, 0
        %vm4589 = vcmask 1041408
        %v4591 = vsel %vm4589, %v4549, 0
        %v4594 = vsel %vm4589, %v4550, 0
        %v4597 = vsel %vm4589, %v4551, 0
        %v4600 = vsel %vm4589, %v4552, 0
        %v4603 = vsel %vm4589, %v4553, 0
        %v4606 = vsel %vm4589, %v4554, 0
        %v4609 = vsel %vm4589, %v4555, 0
        %v4612 = vsel %vm4589, %v4556, 0
        %v4615 = vsel %vm4589, %v4557, 0
        %v4618 = vsel %vm4589, %v4558, 0
        %v4621 = vsel %vm4589, %v4559, 0
        %v4624 = vsel %vm4589, %v4560, 0
        %v4627 = vsel %vm4589, %v4561, 0
        %v4630 = vsel %vm4589, %v4562, 0
        %v4633 = vsel %vm4589, %v4563, 0
        %v4636 = vsel %vm4589, %v4564, 0
        %4638 = vmatprep.subr.bf16.mxu0 %v4594
        %4639 = vmatpush1.bf16.msra.mxu0 %v4591
        %4640 = vmatprep.subr.bf16.mxu0 0
        %4641 = vmatpush1.bf16.msra.mxu0 0
        %4642 = vmatprep.subr.bf16.mxu0 0
        %4643 = vmatpush1.bf16.msra.mxu0 0
        %4644 = vmatprep.subr.bf16.mxu0 0
        %4645 = vmatpush1.bf16.msra.mxu0 0
        %4646 = vmatprep.subr.bf16.mxu0 0
        %4647 = vmatpush1.bf16.msra.mxu0 0
        %4648 = vmatprep.subr.bf16.mxu0 0
        %4649 = vmatpush1.bf16.msra.mxu0 0
        %4650 = vmatprep.subr.bf16.mxu0 0
        %4651 = vmatpush1.bf16.msra.mxu0 0
        %4652 = vmatprep.subr.bf16.mxu0 0
        %4653 = vmatpush1.bf16.msra.mxu0 0
        %4654 = vmatprep.subr.bf16.mxu0 0
        %4655 = vmatpush1.bf16.msra.mxu0 0
        %4656 = vmatprep.subr.bf16.mxu0 0
        %4657 = vmatpush1.bf16.msra.mxu0 0
        %4658 = vmatprep.subr.bf16.mxu0 0
        %4659 = vmatpush1.bf16.msra.mxu0 0
        %4660 = vmatprep.subr.bf16.mxu0 0
        %4661 = vmatpush1.bf16.msra.mxu0 0
        %4662 = vmatprep.subr.bf16.mxu0 0
        %4663 = vmatpush1.bf16.msra.mxu0 0
        %4664 = vmatprep.subr.bf16.mxu0 0
        %4665 = vmatpush1.bf16.msra.mxu0 0
        %4666 = vmatprep.subr.bf16.mxu0 0
        %4667 = vmatpush1.bf16.msra.mxu0 0
        %4668 = vmatprep.subr.bf16.mxu0 0
        %4669 = vmatpush1.bf16.msra.mxu0 0
        %4670 = vmatprep.mubr.bf16.mxu0 0
        %4671 = vmatmul.mubr.bf16.gmra.mrb[0].mxu0 %v4566
        %v4672 = vpop.f32.mrb[0].mxu0
        %v4673 = vadd.f32 %v4464, %v4672
        %v4674 = vpop.f32.mrb[0].mxu0
        %v4675 = vadd.f32 %v4468, %v4674
        %v4676 = vpop.f32.mrb[0].mxu0
        %v4677 = vadd.f32 %v4464, %v4676
        %v4678 = vpop.f32.mrb[0].mxu0
        %v4679 = vadd.f32 %v4468, %v4678
        %4680 = vmatprep.mubr.bf16.mxu0 0
        %4681 = vmatmul.mubr.bf16.gmra.mrb[0].mxu0 %v4569
        %v4682 = vpop.f32.mrb[0].mxu0
        %v4683 = vadd.f32 %v4464, %v4682
        %v4684 = vpop.f32.mrb[0].mxu0
        %v4685 = vadd.f32 %v4468, %v4684
        %v4686 = vpop.f32.mrb[0].mxu0
        %v4687 = vadd.f32 %v4464, %v4686
        %v4688 = vpop.f32.mrb[0].mxu0
        %v4689 = vadd.f32 %v4468, %v4688
        %4690 = vmatprep.mubr.bf16.mxu0 0
        %4691 = vmatmul.mubr.bf16.gmra.mrb[0].mxu0 %v4572
        %v4692 = vpop.f32.mrb[0].mxu0
        %v4693 = vadd.f32 %v4464, %v4692
        %v4694 = vpop.f32.mrb[0].mxu0
        %v4695 = vadd.f32 %v4468, %v4694
        %v4696 = vpop.f32.mrb[0].mxu0
        %v4697 = vadd.f32 %v4464, %v4696
        %v4698 = vpop.f32.mrb[0].mxu0
        %v4699 = vadd.f32 %v4468, %v4698
        %4700 = vmatprep.mubr.bf16.mxu0 0
        %4701 = vmatmul.mubr.bf16.gmra.mrb[0].mxu0 %v4575
        %v4702 = vpop.f32.mrb[0].mxu0
        %v4703 = vadd.f32 %v4464, %v4702
        %v4704 = vpop.f32.mrb[0].mxu0
        %v4705 = vadd.f32 %v4468, %v4704
        %v4706 = vpop.f32.mrb[0].mxu0
        %v4707 = vadd.f32 %v4464, %v4706
        %v4708 = vpop.f32.mrb[0].mxu0
        %v4709 = vadd.f32 %v4468, %v4708
        %4710 = vmatprep.mubr.bf16.mxu0 0
        %4711 = vmatmul.mubr.bf16.gmra.mrb[0].mxu0 %v4578
        %v4712 = vpop.f32.mrb[0].mxu0
        %v4713 = vadd.f32 %v4464, %v4712
        %v4714 = vpop.f32.mrb[0].mxu0
        %v4715 = vadd.f32 %v4468, %v4714
        %v4716 = vpop.f32.mrb[0].mxu0
        %v4717 = vadd.f32 %v4464, %v4716
        %v4718 = vpop.f32.mrb[0].mxu0
        %v4719 = vadd.f32 %v4468, %v4718
        %4720 = vmatprep.mubr.bf16.mxu0 0
        %4721 = vmatmul.mubr.bf16.gmra.mrb[0].mxu0 %v4581
        %v4722 = vpop.f32.mrb[0].mxu0
        %v4723 = vadd.f32 %v4464, %v4722
        %v4724 = vpop.f32.mrb[0].mxu0
        %v4725 = vadd.f32 %v4468, %v4724
        %v4726 = vpop.f32.mrb[0].mxu0
        %v4727 = vadd.f32 %v4464, %v4726
        %v4728 = vpop.f32.mrb[0].mxu0
        %v4729 = vadd.f32 %v4468, %v4728
        %4730 = vmatprep.mubr.bf16.mxu0 0
        %4731 = vmatmul.mubr.bf16.gmra.mrb[0].mxu0 %v4584
        %v4732 = vpop.f32.mrb[0].mxu0
        %v4733 = vadd.f32 %v4464, %v4732
        %v4734 = vpop.f32.mrb[0].mxu0
        %v4735 = vadd.f32 %v4468, %v4734
        %v4736 = vpop.f32.mrb[0].mxu0
        %v4737 = vadd.f32 %v4464, %v4736
        %v4738 = vpop.f32.mrb[0].mxu0
        %v4739 = vadd.f32 %v4468, %v4738
        %4740 = vmatprep.mubr.bf16.mxu0 0
        %4741 = vmatmul.mubr.bf16.gmra.mrb[0].mxu0 %v4587
        %v4742 = vpop.f32.mrb[0].mxu0
        %v4743 = vadd.f32 %v4464, %v4742
        %v4744 = vpop.f32.mrb[0].mxu0
        %v4745 = vadd.f32 %v4468, %v4744
        %v4746 = vpop.f32.mrb[0].mxu0
        %v4747 = vadd.f32 %v4464, %v4746
        %v4748 = vpop.f32.mrb[0].mxu0
        %v4749 = vadd.f32 %v4468, %v4748
        %4750 = vdwg.mxu0
        %4751 = vmatprep.subr.bf16.mxu0 %v4600
        %4752 = vmatpush1.bf16.msra.mxu0 %v4597
        %4753 = vmatprep.subr.bf16.mxu0 0
        %4754 = vmatpush1.bf16.msra.mxu0 0
        %4755 = vmatprep.subr.bf16.mxu0 0
        %4756 = vmatpush1.bf16.msra.mxu0 0
        %4757 = vmatprep.subr.bf16.mxu0 0
        %4758 = vmatpush1.bf16.msra.mxu0 0
        %4759 = vmatprep.subr.bf16.mxu0 0
        %4760 = vmatpush1.bf16.msra.mxu0 0
        %4761 = vmatprep.subr.bf16.mxu0 0
        %4762 = vmatpush1.bf16.msra.mxu0 0
        %4763 = vmatprep.subr.bf16.mxu0 0
        %4764 = vmatpush1.bf16.msra.mxu0 0
        %4765 = vmatprep.subr.bf16.mxu0 0
        %4766 = vmatpush1.bf16.msra.mxu0 0
        %4767 = vmatprep.subr.bf16.mxu0 0
        %4768 = vmatpush1.bf16.msra.mxu0 0
        %4769 = vmatprep.subr.bf16.mxu0 0
        %4770 = vmatpush1.bf16.msra.mxu0 0
        %4771 = vmatprep.subr.bf16.mxu0 0
        %4772 = vmatpush1.bf16.msra.mxu0 0
        %4773 = vmatprep.subr.bf16.mxu0 0
        %4774 = vmatpush1.bf16.msra.mxu0 0
        %4775 = vmatprep.subr.bf16.mxu0 0
        %4776 = vmatpush1.bf16.msra.mxu0 0
        %4777 = vmatprep.subr.bf16.mxu0 0
        %4778 = vmatpush1.bf16.msra.mxu0 0
        %4779 = vmatprep.subr.bf16.mxu0 0
        %4780 = vmatpush1.bf16.msra.mxu0 0
        %4781 = vmatprep.subr.bf16.mxu0 0
        %4782 = vmatpush1.bf16.msra.mxu0 0
        %4783 = vmatprep.mubr.bf16.mxu0 0
        %4784 = vmatmul.mubr.bf16.gmra.mrb[0].mxu0 %v4566
        %v4785 = vpop.f32.mrb[0].mxu0
        %v4786 = vadd.f32 %v4472, %v4785
        %v4787 = vpop.f32.mrb[0].mxu0
        %v4788 = vadd.f32 %v4476, %v4787
        %v4789 = vpop.f32.mrb[0].mxu0
        %v4790 = vadd.f32 %v4472, %v4789
        %v4791 = vpop.f32.mrb[0].mxu0
        %v4792 = vadd.f32 %v4476, %v4791
        %4793 = vmatprep.mubr.bf16.mxu0 0
        %4794 = vmatmul.mubr.bf16.gmra.mrb[0].mxu0 %v4569
        %v4795 = vpop.f32.mrb[0].mxu0
        %v4796 = vadd.f32 %v4472, %v4795
        %v4797 = vpop.f32.mrb[0].mxu0
        %v4798 = vadd.f32 %v4476, %v4797
        %v4799 = vpop.f32.mrb[0].mxu0
        %v4800 = vadd.f32 %v4472, %v4799
        %v4801 = vpop.f32.mrb[0].mxu0
        %v4802 = vadd.f32 %v4476, %v4801
        %4803 = vmatprep.mubr.bf16.mxu0 0
        %4804 = vmatmul.mubr.bf16.gmra.mrb[0].mxu0 %v4572
        %v4805 = vpop.f32.mrb[0].mxu0
        %v4806 = vadd.f32 %v4472, %v4805
        %v4807 = vpop.f32.mrb[0].mxu0
        %v4808 = vadd.f32 %v4476, %v4807
        %v4809 = vpop.f32.mrb[0].mxu0
        %v4810 = vadd.f32 %v4472, %v4809
        %v4811 = vpop.f32.mrb[0].mxu0
        %v4812 = vadd.f32 %v4476, %v4811
        %4813 = vmatprep.mubr.bf16.mxu0 0
        %4814 = vmatmul.mubr.bf16.gmra.mrb[0].mxu0 %v4575
        %v4815 = vpop.f32.mrb[0].mxu0
        %v4816 = vadd.f32 %v4472, %v4815
        %v4817 = vpop.f32.mrb[0].mxu0
        %v4818 = vadd.f32 %v4476, %v4817
        %v4819 = vpop.f32.mrb[0].mxu0
        %v4820 = vadd.f32 %v4472, %v4819
        %v4821 = vpop.f32.mrb[0].mxu0
        %v4822 = vadd.f32 %v4476, %v4821
        %4823 = vmatprep.mubr.bf16.mxu0 0
        %4824 = vmatmul.mubr.bf16.gmra.mrb[0].mxu0 %v4578
        %v4825 = vpop.f32.mrb[0].mxu0
        %v4826 = vadd.f32 %v4472, %v4825
        %v4827 = vpop.f32.mrb[0].mxu0
        %v4828 = vadd.f32 %v4476, %v4827
        %v4829 = vpop.f32.mrb[0].mxu0
        %v4830 = vadd.f32 %v4472, %v4829
        %v4831 = vpop.f32.mrb[0].mxu0
        %v4832 = vadd.f32 %v4476, %v4831
        %4833 = vmatprep.mubr.bf16.mxu0 0
        %4834 = vmatmul.mubr.bf16.gmra.mrb[0].mxu0 %v4581
        %v4835 = vpop.f32.mrb[0].mxu0
        %v4836 = vadd.f32 %v4472, %v4835
        %v4837 = vpop.f32.mrb[0].mxu0
        %v4838 = vadd.f32 %v4476, %v4837
        %v4839 = vpop.f32.mrb[0].mxu0
        %v4840 = vadd.f32 %v4472, %v4839
        %v4841 = vpop.f32.mrb[0].mxu0
        %v4842 = vadd.f32 %v4476, %v4841
        %4843 = vmatprep.mubr.bf16.mxu0 0
        %4844 = vmatmul.mubr.bf16.gmra.mrb[0].mxu0 %v4584
        %v4845 = vpop.f32.mrb[0].mxu0
        %v4846 = vadd.f32 %v4472, %v4845
        %v4847 = vpop.f32.mrb[0].mxu0
        %v4848 = vadd.f32 %v4476, %v4847
        %v4849 = vpop.f32.mrb[0].mxu0
        %v4850 = vadd.f32 %v4472, %v4849
        %v4851 = vpop.f32.mrb[0].mxu0
        %v4852 = vadd.f32 %v4476, %v4851
        %4853 = vmatprep.mubr.bf16.mxu0 0
        %4854 = vmatmul.mubr.bf16.gmra.mrb[0].mxu0 %v4587
        %v4855 = vpop.f32.mrb[0].mxu0
        %v4856 = vadd.f32 %v4472, %v4855
        %v4857 = vpop.f32.mrb[0].mxu0
        %v4858 = vadd.f32 %v4476, %v4857
        %v4859 = vpop.f32.mrb[0].mxu0
        %v4860 = vadd.f32 %v4472, %v4859
        %v4861 = vpop.f32.mrb[0].mxu0
        %v4862 = vadd.f32 %v4476, %v4861
        %4863 = vdwg.mxu0
        %4864 = vmatprep.subr.bf16.mxu0 %v4606
        %4865 = vmatpush1.bf16.msra.mxu0 %v4603
        %4866 = vmatprep.subr.bf16.mxu0 0
        %4867 = vmatpush1.bf16.msra.mxu0 0
        %4868 = vmatprep.subr.bf16.mxu0 0
        %4869 = vmatpush1.bf16.msra.mxu0 0
        %4870 = vmatprep.subr.bf16.mxu0 0
        %4871 = vmatpush1.bf16.msra.mxu0 0
        %4872 = vmatprep.subr.bf16.mxu0 0
        %4873 = vmatpush1.bf16.msra.mxu0 0
        %4874 = vmatprep.subr.bf16.mxu0 0
        %4875 = vmatpush1.bf16.msra.mxu0 0
        %4876 = vmatprep.subr.bf16.mxu0 0
        %4877 = vmatpush1.bf16.msra.mxu0 0
        %4878 = vmatprep.subr.bf16.mxu0 0
        %4879 = vmatpush1.bf16.msra.mxu0 0
        %4880 = vmatprep.subr.bf16.mxu0 0
        %4881 = vmatpush1.bf16.msra.mxu0 0
        %4882 = vmatprep.subr.bf16.mxu0 0
        %4883 = vmatpush1.bf16.msra.mxu0 0
        %4884 = vmatprep.subr.bf16.mxu0 0
        %4885 = vmatpush1.bf16.msra.mxu0 0
        %4886 = vmatprep.subr.bf16.mxu0 0
        %4887 = vmatpush1.bf16.msra.mxu0 0
        %4888 = vmatprep.subr.bf16.mxu0 0
        %4889 = vmatpush1.bf16.msra.mxu0 0
        %4890 = vmatprep.subr.bf16.mxu0 0
        %4891 = vmatpush1.bf16.msra.mxu0 0
        %4892 = vmatprep.subr.bf16.mxu0 0
        %4893 = vmatpush1.bf16.msra.mxu0 0
        %4894 = vmatprep.subr.bf16.mxu0 0
        %4895 = vmatpush1.bf16.msra.mxu0 0
        %4896 = vmatprep.mubr.bf16.mxu0 0
        %4897 = vmatmul.mubr.bf16.gmra.mrb[0].mxu0 %v4566
        %v4898 = vpop.f32.mrb[0].mxu0
        %v4899 = vadd.f32 %v4480, %v4898
        %v4900 = vpop.f32.mrb[0].mxu0
        %v4901 = vadd.f32 %v4484, %v4900
        %v4902 = vpop.f32.mrb[0].mxu0
        %v4903 = vadd.f32 %v4480, %v4902
        %v4904 = vpop.f32.mrb[0].mxu0
        %v4905 = vadd.f32 %v4484, %v4904
        %4906 = vmatprep.mubr.bf16.mxu0 0
        %4907 = vmatmul.mubr.bf16.gmra.mrb[0].mxu0 %v4569
        %v4908 = vpop.f32.mrb[0].mxu0
        %v4909 = vadd.f32 %v4480, %v4908
        %v4910 = vpop.f32.mrb[0].mxu0
        %v4911 = vadd.f32 %v4484, %v4910
        %v4912 = vpop.f32.mrb[0].mxu0
        %v4913 = vadd.f32 %v4480, %v4912
        %v4914 = vpop.f32.mrb[0].mxu0
        %v4915 = vadd.f32 %v4484, %v4914
        %4916 = vmatprep.mubr.bf16.mxu0 0
        %4917 = vmatmul.mubr.bf16.gmra.mrb[0].mxu0 %v4572
        %v4918 = vpop.f32.mrb[0].mxu0
        %v4919 = vadd.f32 %v4480, %v4918
        %v4920 = vpop.f32.mrb[0].mxu0
        %v4921 = vadd.f32 %v4484, %v4920
        %v4922 = vpop.f32.mrb[0].mxu0
        %v4923 = vadd.f32 %v4480, %v4922
        %v4924 = vpop.f32.mrb[0].mxu0
        %v4925 = vadd.f32 %v4484, %v4924
        %4926 = vmatprep.mubr.bf16.mxu0 0
        %4927 = vmatmul.mubr.bf16.gmra.mrb[0].mxu0 %v4575
        %v4928 = vpop.f32.mrb[0].mxu0
        %v4929 = vadd.f32 %v4480, %v4928
        %v4930 = vpop.f32.mrb[0].mxu0
        %v4931 = vadd.f32 %v4484, %v4930
        %v4932 = vpop.f32.mrb[0].mxu0
        %v4933 = vadd.f32 %v4480, %v4932
        %v4934 = vpop.f32.mrb[0].mxu0
        %v4935 = vadd.f32 %v4484, %v4934
        %4936 = vmatprep.mubr.bf16.mxu0 0
        %4937 = vmatmul.mubr.bf16.gmra.mrb[0].mxu0 %v4578
        %v4938 = vpop.f32.mrb[0].mxu0
        %v4939 = vadd.f32 %v4480, %v4938
        %v4940 = vpop.f32.mrb[0].mxu0
        %v4941 = vadd.f32 %v4484, %v4940
        %v4942 = vpop.f32.mrb[0].mxu0
        %v4943 = vadd.f32 %v4480, %v4942
        %v4944 = vpop.f32.mrb[0].mxu0
        %v4945 = vadd.f32 %v4484, %v4944
        %4946 = vmatprep.mubr.bf16.mxu0 0
        %4947 = vmatmul.mubr.bf16.gmra.mrb[0].mxu0 %v4581
        %v4948 = vpop.f32.mrb[0].mxu0
        %v4949 = vadd.f32 %v4480, %v4948
        %v4950 = vpop.f32.mrb[0].mxu0
        %v4951 = vadd.f32 %v4484, %v4950
        %v4952 = vpop.f32.mrb[0].mxu0
        %v4953 = vadd.f32 %v4480, %v4952
        %v4954 = vpop.f32.mrb[0].mxu0
        %v4955 = vadd.f32 %v4484, %v4954
        %4956 = vmatprep.mubr.bf16.mxu0 0
        %4957 = vmatmul.mubr.bf16.gmra.mrb[0].mxu0 %v4584
        %v4958 = vpop.f32.mrb[0].mxu0
        %v4959 = vadd.f32 %v4480, %v4958
        %v4960 = vpop.f32.mrb[0].mxu0
        %v4961 = vadd.f32 %v4484, %v4960
        %v4962 = vpop.f32.mrb[0].mxu0
        %v4963 = vadd.f32 %v4480, %v4962
        %v4964 = vpop.f32.mrb[0].mxu0
        %v4965 = vadd.f32 %v4484, %v4964
        %4966 = vmatprep.mubr.bf16.mxu0 0
        %4967 = vmatmul.mubr.bf16.gmra.mrb[0].mxu0 %v4587
        %v4968 = vpop.f32.mrb[0].mxu0
        %v4969 = vadd.f32 %v4480, %v4968
        %v4970 = vpop.f32.mrb[0].mxu0
        %v4971 = vadd.f32 %v4484, %v4970
        %v4972 = vpop.f32.mrb[0].mxu0
        %v4973 = vadd.f32 %v4480, %v4972
        %v4974 = vpop.f32.mrb[0].mxu0
        %v4975 = vadd.f32 %v4484, %v4974
        %4976 = vdwg.mxu0
        %4977 = vmatprep.subr.bf16.mxu0 %v4612
        %4978 = vmatpush1.bf16.msra.mxu0 %v4609
        %4979 = vmatprep.subr.bf16.mxu0 0
        %4980 = vmatpush1.bf16.msra.mxu0 0
        %4981 = vmatprep.subr.bf16.mxu0 0
        %4982 = vmatpush1.bf16.msra.mxu0 0
        %4983 = vmatprep.subr.bf16.mxu0 0
        %4984 = vmatpush1.bf16.msra.mxu0 0
        %4985 = vmatprep.subr.bf16.mxu0 0
        %4986 = vmatpush1.bf16.msra.mxu0 0
        %4987 = vmatprep.subr.bf16.mxu0 0
        %4988 = vmatpush1.bf16.msra.mxu0 0
        %4989 = vmatprep.subr.bf16.mxu0 0
        %4990 = vmatpush1.bf16.msra.mxu0 0
        %4991 = vmatprep.subr.bf16.mxu0 0
        %4992 = vmatpush1.bf16.msra.mxu0 0
        %4993 = vmatprep.subr.bf16.mxu0 0
        %4994 = vmatpush1.bf16.msra.mxu0 0
        %4995 = vmatprep.subr.bf16.mxu0 0
        %4996 = vmatpush1.bf16.msra.mxu0 0
        %4997 = vmatprep.subr.bf16.mxu0 0
        %4998 = vmatpush1.bf16.msra.mxu0 0
        %4999 = vmatprep.subr.bf16.mxu0 0
        %5000 = vmatpush1.bf16.msra.mxu0 0
        %5001 = vmatprep.subr.bf16.mxu0 0
        %5002 = vmatpush1.bf16.msra.mxu0 0
        %5003 = vmatprep.subr.bf16.mxu0 0
        %5004 = vmatpush1.bf16.msra.mxu0 0
        %5005 = vmatprep.subr.bf16.mxu0 0
        %5006 = vmatpush1.bf16.msra.mxu0 0
        %5007 = vmatprep.subr.bf16.mxu0 0
        %5008 = vmatpush1.bf16.msra.mxu0 0
        %5009 = vmatprep.mubr.bf16.mxu0 0
        %5010 = vmatmul.mubr.bf16.gmra.mrb[0].mxu0 %v4566
        %v5011 = vpop.f32.mrb[0].mxu0
        %v5012 = vadd.f32 %v4488, %v5011
        %v5013 = vpop.f32.mrb[0].mxu0
        %v5014 = vadd.f32 %v4492, %v5013
        %v5015 = vpop.f32.mrb[0].mxu0
        %v5016 = vadd.f32 %v4488, %v5015
        %v5017 = vpop.f32.mrb[0].mxu0
        %v5018 = vadd.f32 %v4492, %v5017
        %5019 = vmatprep.mubr.bf16.mxu0 0
        %5020 = vmatmul.mubr.bf16.gmra.mrb[0].mxu0 %v4569
        %v5021 = vpop.f32.mrb[0].mxu0
        %v5022 = vadd.f32 %v4488, %v5021
        %v5023 = vpop.f32.mrb[0].mxu0
        %v5024 = vadd.f32 %v4492, %v5023
        %v5025 = vpop.f32.mrb[0].mxu0
        %v5026 = vadd.f32 %v4488, %v5025
        %v5027 = vpop.f32.mrb[0].mxu0
        %v5028 = vadd.f32 %v4492, %v5027
        %5029 = vmatprep.mubr.bf16.mxu0 0
        %5030 = vmatmul.mubr.bf16.gmra.mrb[0].mxu0 %v4572
        %v5031 = vpop.f32.mrb[0].mxu0
        %v5032 = vadd.f32 %v4488, %v5031
        %v5033 = vpop.f32.mrb[0].mxu0
        %v5034 = vadd.f32 %v4492, %v5033
        %v5035 = vpop.f32.mrb[0].mxu0
        %v5036 = vadd.f32 %v4488, %v5035
        %v5037 = vpop.f32.mrb[0].mxu0
        %v5038 = vadd.f32 %v4492, %v5037
        %5039 = vmatprep.mubr.bf16.mxu0 0
        %5040 = vmatmul.mubr.bf16.gmra.mrb[0].mxu0 %v4575
        %v5041 = vpop.f32.mrb[0].mxu0
        %v5042 = vadd.f32 %v4488, %v5041
        %v5043 = vpop.f32.mrb[0].mxu0
        %v5044 = vadd.f32 %v4492, %v5043
        %v5045 = vpop.f32.mrb[0].mxu0
        %v5046 = vadd.f32 %v4488, %v5045
        %v5047 = vpop.f32.mrb[0].mxu0
        %v5048 = vadd.f32 %v4492, %v5047
        %5049 = vmatprep.mubr.bf16.mxu0 0
        %5050 = vmatmul.mubr.bf16.gmra.mrb[0].mxu0 %v4578
        %v5051 = vpop.f32.mrb[0].mxu0
        %v5052 = vadd.f32 %v4488, %v5051
        %v5053 = vpop.f32.mrb[0].mxu0
        %v5054 = vadd.f32 %v4492, %v5053
        %v5055 = vpop.f32.mrb[0].mxu0
        %v5056 = vadd.f32 %v4488, %v5055
        %v5057 = vpop.f32.mrb[0].mxu0
        %v5058 = vadd.f32 %v4492, %v5057
        %5059 = vmatprep.mubr.bf16.mxu0 0
        %5060 = vmatmul.mubr.bf16.gmra.mrb[0].mxu0 %v4581
        %v5061 = vpop.f32.mrb[0].mxu0
        %v5062 = vadd.f32 %v4488, %v5061
        %v5063 = vpop.f32.mrb[0].mxu0
        %v5064 = vadd.f32 %v4492, %v5063
        %v5065 = vpop.f32.mrb[0].mxu0
        %v5066 = vadd.f32 %v4488, %v5065
        %v5067 = vpop.f32.mrb[0].mxu0
        %v5068 = vadd.f32 %v4492, %v5067
        %5069 = vmatprep.mubr.bf16.mxu0 0
        %5070 = vmatmul.mubr.bf16.gmra.mrb[0].mxu0 %v4584
        %v5071 = vpop.f32.mrb[0].mxu0
        %v5072 = vadd.f32 %v4488, %v5071
        %v5073 = vpop.f32.mrb[0].mxu0
        %v5074 = vadd.f32 %v4492, %v5073
        %v5075 = vpop.f32.mrb[0].mxu0
        %v5076 = vadd.f32 %v4488, %v5075
        %v5077 = vpop.f32.mrb[0].mxu0
        %v5078 = vadd.f32 %v4492, %v5077
        %5079 = vmatprep.mubr.bf16.mxu0 0
        %5080 = vmatmul.mubr.bf16.gmra.mrb[0].mxu0 %v4587
        %v5081 = vpop.f32.mrb[0].mxu0
        %v5082 = vadd.f32 %v4488, %v5081
        %v5083 = vpop.f32.mrb[0].mxu0
        %v5084 = vadd.f32 %v4492, %v5083
        %v5085 = vpop.f32.mrb[0].mxu0
        %v5086 = vadd.f32 %v4488, %v5085
        %v5087 = vpop.f32.mrb[0].mxu0
        %v5088 = vadd.f32 %v4492, %v5087
        %5089 = vdwg.mxu0
        %5090 = vmatprep.subr.bf16.mxu0 %v4618
        %5091 = vmatpush1.bf16.msra.mxu0 %v4615
        %5092 = vmatprep.subr.bf16.mxu0 0
        %5093 = vmatpush1.bf16.msra.mxu0 0
        %5094 = vmatprep.subr.bf16.mxu0 0
        %5095 = vmatpush1.bf16.msra.mxu0 0
        %5096 = vmatprep.subr.bf16.mxu0 0
        %5097 = vmatpush1.bf16.msra.mxu0 0
        %5098 = vmatprep.subr.bf16.mxu0 0
        %5099 = vmatpush1.bf16.msra.mxu0 0
        %5100 = vmatprep.subr.bf16.mxu0 0
        %5101 = vmatpush1.bf16.msra.mxu0 0
        %5102 = vmatprep.subr.bf16.mxu0 0
        %5103 = vmatpush1.bf16.msra.mxu0 0
        %5104 = vmatprep.subr.bf16.mxu0 0
        %5105 = vmatpush1.bf16.msra.mxu0 0
        %5106 = vmatprep.subr.bf16.mxu0 0
        %5107 = vmatpush1.bf16.msra.mxu0 0
        %5108 = vmatprep.subr.bf16.mxu0 0
        %5109 = vmatpush1.bf16.msra.mxu0 0
        %5110 = vmatprep.subr.bf16.mxu0 0
        %5111 = vmatpush1.bf16.msra.mxu0 0
        %5112 = vmatprep.subr.bf16.mxu0 0
        %5113 = vmatpush1.bf16.msra.mxu0 0
        %5114 = vmatprep.subr.bf16.mxu0 0
        %5115 = vmatpush1.bf16.msra.mxu0 0
        %5116 = vmatprep.subr.bf16.mxu0 0
        %5117 = vmatpush1.bf16.msra.mxu0 0
        %5118 = vmatprep.subr.bf16.mxu0 0
        %5119 = vmatpush1.bf16.msra.mxu0 0
        %5120 = vmatprep.subr.bf16.mxu0 0
        %5121 = vmatpush1.bf16.msra.mxu0 0
        %5122 = vmatprep.mubr.bf16.mxu0 0
        %5123 = vmatmul.mubr.bf16.gmra.mrb[0].mxu0 %v4566
        %v5124 = vpop.f32.mrb[0].mxu0
        %v5125 = vadd.f32 %v4496, %v5124
        %v5126 = vpop.f32.mrb[0].mxu0
        %v5127 = vadd.f32 %v4500, %v5126
        %v5128 = vpop.f32.mrb[0].mxu0
        %v5129 = vadd.f32 %v4496, %v5128
        %v5130 = vpop.f32.mrb[0].mxu0
        %v5131 = vadd.f32 %v4500, %v5130
        %5132 = vmatprep.mubr.bf16.mxu0 0
        %5133 = vmatmul.mubr.bf16.gmra.mrb[0].mxu0 %v4569
        %v5134 = vpop.f32.mrb[0].mxu0
        %v5135 = vadd.f32 %v4496, %v5134
        %v5136 = vpop.f32.mrb[0].mxu0
        %v5137 = vadd.f32 %v4500, %v5136
        %v5138 = vpop.f32.mrb[0].mxu0
        %v5139 = vadd.f32 %v4496, %v5138
        %v5140 = vpop.f32.mrb[0].mxu0
        %v5141 = vadd.f32 %v4500, %v5140
        %5142 = vmatprep.mubr.bf16.mxu0 0
        %5143 = vmatmul.mubr.bf16.gmra.mrb[0].mxu0 %v4572
        %v5144 = vpop.f32.mrb[0].mxu0
        %v5145 = vadd.f32 %v4496, %v5144
        %v5146 = vpop.f32.mrb[0].mxu0
        %v5147 = vadd.f32 %v4500, %v5146
        %v5148 = vpop.f32.mrb[0].mxu0
        %v5149 = vadd.f32 %v4496, %v5148
        %v5150 = vpop.f32.mrb[0].mxu0
        %v5151 = vadd.f32 %v4500, %v5150
        %5152 = vmatprep.mubr.bf16.mxu0 0
        %5153 = vmatmul.mubr.bf16.gmra.mrb[0].mxu0 %v4575
        %v5154 = vpop.f32.mrb[0].mxu0
        %v5155 = vadd.f32 %v4496, %v5154
        %v5156 = vpop.f32.mrb[0].mxu0
        %v5157 = vadd.f32 %v4500, %v5156
        %v5158 = vpop.f32.mrb[0].mxu0
        %v5159 = vadd.f32 %v4496, %v5158
        %v5160 = vpop.f32.mrb[0].mxu0
        %v5161 = vadd.f32 %v4500, %v5160
        %5162 = vmatprep.mubr.bf16.mxu0 0
        %5163 = vmatmul.mubr.bf16.gmra.mrb[0].mxu0 %v4578
        %v5164 = vpop.f32.mrb[0].mxu0
        %v5165 = vadd.f32 %v4496, %v5164
        %v5166 = vpop.f32.mrb[0].mxu0
        %v5167 = vadd.f32 %v4500, %v5166
        %v5168 = vpop.f32.mrb[0].mxu0
        %v5169 = vadd.f32 %v4496, %v5168
        %v5170 = vpop.f32.mrb[0].mxu0
        %v5171 = vadd.f32 %v4500, %v5170
        %5172 = vmatprep.mubr.bf16.mxu0 0
        %5173 = vmatmul.mubr.bf16.gmra.mrb[0].mxu0 %v4581
        %v5174 = vpop.f32.mrb[0].mxu0
        %v5175 = vadd.f32 %v4496, %v5174
        %v5176 = vpop.f32.mrb[0].mxu0
        %v5177 = vadd.f32 %v4500, %v5176
        %v5178 = vpop.f32.mrb[0].mxu0
        %v5179 = vadd.f32 %v4496, %v5178
        %v5180 = vpop.f32.mrb[0].mxu0
        %v5181 = vadd.f32 %v4500, %v5180
        %5182 = vmatprep.mubr.bf16.mxu0 0
        %5183 = vmatmul.mubr.bf16.gmra.mrb[0].mxu0 %v4584
        %v5184 = vpop.f32.mrb[0].mxu0
        %v5185 = vadd.f32 %v4496, %v5184
        %v5186 = vpop.f32.mrb[0].mxu0
        %v5187 = vadd.f32 %v4500, %v5186
        %v5188 = vpop.f32.mrb[0].mxu0
        %v5189 = vadd.f32 %v4496, %v5188
        %v5190 = vpop.f32.mrb[0].mxu0
        %v5191 = vadd.f32 %v4500, %v5190
        %5192 = vmatprep.mubr.bf16.mxu0 0
        %5193 = vmatmul.mubr.bf16.gmra.mrb[0].mxu0 %v4587
        %v5194 = vpop.f32.mrb[0].mxu0
        %v5195 = vadd.f32 %v4496, %v5194
        %v5196 = vpop.f32.mrb[0].mxu0
        %v5197 = vadd.f32 %v4500, %v5196
        %v5198 = vpop.f32.mrb[0].mxu0
        %v5199 = vadd.f32 %v4496, %v5198
        %v5200 = vpop.f32.mrb[0].mxu0
        %v5201 = vadd.f32 %v4500, %v5200
        %5202 = vdwg.mxu0
        %5203 = vmatprep.subr.bf16.mxu0 %v4624
        %5204 = vmatpush1.bf16.msra.mxu0 %v4621
        %5205 = vmatprep.subr.bf16.mxu0 0
        %5206 = vmatpush1.bf16.msra.mxu0 0
        %5207 = vmatprep.subr.bf16.mxu0 0
        %5208 = vmatpush1.bf16.msra.mxu0 0
        %5209 = vmatprep.subr.bf16.mxu0 0
        %5210 = vmatpush1.bf16.msra.mxu0 0
        %5211 = vmatprep.subr.bf16.mxu0 0
        %5212 = vmatpush1.bf16.msra.mxu0 0
        %5213 = vmatprep.subr.bf16.mxu0 0
        %5214 = vmatpush1.bf16.msra.mxu0 0
        %5215 = vmatprep.subr.bf16.mxu0 0
        %5216 = vmatpush1.bf16.msra.mxu0 0
        %5217 = vmatprep.subr.bf16.mxu0 0
        %5218 = vmatpush1.bf16.msra.mxu0 0
        %5219 = vmatprep.subr.bf16.mxu0 0
        %5220 = vmatpush1.bf16.msra.mxu0 0
        %5221 = vmatprep.subr.bf16.mxu0 0
        %5222 = vmatpush1.bf16.msra.mxu0 0
        %5223 = vmatprep.subr.bf16.mxu0 0
        %5224 = vmatpush1.bf16.msra.mxu0 0
        %5225 = vmatprep.subr.bf16.mxu0 0
        %5226 = vmatpush1.bf16.msra.mxu0 0
        %5227 = vmatprep.subr.bf16.mxu0 0
        %5228 = vmatpush1.bf16.msra.mxu0 0
        %5229 = vmatprep.subr.bf16.mxu0 0
        %5230 = vmatpush1.bf16.msra.mxu0 0
        %5231 = vmatprep.subr.bf16.mxu0 0
        %5232 = vmatpush1.bf16.msra.mxu0 0
        %5233 = vmatprep.subr.bf16.mxu0 0
        %5234 = vmatpush1.bf16.msra.mxu0 0
        %5235 = vmatprep.mubr.bf16.mxu0 0
        %5236 = vmatmul.mubr.bf16.gmra.mrb[0].mxu0 %v4566
        %v5237 = vpop.f32.mrb[0].mxu0
        %v5238 = vadd.f32 %v4504, %v5237
        %v5239 = vpop.f32.mrb[0].mxu0
        %v5240 = vadd.f32 %v4508, %v5239
        %v5241 = vpop.f32.mrb[0].mxu0
        %v5242 = vadd.f32 %v4504, %v5241
        %v5243 = vpop.f32.mrb[0].mxu0
        %v5244 = vadd.f32 %v4508, %v5243
        %5245 = vmatprep.mubr.bf16.mxu0 0
        %5246 = vmatmul.mubr.bf16.gmra.mrb[0].mxu0 %v4569
        %v5247 = vpop.f32.mrb[0].mxu0
        %v5248 = vadd.f32 %v4504, %v5247
        %v5249 = vpop.f32.mrb[0].mxu0
        %v5250 = vadd.f32 %v4508, %v5249
        %v5251 = vpop.f32.mrb[0].mxu0
        %v5252 = vadd.f32 %v4504, %v5251
        %v5253 = vpop.f32.mrb[0].mxu0
        %v5254 = vadd.f32 %v4508, %v5253
        %5255 = vmatprep.mubr.bf16.mxu0 0
        %5256 = vmatmul.mubr.bf16.gmra.mrb[0].mxu0 %v4572
        %v5257 = vpop.f32.mrb[0].mxu0
        %v5258 = vadd.f32 %v4504, %v5257
        %v5259 = vpop.f32.mrb[0].mxu0
        %v5260 = vadd.f32 %v4508, %v5259
        %v5261 = vpop.f32.mrb[0].mxu0
        %v5262 = vadd.f32 %v4504, %v5261
        %v5263 = vpop.f32.mrb[0].mxu0
        %v5264 = vadd.f32 %v4508, %v5263
        %5265 = vmatprep.mubr.bf16.mxu0 0
        %5266 = vmatmul.mubr.bf16.gmra.mrb[0].mxu0 %v4575
        %v5267 = vpop.f32.mrb[0].mxu0
        %v5268 = vadd.f32 %v4504, %v5267
        %v5269 = vpop.f32.mrb[0].mxu0
        %v5270 = vadd.f32 %v4508, %v5269
        %v5271 = vpop.f32.mrb[0].mxu0
        %v5272 = vadd.f32 %v4504, %v5271
        %v5273 = vpop.f32.mrb[0].mxu0
        %v5274 = vadd.f32 %v4508, %v5273
        %5275 = vmatprep.mubr.bf16.mxu0 0
        %5276 = vmatmul.mubr.bf16.gmra.mrb[0].mxu0 %v4578
        %v5277 = vpop.f32.mrb[0].mxu0
        %v5278 = vadd.f32 %v4504, %v5277
        %v5279 = vpop.f32.mrb[0].mxu0
        %v5280 = vadd.f32 %v4508, %v5279
        %v5281 = vpop.f32.mrb[0].mxu0
        %v5282 = vadd.f32 %v4504, %v5281
        %v5283 = vpop.f32.mrb[0].mxu0
        %v5284 = vadd.f32 %v4508, %v5283
        %5285 = vmatprep.mubr.bf16.mxu0 0
        %5286 = vmatmul.mubr.bf16.gmra.mrb[0].mxu0 %v4581
        %v5287 = vpop.f32.mrb[0].mxu0
        %v5288 = vadd.f32 %v4504, %v5287
        %v5289 = vpop.f32.mrb[0].mxu0
        %v5290 = vadd.f32 %v4508, %v5289
        %v5291 = vpop.f32.mrb[0].mxu0
        %v5292 = vadd.f32 %v4504, %v5291
        %v5293 = vpop.f32.mrb[0].mxu0
        %v5294 = vadd.f32 %v4508, %v5293
        %5295 = vmatprep.mubr.bf16.mxu0 0
        %5296 = vmatmul.mubr.bf16.gmra.mrb[0].mxu0 %v4584
        %v5297 = vpop.f32.mrb[0].mxu0
        %v5298 = vadd.f32 %v4504, %v5297
        %v5299 = vpop.f32.mrb[0].mxu0
        %v5300 = vadd.f32 %v4508, %v5299
        %v5301 = vpop.f32.mrb[0].mxu0
        %v5302 = vadd.f32 %v4504, %v5301
        %v5303 = vpop.f32.mrb[0].mxu0
        %v5304 = vadd.f32 %v4508, %v5303
        %5305 = vmatprep.mubr.bf16.mxu0 0
        %5306 = vmatmul.mubr.bf16.gmra.mrb[0].mxu0 %v4587
        %v5307 = vpop.f32.mrb[0].mxu0
        %v5308 = vadd.f32 %v4504, %v5307
        %v5309 = vpop.f32.mrb[0].mxu0
        %v5310 = vadd.f32 %v4508, %v5309
        %v5311 = vpop.f32.mrb[0].mxu0
        %v5312 = vadd.f32 %v4504, %v5311
        %v5313 = vpop.f32.mrb[0].mxu0
        %v5314 = vadd.f32 %v4508, %v5313
        %5315 = vdwg.mxu0
        %5316 = vmatprep.subr.bf16.mxu0 %v4630
        %5317 = vmatpush1.bf16.msra.mxu0 %v4627
        %5318 = vmatprep.subr.bf16.mxu0 0
        %5319 = vmatpush1.bf16.msra.mxu0 0
        %5320 = vmatprep.subr.bf16.mxu0 0
        %5321 = vmatpush1.bf16.msra.mxu0 0
        %5322 = vmatprep.subr.bf16.mxu0 0
        %5323 = vmatpush1.bf16.msra.mxu0 0
        %5324 = vmatprep.subr.bf16.mxu0 0
        %5325 = vmatpush1.bf16.msra.mxu0 0
        %5326 = vmatprep.subr.bf16.mxu0 0
        %5327 = vmatpush1.bf16.msra.mxu0 0
        %5328 = vmatprep.subr.bf16.mxu0 0
        %5329 = vmatpush1.bf16.msra.mxu0 0
        %5330 = vmatprep.subr.bf16.mxu0 0
        %5331 = vmatpush1.bf16.msra.mxu0 0
        %5332 = vmatprep.subr.bf16.mxu0 0
        %5333 = vmatpush1.bf16.msra.mxu0 0
        %5334 = vmatprep.subr.bf16.mxu0 0
        %5335 = vmatpush1.bf16.msra.mxu0 0
        %5336 = vmatprep.subr.bf16.mxu0 0
        %5337 = vmatpush1.bf16.msra.mxu0 0
        %5338 = vmatprep.subr.bf16.mxu0 0
        %5339 = vmatpush1.bf16.msra.mxu0 0
        %5340 = vmatprep.subr.bf16.mxu0 0
        %5341 = vmatpush1.bf16.msra.mxu0 0
        %5342 = vmatprep.subr.bf16.mxu0 0
        %5343 = vmatpush1.bf16.msra.mxu0 0
        %5344 = vmatprep.subr.bf16.mxu0 0
        %5345 = vmatpush1.bf16.msra.mxu0 0
        %5346 = vmatprep.subr.bf16.mxu0 0
        %5347 = vmatpush1.bf16.msra.mxu0 0
        %5348 = vmatprep.mubr.bf16.mxu0 0
        %5349 = vmatmul.mubr.bf16.gmra.mrb[0].mxu0 %v4566
        %v5350 = vpop.f32.mrb[0].mxu0
        %v5351 = vadd.f32 %v4512, %v5350
        %v5352 = vpop.f32.mrb[0].mxu0
        %v5353 = vadd.f32 %v4516, %v5352
        %v5354 = vpop.f32.mrb[0].mxu0
        %v5355 = vadd.f32 %v4512, %v5354
        %v5356 = vpop.f32.mrb[0].mxu0
        %v5357 = vadd.f32 %v4516, %v5356
        %5358 = vmatprep.mubr.bf16.mxu0 0
        %5359 = vmatmul.mubr.bf16.gmra.mrb[0].mxu0 %v4569
        %v5360 = vpop.f32.mrb[0].mxu0
        %v5361 = vadd.f32 %v4512, %v5360
        %v5362 = vpop.f32.mrb[0].mxu0
        %v5363 = vadd.f32 %v4516, %v5362
        %v5364 = vpop.f32.mrb[0].mxu0
        %v5365 = vadd.f32 %v4512, %v5364
        %v5366 = vpop.f32.mrb[0].mxu0
        %v5367 = vadd.f32 %v4516, %v5366
        %5368 = vmatprep.mubr.bf16.mxu0 0
        %5369 = vmatmul.mubr.bf16.gmra.mrb[0].mxu0 %v4572
        %v5370 = vpop.f32.mrb[0].mxu0
        %v5371 = vadd.f32 %v4512, %v5370
        %v5372 = vpop.f32.mrb[0].mxu0
        %v5373 = vadd.f32 %v4516, %v5372
        %v5374 = vpop.f32.mrb[0].mxu0
        %v5375 = vadd.f32 %v4512, %v5374
        %v5376 = vpop.f32.mrb[0].mxu0
        %v5377 = vadd.f32 %v4516, %v5376
        %5378 = vmatprep.mubr.bf16.mxu0 0
        %5379 = vmatmul.mubr.bf16.gmra.mrb[0].mxu0 %v4575
        %v5380 = vpop.f32.mrb[0].mxu0
        %v5381 = vadd.f32 %v4512, %v5380
        %v5382 = vpop.f32.mrb[0].mxu0
        %v5383 = vadd.f32 %v4516, %v5382
        %v5384 = vpop.f32.mrb[0].mxu0
        %v5385 = vadd.f32 %v4512, %v5384
        %v5386 = vpop.f32.mrb[0].mxu0
        %v5387 = vadd.f32 %v4516, %v5386
        %5388 = vmatprep.mubr.bf16.mxu0 0
        %5389 = vmatmul.mubr.bf16.gmra.mrb[0].mxu0 %v4578
        %v5390 = vpop.f32.mrb[0].mxu0
        %v5391 = vadd.f32 %v4512, %v5390
        %v5392 = vpop.f32.mrb[0].mxu0
        %v5393 = vadd.f32 %v4516, %v5392
        %v5394 = vpop.f32.mrb[0].mxu0
        %v5395 = vadd.f32 %v4512, %v5394
        %v5396 = vpop.f32.mrb[0].mxu0
        %v5397 = vadd.f32 %v4516, %v5396
        %5398 = vmatprep.mubr.bf16.mxu0 0
        %5399 = vmatmul.mubr.bf16.gmra.mrb[0].mxu0 %v4581
        %v5400 = vpop.f32.mrb[0].mxu0
        %v5401 = vadd.f32 %v4512, %v5400
        %v5402 = vpop.f32.mrb[0].mxu0
        %v5403 = vadd.f32 %v4516, %v5402
        %v5404 = vpop.f32.mrb[0].mxu0
        %v5405 = vadd.f32 %v4512, %v5404
        %v5406 = vpop.f32.mrb[0].mxu0
        %v5407 = vadd.f32 %v4516, %v5406
        %5408 = vmatprep.mubr.bf16.mxu0 0
        %5409 = vmatmul.mubr.bf16.gmra.mrb[0].mxu0 %v4584
        %v5410 = vpop.f32.mrb[0].mxu0
        %v5411 = vadd.f32 %v4512, %v5410
        %v5412 = vpop.f32.mrb[0].mxu0
        %v5413 = vadd.f32 %v4516, %v5412
        %v5414 = vpop.f32.mrb[0].mxu0
        %v5415 = vadd.f32 %v4512, %v5414
        %v5416 = vpop.f32.mrb[0].mxu0
        %v5417 = vadd.f32 %v4516, %v5416
        %5418 = vmatprep.mubr.bf16.mxu0 0
        %5419 = vmatmul.mubr.bf16.gmra.mrb[0].mxu0 %v4587
        %v5420 = vpop.f32.mrb[0].mxu0
        %v5421 = vadd.f32 %v4512, %v5420
        %v5422 = vpop.f32.mrb[0].mxu0
        %v5423 = vadd.f32 %v4516, %v5422
        %v5424 = vpop.f32.mrb[0].mxu0
        %v5425 = vadd.f32 %v4512, %v5424
        %v5426 = vpop.f32.mrb[0].mxu0
        %v5427 = vadd.f32 %v4516, %v5426
        %5428 = vdwg.mxu0
        %5429 = vmatprep.subr.bf16.mxu0 %v4636
        %5430 = vmatpush1.bf16.msra.mxu0 %v4633
        %5431 = vmatprep.subr.bf16.mxu0 0
        %5432 = vmatpush1.bf16.msra.mxu0 0
        %5433 = vmatprep.subr.bf16.mxu0 0
        %5434 = vmatpush1.bf16.msra.mxu0 0
        %5435 = vmatprep.subr.bf16.mxu0 0
        %5436 = vmatpush1.bf16.msra.mxu0 0
        %5437 = vmatprep.subr.bf16.mxu0 0
        %5438 = vmatpush1.bf16.msra.mxu0 0
        %5439 = vmatprep.subr.bf16.mxu0 0
        %5440 = vmatpush1.bf16.msra.mxu0 0
        %5441 = vmatprep.subr.bf16.mxu0 0
        %5442 = vmatpush1.bf16.msra.mxu0 0
        %5443 = vmatprep.subr.bf16.mxu0 0
        %5444 = vmatpush1.bf16.msra.mxu0 0
        %5445 = vmatprep.subr.bf16.mxu0 0
        %5446 = vmatpush1.bf16.msra.mxu0 0
        %5447 = vmatprep.subr.bf16.mxu0 0
        %5448 = vmatpush1.bf16.msra.mxu0 0
        %5449 = vmatprep.subr.bf16.mxu0 0
        %5450 = vmatpush1.bf16.msra.mxu0 0
        %5451 = vmatprep.subr.bf16.mxu0 0
        %5452 = vmatpush1.bf16.msra.mxu0 0
        %5453 = vmatprep.subr.bf16.mxu0 0
        %5454 = vmatpush1.bf16.msra.mxu0 0
        %5455 = vmatprep.subr.bf16.mxu0 0
        %5456 = vmatpush1.bf16.msra.mxu0 0
        %5457 = vmatprep.subr.bf16.mxu0 0
        %5458 = vmatpush1.bf16.msra.mxu0 0
        %5459 = vmatprep.subr.bf16.mxu0 0
        %5460 = vmatpush1.bf16.msra.mxu0 0
        %5461 = vmatprep.mubr.bf16.mxu0 0
        %5462 = vmatmul.mubr.bf16.gmra.mrb[0].mxu0 %v4566
        %v5463 = vpop.f32.mrb[0].mxu0
        %v5464 = vadd.f32 %v4520, %v5463
        %v5465 = vpop.f32.mrb[0].mxu0
        %v5466 = vadd.f32 %v4524, %v5465
        %v5467 = vpop.f32.mrb[0].mxu0
        %v5468 = vadd.f32 %v4520, %v5467
        %v5469 = vpop.f32.mrb[0].mxu0
        %v5470 = vadd.f32 %v4524, %v5469
        %5471 = vmatprep.mubr.bf16.mxu0 0
        %5472 = vmatmul.mubr.bf16.gmra.mrb[0].mxu0 %v4569
        %v5473 = vpop.f32.mrb[0].mxu0
        %v5474 = vadd.f32 %v4520, %v5473
        %v5475 = vpop.f32.mrb[0].mxu0
        %v5476 = vadd.f32 %v4524, %v5475
        %v5477 = vpop.f32.mrb[0].mxu0
        %v5478 = vadd.f32 %v4520, %v5477
        %v5479 = vpop.f32.mrb[0].mxu0
        %v5480 = vadd.f32 %v4524, %v5479
        %5481 = vmatprep.mubr.bf16.mxu0 0
        %5482 = vmatmul.mubr.bf16.gmra.mrb[0].mxu0 %v4572
        %v5483 = vpop.f32.mrb[0].mxu0
        %v5484 = vadd.f32 %v4520, %v5483
        %v5485 = vpop.f32.mrb[0].mxu0
        %v5486 = vadd.f32 %v4524, %v5485
        %v5487 = vpop.f32.mrb[0].mxu0
        %v5488 = vadd.f32 %v4520, %v5487
        %v5489 = vpop.f32.mrb[0].mxu0
        %v5490 = vadd.f32 %v4524, %v5489
        %5491 = vmatprep.mubr.bf16.mxu0 0
        %5492 = vmatmul.mubr.bf16.gmra.mrb[0].mxu0 %v4575
        %v5493 = vpop.f32.mrb[0].mxu0
        %v5494 = vadd.f32 %v4520, %v5493
        %v5495 = vpop.f32.mrb[0].mxu0
        %v5496 = vadd.f32 %v4524, %v5495
        %v5497 = vpop.f32.mrb[0].mxu0
        %v5498 = vadd.f32 %v4520, %v5497
        %v5499 = vpop.f32.mrb[0].mxu0
        %v5500 = vadd.f32 %v4524, %v5499
        %5501 = vmatprep.mubr.bf16.mxu0 0
        %5502 = vmatmul.mubr.bf16.gmra.mrb[0].mxu0 %v4578
        %v5503 = vpop.f32.mrb[0].mxu0
        %v5504 = vadd.f32 %v4520, %v5503
        %v5505 = vpop.f32.mrb[0].mxu0
        %v5506 = vadd.f32 %v4524, %v5505
        %v5507 = vpop.f32.mrb[0].mxu0
        %v5508 = vadd.f32 %v4520, %v5507
        %v5509 = vpop.f32.mrb[0].mxu0
        %v5510 = vadd.f32 %v4524, %v5509
        %5511 = vmatprep.mubr.bf16.mxu0 0
        %5512 = vmatmul.mubr.bf16.gmra.mrb[0].mxu0 %v4581
        %v5513 = vpop.f32.mrb[0].mxu0
        %v5514 = vadd.f32 %v4520, %v5513
        %v5515 = vpop.f32.mrb[0].mxu0
        %v5516 = vadd.f32 %v4524, %v5515
        %v5517 = vpop.f32.mrb[0].mxu0
        %v5518 = vadd.f32 %v4520, %v5517
        %v5519 = vpop.f32.mrb[0].mxu0
        %v5520 = vadd.f32 %v4524, %v5519
        %5521 = vmatprep.mubr.bf16.mxu0 0
        %5522 = vmatmul.mubr.bf16.gmra.mrb[0].mxu0 %v4584
        %v5523 = vpop.f32.mrb[0].mxu0
        %v5524 = vadd.f32 %v4520, %v5523
        %v5525 = vpop.f32.mrb[0].mxu0
        %v5526 = vadd.f32 %v4524, %v5525
        %v5527 = vpop.f32.mrb[0].mxu0
        %v5528 = vadd.f32 %v4520, %v5527
        %v5529 = vpop.f32.mrb[0].mxu0
        %v5530 = vadd.f32 %v4524, %v5529
        %5531 = vmatprep.mubr.bf16.mxu0 0
        %5532 = vmatmul.mubr.bf16.gmra.mrb[0].mxu0 %v4587
        %v5533 = vpop.f32.mrb[0].mxu0
        %v5534 = vadd.f32 %v4520, %v5533
        %v5535 = vpop.f32.mrb[0].mxu0
        %v5536 = vadd.f32 %v4524, %v5535
        %v5537 = vpop.f32.mrb[0].mxu0
        %v5538 = vadd.f32 %v4520, %v5537
        %v5539 = vpop.f32.mrb[0].mxu0
        %v5540 = vadd.f32 %v4524, %v5539
        %5541 = vdwg.mxu0
        %v5542 = vmax.f32 %v4673, 0.0
        %v5543 = vmax.f32 %v4675, 0.0
        %v5544 = vmax.f32 %v4786, 0.0
        %v5545 = vmax.f32 %v4788, 0.0
        %v5546 = vmax.f32 %v4899, 0.0
        %v5547 = vmax.f32 %v4901, 0.0
        %v5548 = vmax.f32 %v5012, 0.0
        %v5549 = vmax.f32 %v5014, 0.0
        %v5550 = vmax.f32 %v5125, 0.0
        %v5551 = vmax.f32 %v5127, 0.0
        %v5552 = vmax.f32 %v5238, 0.0
        %v5553 = vmax.f32 %v5240, 0.0
        %v5554 = vmax.f32 %v5351, 0.0
        %v5555 = vmax.f32 %v5353, 0.0
        %v5556 = vmax.f32 %v5464, 0.0
        %v5557 = vmax.f32 %v5466, 0.0
        %v5558 = vmax.f32 %v4677, 0.0
        %v5559 = vmax.f32 %v4679, 0.0
        %v5560 = vmax.f32 %v4790, 0.0
        %v5561 = vmax.f32 %v4792, 0.0
        %v5562 = vmax.f32 %v4903, 0.0
        %v5563 = vmax.f32 %v4905, 0.0
        %v5564 = vmax.f32 %v5016, 0.0
        %v5565 = vmax.f32 %v5018, 0.0
        %v5566 = vmax.f32 %v5129, 0.0
        %v5567 = vmax.f32 %v5131, 0.0
        %v5568 = vmax.f32 %v5242, 0.0
        %v5569 = vmax.f32 %v5244, 0.0
        %v5570 = vmax.f32 %v5355, 0.0
        %v5571 = vmax.f32 %v5357, 0.0
        %v5572 = vmax.f32 %v5468, 0.0
        %v5573 = vmax.f32 %v5470, 0.0
        %v5574 = vmax.f32 %v4683, 0.0
        %v5575 = vmax.f32 %v4685, 0.0
        %v5576 = vmax.f32 %v4796, 0.0
        %v5577 = vmax.f32 %v4798, 0.0
        %v5578 = vmax.f32 %v4909, 0.0
        %v5579 = vmax.f32 %v4911, 0.0
        %v5580 = vmax.f32 %v5022, 0.0
        %v5581 = vmax.f32 %v5024, 0.0
        %v5582 = vmax.f32 %v5135, 0.0
        %v5583 = vmax.f32 %v5137, 0.0
        %v5584 = vmax.f32 %v5248, 0.0
        %v5585 = vmax.f32 %v5250, 0.0
        %v5586 = vmax.f32 %v5361, 0.0
        %v5587 = vmax.f32 %v5363, 0.0
        %v5588 = vmax.f32 %v5474, 0.0
        %v5589 = vmax.f32 %v5476, 0.0
        %v5590 = vmax.f32 %v4687, 0.0
        %v5591 = vmax.f32 %v4689, 0.0
        %v5592 = vmax.f32 %v4800, 0.0
        %v5593 = vmax.f32 %v4802, 0.0
        %v5594 = vmax.f32 %v4913, 0.0
        %v5595 = vmax.f32 %v4915, 0.0
        %v5596 = vmax.f32 %v5026, 0.0
        %v5597 = vmax.f32 %v5028, 0.0
        %v5598 = vmax.f32 %v5139, 0.0
        %v5599 = vmax.f32 %v5141, 0.0
        %v5600 = vmax.f32 %v5252, 0.0
        %v5601 = vmax.f32 %v5254, 0.0
        %v5602 = vmax.f32 %v5365, 0.0
        %v5603 = vmax.f32 %v5367, 0.0
        %v5604 = vmax.f32 %v5478, 0.0
        %v5605 = vmax.f32 %v5480, 0.0
        %v5606 = vmax.f32 %v4693, 0.0
        %v5607 = vmax.f32 %v4695, 0.0
        %v5608 = vmax.f32 %v4806, 0.0
        %v5609 = vmax.f32 %v4808, 0.0
        %v5610 = vmax.f32 %v4919, 0.0
        %v5611 = vmax.f32 %v4921, 0.0
        %v5612 = vmax.f32 %v5032, 0.0
        %v5613 = vmax.f32 %v5034, 0.0
        %v5614 = vmax.f32 %v5145, 0.0
        %v5615 = vmax.f32 %v5147, 0.0
        %v5616 = vmax.f32 %v5258, 0.0
        %v5617 = vmax.f32 %v5260, 0.0
        %v5618 = vmax.f32 %v5371, 0.0
        %v5619 = vmax.f32 %v5373, 0.0
        %v5620 = vmax.f32 %v5484, 0.0
        %v5621 = vmax.f32 %v5486, 0.0
        %v5622 = vmax.f32 %v4697, 0.0
        %v5623 = vmax.f32 %v4699, 0.0
        %v5624 = vmax.f32 %v4810, 0.0
        %v5625 = vmax.f32 %v4812, 0.0
        %v5626 = vmax.f32 %v4923, 0.0
        %v5627 = vmax.f32 %v4925, 0.0
        %v5628 = vmax.f32 %v5036, 0.0
        %v5629 = vmax.f32 %v5038, 0.0
        %v5630 = vmax.f32 %v5149, 0.0
        %v5631 = vmax.f32 %v5151, 0.0
        %v5632 = vmax.f32 %v5262, 0.0
        %v5633 = vmax.f32 %v5264, 0.0
        %v5634 = vmax.f32 %v5375, 0.0
        %v5635 = vmax.f32 %v5377, 0.0
        %v5636 = vmax.f32 %v5488, 0.0
        %v5637 = vmax.f32 %v5490, 0.0
        %v5638 = vmax.f32 %v4703, 0.0
        %v5639 = vmax.f32 %v4705, 0.0
        %v5640 = vmax.f32 %v4816, 0.0
        %v5641 = vmax.f32 %v4818, 0.0
        %v5642 = vmax.f32 %v4929, 0.0
        %v5643 = vmax.f32 %v4931, 0.0
        %v5644 = vmax.f32 %v5042, 0.0
        %v5645 = vmax.f32 %v5044, 0.0
        %v5646 = vmax.f32 %v5155, 0.0
        %v5647 = vmax.f32 %v5157, 0.0
        %v5648 = vmax.f32 %v5268, 0.0
        %v5649 = vmax.f32 %v5270, 0.0
        %v5650 = vmax.f32 %v5381, 0.0
        %v5651 = vmax.f32 %v5383, 0.0
        %v5652 = vmax.f32 %v5494, 0.0
        %v5653 = vmax.f32 %v5496, 0.0
        %v5654 = vmax.f32 %v4707, 0.0
        %v5655 = vmax.f32 %v4709, 0.0
        %v5656 = vmax.f32 %v4820, 0.0
        %v5657 = vmax.f32 %v4822, 0.0
        %v5658 = vmax.f32 %v4933, 0.0
        %v5659 = vmax.f32 %v4935, 0.0
        %v5660 = vmax.f32 %v5046, 0.0
        %v5661 = vmax.f32 %v5048, 0.0
        %v5662 = vmax.f32 %v5159, 0.0
        %v5663 = vmax.f32 %v5161, 0.0
        %v5664 = vmax.f32 %v5272, 0.0
        %v5665 = vmax.f32 %v5274, 0.0
        %v5666 = vmax.f32 %v5385, 0.0
        %v5667 = vmax.f32 %v5387, 0.0
        %v5668 = vmax.f32 %v5498, 0.0
        %v5669 = vmax.f32 %v5500, 0.0
        %v5670 = vmax.f32 %v4713, 0.0
        %v5671 = vmax.f32 %v4715, 0.0
        %v5672 = vmax.f32 %v4826, 0.0
        %v5673 = vmax.f32 %v4828, 0.0
        %v5674 = vmax.f32 %v4939, 0.0
        %v5675 = vmax.f32 %v4941, 0.0
        %v5676 = vmax.f32 %v5052, 0.0
        %v5677 = vmax.f32 %v5054, 0.0
        %v5678 = vmax.f32 %v5165, 0.0
        %v5679 = vmax.f32 %v5167, 0.0
        %v5680 = vmax.f32 %v5278, 0.0
        %v5681 = vmax.f32 %v5280, 0.0
        %v5682 = vmax.f32 %v5391, 0.0
        %v5683 = vmax.f32 %v5393, 0.0
        %v5684 = vmax.f32 %v5504, 0.0
        %v5685 = vmax.f32 %v5506, 0.0
        %v5686 = vmax.f32 %v4717, 0.0
        %v5687 = vmax.f32 %v4719, 0.0
        %v5688 = vmax.f32 %v4830, 0.0
        %v5689 = vmax.f32 %v4832, 0.0
        %v5690 = vmax.f32 %v4943, 0.0
        %v5691 = vmax.f32 %v4945, 0.0
        %v5692 = vmax.f32 %v5056, 0.0
        %v5693 = vmax.f32 %v5058, 0.0
        %v5694 = vmax.f32 %v5169, 0.0
        %v5695 = vmax.f32 %v5171, 0.0
        %v5696 = vmax.f32 %v5282, 0.0
        %v5697 = vmax.f32 %v5284, 0.0
        %v5698 = vmax.f32 %v5395, 0.0
        %v5699 = vmax.f32 %v5397, 0.0
        %v5700 = vmax.f32 %v5508, 0.0
        %v5701 = vmax.f32 %v5510, 0.0
        %v5702 = vmax.f32 %v4723, 0.0
        %v5703 = vmax.f32 %v4725, 0.0
        %v5704 = vmax.f32 %v4836, 0.0
        %v5705 = vmax.f32 %v4838, 0.0
        %v5706 = vmax.f32 %v4949, 0.0
        %v5707 = vmax.f32 %v4951, 0.0
        %v5708 = vmax.f32 %v5062, 0.0
        %v5709 = vmax.f32 %v5064, 0.0
        %v5710 = vmax.f32 %v5175, 0.0
        %v5711 = vmax.f32 %v5177, 0.0
        %v5712 = vmax.f32 %v5288, 0.0
        %v5713 = vmax.f32 %v5290, 0.0
        %v5714 = vmax.f32 %v5401, 0.0
        %v5715 = vmax.f32 %v5403, 0.0
        %v5716 = vmax.f32 %v5514, 0.0
        %v5717 = vmax.f32 %v5516, 0.0
        %v5718 = vmax.f32 %v4727, 0.0
        %v5719 = vmax.f32 %v4729, 0.0
        %v5720 = vmax.f32 %v4840, 0.0
        %v5721 = vmax.f32 %v4842, 0.0
        %v5722 = vmax.f32 %v4953, 0.0
        %v5723 = vmax.f32 %v4955, 0.0
        %v5724 = vmax.f32 %v5066, 0.0
        %v5725 = vmax.f32 %v5068, 0.0
        %v5726 = vmax.f32 %v5179, 0.0
        %v5727 = vmax.f32 %v5181, 0.0
        %v5728 = vmax.f32 %v5292, 0.0
        %v5729 = vmax.f32 %v5294, 0.0
        %v5730 = vmax.f32 %v5405, 0.0
        %v5731 = vmax.f32 %v5407, 0.0
        %v5732 = vmax.f32 %v5518, 0.0
        %v5733 = vmax.f32 %v5520, 0.0
        %v5734 = vmax.f32 %v4733, 0.0
        %v5735 = vmax.f32 %v4735, 0.0
        %v5736 = vmax.f32 %v4846, 0.0
        %v5737 = vmax.f32 %v4848, 0.0
        %v5738 = vmax.f32 %v4959, 0.0
        %v5739 = vmax.f32 %v4961, 0.0
        %v5740 = vmax.f32 %v5072, 0.0
        %v5741 = vmax.f32 %v5074, 0.0
        %v5742 = vmax.f32 %v5185, 0.0
        %v5743 = vmax.f32 %v5187, 0.0
        %v5744 = vmax.f32 %v5298, 0.0
        %v5745 = vmax.f32 %v5300, 0.0
        %v5746 = vmax.f32 %v5411, 0.0
        %v5747 = vmax.f32 %v5413, 0.0
        %v5748 = vmax.f32 %v5524, 0.0
        %v5749 = vmax.f32 %v5526, 0.0
        %v5750 = vmax.f32 %v4737, 0.0
        %v5751 = vmax.f32 %v4739, 0.0
        %v5752 = vmax.f32 %v4850, 0.0
        %v5753 = vmax.f32 %v4852, 0.0
        %v5754 = vmax.f32 %v4963, 0.0
        %v5755 = vmax.f32 %v4965, 0.0
        %v5756 = vmax.f32 %v5076, 0.0
        %v5757 = vmax.f32 %v5078, 0.0
        %v5758 = vmax.f32 %v5189, 0.0
        %v5759 = vmax.f32 %v5191, 0.0
        %v5760 = vmax.f32 %v5302, 0.0
        %v5761 = vmax.f32 %v5304, 0.0
        %v5762 = vmax.f32 %v5415, 0.0
        %v5763 = vmax.f32 %v5417, 0.0
        %v5764 = vmax.f32 %v5528, 0.0
        %v5765 = vmax.f32 %v5530, 0.0
        %v5766 = vmax.f32 %v4743, 0.0
        %v5767 = vmax.f32 %v4745, 0.0
        %v5768 = vmax.f32 %v4856, 0.0
        %v5769 = vmax.f32 %v4858, 0.0
        %v5770 = vmax.f32 %v4969, 0.0
        %v5771 = vmax.f32 %v4971, 0.0
        %v5772 = vmax.f32 %v5082, 0.0
        %v5773 = vmax.f32 %v5084, 0.0
        %v5774 = vmax.f32 %v5195, 0.0
        %v5775 = vmax.f32 %v5197, 0.0
        %v5776 = vmax.f32 %v5308, 0.0
        %v5777 = vmax.f32 %v5310, 0.0
        %v5778 = vmax.f32 %v5421, 0.0
        %v5779 = vmax.f32 %v5423, 0.0
        %v5780 = vmax.f32 %v5534, 0.0
        %v5781 = vmax.f32 %v5536, 0.0
        %v5782 = vmax.f32 %v4747, 0.0
        %v5783 = vmax.f32 %v4749, 0.0
        %v5784 = vmax.f32 %v4860, 0.0
        %v5785 = vmax.f32 %v4862, 0.0
        %v5786 = vmax.f32 %v4973, 0.0
        %v5787 = vmax.f32 %v4975, 0.0
        %v5788 = vmax.f32 %v5086, 0.0
        %v5789 = vmax.f32 %v5088, 0.0
        %v5790 = vmax.f32 %v5199, 0.0
        %v5791 = vmax.f32 %v5201, 0.0
        %v5792 = vmax.f32 %v5312, 0.0
        %v5793 = vmax.f32 %v5314, 0.0
        %v5794 = vmax.f32 %v5425, 0.0
        %v5795 = vmax.f32 %v5427, 0.0
        %v5796 = vmax.f32 %v5538, 0.0
        %v5797 = vmax.f32 %v5540, 0.0
        %v5798 = vpack.c.bf16 %v5558, %v5542
        %v5799 = vpack.c.bf16 %v5559, %v5543
        %v5800 = vpack.c.bf16 %v5560, %v5544
        %v5801 = vpack.c.bf16 %v5561, %v5545
        %v5802 = vpack.c.bf16 %v5562, %v5546
        %v5803 = vpack.c.bf16 %v5563, %v5547
        %v5804 = vpack.c.bf16 %v5564, %v5548
        %v5805 = vpack.c.bf16 %v5565, %v5549
        %v5806 = vpack.c.bf16 %v5566, %v5550
        %v5807 = vpack.c.bf16 %v5567, %v5551
        %v5808 = vpack.c.bf16 %v5568, %v5552
        %v5809 = vpack.c.bf16 %v5569, %v5553
        %v5810 = vpack.c.bf16 %v5570, %v5554
        %v5811 = vpack.c.bf16 %v5571, %v5555
        %v5812 = vpack.c.bf16 %v5572, %v5556
        %v5813 = vpack.c.bf16 %v5573, %v5557
        %v5814 = vpack.c.bf16 %v5590, %v5574
        %v5815 = vpack.c.bf16 %v5591, %v5575
        %v5816 = vpack.c.bf16 %v5592, %v5576
        %v5817 = vpack.c.bf16 %v5593, %v5577
        %v5818 = vpack.c.bf16 %v5594, %v5578
        %v5819 = vpack.c.bf16 %v5595, %v5579
        %v5820 = vpack.c.bf16 %v5596, %v5580
        %v5821 = vpack.c.bf16 %v5597, %v5581
        %v5822 = vpack.c.bf16 %v5598, %v5582
        %v5823 = vpack.c.bf16 %v5599, %v5583
        %v5824 = vpack.c.bf16 %v5600, %v5584
        %v5825 = vpack.c.bf16 %v5601, %v5585
        %v5826 = vpack.c.bf16 %v5602, %v5586
        %v5827 = vpack.c.bf16 %v5603, %v5587
        %v5828 = vpack.c.bf16 %v5604, %v5588
        %v5829 = vpack.c.bf16 %v5605, %v5589
        %v5830 = vpack.c.bf16 %v5622, %v5606
        %v5831 = vpack.c.bf16 %v5623, %v5607
        %v5832 = vpack.c.bf16 %v5624, %v5608
        %v5833 = vpack.c.bf16 %v5625, %v5609
        %v5834 = vpack.c.bf16 %v5626, %v5610
        %v5835 = vpack.c.bf16 %v5627, %v5611
        %v5836 = vpack.c.bf16 %v5628, %v5612
        %v5837 = vpack.c.bf16 %v5629, %v5613
        %v5838 = vpack.c.bf16 %v5630, %v5614
        %v5839 = vpack.c.bf16 %v5631, %v5615
        %v5840 = vpack.c.bf16 %v5632, %v5616
        %v5841 = vpack.c.bf16 %v5633, %v5617
        %v5842 = vpack.c.bf16 %v5634, %v5618
        %v5843 = vpack.c.bf16 %v5635, %v5619
        %v5844 = vpack.c.bf16 %v5636, %v5620
        %v5845 = vpack.c.bf16 %v5637, %v5621
        %v5846 = vpack.c.bf16 %v5654, %v5638
        %v5847 = vpack.c.bf16 %v5655, %v5639
        %v5848 = vpack.c.bf16 %v5656, %v5640
        %v5849 = vpack.c.bf16 %v5657, %v5641
        %v5850 = vpack.c.bf16 %v5658, %v5642
        %v5851 = vpack.c.bf16 %v5659, %v5643
        %v5852 = vpack.c.bf16 %v5660, %v5644
        %v5853 = vpack.c.bf16 %v5661, %v5645
        %v5854 = vpack.c.bf16 %v5662, %v5646
        %v5855 = vpack.c.bf16 %v5663, %v5647
        %v5856 = vpack.c.bf16 %v5664, %v5648
        %v5857 = vpack.c.bf16 %v5665, %v5649
        %v5858 = vpack.c.bf16 %v5666, %v5650
        %v5859 = vpack.c.bf16 %v5667, %v5651
        %v5860 = vpack.c.bf16 %v5668, %v5652
        %v5861 = vpack.c.bf16 %v5669, %v5653
        %v5862 = vpack.c.bf16 %v5686, %v5670
        %v5863 = vpack.c.bf16 %v5687, %v5671
        %v5864 = vpack.c.bf16 %v5688, %v5672
        %v5865 = vpack.c.bf16 %v5689, %v5673
        %v5866 = vpack.c.bf16 %v5690, %v5674
        %v5867 = vpack.c.bf16 %v5691, %v5675
        %v5868 = vpack.c.bf16 %v5692, %v5676
        %v5869 = vpack.c.bf16 %v5693, %v5677
        %v5870 = vpack.c.bf16 %v5694, %v5678
        %v5871 = vpack.c.bf16 %v5695, %v5679
        %v5872 = vpack.c.bf16 %v5696, %v5680
        %v5873 = vpack.c.bf16 %v5697, %v5681
        %v5874 = vpack.c.bf16 %v5698, %v5682
        %v5875 = vpack.c.bf16 %v5699, %v5683
        %v5876 = vpack.c.bf16 %v5700, %v5684
        %v5877 = vpack.c.bf16 %v5701, %v5685
        %v5878 = vpack.c.bf16 %v5718, %v5702
        %v5879 = vpack.c.bf16 %v5719, %v5703
        %v5880 = vpack.c.bf16 %v5720, %v5704
        %v5881 = vpack.c.bf16 %v5721, %v5705
        %v5882 = vpack.c.bf16 %v5722, %v5706
        %v5883 = vpack.c.bf16 %v5723, %v5707
        %v5884 = vpack.c.bf16 %v5724, %v5708
        %v5885 = vpack.c.bf16 %v5725, %v5709
        %v5886 = vpack.c.bf16 %v5726, %v5710
        %v5887 = vpack.c.bf16 %v5727, %v5711
        %v5888 = vpack.c.bf16 %v5728, %v5712
        %v5889 = vpack.c.bf16 %v5729, %v5713
        %v5890 = vpack.c.bf16 %v5730, %v5714
        %v5891 = vpack.c.bf16 %v5731, %v5715
        %v5892 = vpack.c.bf16 %v5732, %v5716
        %v5893 = vpack.c.bf16 %v5733, %v5717
        %v5894 = vpack.c.bf16 %v5750, %v5734
        %v5895 = vpack.c.bf16 %v5751, %v5735
        %v5896 = vpack.c.bf16 %v5752, %v5736
        %v5897 = vpack.c.bf16 %v5753, %v5737
        %v5898 = vpack.c.bf16 %v5754, %v5738
        %v5899 = vpack.c.bf16 %v5755, %v5739
        %v5900 = vpack.c.bf16 %v5756, %v5740
        %v5901 = vpack.c.bf16 %v5757, %v5741
        %v5902 = vpack.c.bf16 %v5758, %v5742
        %v5903 = vpack.c.bf16 %v5759, %v5743
        %v5904 = vpack.c.bf16 %v5760, %v5744
        %v5905 = vpack.c.bf16 %v5761, %v5745
        %v5906 = vpack.c.bf16 %v5762, %v5746
        %v5907 = vpack.c.bf16 %v5763, %v5747
        %v5908 = vpack.c.bf16 %v5764, %v5748
        %v5909 = vpack.c.bf16 %v5765, %v5749
        %v5910 = vpack.c.bf16 %v5782, %v5766
        %v5911 = vpack.c.bf16 %v5783, %v5767
        %v5912 = vpack.c.bf16 %v5784, %v5768
        %v5913 = vpack.c.bf16 %v5785, %v5769
        %v5914 = vpack.c.bf16 %v5786, %v5770
        %v5915 = vpack.c.bf16 %v5787, %v5771
        %v5916 = vpack.c.bf16 %v5788, %v5772
        %v5917 = vpack.c.bf16 %v5789, %v5773
        %v5918 = vpack.c.bf16 %v5790, %v5774
        %v5919 = vpack.c.bf16 %v5791, %v5775
        %v5920 = vpack.c.bf16 %v5792, %v5776
        %v5921 = vpack.c.bf16 %v5793, %v5777
        %v5922 = vpack.c.bf16 %v5794, %v5778
        %v5923 = vpack.c.bf16 %v5795, %v5779
        %v5924 = vpack.c.bf16 %v5796, %v5780
        %v5925 = vpack.c.bf16 %v5797, %v5781
        %v5926 = vlaneseq
        %v5927 = vshrl.u32 %v5926, 7
        %v5928 = vsub.s32 0, %v5927
        %v5929 = vrot.slane %v222, %v5928
        %v5938 = vunpack.c.l.b16 %v243
        %v5939 = vunpack.c.h.b16 %v243
        %v5940 = vunpack.c.l.b16 %v244
        %v5941 = vunpack.c.h.b16 %v244
        %v5942 = vunpack.c.l.b16 %v245
        %v5943 = vunpack.c.h.b16 %v245
        %v5944 = vunpack.c.l.b16 %v246
        %v5945 = vunpack.c.h.b16 %v246
        %v5946 = vunpack.c.l.b16 %v247
        %v5947 = vunpack.c.h.b16 %v247
        %v5948 = vunpack.c.l.b16 %v248
        %v5949 = vunpack.c.h.b16 %v248
        %v5950 = vunpack.c.l.b16 %v249
        %v5951 = vunpack.c.h.b16 %v249
        %v5952 = vunpack.c.l.b16 %v250
        %v5953 = vunpack.c.h.b16 %v250
        %v5954 = vpack.c.b16 %v5938, %v5938
        %v5955 = vpack.c.b16 %v5939, %v5939
        %v5956 = vpack.c.b16 %v5940, %v5940
        %v5957 = vpack.c.b16 %v5941, %v5941
        %v5958 = vpack.c.b16 %v5942, %v5942
        %v5959 = vpack.c.b16 %v5943, %v5943
        %v5960 = vpack.c.b16 %v5944, %v5944
        %v5961 = vpack.c.b16 %v5945, %v5945
        %v5962 = vpack.c.b16 %v5946, %v5946
        %v5963 = vpack.c.b16 %v5947, %v5947
        %v5964 = vpack.c.b16 %v5948, %v5948
        %v5965 = vpack.c.b16 %v5949, %v5949
        %v5966 = vpack.c.b16 %v5950, %v5950
        %v5967 = vpack.c.b16 %v5951, %v5951
        %v5968 = vpack.c.b16 %v5952, %v5952
        %v5969 = vpack.c.b16 %v5953, %v5953
        %v5970 = vrot.slane %v5954, 2
        %v5971 = vrot.slane %v5955, 2
        %v5972 = vrot.slane %v5956, 2
        %v5973 = vrot.slane %v5957, 2
        %v5974 = vrot.slane %v5958, 2
        %v5975 = vrot.slane %v5959, 2
        %v5976 = vrot.slane %v5960, 2
        %v5977 = vrot.slane %v5961, 2
        %v5978 = vrot.slane %v5962, 2
        %v5979 = vrot.slane %v5963, 2
        %v5980 = vrot.slane %v5964, 2
        %v5981 = vrot.slane %v5965, 2
        %v5982 = vrot.slane %v5966, 2
        %v5983 = vrot.slane %v5967, 2
        %v5984 = vrot.slane %v5968, 2
        %v5985 = vrot.slane %v5969, 2
        %6002 = vmatprep.subr.bf16.mxu0 %v5971
        %6003 = vmatpush1.bf16.xpose.msra.mxu0 %v5970
        %6004 = vmatprep.subr.bf16.mxu0 0
        %6005 = vmatpush1.bf16.xpose.msra.mxu0 0
        %6006 = vmatprep.subr.bf16.mxu0 0
        %6007 = vmatpush1.bf16.xpose.msra.mxu0 0
        %6008 = vmatprep.subr.bf16.mxu0 0
        %6009 = vmatpush1.bf16.xpose.msra.mxu0 0
        %6010 = vmatprep.subr.bf16.mxu0 0
        %6011 = vmatpush1.bf16.xpose.msra.mxu0 0
        %6012 = vmatprep.subr.bf16.mxu0 0
        %6013 = vmatpush1.bf16.xpose.msra.mxu0 0
        %6014 = vmatprep.subr.bf16.mxu0 0
        %6015 = vmatpush1.bf16.xpose.msra.mxu0 0
        %6016 = vmatprep.subr.bf16.mxu0 0
        %6017 = vmatpush1.bf16.xpose.msra.mxu0 0
        %6018 = vmatprep.subr.bf16.mxu0 0
        %6019 = vmatpush1.bf16.xpose.msra.mxu0 0
        %6020 = vmatprep.subr.bf16.mxu0 0
        %6021 = vmatpush1.bf16.xpose.msra.mxu0 0
        %6022 = vmatprep.subr.bf16.mxu0 0
        %6023 = vmatpush1.bf16.xpose.msra.mxu0 0
        %6024 = vmatprep.subr.bf16.mxu0 0
        %6025 = vmatpush1.bf16.xpose.msra.mxu0 0
        %6026 = vmatprep.subr.bf16.mxu0 0
        %6027 = vmatpush1.bf16.xpose.msra.mxu0 0
        %6028 = vmatprep.subr.bf16.mxu0 0
        %6029 = vmatpush1.bf16.xpose.msra.mxu0 0
        %6030 = vmatprep.subr.bf16.mxu0 0
        %6031 = vmatpush1.bf16.xpose.msra.mxu0 0
        %6032 = vmatprep.subr.bf16.mxu0 0
        %6033 = vmatpush1.bf16.xpose.msra.mxu0 0
        %6034 = vmatprep.mubr.bf16.mxu0 %v5799
        %6035 = vmatmul.mubr.bf16.gmra.mrb[0].mxu0 %v5798
        %v6036 = vpop.f32.mrb[0].mxu0
        %v6037 = vadd.f32 %v5929, %v6036
        %v6038 = vpop.f32.mrb[0].mxu0
        %v6039 = vpop.f32.mrb[0].mxu0
        %v6040 = vadd.f32 %v5929, %v6039
        %v6041 = vpop.f32.mrb[0].mxu0
        %6042 = vmatprep.mubr.bf16.mxu0 %v5815
        %6043 = vmatmul.mubr.bf16.gmra.mrb[0].mxu0 %v5814
        %v6044 = vpop.f32.mrb[0].mxu0
        %v6045 = vadd.f32 %v5929, %v6044
        %v6046 = vpop.f32.mrb[0].mxu0
        %v6047 = vpop.f32.mrb[0].mxu0
        %v6048 = vadd.f32 %v5929, %v6047
        %v6049 = vpop.f32.mrb[0].mxu0
        %6050 = vmatprep.mubr.bf16.mxu0 %v5831
        %6051 = vmatmul.mubr.bf16.gmra.mrb[0].mxu0 %v5830
        %v6052 = vpop.f32.mrb[0].mxu0
        %v6053 = vadd.f32 %v5929, %v6052
        %v6054 = vpop.f32.mrb[0].mxu0
        %v6055 = vpop.f32.mrb[0].mxu0
        %v6056 = vadd.f32 %v5929, %v6055
        %v6057 = vpop.f32.mrb[0].mxu0
        %6058 = vmatprep.mubr.bf16.mxu0 %v5847
        %6059 = vmatmul.mubr.bf16.gmra.mrb[0].mxu0 %v5846
        %v6060 = vpop.f32.mrb[0].mxu0
        %v6061 = vadd.f32 %v5929, %v6060
        %v6062 = vpop.f32.mrb[0].mxu0
        %v6063 = vpop.f32.mrb[0].mxu0
        %v6064 = vadd.f32 %v5929, %v6063
        %v6065 = vpop.f32.mrb[0].mxu0
        %6066 = vmatprep.mubr.bf16.mxu0 %v5863
        %6067 = vmatmul.mubr.bf16.gmra.mrb[0].mxu0 %v5862
        %v6068 = vpop.f32.mrb[0].mxu0
        %v6069 = vadd.f32 %v5929, %v6068
        %v6070 = vpop.f32.mrb[0].mxu0
        %v6071 = vpop.f32.mrb[0].mxu0
        %v6072 = vadd.f32 %v5929, %v6071
        %v6073 = vpop.f32.mrb[0].mxu0
        %6074 = vmatprep.mubr.bf16.mxu0 %v5879
        %6075 = vmatmul.mubr.bf16.gmra.mrb[0].mxu0 %v5878
        %v6076 = vpop.f32.mrb[0].mxu0
        %v6077 = vadd.f32 %v5929, %v6076
        %v6078 = vpop.f32.mrb[0].mxu0
        %v6079 = vpop.f32.mrb[0].mxu0
        %v6080 = vadd.f32 %v5929, %v6079
        %v6081 = vpop.f32.mrb[0].mxu0
        %6082 = vmatprep.mubr.bf16.mxu0 %v5895
        %6083 = vmatmul.mubr.bf16.gmra.mrb[0].mxu0 %v5894
        %v6084 = vpop.f32.mrb[0].mxu0
        %v6085 = vadd.f32 %v5929, %v6084
        %v6086 = vpop.f32.mrb[0].mxu0
        %v6087 = vpop.f32.mrb[0].mxu0
        %v6088 = vadd.f32 %v5929, %v6087
        %v6089 = vpop.f32.mrb[0].mxu0
        %6090 = vmatprep.mubr.bf16.mxu0 %v5911
        %6091 = vmatmul.mubr.bf16.gmra.mrb[0].mxu0 %v5910
        %v6092 = vpop.f32.mrb[0].mxu0
        %v6093 = vadd.f32 %v5929, %v6092
        %v6094 = vpop.f32.mrb[0].mxu0
        %v6095 = vpop.f32.mrb[0].mxu0
        %v6096 = vadd.f32 %v5929, %v6095
        %v6097 = vpop.f32.mrb[0].mxu0
        %6098 = vdwg.mxu0
        %6099 = vmatprep.subr.bf16.mxu0 %v5973
        %6100 = vmatpush1.bf16.xpose.msra.mxu0 %v5972
        %6101 = vmatprep.subr.bf16.mxu0 0
        %6102 = vmatpush1.bf16.xpose.msra.mxu0 0
        %6103 = vmatprep.subr.bf16.mxu0 0
        %6104 = vmatpush1.bf16.xpose.msra.mxu0 0
        %6105 = vmatprep.subr.bf16.mxu0 0
        %6106 = vmatpush1.bf16.xpose.msra.mxu0 0
        %6107 = vmatprep.subr.bf16.mxu0 0
        %6108 = vmatpush1.bf16.xpose.msra.mxu0 0
        %6109 = vmatprep.subr.bf16.mxu0 0
        %6110 = vmatpush1.bf16.xpose.msra.mxu0 0
        %6111 = vmatprep.subr.bf16.mxu0 0
        %6112 = vmatpush1.bf16.xpose.msra.mxu0 0
        %6113 = vmatprep.subr.bf16.mxu0 0
        %6114 = vmatpush1.bf16.xpose.msra.mxu0 0
        %6115 = vmatprep.subr.bf16.mxu0 0
        %6116 = vmatpush1.bf16.xpose.msra.mxu0 0
        %6117 = vmatprep.subr.bf16.mxu0 0
        %6118 = vmatpush1.bf16.xpose.msra.mxu0 0
        %6119 = vmatprep.subr.bf16.mxu0 0
        %6120 = vmatpush1.bf16.xpose.msra.mxu0 0
        %6121 = vmatprep.subr.bf16.mxu0 0
        %6122 = vmatpush1.bf16.xpose.msra.mxu0 0
        %6123 = vmatprep.subr.bf16.mxu0 0
        %6124 = vmatpush1.bf16.xpose.msra.mxu0 0
        %6125 = vmatprep.subr.bf16.mxu0 0
        %6126 = vmatpush1.bf16.xpose.msra.mxu0 0
        %6127 = vmatprep.subr.bf16.mxu0 0
        %6128 = vmatpush1.bf16.xpose.msra.mxu0 0
        %6129 = vmatprep.subr.bf16.mxu0 0
        %6130 = vmatpush1.bf16.xpose.msra.mxu0 0
        %6131 = vmatprep.mubr.bf16.mxu0 %v5801
        %6132 = vmatmul.mubr.bf16.gmra.mrb[0].mxu0 %v5800
        %v6133 = vpop.f32.mrb[0].mxu0
        %v6134 = vadd.f32 %v6037, %v6133
        %v6135 = vpop.f32.mrb[0].mxu0
        %v6136 = vpop.f32.mrb[0].mxu0
        %v6137 = vadd.f32 %v6040, %v6136
        %v6138 = vpop.f32.mrb[0].mxu0
        %6139 = vmatprep.mubr.bf16.mxu0 %v5817
        %6140 = vmatmul.mubr.bf16.gmra.mrb[0].mxu0 %v5816
        %v6141 = vpop.f32.mrb[0].mxu0
        %v6142 = vadd.f32 %v6045, %v6141
        %v6143 = vpop.f32.mrb[0].mxu0
        %v6144 = vpop.f32.mrb[0].mxu0
        %v6145 = vadd.f32 %v6048, %v6144
        %v6146 = vpop.f32.mrb[0].mxu0
        %6147 = vmatprep.mubr.bf16.mxu0 %v5833
        %6148 = vmatmul.mubr.bf16.gmra.mrb[0].mxu0 %v5832
        %v6149 = vpop.f32.mrb[0].mxu0
        %v6150 = vadd.f32 %v6053, %v6149
        %v6151 = vpop.f32.mrb[0].mxu0
        %v6152 = vpop.f32.mrb[0].mxu0
        %v6153 = vadd.f32 %v6056, %v6152
        %v6154 = vpop.f32.mrb[0].mxu0
        %6155 = vmatprep.mubr.bf16.mxu0 %v5849
        %6156 = vmatmul.mubr.bf16.gmra.mrb[0].mxu0 %v5848
        %v6157 = vpop.f32.mrb[0].mxu0
        %v6158 = vadd.f32 %v6061, %v6157
        %v6159 = vpop.f32.mrb[0].mxu0
        %v6160 = vpop.f32.mrb[0].mxu0
        %v6161 = vadd.f32 %v6064, %v6160
        %v6162 = vpop.f32.mrb[0].mxu0
        %6163 = vmatprep.mubr.bf16.mxu0 %v5865
        %6164 = vmatmul.mubr.bf16.gmra.mrb[0].mxu0 %v5864
        %v6165 = vpop.f32.mrb[0].mxu0
        %v6166 = vadd.f32 %v6069, %v6165
        %v6167 = vpop.f32.mrb[0].mxu0
        %v6168 = vpop.f32.mrb[0].mxu0
        %v6169 = vadd.f32 %v6072, %v6168
        %v6170 = vpop.f32.mrb[0].mxu0
        %6171 = vmatprep.mubr.bf16.mxu0 %v5881
        %6172 = vmatmul.mubr.bf16.gmra.mrb[0].mxu0 %v5880
        %v6173 = vpop.f32.mrb[0].mxu0
        %v6174 = vadd.f32 %v6077, %v6173
        %v6175 = vpop.f32.mrb[0].mxu0
        %v6176 = vpop.f32.mrb[0].mxu0
        %v6177 = vadd.f32 %v6080, %v6176
        %v6178 = vpop.f32.mrb[0].mxu0
        %6179 = vmatprep.mubr.bf16.mxu0 %v5897
        %6180 = vmatmul.mubr.bf16.gmra.mrb[0].mxu0 %v5896
        %v6181 = vpop.f32.mrb[0].mxu0
        %v6182 = vadd.f32 %v6085, %v6181
        %v6183 = vpop.f32.mrb[0].mxu0
        %v6184 = vpop.f32.mrb[0].mxu0
        %v6185 = vadd.f32 %v6088, %v6184
        %v6186 = vpop.f32.mrb[0].mxu0
        %6187 = vmatprep.mubr.bf16.mxu0 %v5913
        %6188 = vmatmul.mubr.bf16.gmra.mrb[0].mxu0 %v5912
        %v6189 = vpop.f32.mrb[0].mxu0
        %v6190 = vadd.f32 %v6093, %v6189
        %v6191 = vpop.f32.mrb[0].mxu0
        %v6192 = vpop.f32.mrb[0].mxu0
        %v6193 = vadd.f32 %v6096, %v6192
        %v6194 = vpop.f32.mrb[0].mxu0
        %6195 = vdwg.mxu0
        %6196 = vmatprep.subr.bf16.mxu0 %v5975
        %6197 = vmatpush1.bf16.xpose.msra.mxu0 %v5974
        %6198 = vmatprep.subr.bf16.mxu0 0
        %6199 = vmatpush1.bf16.xpose.msra.mxu0 0
        %6200 = vmatprep.subr.bf16.mxu0 0
        %6201 = vmatpush1.bf16.xpose.msra.mxu0 0
        %6202 = vmatprep.subr.bf16.mxu0 0
        %6203 = vmatpush1.bf16.xpose.msra.mxu0 0
        %6204 = vmatprep.subr.bf16.mxu0 0
        %6205 = vmatpush1.bf16.xpose.msra.mxu0 0
        %6206 = vmatprep.subr.bf16.mxu0 0
        %6207 = vmatpush1.bf16.xpose.msra.mxu0 0
        %6208 = vmatprep.subr.bf16.mxu0 0
        %6209 = vmatpush1.bf16.xpose.msra.mxu0 0
        %6210 = vmatprep.subr.bf16.mxu0 0
        %6211 = vmatpush1.bf16.xpose.msra.mxu0 0
        %6212 = vmatprep.subr.bf16.mxu0 0
        %6213 = vmatpush1.bf16.xpose.msra.mxu0 0
        %6214 = vmatprep.subr.bf16.mxu0 0
        %6215 = vmatpush1.bf16.xpose.msra.mxu0 0
        %6216 = vmatprep.subr.bf16.mxu0 0
        %6217 = vmatpush1.bf16.xpose.msra.mxu0 0
        %6218 = vmatprep.subr.bf16.mxu0 0
        %6219 = vmatpush1.bf16.xpose.msra.mxu0 0
        %6220 = vmatprep.subr.bf16.mxu0 0
        %6221 = vmatpush1.bf16.xpose.msra.mxu0 0
        %6222 = vmatprep.subr.bf16.mxu0 0
        %6223 = vmatpush1.bf16.xpose.msra.mxu0 0
        %6224 = vmatprep.subr.bf16.mxu0 0
        %6225 = vmatpush1.bf16.xpose.msra.mxu0 0
        %6226 = vmatprep.subr.bf16.mxu0 0
        %6227 = vmatpush1.bf16.xpose.msra.mxu0 0
        %6228 = vmatprep.mubr.bf16.mxu0 %v5803
        %6229 = vmatmul.mubr.bf16.gmra.mrb[0].mxu0 %v5802
        %v6230 = vpop.f32.mrb[0].mxu0
        %v6231 = vadd.f32 %v6134, %v6230
        %v6232 = vpop.f32.mrb[0].mxu0
        %v6233 = vpop.f32.mrb[0].mxu0
        %v6234 = vadd.f32 %v6137, %v6233
        %v6235 = vpop.f32.mrb[0].mxu0
        %6236 = vmatprep.mubr.bf16.mxu0 %v5819
        %6237 = vmatmul.mubr.bf16.gmra.mrb[0].mxu0 %v5818
        %v6238 = vpop.f32.mrb[0].mxu0
        %v6239 = vadd.f32 %v6142, %v6238
        %v6240 = vpop.f32.mrb[0].mxu0
        %v6241 = vpop.f32.mrb[0].mxu0
        %v6242 = vadd.f32 %v6145, %v6241
        %v6243 = vpop.f32.mrb[0].mxu0
        %6244 = vmatprep.mubr.bf16.mxu0 %v5835
        %6245 = vmatmul.mubr.bf16.gmra.mrb[0].mxu0 %v5834
        %v6246 = vpop.f32.mrb[0].mxu0
        %v6247 = vadd.f32 %v6150, %v6246
        %v6248 = vpop.f32.mrb[0].mxu0
        %v6249 = vpop.f32.mrb[0].mxu0
        %v6250 = vadd.f32 %v6153, %v6249
        %v6251 = vpop.f32.mrb[0].mxu0
        %6252 = vmatprep.mubr.bf16.mxu0 %v5851
        %6253 = vmatmul.mubr.bf16.gmra.mrb[0].mxu0 %v5850
        %v6254 = vpop.f32.mrb[0].mxu0
        %v6255 = vadd.f32 %v6158, %v6254
        %v6256 = vpop.f32.mrb[0].mxu0
        %v6257 = vpop.f32.mrb[0].mxu0
        %v6258 = vadd.f32 %v6161, %v6257
        %v6259 = vpop.f32.mrb[0].mxu0
        %6260 = vmatprep.mubr.bf16.mxu0 %v5867
        %6261 = vmatmul.mubr.bf16.gmra.mrb[0].mxu0 %v5866
        %v6262 = vpop.f32.mrb[0].mxu0
        %v6263 = vadd.f32 %v6166, %v6262
        %v6264 = vpop.f32.mrb[0].mxu0
        %v6265 = vpop.f32.mrb[0].mxu0
        %v6266 = vadd.f32 %v6169, %v6265
        %v6267 = vpop.f32.mrb[0].mxu0
        %6268 = vmatprep.mubr.bf16.mxu0 %v5883
        %6269 = vmatmul.mubr.bf16.gmra.mrb[0].mxu0 %v5882
        %v6270 = vpop.f32.mrb[0].mxu0
        %v6271 = vadd.f32 %v6174, %v6270
        %v6272 = vpop.f32.mrb[0].mxu0
        %v6273 = vpop.f32.mrb[0].mxu0
        %v6274 = vadd.f32 %v6177, %v6273
        %v6275 = vpop.f32.mrb[0].mxu0
        %6276 = vmatprep.mubr.bf16.mxu0 %v5899
        %6277 = vmatmul.mubr.bf16.gmra.mrb[0].mxu0 %v5898
        %v6278 = vpop.f32.mrb[0].mxu0
        %v6279 = vadd.f32 %v6182, %v6278
        %v6280 = vpop.f32.mrb[0].mxu0
        %v6281 = vpop.f32.mrb[0].mxu0
        %v6282 = vadd.f32 %v6185, %v6281
        %v6283 = vpop.f32.mrb[0].mxu0
        %6284 = vmatprep.mubr.bf16.mxu0 %v5915
        %6285 = vmatmul.mubr.bf16.gmra.mrb[0].mxu0 %v5914
        %v6286 = vpop.f32.mrb[0].mxu0
        %v6287 = vadd.f32 %v6190, %v6286
        %v6288 = vpop.f32.mrb[0].mxu0
        %v6289 = vpop.f32.mrb[0].mxu0
        %v6290 = vadd.f32 %v6193, %v6289
        %v6291 = vpop.f32.mrb[0].mxu0
        %6292 = vdwg.mxu0
        %6293 = vmatprep.subr.bf16.mxu0 %v5977
        %6294 = vmatpush1.bf16.xpose.msra.mxu0 %v5976
        %6295 = vmatprep.subr.bf16.mxu0 0
        %6296 = vmatpush1.bf16.xpose.msra.mxu0 0
        %6297 = vmatprep.subr.bf16.mxu0 0
        %6298 = vmatpush1.bf16.xpose.msra.mxu0 0
        %6299 = vmatprep.subr.bf16.mxu0 0
        %6300 = vmatpush1.bf16.xpose.msra.mxu0 0
        %6301 = vmatprep.subr.bf16.mxu0 0
        %6302 = vmatpush1.bf16.xpose.msra.mxu0 0
        %6303 = vmatprep.subr.bf16.mxu0 0
        %6304 = vmatpush1.bf16.xpose.msra.mxu0 0
        %6305 = vmatprep.subr.bf16.mxu0 0
        %6306 = vmatpush1.bf16.xpose.msra.mxu0 0
        %6307 = vmatprep.subr.bf16.mxu0 0
        %6308 = vmatpush1.bf16.xpose.msra.mxu0 0
        %6309 = vmatprep.subr.bf16.mxu0 0
        %6310 = vmatpush1.bf16.xpose.msra.mxu0 0
        %6311 = vmatprep.subr.bf16.mxu0 0
        %6312 = vmatpush1.bf16.xpose.msra.mxu0 0
        %6313 = vmatprep.subr.bf16.mxu0 0
        %6314 = vmatpush1.bf16.xpose.msra.mxu0 0
        %6315 = vmatprep.subr.bf16.mxu0 0
        %6316 = vmatpush1.bf16.xpose.msra.mxu0 0
        %6317 = vmatprep.subr.bf16.mxu0 0
        %6318 = vmatpush1.bf16.xpose.msra.mxu0 0
        %6319 = vmatprep.subr.bf16.mxu0 0
        %6320 = vmatpush1.bf16.xpose.msra.mxu0 0
        %6321 = vmatprep.subr.bf16.mxu0 0
        %6322 = vmatpush1.bf16.xpose.msra.mxu0 0
        %6323 = vmatprep.subr.bf16.mxu0 0
        %6324 = vmatpush1.bf16.xpose.msra.mxu0 0
        %6325 = vmatprep.mubr.bf16.mxu0 %v5805
        %6326 = vmatmul.mubr.bf16.gmra.mrb[0].mxu0 %v5804
        %v6327 = vpop.f32.mrb[0].mxu0
        %v6328 = vadd.f32 %v6231, %v6327
        %v6329 = vpop.f32.mrb[0].mxu0
        %v6330 = vpop.f32.mrb[0].mxu0
        %v6331 = vadd.f32 %v6234, %v6330
        %v6332 = vpop.f32.mrb[0].mxu0
        %6333 = vmatprep.mubr.bf16.mxu0 %v5821
        %6334 = vmatmul.mubr.bf16.gmra.mrb[0].mxu0 %v5820
        %v6335 = vpop.f32.mrb[0].mxu0
        %v6336 = vadd.f32 %v6239, %v6335
        %v6337 = vpop.f32.mrb[0].mxu0
        %v6338 = vpop.f32.mrb[0].mxu0
        %v6339 = vadd.f32 %v6242, %v6338
        %v6340 = vpop.f32.mrb[0].mxu0
        %6341 = vmatprep.mubr.bf16.mxu0 %v5837
        %6342 = vmatmul.mubr.bf16.gmra.mrb[0].mxu0 %v5836
        %v6343 = vpop.f32.mrb[0].mxu0
        %v6344 = vadd.f32 %v6247, %v6343
        %v6345 = vpop.f32.mrb[0].mxu0
        %v6346 = vpop.f32.mrb[0].mxu0
        %v6347 = vadd.f32 %v6250, %v6346
        %v6348 = vpop.f32.mrb[0].mxu0
        %6349 = vmatprep.mubr.bf16.mxu0 %v5853
        %6350 = vmatmul.mubr.bf16.gmra.mrb[0].mxu0 %v5852
        %v6351 = vpop.f32.mrb[0].mxu0
        %v6352 = vadd.f32 %v6255, %v6351
        %v6353 = vpop.f32.mrb[0].mxu0
        %v6354 = vpop.f32.mrb[0].mxu0
        %v6355 = vadd.f32 %v6258, %v6354
        %v6356 = vpop.f32.mrb[0].mxu0
        %6357 = vmatprep.mubr.bf16.mxu0 %v5869
        %6358 = vmatmul.mubr.bf16.gmra.mrb[0].mxu0 %v5868
        %v6359 = vpop.f32.mrb[0].mxu0
        %v6360 = vadd.f32 %v6263, %v6359
        %v6361 = vpop.f32.mrb[0].mxu0
        %v6362 = vpop.f32.mrb[0].mxu0
        %v6363 = vadd.f32 %v6266, %v6362
        %v6364 = vpop.f32.mrb[0].mxu0
        %6365 = vmatprep.mubr.bf16.mxu0 %v5885
        %6366 = vmatmul.mubr.bf16.gmra.mrb[0].mxu0 %v5884
        %v6367 = vpop.f32.mrb[0].mxu0
        %v6368 = vadd.f32 %v6271, %v6367
        %v6369 = vpop.f32.mrb[0].mxu0
        %v6370 = vpop.f32.mrb[0].mxu0
        %v6371 = vadd.f32 %v6274, %v6370
        %v6372 = vpop.f32.mrb[0].mxu0
        %6373 = vmatprep.mubr.bf16.mxu0 %v5901
        %6374 = vmatmul.mubr.bf16.gmra.mrb[0].mxu0 %v5900
        %v6375 = vpop.f32.mrb[0].mxu0
        %v6376 = vadd.f32 %v6279, %v6375
        %v6377 = vpop.f32.mrb[0].mxu0
        %v6378 = vpop.f32.mrb[0].mxu0
        %v6379 = vadd.f32 %v6282, %v6378
        %v6380 = vpop.f32.mrb[0].mxu0
        %6381 = vmatprep.mubr.bf16.mxu0 %v5917
        %6382 = vmatmul.mubr.bf16.gmra.mrb[0].mxu0 %v5916
        %v6383 = vpop.f32.mrb[0].mxu0
        %v6384 = vadd.f32 %v6287, %v6383
        %v6385 = vpop.f32.mrb[0].mxu0
        %v6386 = vpop.f32.mrb[0].mxu0
        %v6387 = vadd.f32 %v6290, %v6386
        %v6388 = vpop.f32.mrb[0].mxu0
        %6389 = vdwg.mxu0
        %6390 = vmatprep.subr.bf16.mxu0 %v5979
        %6391 = vmatpush1.bf16.xpose.msra.mxu0 %v5978
        %6392 = vmatprep.subr.bf16.mxu0 0
        %6393 = vmatpush1.bf16.xpose.msra.mxu0 0
        %6394 = vmatprep.subr.bf16.mxu0 0
        %6395 = vmatpush1.bf16.xpose.msra.mxu0 0
        %6396 = vmatprep.subr.bf16.mxu0 0
        %6397 = vmatpush1.bf16.xpose.msra.mxu0 0
        %6398 = vmatprep.subr.bf16.mxu0 0
        %6399 = vmatpush1.bf16.xpose.msra.mxu0 0
        %6400 = vmatprep.subr.bf16.mxu0 0
        %6401 = vmatpush1.bf16.xpose.msra.mxu0 0
        %6402 = vmatprep.subr.bf16.mxu0 0
        %6403 = vmatpush1.bf16.xpose.msra.mxu0 0
        %6404 = vmatprep.subr.bf16.mxu0 0
        %6405 = vmatpush1.bf16.xpose.msra.mxu0 0
        %6406 = vmatprep.subr.bf16.mxu0 0
        %6407 = vmatpush1.bf16.xpose.msra.mxu0 0
        %6408 = vmatprep.subr.bf16.mxu0 0
        %6409 = vmatpush1.bf16.xpose.msra.mxu0 0
        %6410 = vmatprep.subr.bf16.mxu0 0
        %6411 = vmatpush1.bf16.xpose.msra.mxu0 0
        %6412 = vmatprep.subr.bf16.mxu0 0
        %6413 = vmatpush1.bf16.xpose.msra.mxu0 0
        %6414 = vmatprep.subr.bf16.mxu0 0
        %6415 = vmatpush1.bf16.xpose.msra.mxu0 0
        %6416 = vmatprep.subr.bf16.mxu0 0
        %6417 = vmatpush1.bf16.xpose.msra.mxu0 0
        %6418 = vmatprep.subr.bf16.mxu0 0
        %6419 = vmatpush1.bf16.xpose.msra.mxu0 0
        %6420 = vmatprep.subr.bf16.mxu0 0
        %6421 = vmatpush1.bf16.xpose.msra.mxu0 0
        %6422 = vmatprep.mubr.bf16.mxu0 %v5807
        %6423 = vmatmul.mubr.bf16.gmra.mrb[0].mxu0 %v5806
        %v6424 = vpop.f32.mrb[0].mxu0
        %v6425 = vadd.f32 %v6328, %v6424
        %v6426 = vpop.f32.mrb[0].mxu0
        %v6427 = vpop.f32.mrb[0].mxu0
        %v6428 = vadd.f32 %v6331, %v6427
        %v6429 = vpop.f32.mrb[0].mxu0
        %6430 = vmatprep.mubr.bf16.mxu0 %v5823
        %6431 = vmatmul.mubr.bf16.gmra.mrb[0].mxu0 %v5822
        %v6432 = vpop.f32.mrb[0].mxu0
        %v6433 = vadd.f32 %v6336, %v6432
        %v6434 = vpop.f32.mrb[0].mxu0
        %v6435 = vpop.f32.mrb[0].mxu0
        %v6436 = vadd.f32 %v6339, %v6435
        %v6437 = vpop.f32.mrb[0].mxu0
        %6438 = vmatprep.mubr.bf16.mxu0 %v5839
        %6439 = vmatmul.mubr.bf16.gmra.mrb[0].mxu0 %v5838
        %v6440 = vpop.f32.mrb[0].mxu0
        %v6441 = vadd.f32 %v6344, %v6440
        %v6442 = vpop.f32.mrb[0].mxu0
        %v6443 = vpop.f32.mrb[0].mxu0
        %v6444 = vadd.f32 %v6347, %v6443
        %v6445 = vpop.f32.mrb[0].mxu0
        %6446 = vmatprep.mubr.bf16.mxu0 %v5855
        %6447 = vmatmul.mubr.bf16.gmra.mrb[0].mxu0 %v5854
        %v6448 = vpop.f32.mrb[0].mxu0
        %v6449 = vadd.f32 %v6352, %v6448
        %v6450 = vpop.f32.mrb[0].mxu0
        %v6451 = vpop.f32.mrb[0].mxu0
        %v6452 = vadd.f32 %v6355, %v6451
        %v6453 = vpop.f32.mrb[0].mxu0
        %6454 = vmatprep.mubr.bf16.mxu0 %v5871
        %6455 = vmatmul.mubr.bf16.gmra.mrb[0].mxu0 %v5870
        %v6456 = vpop.f32.mrb[0].mxu0
        %v6457 = vadd.f32 %v6360, %v6456
        %v6458 = vpop.f32.mrb[0].mxu0
        %v6459 = vpop.f32.mrb[0].mxu0
        %v6460 = vadd.f32 %v6363, %v6459
        %v6461 = vpop.f32.mrb[0].mxu0
        %6462 = vmatprep.mubr.bf16.mxu0 %v5887
        %6463 = vmatmul.mubr.bf16.gmra.mrb[0].mxu0 %v5886
        %v6464 = vpop.f32.mrb[0].mxu0
        %v6465 = vadd.f32 %v6368, %v6464
        %v6466 = vpop.f32.mrb[0].mxu0
        %v6467 = vpop.f32.mrb[0].mxu0
        %v6468 = vadd.f32 %v6371, %v6467
        %v6469 = vpop.f32.mrb[0].mxu0
        %6470 = vmatprep.mubr.bf16.mxu0 %v5903
        %6471 = vmatmul.mubr.bf16.gmra.mrb[0].mxu0 %v5902
        %v6472 = vpop.f32.mrb[0].mxu0
        %v6473 = vadd.f32 %v6376, %v6472
        %v6474 = vpop.f32.mrb[0].mxu0
        %v6475 = vpop.f32.mrb[0].mxu0
        %v6476 = vadd.f32 %v6379, %v6475
        %v6477 = vpop.f32.mrb[0].mxu0
        %6478 = vmatprep.mubr.bf16.mxu0 %v5919
        %6479 = vmatmul.mubr.bf16.gmra.mrb[0].mxu0 %v5918
        %v6480 = vpop.f32.mrb[0].mxu0
        %v6481 = vadd.f32 %v6384, %v6480
        %v6482 = vpop.f32.mrb[0].mxu0
        %v6483 = vpop.f32.mrb[0].mxu0
        %v6484 = vadd.f32 %v6387, %v6483
        %v6485 = vpop.f32.mrb[0].mxu0
        %6486 = vdwg.mxu0
        %6487 = vmatprep.subr.bf16.mxu0 %v5981
        %6488 = vmatpush1.bf16.xpose.msra.mxu0 %v5980
        %6489 = vmatprep.subr.bf16.mxu0 0
        %6490 = vmatpush1.bf16.xpose.msra.mxu0 0
        %6491 = vmatprep.subr.bf16.mxu0 0
        %6492 = vmatpush1.bf16.xpose.msra.mxu0 0
        %6493 = vmatprep.subr.bf16.mxu0 0
        %6494 = vmatpush1.bf16.xpose.msra.mxu0 0
        %6495 = vmatprep.subr.bf16.mxu0 0
        %6496 = vmatpush1.bf16.xpose.msra.mxu0 0
        %6497 = vmatprep.subr.bf16.mxu0 0
        %6498 = vmatpush1.bf16.xpose.msra.mxu0 0
        %6499 = vmatprep.subr.bf16.mxu0 0
        %6500 = vmatpush1.bf16.xpose.msra.mxu0 0
        %6501 = vmatprep.subr.bf16.mxu0 0
        %6502 = vmatpush1.bf16.xpose.msra.mxu0 0
        %6503 = vmatprep.subr.bf16.mxu0 0
        %6504 = vmatpush1.bf16.xpose.msra.mxu0 0
        %6505 = vmatprep.subr.bf16.mxu0 0
        %6506 = vmatpush1.bf16.xpose.msra.mxu0 0
        %6507 = vmatprep.subr.bf16.mxu0 0
        %6508 = vmatpush1.bf16.xpose.msra.mxu0 0
        %6509 = vmatprep.subr.bf16.mxu0 0
        %6510 = vmatpush1.bf16.xpose.msra.mxu0 0
        %6511 = vmatprep.subr.bf16.mxu0 0
        %6512 = vmatpush1.bf16.xpose.msra.mxu0 0
        %6513 = vmatprep.subr.bf16.mxu0 0
        %6514 = vmatpush1.bf16.xpose.msra.mxu0 0
        %6515 = vmatprep.subr.bf16.mxu0 0
        %6516 = vmatpush1.bf16.xpose.msra.mxu0 0
        %6517 = vmatprep.subr.bf16.mxu0 0
        %6518 = vmatpush1.bf16.xpose.msra.mxu0 0
        %6519 = vmatprep.mubr.bf16.mxu0 %v5809
        %6520 = vmatmul.mubr.bf16.gmra.mrb[0].mxu0 %v5808
        %v6521 = vpop.f32.mrb[0].mxu0
        %v6522 = vadd.f32 %v6425, %v6521
        %v6523 = vpop.f32.mrb[0].mxu0
        %v6524 = vpop.f32.mrb[0].mxu0
        %v6525 = vadd.f32 %v6428, %v6524
        %v6526 = vpop.f32.mrb[0].mxu0
        %6527 = vmatprep.mubr.bf16.mxu0 %v5825
        %6528 = vmatmul.mubr.bf16.gmra.mrb[0].mxu0 %v5824
        %v6529 = vpop.f32.mrb[0].mxu0
        %v6530 = vadd.f32 %v6433, %v6529
        %v6531 = vpop.f32.mrb[0].mxu0
        %v6532 = vpop.f32.mrb[0].mxu0
        %v6533 = vadd.f32 %v6436, %v6532
        %v6534 = vpop.f32.mrb[0].mxu0
        %6535 = vmatprep.mubr.bf16.mxu0 %v5841
        %6536 = vmatmul.mubr.bf16.gmra.mrb[0].mxu0 %v5840
        %v6537 = vpop.f32.mrb[0].mxu0
        %v6538 = vadd.f32 %v6441, %v6537
        %v6539 = vpop.f32.mrb[0].mxu0
        %v6540 = vpop.f32.mrb[0].mxu0
        %v6541 = vadd.f32 %v6444, %v6540
        %v6542 = vpop.f32.mrb[0].mxu0
        %6543 = vmatprep.mubr.bf16.mxu0 %v5857
        %6544 = vmatmul.mubr.bf16.gmra.mrb[0].mxu0 %v5856
        %v6545 = vpop.f32.mrb[0].mxu0
        %v6546 = vadd.f32 %v6449, %v6545
        %v6547 = vpop.f32.mrb[0].mxu0
        %v6548 = vpop.f32.mrb[0].mxu0
        %v6549 = vadd.f32 %v6452, %v6548
        %v6550 = vpop.f32.mrb[0].mxu0
        %6551 = vmatprep.mubr.bf16.mxu0 %v5873
        %6552 = vmatmul.mubr.bf16.gmra.mrb[0].mxu0 %v5872
        %v6553 = vpop.f32.mrb[0].mxu0
        %v6554 = vadd.f32 %v6457, %v6553
        %v6555 = vpop.f32.mrb[0].mxu0
        %v6556 = vpop.f32.mrb[0].mxu0
        %v6557 = vadd.f32 %v6460, %v6556
        %v6558 = vpop.f32.mrb[0].mxu0
        %6559 = vmatprep.mubr.bf16.mxu0 %v5889
        %6560 = vmatmul.mubr.bf16.gmra.mrb[0].mxu0 %v5888
        %v6561 = vpop.f32.mrb[0].mxu0
        %v6562 = vadd.f32 %v6465, %v6561
        %v6563 = vpop.f32.mrb[0].mxu0
        %v6564 = vpop.f32.mrb[0].mxu0
        %v6565 = vadd.f32 %v6468, %v6564
        %v6566 = vpop.f32.mrb[0].mxu0
        %6567 = vmatprep.mubr.bf16.mxu0 %v5905
        %6568 = vmatmul.mubr.bf16.gmra.mrb[0].mxu0 %v5904
        %v6569 = vpop.f32.mrb[0].mxu0
        %v6570 = vadd.f32 %v6473, %v6569
        %v6571 = vpop.f32.mrb[0].mxu0
        %v6572 = vpop.f32.mrb[0].mxu0
        %v6573 = vadd.f32 %v6476, %v6572
        %v6574 = vpop.f32.mrb[0].mxu0
        %6575 = vmatprep.mubr.bf16.mxu0 %v5921
        %6576 = vmatmul.mubr.bf16.gmra.mrb[0].mxu0 %v5920
        %v6577 = vpop.f32.mrb[0].mxu0
        %v6578 = vadd.f32 %v6481, %v6577
        %v6579 = vpop.f32.mrb[0].mxu0
        %v6580 = vpop.f32.mrb[0].mxu0
        %v6581 = vadd.f32 %v6484, %v6580
        %v6582 = vpop.f32.mrb[0].mxu0
        %6583 = vdwg.mxu0
        %6584 = vmatprep.subr.bf16.mxu0 %v5983
        %6585 = vmatpush1.bf16.xpose.msra.mxu0 %v5982
        %6586 = vmatprep.subr.bf16.mxu0 0
        %6587 = vmatpush1.bf16.xpose.msra.mxu0 0
        %6588 = vmatprep.subr.bf16.mxu0 0
        %6589 = vmatpush1.bf16.xpose.msra.mxu0 0
        %6590 = vmatprep.subr.bf16.mxu0 0
        %6591 = vmatpush1.bf16.xpose.msra.mxu0 0
        %6592 = vmatprep.subr.bf16.mxu0 0
        %6593 = vmatpush1.bf16.xpose.msra.mxu0 0
        %6594 = vmatprep.subr.bf16.mxu0 0
        %6595 = vmatpush1.bf16.xpose.msra.mxu0 0
        %6596 = vmatprep.subr.bf16.mxu0 0
        %6597 = vmatpush1.bf16.xpose.msra.mxu0 0
        %6598 = vmatprep.subr.bf16.mxu0 0
        %6599 = vmatpush1.bf16.xpose.msra.mxu0 0
        %6600 = vmatprep.subr.bf16.mxu0 0
        %6601 = vmatpush1.bf16.xpose.msra.mxu0 0
        %6602 = vmatprep.subr.bf16.mxu0 0
        %6603 = vmatpush1.bf16.xpose.msra.mxu0 0
        %6604 = vmatprep.subr.bf16.mxu0 0
        %6605 = vmatpush1.bf16.xpose.msra.mxu0 0
        %6606 = vmatprep.subr.bf16.mxu0 0
        %6607 = vmatpush1.bf16.xpose.msra.mxu0 0
        %6608 = vmatprep.subr.bf16.mxu0 0
        %6609 = vmatpush1.bf16.xpose.msra.mxu0 0
        %6610 = vmatprep.subr.bf16.mxu0 0
        %6611 = vmatpush1.bf16.xpose.msra.mxu0 0
        %6612 = vmatprep.subr.bf16.mxu0 0
        %6613 = vmatpush1.bf16.xpose.msra.mxu0 0
        %6614 = vmatprep.subr.bf16.mxu0 0
        %6615 = vmatpush1.bf16.xpose.msra.mxu0 0
        %6616 = vmatprep.mubr.bf16.mxu0 %v5811
        %6617 = vmatmul.mubr.bf16.gmra.mrb[0].mxu0 %v5810
        %v6618 = vpop.f32.mrb[0].mxu0
        %v6619 = vadd.f32 %v6522, %v6618
        %v6620 = vpop.f32.mrb[0].mxu0
        %v6621 = vpop.f32.mrb[0].mxu0
        %v6622 = vadd.f32 %v6525, %v6621
        %v6623 = vpop.f32.mrb[0].mxu0
        %6624 = vmatprep.mubr.bf16.mxu0 %v5827
        %6625 = vmatmul.mubr.bf16.gmra.mrb[0].mxu0 %v5826
        %v6626 = vpop.f32.mrb[0].mxu0
        %v6627 = vadd.f32 %v6530, %v6626
        %v6628 = vpop.f32.mrb[0].mxu0
        %v6629 = vpop.f32.mrb[0].mxu0
        %v6630 = vadd.f32 %v6533, %v6629
        %v6631 = vpop.f32.mrb[0].mxu0
        %6632 = vmatprep.mubr.bf16.mxu0 %v5843
        %6633 = vmatmul.mubr.bf16.gmra.mrb[0].mxu0 %v5842
        %v6634 = vpop.f32.mrb[0].mxu0
        %v6635 = vadd.f32 %v6538, %v6634
        %v6636 = vpop.f32.mrb[0].mxu0
        %v6637 = vpop.f32.mrb[0].mxu0
        %v6638 = vadd.f32 %v6541, %v6637
        %v6639 = vpop.f32.mrb[0].mxu0
        %6640 = vmatprep.mubr.bf16.mxu0 %v5859
        %6641 = vmatmul.mubr.bf16.gmra.mrb[0].mxu0 %v5858
        %v6642 = vpop.f32.mrb[0].mxu0
        %v6643 = vadd.f32 %v6546, %v6642
        %v6644 = vpop.f32.mrb[0].mxu0
        %v6645 = vpop.f32.mrb[0].mxu0
        %v6646 = vadd.f32 %v6549, %v6645
        %v6647 = vpop.f32.mrb[0].mxu0
        %6648 = vmatprep.mubr.bf16.mxu0 %v5875
        %6649 = vmatmul.mubr.bf16.gmra.mrb[0].mxu0 %v5874
        %v6650 = vpop.f32.mrb[0].mxu0
        %v6651 = vadd.f32 %v6554, %v6650
        %v6652 = vpop.f32.mrb[0].mxu0
        %v6653 = vpop.f32.mrb[0].mxu0
        %v6654 = vadd.f32 %v6557, %v6653
        %v6655 = vpop.f32.mrb[0].mxu0
        %6656 = vmatprep.mubr.bf16.mxu0 %v5891
        %6657 = vmatmul.mubr.bf16.gmra.mrb[0].mxu0 %v5890
        %v6658 = vpop.f32.mrb[0].mxu0
        %v6659 = vadd.f32 %v6562, %v6658
        %v6660 = vpop.f32.mrb[0].mxu0
        %v6661 = vpop.f32.mrb[0].mxu0
        %v6662 = vadd.f32 %v6565, %v6661
        %v6663 = vpop.f32.mrb[0].mxu0
        %6664 = vmatprep.mubr.bf16.mxu0 %v5907
        %6665 = vmatmul.mubr.bf16.gmra.mrb[0].mxu0 %v5906
        %v6666 = vpop.f32.mrb[0].mxu0
        %v6667 = vadd.f32 %v6570, %v6666
        %v6668 = vpop.f32.mrb[0].mxu0
        %v6669 = vpop.f32.mrb[0].mxu0
        %v6670 = vadd.f32 %v6573, %v6669
        %v6671 = vpop.f32.mrb[0].mxu0
        %6672 = vmatprep.mubr.bf16.mxu0 %v5923
        %6673 = vmatmul.mubr.bf16.gmra.mrb[0].mxu0 %v5922
        %v6674 = vpop.f32.mrb[0].mxu0
        %v6675 = vadd.f32 %v6578, %v6674
        %v6676 = vpop.f32.mrb[0].mxu0
        %v6677 = vpop.f32.mrb[0].mxu0
        %v6678 = vadd.f32 %v6581, %v6677
        %v6679 = vpop.f32.mrb[0].mxu0
        %6680 = vdwg.mxu0
        %6681 = vmatprep.subr.bf16.mxu0 %v5985
        %6682 = vmatpush1.bf16.xpose.msra.mxu0 %v5984
        %6683 = vmatprep.subr.bf16.mxu0 0
        %6684 = vmatpush1.bf16.xpose.msra.mxu0 0
        %6685 = vmatprep.subr.bf16.mxu0 0
        %6686 = vmatpush1.bf16.xpose.msra.mxu0 0
        %6687 = vmatprep.subr.bf16.mxu0 0
        %6688 = vmatpush1.bf16.xpose.msra.mxu0 0
        %6689 = vmatprep.subr.bf16.mxu0 0
        %6690 = vmatpush1.bf16.xpose.msra.mxu0 0
        %6691 = vmatprep.subr.bf16.mxu0 0
        %6692 = vmatpush1.bf16.xpose.msra.mxu0 0
        %6693 = vmatprep.subr.bf16.mxu0 0
        %6694 = vmatpush1.bf16.xpose.msra.mxu0 0
        %6695 = vmatprep.subr.bf16.mxu0 0
        %6696 = vmatpush1.bf16.xpose.msra.mxu0 0
        %6697 = vmatprep.subr.bf16.mxu0 0
        %6698 = vmatpush1.bf16.xpose.msra.mxu0 0
        %6699 = vmatprep.subr.bf16.mxu0 0
        %6700 = vmatpush1.bf16.xpose.msra.mxu0 0
        %6701 = vmatprep.subr.bf16.mxu0 0
        %6702 = vmatpush1.bf16.xpose.msra.mxu0 0
        %6703 = vmatprep.subr.bf16.mxu0 0
        %6704 = vmatpush1.bf16.xpose.msra.mxu0 0
        %6705 = vmatprep.subr.bf16.mxu0 0
        %6706 = vmatpush1.bf16.xpose.msra.mxu0 0
        %6707 = vmatprep.subr.bf16.mxu0 0
        %6708 = vmatpush1.bf16.xpose.msra.mxu0 0
        %6709 = vmatprep.subr.bf16.mxu0 0
        %6710 = vmatpush1.bf16.xpose.msra.mxu0 0
        %6711 = vmatprep.subr.bf16.mxu0 0
        %6712 = vmatpush1.bf16.xpose.msra.mxu0 0
        %6713 = vmatprep.mubr.bf16.mxu0 %v5813
        %6714 = vmatmul.mubr.bf16.gmra.mrb[0].mxu0 %v5812
        %v6715 = vpop.f32.mrb[0].mxu0
        %v6716 = vadd.f32 %v6619, %v6715
        %v6717 = vpop.f32.mrb[0].mxu0
        %v6718 = vpop.f32.mrb[0].mxu0
        %v6719 = vadd.f32 %v6622, %v6718
        %v6720 = vpop.f32.mrb[0].mxu0
        %6721 = vmatprep.mubr.bf16.mxu0 %v5829
        %6722 = vmatmul.mubr.bf16.gmra.mrb[0].mxu0 %v5828
        %v6723 = vpop.f32.mrb[0].mxu0
        %v6724 = vadd.f32 %v6627, %v6723
        %v6725 = vpop.f32.mrb[0].mxu0
        %v6726 = vpop.f32.mrb[0].mxu0
        %v6727 = vadd.f32 %v6630, %v6726
        %v6728 = vpop.f32.mrb[0].mxu0
        %6729 = vmatprep.mubr.bf16.mxu0 %v5845
        %6730 = vmatmul.mubr.bf16.gmra.mrb[0].mxu0 %v5844
        %v6731 = vpop.f32.mrb[0].mxu0
        %v6732 = vadd.f32 %v6635, %v6731
        %v6733 = vpop.f32.mrb[0].mxu0
        %v6734 = vpop.f32.mrb[0].mxu0
        %v6735 = vadd.f32 %v6638, %v6734
        %v6736 = vpop.f32.mrb[0].mxu0
        %6737 = vmatprep.mubr.bf16.mxu0 %v5861
        %6738 = vmatmul.mubr.bf16.gmra.mrb[0].mxu0 %v5860
        %v6739 = vpop.f32.mrb[0].mxu0
        %v6740 = vadd.f32 %v6643, %v6739
        %v6741 = vpop.f32.mrb[0].mxu0
        %v6742 = vpop.f32.mrb[0].mxu0
        %v6743 = vadd.f32 %v6646, %v6742
        %v6744 = vpop.f32.mrb[0].mxu0
        %6745 = vmatprep.mubr.bf16.mxu0 %v5877
        %6746 = vmatmul.mubr.bf16.gmra.mrb[0].mxu0 %v5876
        %v6747 = vpop.f32.mrb[0].mxu0
        %v6748 = vadd.f32 %v6651, %v6747
        %v6749 = vpop.f32.mrb[0].mxu0
        %v6750 = vpop.f32.mrb[0].mxu0
        %v6751 = vadd.f32 %v6654, %v6750
        %v6752 = vpop.f32.mrb[0].mxu0
        %6753 = vmatprep.mubr.bf16.mxu0 %v5893
        %6754 = vmatmul.mubr.bf16.gmra.mrb[0].mxu0 %v5892
        %v6755 = vpop.f32.mrb[0].mxu0
        %v6756 = vadd.f32 %v6659, %v6755
        %v6757 = vpop.f32.mrb[0].mxu0
        %v6758 = vpop.f32.mrb[0].mxu0
        %v6759 = vadd.f32 %v6662, %v6758
        %v6760 = vpop.f32.mrb[0].mxu0
        %6761 = vmatprep.mubr.bf16.mxu0 %v5909
        %6762 = vmatmul.mubr.bf16.gmra.mrb[0].mxu0 %v5908
        %v6763 = vpop.f32.mrb[0].mxu0
        %v6764 = vadd.f32 %v6667, %v6763
        %v6765 = vpop.f32.mrb[0].mxu0
        %v6766 = vpop.f32.mrb[0].mxu0
        %v6767 = vadd.f32 %v6670, %v6766
        %v6768 = vpop.f32.mrb[0].mxu0
        %6769 = vmatprep.mubr.bf16.mxu0 %v5925
        %6770 = vmatmul.mubr.bf16.gmra.mrb[0].mxu0 %v5924
        %v6771 = vpop.f32.mrb[0].mxu0
        %v6772 = vadd.f32 %v6675, %v6771
        %v6773 = vpop.f32.mrb[0].mxu0
        %v6774 = vpop.f32.mrb[0].mxu0
        %v6775 = vadd.f32 %v6678, %v6774
        %v6776 = vpop.f32.mrb[0].mxu0
        %6777 = vdwg.mxu0
        %v6778 = vadd.f32 %v4437, %v6716
        %v6779 = vadd.f32 %v4438, %v6719
        %v6780 = vadd.f32 %v4439, %v6724
        %v6781 = vadd.f32 %v4440, %v6727
        %v6782 = vadd.f32 %v4441, %v6732
        %v6783 = vadd.f32 %v4442, %v6735
        %v6784 = vadd.f32 %v4443, %v6740
        %v6785 = vadd.f32 %v4444, %v6743
        %v6786 = vadd.f32 %v4445, %v6748
        %v6787 = vadd.f32 %v4446, %v6751
        %v6788 = vadd.f32 %v4447, %v6756
        %v6789 = vadd.f32 %v4448, %v6759
        %v6790 = vadd.f32 %v4449, %v6764
        %v6791 = vadd.f32 %v4450, %v6767
        %v6792 = vadd.f32 %v4451, %v6772
        %v6793 = vadd.f32 %v4452, %v6775
        %v6794 = vsel %vm4203, %v6778, 0.0
        %6795 = vadd.xlane.f32.xlu0 %v6794
        %v6796 = vpop.xlane.xlu0 %6795
        %v6797 = vsel %vm4203, %v6779, 0.0
        %6798 = vadd.xlane.f32.xlu0 %v6797
        %v6799 = vpop.xlane.xlu0 %6798
        %v6800 = vsel %vm4203, %v6780, 0.0
        %6801 = vadd.xlane.f32.xlu0 %v6800
        %v6802 = vpop.xlane.xlu0 %6801
        %v6803 = vsel %vm4203, %v6781, 0.0
        %6804 = vadd.xlane.f32.xlu0 %v6803
        %v6805 = vpop.xlane.xlu0 %6804
        %v6806 = vsel %vm4203, %v6782, 0.0
        %6807 = vadd.xlane.f32.xlu0 %v6806
        %v6808 = vpop.xlane.xlu0 %6807
        %v6809 = vsel %vm4203, %v6783, 0.0
        %6810 = vadd.xlane.f32.xlu0 %v6809
        %v6811 = vpop.xlane.xlu0 %6810
        %v6812 = vsel %vm4203, %v6784, 0.0
        %6813 = vadd.xlane.f32.xlu0 %v6812
        %v6814 = vpop.xlane.xlu0 %6813
        %v6815 = vsel %vm4203, %v6785, 0.0
        %6816 = vadd.xlane.f32.xlu0 %v6815
        %v6817 = vpop.xlane.xlu0 %6816
        %v6818 = vsel %vm4203, %v6786, 0.0
        %6819 = vadd.xlane.f32.xlu0 %v6818
        %v6820 = vpop.xlane.xlu0 %6819
        %v6821 = vsel %vm4203, %v6787, 0.0
        %6822 = vadd.xlane.f32.xlu0 %v6821
        %v6823 = vpop.xlane.xlu0 %6822
        %v6824 = vsel %vm4203, %v6788, 0.0
        %6825 = vadd.xlane.f32.xlu0 %v6824
        %v6826 = vpop.xlane.xlu0 %6825
        %v6827 = vsel %vm4203, %v6789, 0.0
        %6828 = vadd.xlane.f32.xlu0 %v6827
        %v6829 = vpop.xlane.xlu0 %6828
        %v6830 = vsel %vm4203, %v6790, 0.0
        %6831 = vadd.xlane.f32.xlu0 %v6830
        %v6832 = vpop.xlane.xlu0 %6831
        %v6833 = vsel %vm4203, %v6791, 0.0
        %6834 = vadd.xlane.f32.xlu0 %v6833
        %v6835 = vpop.xlane.xlu0 %6834
        %v6836 = vsel %vm4203, %v6792, 0.0
        %6837 = vadd.xlane.f32.xlu0 %v6836
        %v6838 = vpop.xlane.xlu0 %6837
        %v6839 = vsel %vm4203, %v6793, 0.0
        %6840 = vadd.xlane.f32.xlu0 %v6839
        %v6841 = vpop.xlane.xlu0 %6840
        %v6842 = vmul.f32 %v6796, %v4252
        %v6843 = vmul.f32 %v6799, %v4252
        %v6844 = vmul.f32 %v6802, %v4252
        %v6845 = vmul.f32 %v6805, %v4252
        %v6846 = vmul.f32 %v6808, %v4252
        %v6847 = vmul.f32 %v6811, %v4252
        %v6848 = vmul.f32 %v6814, %v4252
        %v6849 = vmul.f32 %v6817, %v4252
        %v6850 = vmul.f32 %v6820, %v4252
        %v6851 = vmul.f32 %v6823, %v4252
        %v6852 = vmul.f32 %v6826, %v4252
        %v6853 = vmul.f32 %v6829, %v4252
        %v6854 = vmul.f32 %v6832, %v4252
        %v6855 = vmul.f32 %v6835, %v4252
        %v6856 = vmul.f32 %v6838, %v4252
        %v6857 = vmul.f32 %v6841, %v4252
        %v6858 = vsub.f32 %v6778, %v6842
        %v6859 = vsub.f32 %v6779, %v6843
        %v6860 = vsub.f32 %v6780, %v6844
        %v6861 = vsub.f32 %v6781, %v6845
        %v6862 = vsub.f32 %v6782, %v6846
        %v6863 = vsub.f32 %v6783, %v6847
        %v6864 = vsub.f32 %v6784, %v6848
        %v6865 = vsub.f32 %v6785, %v6849
        %v6866 = vsub.f32 %v6786, %v6850
        %v6867 = vsub.f32 %v6787, %v6851
        %v6868 = vsub.f32 %v6788, %v6852
        %v6869 = vsub.f32 %v6789, %v6853
        %v6870 = vsub.f32 %v6790, %v6854
        %v6871 = vsub.f32 %v6791, %v6855
        %v6872 = vsub.f32 %v6792, %v6856
        %v6873 = vsub.f32 %v6793, %v6857
        %v6874 = vmul.f32 %v6858, %v6858
        %v6875 = vmul.f32 %v6859, %v6859
        %v6876 = vmul.f32 %v6860, %v6860
        %v6877 = vmul.f32 %v6861, %v6861
        %v6878 = vmul.f32 %v6862, %v6862
        %v6879 = vmul.f32 %v6863, %v6863
        %v6880 = vmul.f32 %v6864, %v6864
        %v6881 = vmul.f32 %v6865, %v6865
        %v6882 = vmul.f32 %v6866, %v6866
        %v6883 = vmul.f32 %v6867, %v6867
        %v6884 = vmul.f32 %v6868, %v6868
        %v6885 = vmul.f32 %v6869, %v6869
        %v6886 = vmul.f32 %v6870, %v6870
        %v6887 = vmul.f32 %v6871, %v6871
        %v6888 = vmul.f32 %v6872, %v6872
        %v6889 = vmul.f32 %v6873, %v6873
        %v6890 = vsel %vm4203, %v6874, 0.0
        %6891 = vadd.xlane.f32.xlu0 %v6890
        %v6892 = vpop.xlane.xlu0 %6891
        %v6893 = vsel %vm4203, %v6875, 0.0
        %6894 = vadd.xlane.f32.xlu0 %v6893
        %v6895 = vpop.xlane.xlu0 %6894
        %v6896 = vsel %vm4203, %v6876, 0.0
        %6897 = vadd.xlane.f32.xlu0 %v6896
        %v6898 = vpop.xlane.xlu0 %6897
        %v6899 = vsel %vm4203, %v6877, 0.0
        %6900 = vadd.xlane.f32.xlu0 %v6899
        %v6901 = vpop.xlane.xlu0 %6900
        %v6902 = vsel %vm4203, %v6878, 0.0
        %6903 = vadd.xlane.f32.xlu0 %v6902
        %v6904 = vpop.xlane.xlu0 %6903
        %v6905 = vsel %vm4203, %v6879, 0.0
        %6906 = vadd.xlane.f32.xlu0 %v6905
        %v6907 = vpop.xlane.xlu0 %6906
        %v6908 = vsel %vm4203, %v6880, 0.0
        %6909 = vadd.xlane.f32.xlu0 %v6908
        %v6910 = vpop.xlane.xlu0 %6909
        %v6911 = vsel %vm4203, %v6881, 0.0
        %6912 = vadd.xlane.f32.xlu0 %v6911
        %v6913 = vpop.xlane.xlu0 %6912
        %v6914 = vsel %vm4203, %v6882, 0.0
        %6915 = vadd.xlane.f32.xlu0 %v6914
        %v6916 = vpop.xlane.xlu0 %6915
        %v6917 = vsel %vm4203, %v6883, 0.0
        %6918 = vadd.xlane.f32.xlu0 %v6917
        %v6919 = vpop.xlane.xlu0 %6918
        %v6920 = vsel %vm4203, %v6884, 0.0
        %6921 = vadd.xlane.f32.xlu0 %v6920
        %v6922 = vpop.xlane.xlu0 %6921
        %v6923 = vsel %vm4203, %v6885, 0.0
        %6924 = vadd.xlane.f32.xlu0 %v6923
        %v6925 = vpop.xlane.xlu0 %6924
        %v6926 = vsel %vm4203, %v6886, 0.0
        %6927 = vadd.xlane.f32.xlu0 %v6926
        %v6928 = vpop.xlane.xlu0 %6927
        %v6929 = vsel %vm4203, %v6887, 0.0
        %6930 = vadd.xlane.f32.xlu0 %v6929
        %v6931 = vpop.xlane.xlu0 %6930
        %v6932 = vsel %vm4203, %v6888, 0.0
        %6933 = vadd.xlane.f32.xlu0 %v6932
        %v6934 = vpop.xlane.xlu0 %6933
        %v6935 = vsel %vm4203, %v6889, 0.0
        %6936 = vadd.xlane.f32.xlu0 %v6935
        %v6937 = vpop.xlane.xlu0 %6936
        %v6938 = vmul.f32 %v6892, %v4252
        %v6939 = vmul.f32 %v6895, %v4252
        %v6940 = vmul.f32 %v6898, %v4252
        %v6941 = vmul.f32 %v6901, %v4252
        %v6942 = vmul.f32 %v6904, %v4252
        %v6943 = vmul.f32 %v6907, %v4252
        %v6944 = vmul.f32 %v6910, %v4252
        %v6945 = vmul.f32 %v6913, %v4252
        %v6946 = vmul.f32 %v6916, %v4252
        %v6947 = vmul.f32 %v6919, %v4252
        %v6948 = vmul.f32 %v6922, %v4252
        %v6949 = vmul.f32 %v6925, %v4252
        %v6950 = vmul.f32 %v6928, %v4252
        %v6951 = vmul.f32 %v6931, %v4252
        %v6952 = vmul.f32 %v6934, %v4252
        %v6953 = vmul.f32 %v6937, %v4252
        %v6954 = vadd.f32 %v6938, 1e-05
        %v6955 = vadd.f32 %v6939, 1e-05
        %v6956 = vadd.f32 %v6940, 1e-05
        %v6957 = vadd.f32 %v6941, 1e-05
        %v6958 = vadd.f32 %v6942, 1e-05
        %v6959 = vadd.f32 %v6943, 1e-05
        %v6960 = vadd.f32 %v6944, 1e-05
        %v6961 = vadd.f32 %v6945, 1e-05
        %v6962 = vadd.f32 %v6946, 1e-05
        %v6963 = vadd.f32 %v6947, 1e-05
        %v6964 = vadd.f32 %v6948, 1e-05
        %v6965 = vadd.f32 %v6949, 1e-05
        %v6966 = vadd.f32 %v6950, 1e-05
        %v6967 = vadd.f32 %v6951, 1e-05
        %v6968 = vadd.f32 %v6952, 1e-05
        %v6969 = vadd.f32 %v6953, 1e-05
        %v6970 = vrsqrt.pop %v6954
        %v6971 = vrsqrt.pop %v6955
        %v6972 = vrsqrt.pop %v6956
        %v6973 = vrsqrt.pop %v6957
        %v6974 = vrsqrt.pop %v6958
        %v6975 = vrsqrt.pop %v6959
        %v6976 = vrsqrt.pop %v6960
        %v6977 = vrsqrt.pop %v6961
        %v6978 = vrsqrt.pop %v6962
        %v6979 = vrsqrt.pop %v6963
        %v6980 = vrsqrt.pop %v6964
        %v6981 = vrsqrt.pop %v6965
        %v6982 = vrsqrt.pop %v6966
        %v6983 = vrsqrt.pop %v6967
        %v6984 = vrsqrt.pop %v6968
        %v6985 = vrsqrt.pop %v6969
        %v6986 = vmul.f32 %v6858, %v6970
        %v6987 = vmul.f32 %v6859, %v6971
        %v6988 = vmul.f32 %v6860, %v6972
        %v6989 = vmul.f32 %v6861, %v6973
        %v6990 = vmul.f32 %v6862, %v6974
        %v6991 = vmul.f32 %v6863, %v6975
        %v6992 = vmul.f32 %v6864, %v6976
        %v6993 = vmul.f32 %v6865, %v6977
        %v6994 = vmul.f32 %v6866, %v6978
        %v6995 = vmul.f32 %v6867, %v6979
        %v6996 = vmul.f32 %v6868, %v6980
        %v6997 = vmul.f32 %v6869, %v6981
        %v6998 = vmul.f32 %v6870, %v6982
        %v6999 = vmul.f32 %v6871, %v6983
        %v7000 = vmul.f32 %v6872, %v6984
        %v7001 = vmul.f32 %v6873, %v6985
        %v7002 = vlaneseq
        %v7003 = vshrl.u32 %v7002, 7
        %v7004 = vsub.s32 0, %v7003
        %v7005 = vrot.slane %v225, %v7004
        %v7006 = vmul.f32 %v6986, %v7005
        %v7007 = vmul.f32 %v6987, %v7005
        %v7008 = vmul.f32 %v6988, %v7005
        %v7009 = vmul.f32 %v6989, %v7005
        %v7010 = vmul.f32 %v6990, %v7005
        %v7011 = vmul.f32 %v6991, %v7005
        %v7012 = vmul.f32 %v6992, %v7005
        %v7013 = vmul.f32 %v6993, %v7005
        %v7014 = vmul.f32 %v6994, %v7005
        %v7015 = vmul.f32 %v6995, %v7005
        %v7016 = vmul.f32 %v6996, %v7005
        %v7017 = vmul.f32 %v6997, %v7005
        %v7018 = vmul.f32 %v6998, %v7005
        %v7019 = vmul.f32 %v6999, %v7005
        %v7020 = vmul.f32 %v7000, %v7005
        %v7021 = vmul.f32 %v7001, %v7005
        %v7022 = vlaneseq
        %v7023 = vshrl.u32 %v7022, 7
        %v7024 = vsub.s32 0, %v7023
        %v7025 = vrot.slane %v226, %v7024
        %v7026 = vadd.f32 %v7006, %v7025
        %v7027 = vadd.f32 %v7007, %v7025
        %v7028 = vadd.f32 %v7008, %v7025
        %v7029 = vadd.f32 %v7009, %v7025
        %v7030 = vadd.f32 %v7010, %v7025
        %v7031 = vadd.f32 %v7011, %v7025
        %v7032 = vadd.f32 %v7012, %v7025
        %v7033 = vadd.f32 %v7013, %v7025
        %v7034 = vadd.f32 %v7014, %v7025
        %v7035 = vadd.f32 %v7015, %v7025
        %v7036 = vadd.f32 %v7016, %v7025
        %v7037 = vadd.f32 %v7017, %v7025
        %v7038 = vadd.f32 %v7018, %v7025
        %v7039 = vadd.f32 %v7019, %v7025
        %v7040 = vadd.f32 %v7020, %v7025
        %v7041 = vadd.f32 %v7021, %v7025
        %7043 = vset.pattern.permute.xlu0 0
        %7044 = vperm.xlu0 %7043, %v7026
        %v7045 = vpop.permute.xlu0 %7044
        %7048 = vset.pattern.permute.xlu0 0
        %7049 = vperm.xlu0 %7048, %v7027
        %v7050 = vpop.permute.xlu0 %7049
        %7053 = vset.pattern.permute.xlu0 0
        %7054 = vperm.xlu0 %7053, %v7028
        %v7055 = vpop.permute.xlu0 %7054
        %7058 = vset.pattern.permute.xlu0 0
        %7059 = vperm.xlu0 %7058, %v7029
        %v7060 = vpop.permute.xlu0 %7059
        %7063 = vset.pattern.permute.xlu0 0
        %7064 = vperm.xlu0 %7063, %v7030
        %v7065 = vpop.permute.xlu0 %7064
        %7068 = vset.pattern.permute.xlu0 0
        %7069 = vperm.xlu0 %7068, %v7031
        %v7070 = vpop.permute.xlu0 %7069
        %7073 = vset.pattern.permute.xlu0 0
        %7074 = vperm.xlu0 %7073, %v7032
        %v7075 = vpop.permute.xlu0 %7074
        %7078 = vset.pattern.permute.xlu0 0
        %7079 = vperm.xlu0 %7078, %v7033
        %v7080 = vpop.permute.xlu0 %7079
        %7083 = vset.pattern.permute.xlu0 0
        %7084 = vperm.xlu0 %7083, %v7034
        %v7085 = vpop.permute.xlu0 %7084
        %7088 = vset.pattern.permute.xlu0 0
        %7089 = vperm.xlu0 %7088, %v7035
        %v7090 = vpop.permute.xlu0 %7089
        %7093 = vset.pattern.permute.xlu0 0
        %7094 = vperm.xlu0 %7093, %v7036
        %v7095 = vpop.permute.xlu0 %7094
        %7098 = vset.pattern.permute.xlu0 0
        %7099 = vperm.xlu0 %7098, %v7037
        %v7100 = vpop.permute.xlu0 %7099
        %7103 = vset.pattern.permute.xlu0 0
        %7104 = vperm.xlu0 %7103, %v7038
        %v7105 = vpop.permute.xlu0 %7104
        %7108 = vset.pattern.permute.xlu0 0
        %7109 = vperm.xlu0 %7108, %v7039
        %v7110 = vpop.permute.xlu0 %7109
        %7113 = vset.pattern.permute.xlu0 0
        %7114 = vperm.xlu0 %7113, %v7040
        %v7115 = vpop.permute.xlu0 %7114
        %7118 = vset.pattern.permute.xlu0 0
        %7119 = vperm.xlu0 %7118, %v7041
        %v7120 = vpop.permute.xlu0 %7119
        %v7122 = vmul.f32 %v7045, %v3870
        %v7123 = vmul.f32 %v7050, %v3870
        %v7124 = vmul.f32 %v7055, %v3870
        %v7125 = vmul.f32 %v7060, %v3870
        %v7126 = vmul.f32 %v7065, %v3870
        %v7127 = vmul.f32 %v7070, %v3870
        %v7128 = vmul.f32 %v7075, %v3870
        %v7129 = vmul.f32 %v7080, %v3870
        %v7130 = vmul.f32 %v7085, %v3870
        %v7131 = vmul.f32 %v7090, %v3870
        %v7132 = vmul.f32 %v7095, %v3870
        %v7133 = vmul.f32 %v7100, %v3870
        %v7134 = vmul.f32 %v7105, %v3870
        %v7135 = vmul.f32 %v7110, %v3870
        %v7136 = vmul.f32 %v7115, %v3870
        %v7137 = vmul.f32 %v7120, %v3870
        %v7138 = vadd.f32 %v3786, %v7122
        %v7139 = vadd.f32 %v3786, %v7123
        %v7140 = vadd.f32 %v3786, %v7124
        %v7141 = vadd.f32 %v3786, %v7125
        %v7142 = vadd.f32 %v3786, %v7126
        %v7143 = vadd.f32 %v3786, %v7127
        %v7144 = vadd.f32 %v3786, %v7128
        %v7145 = vadd.f32 %v3786, %v7129
        %v7146 = vadd.f32 %v3786, %v7130
        %v7147 = vadd.f32 %v3786, %v7131
        %v7148 = vadd.f32 %v3786, %v7132
        %v7149 = vadd.f32 %v3786, %v7133
        %v7150 = vadd.f32 %v3786, %v7134
        %v7151 = vadd.f32 %v3786, %v7135
        %v7152 = vadd.f32 %v3786, %v7136
        %v7153 = vadd.f32 %v3786, %v7137
        %7154 = vset.pattern.permute.xlu0 1
        %7155 = vperm.xlu0 %7154, %v7026
        %v7156 = vpop.permute.xlu0 %7155
        %7158 = vset.pattern.permute.xlu0 1
        %7159 = vperm.xlu0 %7158, %v7027
        %v7160 = vpop.permute.xlu0 %7159
        %7162 = vset.pattern.permute.xlu0 1
        %7163 = vperm.xlu0 %7162, %v7028
        %v7164 = vpop.permute.xlu0 %7163
        %7166 = vset.pattern.permute.xlu0 1
        %7167 = vperm.xlu0 %7166, %v7029
        %v7168 = vpop.permute.xlu0 %7167
        %7170 = vset.pattern.permute.xlu0 1
        %7171 = vperm.xlu0 %7170, %v7030
        %v7172 = vpop.permute.xlu0 %7171
        %7174 = vset.pattern.permute.xlu0 1
        %7175 = vperm.xlu0 %7174, %v7031
        %v7176 = vpop.permute.xlu0 %7175
        %7178 = vset.pattern.permute.xlu0 1
        %7179 = vperm.xlu0 %7178, %v7032
        %v7180 = vpop.permute.xlu0 %7179
        %7182 = vset.pattern.permute.xlu0 1
        %7183 = vperm.xlu0 %7182, %v7033
        %v7184 = vpop.permute.xlu0 %7183
        %7186 = vset.pattern.permute.xlu0 1
        %7187 = vperm.xlu0 %7186, %v7034
        %v7188 = vpop.permute.xlu0 %7187
        %7190 = vset.pattern.permute.xlu0 1
        %7191 = vperm.xlu0 %7190, %v7035
        %v7192 = vpop.permute.xlu0 %7191
        %7194 = vset.pattern.permute.xlu0 1
        %7195 = vperm.xlu0 %7194, %v7036
        %v7196 = vpop.permute.xlu0 %7195
        %7198 = vset.pattern.permute.xlu0 1
        %7199 = vperm.xlu0 %7198, %v7037
        %v7200 = vpop.permute.xlu0 %7199
        %7202 = vset.pattern.permute.xlu0 1
        %7203 = vperm.xlu0 %7202, %v7038
        %v7204 = vpop.permute.xlu0 %7203
        %7206 = vset.pattern.permute.xlu0 1
        %7207 = vperm.xlu0 %7206, %v7039
        %v7208 = vpop.permute.xlu0 %7207
        %7210 = vset.pattern.permute.xlu0 1
        %7211 = vperm.xlu0 %7210, %v7040
        %v7212 = vpop.permute.xlu0 %7211
        %7214 = vset.pattern.permute.xlu0 1
        %7215 = vperm.xlu0 %7214, %v7041
        %v7216 = vpop.permute.xlu0 %7215
        %v7218 = vmul.f32 %v7156, %v3970
        %v7219 = vmul.f32 %v7160, %v3970
        %v7220 = vmul.f32 %v7164, %v3970
        %v7221 = vmul.f32 %v7168, %v3970
        %v7222 = vmul.f32 %v7172, %v3970
        %v7223 = vmul.f32 %v7176, %v3970
        %v7224 = vmul.f32 %v7180, %v3970
        %v7225 = vmul.f32 %v7184, %v3970
        %v7226 = vmul.f32 %v7188, %v3970
        %v7227 = vmul.f32 %v7192, %v3970
        %v7228 = vmul.f32 %v7196, %v3970
        %v7229 = vmul.f32 %v7200, %v3970
        %v7230 = vmul.f32 %v7204, %v3970
        %v7231 = vmul.f32 %v7208, %v3970
        %v7232 = vmul.f32 %v7212, %v3970
        %v7233 = vmul.f32 %v7216, %v3970
        %v7234 = vadd.f32 %v7138, %v7218
        %v7235 = vadd.f32 %v7139, %v7219
        %v7236 = vadd.f32 %v7140, %v7220
        %v7237 = vadd.f32 %v7141, %v7221
        %v7238 = vadd.f32 %v7142, %v7222
        %v7239 = vadd.f32 %v7143, %v7223
        %v7240 = vadd.f32 %v7144, %v7224
        %v7241 = vadd.f32 %v7145, %v7225
        %v7242 = vadd.f32 %v7146, %v7226
        %v7243 = vadd.f32 %v7147, %v7227
        %v7244 = vadd.f32 %v7148, %v7228
        %v7245 = vadd.f32 %v7149, %v7229
        %v7246 = vadd.f32 %v7150, %v7230
        %v7247 = vadd.f32 %v7151, %v7231
        %v7248 = vadd.f32 %v7152, %v7232
        %v7249 = vadd.f32 %v7153, %v7233
        %7250 = vset.pattern.permute.xlu0 2
        %7251 = vperm.xlu0 %7250, %v7026
        %v7252 = vpop.permute.xlu0 %7251
        %7254 = vset.pattern.permute.xlu0 2
        %7255 = vperm.xlu0 %7254, %v7027
        %v7256 = vpop.permute.xlu0 %7255
        %7258 = vset.pattern.permute.xlu0 2
        %7259 = vperm.xlu0 %7258, %v7028
        %v7260 = vpop.permute.xlu0 %7259
        %7262 = vset.pattern.permute.xlu0 2
        %7263 = vperm.xlu0 %7262, %v7029
        %v7264 = vpop.permute.xlu0 %7263
        %7266 = vset.pattern.permute.xlu0 2
        %7267 = vperm.xlu0 %7266, %v7030
        %v7268 = vpop.permute.xlu0 %7267
        %7270 = vset.pattern.permute.xlu0 2
        %7271 = vperm.xlu0 %7270, %v7031
        %v7272 = vpop.permute.xlu0 %7271
        %7274 = vset.pattern.permute.xlu0 2
        %7275 = vperm.xlu0 %7274, %v7032
        %v7276 = vpop.permute.xlu0 %7275
        %7278 = vset.pattern.permute.xlu0 2
        %7279 = vperm.xlu0 %7278, %v7033
        %v7280 = vpop.permute.xlu0 %7279
        %7282 = vset.pattern.permute.xlu0 2
        %7283 = vperm.xlu0 %7282, %v7034
        %v7284 = vpop.permute.xlu0 %7283
        %7286 = vset.pattern.permute.xlu0 2
        %7287 = vperm.xlu0 %7286, %v7035
        %v7288 = vpop.permute.xlu0 %7287
        %7290 = vset.pattern.permute.xlu0 2
        %7291 = vperm.xlu0 %7290, %v7036
        %v7292 = vpop.permute.xlu0 %7291
        %7294 = vset.pattern.permute.xlu0 2
        %7295 = vperm.xlu0 %7294, %v7037
        %v7296 = vpop.permute.xlu0 %7295
        %7298 = vset.pattern.permute.xlu0 2
        %7299 = vperm.xlu0 %7298, %v7038
        %v7300 = vpop.permute.xlu0 %7299
        %7302 = vset.pattern.permute.xlu0 2
        %7303 = vperm.xlu0 %7302, %v7039
        %v7304 = vpop.permute.xlu0 %7303
        %7306 = vset.pattern.permute.xlu0 2
        %7307 = vperm.xlu0 %7306, %v7040
        %v7308 = vpop.permute.xlu0 %7307
        %7310 = vset.pattern.permute.xlu0 2
        %7311 = vperm.xlu0 %7310, %v7041
        %v7312 = vpop.permute.xlu0 %7311
        %v7314 = vmul.f32 %v7252, %v4070
        %v7315 = vmul.f32 %v7256, %v4070
        %v7316 = vmul.f32 %v7260, %v4070
        %v7317 = vmul.f32 %v7264, %v4070
        %v7318 = vmul.f32 %v7268, %v4070
        %v7319 = vmul.f32 %v7272, %v4070
        %v7320 = vmul.f32 %v7276, %v4070
        %v7321 = vmul.f32 %v7280, %v4070
        %v7322 = vmul.f32 %v7284, %v4070
        %v7323 = vmul.f32 %v7288, %v4070
        %v7324 = vmul.f32 %v7292, %v4070
        %v7325 = vmul.f32 %v7296, %v4070
        %v7326 = vmul.f32 %v7300, %v4070
        %v7327 = vmul.f32 %v7304, %v4070
        %v7328 = vmul.f32 %v7308, %v4070
        %v7329 = vmul.f32 %v7312, %v4070
        %v7330 = vadd.f32 %v7234, %v7314
        %v7331 = vadd.f32 %v7235, %v7315
        %v7332 = vadd.f32 %v7236, %v7316
        %v7333 = vadd.f32 %v7237, %v7317
        %v7334 = vadd.f32 %v7238, %v7318
        %v7335 = vadd.f32 %v7239, %v7319
        %v7336 = vadd.f32 %v7240, %v7320
        %v7337 = vadd.f32 %v7241, %v7321
        %v7338 = vadd.f32 %v7242, %v7322
        %v7339 = vadd.f32 %v7243, %v7323
        %v7340 = vadd.f32 %v7244, %v7324
        %v7341 = vadd.f32 %v7245, %v7325
        %v7342 = vadd.f32 %v7246, %v7326
        %v7343 = vadd.f32 %v7247, %v7327
        %v7344 = vadd.f32 %v7248, %v7328
        %v7345 = vadd.f32 %v7249, %v7329
        %7346 = vset.pattern.permute.xlu0 3
        %7347 = vperm.xlu0 %7346, %v7026
        %v7348 = vpop.permute.xlu0 %7347
        %7350 = vset.pattern.permute.xlu0 3
        %7351 = vperm.xlu0 %7350, %v7027
        %v7352 = vpop.permute.xlu0 %7351
        %7354 = vset.pattern.permute.xlu0 3
        %7355 = vperm.xlu0 %7354, %v7028
        %v7356 = vpop.permute.xlu0 %7355
        %7358 = vset.pattern.permute.xlu0 3
        %7359 = vperm.xlu0 %7358, %v7029
        %v7360 = vpop.permute.xlu0 %7359
        %7362 = vset.pattern.permute.xlu0 3
        %7363 = vperm.xlu0 %7362, %v7030
        %v7364 = vpop.permute.xlu0 %7363
        %7366 = vset.pattern.permute.xlu0 3
        %7367 = vperm.xlu0 %7366, %v7031
        %v7368 = vpop.permute.xlu0 %7367
        %7370 = vset.pattern.permute.xlu0 3
        %7371 = vperm.xlu0 %7370, %v7032
        %v7372 = vpop.permute.xlu0 %7371
        %7374 = vset.pattern.permute.xlu0 3
        %7375 = vperm.xlu0 %7374, %v7033
        %v7376 = vpop.permute.xlu0 %7375
        %7378 = vset.pattern.permute.xlu0 3
        %7379 = vperm.xlu0 %7378, %v7034
        %v7380 = vpop.permute.xlu0 %7379
        %7382 = vset.pattern.permute.xlu0 3
        %7383 = vperm.xlu0 %7382, %v7035
        %v7384 = vpop.permute.xlu0 %7383
        %7386 = vset.pattern.permute.xlu0 3
        %7387 = vperm.xlu0 %7386, %v7036
        %v7388 = vpop.permute.xlu0 %7387
        %7390 = vset.pattern.permute.xlu0 3
        %7391 = vperm.xlu0 %7390, %v7037
        %v7392 = vpop.permute.xlu0 %7391
        %7394 = vset.pattern.permute.xlu0 3
        %7395 = vperm.xlu0 %7394, %v7038
        %v7396 = vpop.permute.xlu0 %7395
        %7398 = vset.pattern.permute.xlu0 3
        %7399 = vperm.xlu0 %7398, %v7039
        %v7400 = vpop.permute.xlu0 %7399
        %7402 = vset.pattern.permute.xlu0 3
        %7403 = vperm.xlu0 %7402, %v7040
        %v7404 = vpop.permute.xlu0 %7403
        %7406 = vset.pattern.permute.xlu0 3
        %7407 = vperm.xlu0 %7406, %v7041
        %v7408 = vpop.permute.xlu0 %7407
        %v7410 = vmul.f32 %v7348, %v4170
        %v7411 = vmul.f32 %v7352, %v4170
        %v7412 = vmul.f32 %v7356, %v4170
        %v7413 = vmul.f32 %v7360, %v4170
        %v7414 = vmul.f32 %v7364, %v4170
        %v7415 = vmul.f32 %v7368, %v4170
        %v7416 = vmul.f32 %v7372, %v4170
        %v7417 = vmul.f32 %v7376, %v4170
        %v7418 = vmul.f32 %v7380, %v4170
        %v7419 = vmul.f32 %v7384, %v4170
        %v7420 = vmul.f32 %v7388, %v4170
        %v7421 = vmul.f32 %v7392, %v4170
        %v7422 = vmul.f32 %v7396, %v4170
        %v7423 = vmul.f32 %v7400, %v4170
        %v7424 = vmul.f32 %v7404, %v4170
        %v7425 = vmul.f32 %v7408, %v4170
        %v7426 = vadd.f32 %v7330, %v7410
        %v7427 = vadd.f32 %v7331, %v7411
        %v7428 = vadd.f32 %v7332, %v7412
        %v7429 = vadd.f32 %v7333, %v7413
        %v7430 = vadd.f32 %v7334, %v7414
        %v7431 = vadd.f32 %v7335, %v7415
        %v7432 = vadd.f32 %v7336, %v7416
        %v7433 = vadd.f32 %v7337, %v7417
        %v7434 = vadd.f32 %v7338, %v7418
        %v7435 = vadd.f32 %v7339, %v7419
        %v7436 = vadd.f32 %v7340, %v7420
        %v7437 = vadd.f32 %v7341, %v7421
        %v7438 = vadd.f32 %v7342, %v7422
        %v7439 = vadd.f32 %v7343, %v7423
        %v7440 = vadd.f32 %v7344, %v7424
        %v7441 = vadd.f32 %v7345, %v7425
        %v7442 = vsel %vm4203, %v7426, 0.0
        %7443 = vadd.xlane.f32.xlu0 %v7442
        %v7444 = vpop.xlane.xlu0 %7443
        %v7445 = vsel %vm4203, %v7427, 0.0
        %7446 = vadd.xlane.f32.xlu0 %v7445
        %v7447 = vpop.xlane.xlu0 %7446
        %v7448 = vsel %vm4203, %v7428, 0.0
        %7449 = vadd.xlane.f32.xlu0 %v7448
        %v7450 = vpop.xlane.xlu0 %7449
        %v7451 = vsel %vm4203, %v7429, 0.0
        %7452 = vadd.xlane.f32.xlu0 %v7451
        %v7453 = vpop.xlane.xlu0 %7452
        %v7454 = vsel %vm4203, %v7430, 0.0
        %7455 = vadd.xlane.f32.xlu0 %v7454
        %v7456 = vpop.xlane.xlu0 %7455
        %v7457 = vsel %vm4203, %v7431, 0.0
        %7458 = vadd.xlane.f32.xlu0 %v7457
        %v7459 = vpop.xlane.xlu0 %7458
        %v7460 = vsel %vm4203, %v7432, 0.0
        %7461 = vadd.xlane.f32.xlu0 %v7460
        %v7462 = vpop.xlane.xlu0 %7461
        %v7463 = vsel %vm4203, %v7433, 0.0
        %7464 = vadd.xlane.f32.xlu0 %v7463
        %v7465 = vpop.xlane.xlu0 %7464
        %v7466 = vsel %vm4203, %v7434, 0.0
        %7467 = vadd.xlane.f32.xlu0 %v7466
        %v7468 = vpop.xlane.xlu0 %7467
        %v7469 = vsel %vm4203, %v7435, 0.0
        %7470 = vadd.xlane.f32.xlu0 %v7469
        %v7471 = vpop.xlane.xlu0 %7470
        %v7472 = vsel %vm4203, %v7436, 0.0
        %7473 = vadd.xlane.f32.xlu0 %v7472
        %v7474 = vpop.xlane.xlu0 %7473
        %v7475 = vsel %vm4203, %v7437, 0.0
        %7476 = vadd.xlane.f32.xlu0 %v7475
        %v7477 = vpop.xlane.xlu0 %7476
        %v7478 = vsel %vm4203, %v7438, 0.0
        %7479 = vadd.xlane.f32.xlu0 %v7478
        %v7480 = vpop.xlane.xlu0 %7479
        %v7481 = vsel %vm4203, %v7439, 0.0
        %7482 = vadd.xlane.f32.xlu0 %v7481
        %v7483 = vpop.xlane.xlu0 %7482
        %v7484 = vsel %vm4203, %v7440, 0.0
        %7485 = vadd.xlane.f32.xlu0 %v7484
        %v7486 = vpop.xlane.xlu0 %7485
        %v7487 = vsel %vm4203, %v7441, 0.0
        %7488 = vadd.xlane.f32.xlu0 %v7487
        %v7489 = vpop.xlane.xlu0 %7488
        %v7490 = vmul.f32 %v7444, %v4252
        %v7491 = vmul.f32 %v7447, %v4252
        %v7492 = vmul.f32 %v7450, %v4252
        %v7493 = vmul.f32 %v7453, %v4252
        %v7494 = vmul.f32 %v7456, %v4252
        %v7495 = vmul.f32 %v7459, %v4252
        %v7496 = vmul.f32 %v7462, %v4252
        %v7497 = vmul.f32 %v7465, %v4252
        %v7498 = vmul.f32 %v7468, %v4252
        %v7499 = vmul.f32 %v7471, %v4252
        %v7500 = vmul.f32 %v7474, %v4252
        %v7501 = vmul.f32 %v7477, %v4252
        %v7502 = vmul.f32 %v7480, %v4252
        %v7503 = vmul.f32 %v7483, %v4252
        %v7504 = vmul.f32 %v7486, %v4252
        %v7505 = vmul.f32 %v7489, %v4252
        %v7506 = vsub.f32 %v7426, %v7490
        %v7507 = vsub.f32 %v7427, %v7491
        %v7508 = vsub.f32 %v7428, %v7492
        %v7509 = vsub.f32 %v7429, %v7493
        %v7510 = vsub.f32 %v7430, %v7494
        %v7511 = vsub.f32 %v7431, %v7495
        %v7512 = vsub.f32 %v7432, %v7496
        %v7513 = vsub.f32 %v7433, %v7497
        %v7514 = vsub.f32 %v7434, %v7498
        %v7515 = vsub.f32 %v7435, %v7499
        %v7516 = vsub.f32 %v7436, %v7500
        %v7517 = vsub.f32 %v7437, %v7501
        %v7518 = vsub.f32 %v7438, %v7502
        %v7519 = vsub.f32 %v7439, %v7503
        %v7520 = vsub.f32 %v7440, %v7504
        %v7521 = vsub.f32 %v7441, %v7505
        %v7522 = vmul.f32 %v7506, %v7506
        %v7523 = vmul.f32 %v7507, %v7507
        %v7524 = vmul.f32 %v7508, %v7508
        %v7525 = vmul.f32 %v7509, %v7509
        %v7526 = vmul.f32 %v7510, %v7510
        %v7527 = vmul.f32 %v7511, %v7511
        %v7528 = vmul.f32 %v7512, %v7512
        %v7529 = vmul.f32 %v7513, %v7513
        %v7530 = vmul.f32 %v7514, %v7514
        %v7531 = vmul.f32 %v7515, %v7515
        %v7532 = vmul.f32 %v7516, %v7516
        %v7533 = vmul.f32 %v7517, %v7517
        %v7534 = vmul.f32 %v7518, %v7518
        %v7535 = vmul.f32 %v7519, %v7519
        %v7536 = vmul.f32 %v7520, %v7520
        %v7537 = vmul.f32 %v7521, %v7521
        %v7538 = vsel %vm4203, %v7522, 0.0
        %7539 = vadd.xlane.f32.xlu0 %v7538
        %v7540 = vpop.xlane.xlu0 %7539
        %v7541 = vsel %vm4203, %v7523, 0.0
        %7542 = vadd.xlane.f32.xlu0 %v7541
        %v7543 = vpop.xlane.xlu0 %7542
        %v7544 = vsel %vm4203, %v7524, 0.0
        %7545 = vadd.xlane.f32.xlu0 %v7544
        %v7546 = vpop.xlane.xlu0 %7545
        %v7547 = vsel %vm4203, %v7525, 0.0
        %7548 = vadd.xlane.f32.xlu0 %v7547
        %v7549 = vpop.xlane.xlu0 %7548
        %v7550 = vsel %vm4203, %v7526, 0.0
        %7551 = vadd.xlane.f32.xlu0 %v7550
        %v7552 = vpop.xlane.xlu0 %7551
        %v7553 = vsel %vm4203, %v7527, 0.0
        %7554 = vadd.xlane.f32.xlu0 %v7553
        %v7555 = vpop.xlane.xlu0 %7554
        %v7556 = vsel %vm4203, %v7528, 0.0
        %7557 = vadd.xlane.f32.xlu0 %v7556
        %v7558 = vpop.xlane.xlu0 %7557
        %v7559 = vsel %vm4203, %v7529, 0.0
        %7560 = vadd.xlane.f32.xlu0 %v7559
        %v7561 = vpop.xlane.xlu0 %7560
        %v7562 = vsel %vm4203, %v7530, 0.0
        %7563 = vadd.xlane.f32.xlu0 %v7562
        %v7564 = vpop.xlane.xlu0 %7563
        %v7565 = vsel %vm4203, %v7531, 0.0
        %7566 = vadd.xlane.f32.xlu0 %v7565
        %v7567 = vpop.xlane.xlu0 %7566
        %v7568 = vsel %vm4203, %v7532, 0.0
        %7569 = vadd.xlane.f32.xlu0 %v7568
        %v7570 = vpop.xlane.xlu0 %7569
        %v7571 = vsel %vm4203, %v7533, 0.0
        %7572 = vadd.xlane.f32.xlu0 %v7571
        %v7573 = vpop.xlane.xlu0 %7572
        %v7574 = vsel %vm4203, %v7534, 0.0
        %7575 = vadd.xlane.f32.xlu0 %v7574
        %v7576 = vpop.xlane.xlu0 %7575
        %v7577 = vsel %vm4203, %v7535, 0.0
        %7578 = vadd.xlane.f32.xlu0 %v7577
        %v7579 = vpop.xlane.xlu0 %7578
        %v7580 = vsel %vm4203, %v7536, 0.0
        %7581 = vadd.xlane.f32.xlu0 %v7580
        %v7582 = vpop.xlane.xlu0 %7581
        %v7583 = vsel %vm4203, %v7537, 0.0
        %7584 = vadd.xlane.f32.xlu0 %v7583
        %v7585 = vpop.xlane.xlu0 %7584
        %v7586 = vmul.f32 %v7540, %v4252
        %v7587 = vmul.f32 %v7543, %v4252
        %v7588 = vmul.f32 %v7546, %v4252
        %v7589 = vmul.f32 %v7549, %v4252
        %v7590 = vmul.f32 %v7552, %v4252
        %v7591 = vmul.f32 %v7555, %v4252
        %v7592 = vmul.f32 %v7558, %v4252
        %v7593 = vmul.f32 %v7561, %v4252
        %v7594 = vmul.f32 %v7564, %v4252
        %v7595 = vmul.f32 %v7567, %v4252
        %v7596 = vmul.f32 %v7570, %v4252
        %v7597 = vmul.f32 %v7573, %v4252
        %v7598 = vmul.f32 %v7576, %v4252
        %v7599 = vmul.f32 %v7579, %v4252
        %v7600 = vmul.f32 %v7582, %v4252
        %v7601 = vmul.f32 %v7585, %v4252
        %v7602 = vadd.f32 %v7586, 1e-05
        %v7603 = vadd.f32 %v7587, 1e-05
        %v7604 = vadd.f32 %v7588, 1e-05
        %v7605 = vadd.f32 %v7589, 1e-05
        %v7606 = vadd.f32 %v7590, 1e-05
        %v7607 = vadd.f32 %v7591, 1e-05
        %v7608 = vadd.f32 %v7592, 1e-05
        %v7609 = vadd.f32 %v7593, 1e-05
        %v7610 = vadd.f32 %v7594, 1e-05
        %v7611 = vadd.f32 %v7595, 1e-05
        %v7612 = vadd.f32 %v7596, 1e-05
        %v7613 = vadd.f32 %v7597, 1e-05
        %v7614 = vadd.f32 %v7598, 1e-05
        %v7615 = vadd.f32 %v7599, 1e-05
        %v7616 = vadd.f32 %v7600, 1e-05
        %v7617 = vadd.f32 %v7601, 1e-05
        %v7618 = vrsqrt.pop %v7602
        %v7619 = vrsqrt.pop %v7603
        %v7620 = vrsqrt.pop %v7604
        %v7621 = vrsqrt.pop %v7605
        %v7622 = vrsqrt.pop %v7606
        %v7623 = vrsqrt.pop %v7607
        %v7624 = vrsqrt.pop %v7608
        %v7625 = vrsqrt.pop %v7609
        %v7626 = vrsqrt.pop %v7610
        %v7627 = vrsqrt.pop %v7611
        %v7628 = vrsqrt.pop %v7612
        %v7629 = vrsqrt.pop %v7613
        %v7630 = vrsqrt.pop %v7614
        %v7631 = vrsqrt.pop %v7615
        %v7632 = vrsqrt.pop %v7616
        %v7633 = vrsqrt.pop %v7617
        %v7634 = vmul.f32 %v7506, %v7618
        %v7635 = vmul.f32 %v7507, %v7619
        %v7636 = vmul.f32 %v7508, %v7620
        %v7637 = vmul.f32 %v7509, %v7621
        %v7638 = vmul.f32 %v7510, %v7622
        %v7639 = vmul.f32 %v7511, %v7623
        %v7640 = vmul.f32 %v7512, %v7624
        %v7641 = vmul.f32 %v7513, %v7625
        %v7642 = vmul.f32 %v7514, %v7626
        %v7643 = vmul.f32 %v7515, %v7627
        %v7644 = vmul.f32 %v7516, %v7628
        %v7645 = vmul.f32 %v7517, %v7629
        %v7646 = vmul.f32 %v7518, %v7630
        %v7647 = vmul.f32 %v7519, %v7631
        %v7648 = vmul.f32 %v7520, %v7632
        %v7649 = vmul.f32 %v7521, %v7633
        %v7650 = vmul.f32 %v7634, %v4416
        %v7651 = vmul.f32 %v7635, %v4416
        %v7652 = vmul.f32 %v7636, %v4416
        %v7653 = vmul.f32 %v7637, %v4416
        %v7654 = vmul.f32 %v7638, %v4416
        %v7655 = vmul.f32 %v7639, %v4416
        %v7656 = vmul.f32 %v7640, %v4416
        %v7657 = vmul.f32 %v7641, %v4416
        %v7658 = vmul.f32 %v7642, %v4416
        %v7659 = vmul.f32 %v7643, %v4416
        %v7660 = vmul.f32 %v7644, %v4416
        %v7661 = vmul.f32 %v7645, %v4416
        %v7662 = vmul.f32 %v7646, %v4416
        %v7663 = vmul.f32 %v7647, %v4416
        %v7664 = vmul.f32 %v7648, %v4416
        %v7665 = vmul.f32 %v7649, %v4416
        %v7666 = vadd.f32 %v7650, %v4436
        %v7667 = vadd.f32 %v7651, %v4436
        %v7668 = vadd.f32 %v7652, %v4436
        %v7669 = vadd.f32 %v7653, %v4436
        %v7670 = vadd.f32 %v7654, %v4436
        %v7671 = vadd.f32 %v7655, %v4436
        %v7672 = vadd.f32 %v7656, %v4436
        %v7673 = vadd.f32 %v7657, %v4436
        %v7674 = vadd.f32 %v7658, %v4436
        %v7675 = vadd.f32 %v7659, %v4436
        %v7676 = vadd.f32 %v7660, %v4436
        %v7677 = vadd.f32 %v7661, %v4436
        %v7678 = vadd.f32 %v7662, %v4436
        %v7679 = vadd.f32 %v7663, %v4436
        %v7680 = vadd.f32 %v7664, %v4436
        %v7681 = vadd.f32 %v7665, %v4436
        %v7682 = vpack.c.bf16 %v7667, %v7666
        %v7683 = vpack.c.bf16 %v7669, %v7668
        %v7684 = vpack.c.bf16 %v7671, %v7670
        %v7685 = vpack.c.bf16 %v7673, %v7672
        %v7686 = vpack.c.bf16 %v7675, %v7674
        %v7687 = vpack.c.bf16 %v7677, %v7676
        %v7688 = vpack.c.bf16 %v7679, %v7678
        %v7689 = vpack.c.bf16 %v7681, %v7680
        %v7691 = vsel %vm4203, %v7682, 0
        %v7694 = vsel %vm4203, %v7683, 0
        %v7697 = vsel %vm4203, %v7684, 0
        %v7700 = vsel %vm4203, %v7685, 0
        %v7703 = vsel %vm4203, %v7686, 0
        %v7706 = vsel %vm4203, %v7687, 0
        %v7709 = vsel %vm4203, %v7688, 0
        %v7712 = vsel %vm4203, %v7689, 0
        %7714 = vmatprep.subr.bf16.mxu0 %v4594
        %7715 = vmatpush1.bf16.msra.mxu0 %v4591
        %7716 = vmatprep.subr.bf16.mxu0 0
        %7717 = vmatpush1.bf16.msra.mxu0 0
        %7718 = vmatprep.subr.bf16.mxu0 0
        %7719 = vmatpush1.bf16.msra.mxu0 0
        %7720 = vmatprep.subr.bf16.mxu0 0
        %7721 = vmatpush1.bf16.msra.mxu0 0
        %7722 = vmatprep.subr.bf16.mxu0 0
        %7723 = vmatpush1.bf16.msra.mxu0 0
        %7724 = vmatprep.subr.bf16.mxu0 0
        %7725 = vmatpush1.bf16.msra.mxu0 0
        %7726 = vmatprep.subr.bf16.mxu0 0
        %7727 = vmatpush1.bf16.msra.mxu0 0
        %7728 = vmatprep.subr.bf16.mxu0 0
        %7729 = vmatpush1.bf16.msra.mxu0 0
        %7730 = vmatprep.subr.bf16.mxu0 0
        %7731 = vmatpush1.bf16.msra.mxu0 0
        %7732 = vmatprep.subr.bf16.mxu0 0
        %7733 = vmatpush1.bf16.msra.mxu0 0
        %7734 = vmatprep.subr.bf16.mxu0 0
        %7735 = vmatpush1.bf16.msra.mxu0 0
        %7736 = vmatprep.subr.bf16.mxu0 0
        %7737 = vmatpush1.bf16.msra.mxu0 0
        %7738 = vmatprep.subr.bf16.mxu0 0
        %7739 = vmatpush1.bf16.msra.mxu0 0
        %7740 = vmatprep.subr.bf16.mxu0 0
        %7741 = vmatpush1.bf16.msra.mxu0 0
        %7742 = vmatprep.subr.bf16.mxu0 0
        %7743 = vmatpush1.bf16.msra.mxu0 0
        %7744 = vmatprep.subr.bf16.mxu0 0
        %7745 = vmatpush1.bf16.msra.mxu0 0
        %7746 = vmatprep.mubr.bf16.mxu0 0
        %7747 = vmatmul.mubr.bf16.gmra.mrb[0].mxu0 %v7691
        %v7748 = vpop.f32.mrb[0].mxu0
        %v7749 = vadd.f32 %v4464, %v7748
        %v7750 = vpop.f32.mrb[0].mxu0
        %v7751 = vadd.f32 %v4468, %v7750
        %v7752 = vpop.f32.mrb[0].mxu0
        %v7753 = vadd.f32 %v4464, %v7752
        %v7754 = vpop.f32.mrb[0].mxu0
        %v7755 = vadd.f32 %v4468, %v7754
        %7756 = vmatprep.mubr.bf16.mxu0 0
        %7757 = vmatmul.mubr.bf16.gmra.mrb[0].mxu0 %v7694
        %v7758 = vpop.f32.mrb[0].mxu0
        %v7759 = vadd.f32 %v4464, %v7758
        %v7760 = vpop.f32.mrb[0].mxu0
        %v7761 = vadd.f32 %v4468, %v7760
        %v7762 = vpop.f32.mrb[0].mxu0
        %v7763 = vadd.f32 %v4464, %v7762
        %v7764 = vpop.f32.mrb[0].mxu0
        %v7765 = vadd.f32 %v4468, %v7764
        %7766 = vmatprep.mubr.bf16.mxu0 0
        %7767 = vmatmul.mubr.bf16.gmra.mrb[0].mxu0 %v7697
        %v7768 = vpop.f32.mrb[0].mxu0
        %v7769 = vadd.f32 %v4464, %v7768
        %v7770 = vpop.f32.mrb[0].mxu0
        %v7771 = vadd.f32 %v4468, %v7770
        %v7772 = vpop.f32.mrb[0].mxu0
        %v7773 = vadd.f32 %v4464, %v7772
        %v7774 = vpop.f32.mrb[0].mxu0
        %v7775 = vadd.f32 %v4468, %v7774
        %7776 = vmatprep.mubr.bf16.mxu0 0
        %7777 = vmatmul.mubr.bf16.gmra.mrb[0].mxu0 %v7700
        %v7778 = vpop.f32.mrb[0].mxu0
        %v7779 = vadd.f32 %v4464, %v7778
        %v7780 = vpop.f32.mrb[0].mxu0
        %v7781 = vadd.f32 %v4468, %v7780
        %v7782 = vpop.f32.mrb[0].mxu0
        %v7783 = vadd.f32 %v4464, %v7782
        %v7784 = vpop.f32.mrb[0].mxu0
        %v7785 = vadd.f32 %v4468, %v7784
        %7786 = vmatprep.mubr.bf16.mxu0 0
        %7787 = vmatmul.mubr.bf16.gmra.mrb[0].mxu0 %v7703
        %v7788 = vpop.f32.mrb[0].mxu0
        %v7789 = vadd.f32 %v4464, %v7788
        %v7790 = vpop.f32.mrb[0].mxu0
        %v7791 = vadd.f32 %v4468, %v7790
        %v7792 = vpop.f32.mrb[0].mxu0
        %v7793 = vadd.f32 %v4464, %v7792
        %v7794 = vpop.f32.mrb[0].mxu0
        %v7795 = vadd.f32 %v4468, %v7794
        %7796 = vmatprep.mubr.bf16.mxu0 0
        %7797 = vmatmul.mubr.bf16.gmra.mrb[0].mxu0 %v7706
        %v7798 = vpop.f32.mrb[0].mxu0
        %v7799 = vadd.f32 %v4464, %v7798
        %v7800 = vpop.f32.mrb[0].mxu0
        %v7801 = vadd.f32 %v4468, %v7800
        %v7802 = vpop.f32.mrb[0].mxu0
        %v7803 = vadd.f32 %v4464, %v7802
        %v7804 = vpop.f32.mrb[0].mxu0
        %v7805 = vadd.f32 %v4468, %v7804
        %7806 = vmatprep.mubr.bf16.mxu0 0
        %7807 = vmatmul.mubr.bf16.gmra.mrb[0].mxu0 %v7709
        %v7808 = vpop.f32.mrb[0].mxu0
        %v7809 = vadd.f32 %v4464, %v7808
        %v7810 = vpop.f32.mrb[0].mxu0
        %v7811 = vadd.f32 %v4468, %v7810
        %v7812 = vpop.f32.mrb[0].mxu0
        %v7813 = vadd.f32 %v4464, %v7812
        %v7814 = vpop.f32.mrb[0].mxu0
        %v7815 = vadd.f32 %v4468, %v7814
        %7816 = vmatprep.mubr.bf16.mxu0 0
        %7817 = vmatmul.mubr.bf16.gmra.mrb[0].mxu0 %v7712
        %v7818 = vpop.f32.mrb[0].mxu0
        %v7819 = vadd.f32 %v4464, %v7818
        %v7820 = vpop.f32.mrb[0].mxu0
        %v7821 = vadd.f32 %v4468, %v7820
        %v7822 = vpop.f32.mrb[0].mxu0
        %v7823 = vadd.f32 %v4464, %v7822
        %v7824 = vpop.f32.mrb[0].mxu0
        %v7825 = vadd.f32 %v4468, %v7824
        %7826 = vdwg.mxu0
        %7827 = vmatprep.subr.bf16.mxu0 %v4600
        %7828 = vmatpush1.bf16.msra.mxu0 %v4597
        %7829 = vmatprep.subr.bf16.mxu0 0
        %7830 = vmatpush1.bf16.msra.mxu0 0
        %7831 = vmatprep.subr.bf16.mxu0 0
        %7832 = vmatpush1.bf16.msra.mxu0 0
        %7833 = vmatprep.subr.bf16.mxu0 0
        %7834 = vmatpush1.bf16.msra.mxu0 0
        %7835 = vmatprep.subr.bf16.mxu0 0
        %7836 = vmatpush1.bf16.msra.mxu0 0
        %7837 = vmatprep.subr.bf16.mxu0 0
        %7838 = vmatpush1.bf16.msra.mxu0 0
        %7839 = vmatprep.subr.bf16.mxu0 0
        %7840 = vmatpush1.bf16.msra.mxu0 0
        %7841 = vmatprep.subr.bf16.mxu0 0
        %7842 = vmatpush1.bf16.msra.mxu0 0
        %7843 = vmatprep.subr.bf16.mxu0 0
        %7844 = vmatpush1.bf16.msra.mxu0 0
        %7845 = vmatprep.subr.bf16.mxu0 0
        %7846 = vmatpush1.bf16.msra.mxu0 0
        %7847 = vmatprep.subr.bf16.mxu0 0
        %7848 = vmatpush1.bf16.msra.mxu0 0
        %7849 = vmatprep.subr.bf16.mxu0 0
        %7850 = vmatpush1.bf16.msra.mxu0 0
        %7851 = vmatprep.subr.bf16.mxu0 0
        %7852 = vmatpush1.bf16.msra.mxu0 0
        %7853 = vmatprep.subr.bf16.mxu0 0
        %7854 = vmatpush1.bf16.msra.mxu0 0
        %7855 = vmatprep.subr.bf16.mxu0 0
        %7856 = vmatpush1.bf16.msra.mxu0 0
        %7857 = vmatprep.subr.bf16.mxu0 0
        %7858 = vmatpush1.bf16.msra.mxu0 0
        %7859 = vmatprep.mubr.bf16.mxu0 0
        %7860 = vmatmul.mubr.bf16.gmra.mrb[0].mxu0 %v7691
        %v7861 = vpop.f32.mrb[0].mxu0
        %v7862 = vadd.f32 %v4472, %v7861
        %v7863 = vpop.f32.mrb[0].mxu0
        %v7864 = vadd.f32 %v4476, %v7863
        %v7865 = vpop.f32.mrb[0].mxu0
        %v7866 = vadd.f32 %v4472, %v7865
        %v7867 = vpop.f32.mrb[0].mxu0
        %v7868 = vadd.f32 %v4476, %v7867
        %7869 = vmatprep.mubr.bf16.mxu0 0
        %7870 = vmatmul.mubr.bf16.gmra.mrb[0].mxu0 %v7694
        %v7871 = vpop.f32.mrb[0].mxu0
        %v7872 = vadd.f32 %v4472, %v7871
        %v7873 = vpop.f32.mrb[0].mxu0
        %v7874 = vadd.f32 %v4476, %v7873
        %v7875 = vpop.f32.mrb[0].mxu0
        %v7876 = vadd.f32 %v4472, %v7875
        %v7877 = vpop.f32.mrb[0].mxu0
        %v7878 = vadd.f32 %v4476, %v7877
        %7879 = vmatprep.mubr.bf16.mxu0 0
        %7880 = vmatmul.mubr.bf16.gmra.mrb[0].mxu0 %v7697
        %v7881 = vpop.f32.mrb[0].mxu0
        %v7882 = vadd.f32 %v4472, %v7881
        %v7883 = vpop.f32.mrb[0].mxu0
        %v7884 = vadd.f32 %v4476, %v7883
        %v7885 = vpop.f32.mrb[0].mxu0
        %v7886 = vadd.f32 %v4472, %v7885
        %v7887 = vpop.f32.mrb[0].mxu0
        %v7888 = vadd.f32 %v4476, %v7887
        %7889 = vmatprep.mubr.bf16.mxu0 0
        %7890 = vmatmul.mubr.bf16.gmra.mrb[0].mxu0 %v7700
        %v7891 = vpop.f32.mrb[0].mxu0
        %v7892 = vadd.f32 %v4472, %v7891
        %v7893 = vpop.f32.mrb[0].mxu0
        %v7894 = vadd.f32 %v4476, %v7893
        %v7895 = vpop.f32.mrb[0].mxu0
        %v7896 = vadd.f32 %v4472, %v7895
        %v7897 = vpop.f32.mrb[0].mxu0
        %v7898 = vadd.f32 %v4476, %v7897
        %7899 = vmatprep.mubr.bf16.mxu0 0
        %7900 = vmatmul.mubr.bf16.gmra.mrb[0].mxu0 %v7703
        %v7901 = vpop.f32.mrb[0].mxu0
        %v7902 = vadd.f32 %v4472, %v7901
        %v7903 = vpop.f32.mrb[0].mxu0
        %v7904 = vadd.f32 %v4476, %v7903
        %v7905 = vpop.f32.mrb[0].mxu0
        %v7906 = vadd.f32 %v4472, %v7905
        %v7907 = vpop.f32.mrb[0].mxu0
        %v7908 = vadd.f32 %v4476, %v7907
        %7909 = vmatprep.mubr.bf16.mxu0 0
        %7910 = vmatmul.mubr.bf16.gmra.mrb[0].mxu0 %v7706
        %v7911 = vpop.f32.mrb[0].mxu0
        %v7912 = vadd.f32 %v4472, %v7911
        %v7913 = vpop.f32.mrb[0].mxu0
        %v7914 = vadd.f32 %v4476, %v7913
        %v7915 = vpop.f32.mrb[0].mxu0
        %v7916 = vadd.f32 %v4472, %v7915
        %v7917 = vpop.f32.mrb[0].mxu0
        %v7918 = vadd.f32 %v4476, %v7917
        %7919 = vmatprep.mubr.bf16.mxu0 0
        %7920 = vmatmul.mubr.bf16.gmra.mrb[0].mxu0 %v7709
        %v7921 = vpop.f32.mrb[0].mxu0
        %v7922 = vadd.f32 %v4472, %v7921
        %v7923 = vpop.f32.mrb[0].mxu0
        %v7924 = vadd.f32 %v4476, %v7923
        %v7925 = vpop.f32.mrb[0].mxu0
        %v7926 = vadd.f32 %v4472, %v7925
        %v7927 = vpop.f32.mrb[0].mxu0
        %v7928 = vadd.f32 %v4476, %v7927
        %7929 = vmatprep.mubr.bf16.mxu0 0
        %7930 = vmatmul.mubr.bf16.gmra.mrb[0].mxu0 %v7712
        %v7931 = vpop.f32.mrb[0].mxu0
        %v7932 = vadd.f32 %v4472, %v7931
        %v7933 = vpop.f32.mrb[0].mxu0
        %v7934 = vadd.f32 %v4476, %v7933
        %v7935 = vpop.f32.mrb[0].mxu0
        %v7936 = vadd.f32 %v4472, %v7935
        %v7937 = vpop.f32.mrb[0].mxu0
        %v7938 = vadd.f32 %v4476, %v7937
        %7939 = vdwg.mxu0
        %7940 = vmatprep.subr.bf16.mxu0 %v4606
        %7941 = vmatpush1.bf16.msra.mxu0 %v4603
        %7942 = vmatprep.subr.bf16.mxu0 0
        %7943 = vmatpush1.bf16.msra.mxu0 0
        %7944 = vmatprep.subr.bf16.mxu0 0
        %7945 = vmatpush1.bf16.msra.mxu0 0
        %7946 = vmatprep.subr.bf16.mxu0 0
        %7947 = vmatpush1.bf16.msra.mxu0 0
        %7948 = vmatprep.subr.bf16.mxu0 0
        %7949 = vmatpush1.bf16.msra.mxu0 0
        %7950 = vmatprep.subr.bf16.mxu0 0
        %7951 = vmatpush1.bf16.msra.mxu0 0
        %7952 = vmatprep.subr.bf16.mxu0 0
        %7953 = vmatpush1.bf16.msra.mxu0 0
        %7954 = vmatprep.subr.bf16.mxu0 0
        %7955 = vmatpush1.bf16.msra.mxu0 0
        %7956 = vmatprep.subr.bf16.mxu0 0
        %7957 = vmatpush1.bf16.msra.mxu0 0
        %7958 = vmatprep.subr.bf16.mxu0 0
        %7959 = vmatpush1.bf16.msra.mxu0 0
        %7960 = vmatprep.subr.bf16.mxu0 0
        %7961 = vmatpush1.bf16.msra.mxu0 0
        %7962 = vmatprep.subr.bf16.mxu0 0
        %7963 = vmatpush1.bf16.msra.mxu0 0
        %7964 = vmatprep.subr.bf16.mxu0 0
        %7965 = vmatpush1.bf16.msra.mxu0 0
        %7966 = vmatprep.subr.bf16.mxu0 0
        %7967 = vmatpush1.bf16.msra.mxu0 0
        %7968 = vmatprep.subr.bf16.mxu0 0
        %7969 = vmatpush1.bf16.msra.mxu0 0
        %7970 = vmatprep.subr.bf16.mxu0 0
        %7971 = vmatpush1.bf16.msra.mxu0 0
        %7972 = vmatprep.mubr.bf16.mxu0 0
        %7973 = vmatmul.mubr.bf16.gmra.mrb[0].mxu0 %v7691
        %v7974 = vpop.f32.mrb[0].mxu0
        %v7975 = vadd.f32 %v4480, %v7974
        %v7976 = vpop.f32.mrb[0].mxu0
        %v7977 = vadd.f32 %v4484, %v7976
        %v7978 = vpop.f32.mrb[0].mxu0
        %v7979 = vadd.f32 %v4480, %v7978
        %v7980 = vpop.f32.mrb[0].mxu0
        %v7981 = vadd.f32 %v4484, %v7980
        %7982 = vmatprep.mubr.bf16.mxu0 0
        %7983 = vmatmul.mubr.bf16.gmra.mrb[0].mxu0 %v7694
        %v7984 = vpop.f32.mrb[0].mxu0
        %v7985 = vadd.f32 %v4480, %v7984
        %v7986 = vpop.f32.mrb[0].mxu0
        %v7987 = vadd.f32 %v4484, %v7986
        %v7988 = vpop.f32.mrb[0].mxu0
        %v7989 = vadd.f32 %v4480, %v7988
        %v7990 = vpop.f32.mrb[0].mxu0
        %v7991 = vadd.f32 %v4484, %v7990
        %7992 = vmatprep.mubr.bf16.mxu0 0
        %7993 = vmatmul.mubr.bf16.gmra.mrb[0].mxu0 %v7697
        %v7994 = vpop.f32.mrb[0].mxu0
        %v7995 = vadd.f32 %v4480, %v7994
        %v7996 = vpop.f32.mrb[0].mxu0
        %v7997 = vadd.f32 %v4484, %v7996
        %v7998 = vpop.f32.mrb[0].mxu0
        %v7999 = vadd.f32 %v4480, %v7998
        %v8000 = vpop.f32.mrb[0].mxu0
        %v8001 = vadd.f32 %v4484, %v8000
        %8002 = vmatprep.mubr.bf16.mxu0 0
        %8003 = vmatmul.mubr.bf16.gmra.mrb[0].mxu0 %v7700
        %v8004 = vpop.f32.mrb[0].mxu0
        %v8005 = vadd.f32 %v4480, %v8004
        %v8006 = vpop.f32.mrb[0].mxu0
        %v8007 = vadd.f32 %v4484, %v8006
        %v8008 = vpop.f32.mrb[0].mxu0
        %v8009 = vadd.f32 %v4480, %v8008
        %v8010 = vpop.f32.mrb[0].mxu0
        %v8011 = vadd.f32 %v4484, %v8010
        %8012 = vmatprep.mubr.bf16.mxu0 0
        %8013 = vmatmul.mubr.bf16.gmra.mrb[0].mxu0 %v7703
        %v8014 = vpop.f32.mrb[0].mxu0
        %v8015 = vadd.f32 %v4480, %v8014
        %v8016 = vpop.f32.mrb[0].mxu0
        %v8017 = vadd.f32 %v4484, %v8016
        %v8018 = vpop.f32.mrb[0].mxu0
        %v8019 = vadd.f32 %v4480, %v8018
        %v8020 = vpop.f32.mrb[0].mxu0
        %v8021 = vadd.f32 %v4484, %v8020
        %8022 = vmatprep.mubr.bf16.mxu0 0
        %8023 = vmatmul.mubr.bf16.gmra.mrb[0].mxu0 %v7706
        %v8024 = vpop.f32.mrb[0].mxu0
        %v8025 = vadd.f32 %v4480, %v8024
        %v8026 = vpop.f32.mrb[0].mxu0
        %v8027 = vadd.f32 %v4484, %v8026
        %v8028 = vpop.f32.mrb[0].mxu0
        %v8029 = vadd.f32 %v4480, %v8028
        %v8030 = vpop.f32.mrb[0].mxu0
        %v8031 = vadd.f32 %v4484, %v8030
        %8032 = vmatprep.mubr.bf16.mxu0 0
        %8033 = vmatmul.mubr.bf16.gmra.mrb[0].mxu0 %v7709
        %v8034 = vpop.f32.mrb[0].mxu0
        %v8035 = vadd.f32 %v4480, %v8034
        %v8036 = vpop.f32.mrb[0].mxu0
        %v8037 = vadd.f32 %v4484, %v8036
        %v8038 = vpop.f32.mrb[0].mxu0
        %v8039 = vadd.f32 %v4480, %v8038
        %v8040 = vpop.f32.mrb[0].mxu0
        %v8041 = vadd.f32 %v4484, %v8040
        %8042 = vmatprep.mubr.bf16.mxu0 0
        %8043 = vmatmul.mubr.bf16.gmra.mrb[0].mxu0 %v7712
        %v8044 = vpop.f32.mrb[0].mxu0
        %v8045 = vadd.f32 %v4480, %v8044
        %v8046 = vpop.f32.mrb[0].mxu0
        %v8047 = vadd.f32 %v4484, %v8046
        %v8048 = vpop.f32.mrb[0].mxu0
        %v8049 = vadd.f32 %v4480, %v8048
        %v8050 = vpop.f32.mrb[0].mxu0
        %v8051 = vadd.f32 %v4484, %v8050
        %8052 = vdwg.mxu0
        %8053 = vmatprep.subr.bf16.mxu0 %v4612
        %8054 = vmatpush1.bf16.msra.mxu0 %v4609
        %8055 = vmatprep.subr.bf16.mxu0 0
        %8056 = vmatpush1.bf16.msra.mxu0 0
        %8057 = vmatprep.subr.bf16.mxu0 0
        %8058 = vmatpush1.bf16.msra.mxu0 0
        %8059 = vmatprep.subr.bf16.mxu0 0
        %8060 = vmatpush1.bf16.msra.mxu0 0
        %8061 = vmatprep.subr.bf16.mxu0 0
        %8062 = vmatpush1.bf16.msra.mxu0 0
        %8063 = vmatprep.subr.bf16.mxu0 0
        %8064 = vmatpush1.bf16.msra.mxu0 0
        %8065 = vmatprep.subr.bf16.mxu0 0
        %8066 = vmatpush1.bf16.msra.mxu0 0
        %8067 = vmatprep.subr.bf16.mxu0 0
        %8068 = vmatpush1.bf16.msra.mxu0 0
        %8069 = vmatprep.subr.bf16.mxu0 0
        %8070 = vmatpush1.bf16.msra.mxu0 0
        %8071 = vmatprep.subr.bf16.mxu0 0
        %8072 = vmatpush1.bf16.msra.mxu0 0
        %8073 = vmatprep.subr.bf16.mxu0 0
        %8074 = vmatpush1.bf16.msra.mxu0 0
        %8075 = vmatprep.subr.bf16.mxu0 0
        %8076 = vmatpush1.bf16.msra.mxu0 0
        %8077 = vmatprep.subr.bf16.mxu0 0
        %8078 = vmatpush1.bf16.msra.mxu0 0
        %8079 = vmatprep.subr.bf16.mxu0 0
        %8080 = vmatpush1.bf16.msra.mxu0 0
        %8081 = vmatprep.subr.bf16.mxu0 0
        %8082 = vmatpush1.bf16.msra.mxu0 0
        %8083 = vmatprep.subr.bf16.mxu0 0
        %8084 = vmatpush1.bf16.msra.mxu0 0
        %8085 = vmatprep.mubr.bf16.mxu0 0
        %8086 = vmatmul.mubr.bf16.gmra.mrb[0].mxu0 %v7691
        %v8087 = vpop.f32.mrb[0].mxu0
        %v8088 = vadd.f32 %v4488, %v8087
        %v8089 = vpop.f32.mrb[0].mxu0
        %v8090 = vadd.f32 %v4492, %v8089
        %v8091 = vpop.f32.mrb[0].mxu0
        %v8092 = vadd.f32 %v4488, %v8091
        %v8093 = vpop.f32.mrb[0].mxu0
        %v8094 = vadd.f32 %v4492, %v8093
        %8095 = vmatprep.mubr.bf16.mxu0 0
        %8096 = vmatmul.mubr.bf16.gmra.mrb[0].mxu0 %v7694
        %v8097 = vpop.f32.mrb[0].mxu0
        %v8098 = vadd.f32 %v4488, %v8097
        %v8099 = vpop.f32.mrb[0].mxu0
        %v8100 = vadd.f32 %v4492, %v8099
        %v8101 = vpop.f32.mrb[0].mxu0
        %v8102 = vadd.f32 %v4488, %v8101
        %v8103 = vpop.f32.mrb[0].mxu0
        %v8104 = vadd.f32 %v4492, %v8103
        %8105 = vmatprep.mubr.bf16.mxu0 0
        %8106 = vmatmul.mubr.bf16.gmra.mrb[0].mxu0 %v7697
        %v8107 = vpop.f32.mrb[0].mxu0
        %v8108 = vadd.f32 %v4488, %v8107
        %v8109 = vpop.f32.mrb[0].mxu0
        %v8110 = vadd.f32 %v4492, %v8109
        %v8111 = vpop.f32.mrb[0].mxu0
        %v8112 = vadd.f32 %v4488, %v8111
        %v8113 = vpop.f32.mrb[0].mxu0
        %v8114 = vadd.f32 %v4492, %v8113
        %8115 = vmatprep.mubr.bf16.mxu0 0
        %8116 = vmatmul.mubr.bf16.gmra.mrb[0].mxu0 %v7700
        %v8117 = vpop.f32.mrb[0].mxu0
        %v8118 = vadd.f32 %v4488, %v8117
        %v8119 = vpop.f32.mrb[0].mxu0
        %v8120 = vadd.f32 %v4492, %v8119
        %v8121 = vpop.f32.mrb[0].mxu0
        %v8122 = vadd.f32 %v4488, %v8121
        %v8123 = vpop.f32.mrb[0].mxu0
        %v8124 = vadd.f32 %v4492, %v8123
        %8125 = vmatprep.mubr.bf16.mxu0 0
        %8126 = vmatmul.mubr.bf16.gmra.mrb[0].mxu0 %v7703
        %v8127 = vpop.f32.mrb[0].mxu0
        %v8128 = vadd.f32 %v4488, %v8127
        %v8129 = vpop.f32.mrb[0].mxu0
        %v8130 = vadd.f32 %v4492, %v8129
        %v8131 = vpop.f32.mrb[0].mxu0
        %v8132 = vadd.f32 %v4488, %v8131
        %v8133 = vpop.f32.mrb[0].mxu0
        %v8134 = vadd.f32 %v4492, %v8133
        %8135 = vmatprep.mubr.bf16.mxu0 0
        %8136 = vmatmul.mubr.bf16.gmra.mrb[0].mxu0 %v7706
        %v8137 = vpop.f32.mrb[0].mxu0
        %v8138 = vadd.f32 %v4488, %v8137
        %v8139 = vpop.f32.mrb[0].mxu0
        %v8140 = vadd.f32 %v4492, %v8139
        %v8141 = vpop.f32.mrb[0].mxu0
        %v8142 = vadd.f32 %v4488, %v8141
        %v8143 = vpop.f32.mrb[0].mxu0
        %v8144 = vadd.f32 %v4492, %v8143
        %8145 = vmatprep.mubr.bf16.mxu0 0
        %8146 = vmatmul.mubr.bf16.gmra.mrb[0].mxu0 %v7709
        %v8147 = vpop.f32.mrb[0].mxu0
        %v8148 = vadd.f32 %v4488, %v8147
        %v8149 = vpop.f32.mrb[0].mxu0
        %v8150 = vadd.f32 %v4492, %v8149
        %v8151 = vpop.f32.mrb[0].mxu0
        %v8152 = vadd.f32 %v4488, %v8151
        %v8153 = vpop.f32.mrb[0].mxu0
        %v8154 = vadd.f32 %v4492, %v8153
        %8155 = vmatprep.mubr.bf16.mxu0 0
        %8156 = vmatmul.mubr.bf16.gmra.mrb[0].mxu0 %v7712
        %v8157 = vpop.f32.mrb[0].mxu0
        %v8158 = vadd.f32 %v4488, %v8157
        %v8159 = vpop.f32.mrb[0].mxu0
        %v8160 = vadd.f32 %v4492, %v8159
        %v8161 = vpop.f32.mrb[0].mxu0
        %v8162 = vadd.f32 %v4488, %v8161
        %v8163 = vpop.f32.mrb[0].mxu0
        %v8164 = vadd.f32 %v4492, %v8163
        %8165 = vdwg.mxu0
        %8166 = vmatprep.subr.bf16.mxu0 %v4618
        %8167 = vmatpush1.bf16.msra.mxu0 %v4615
        %8168 = vmatprep.subr.bf16.mxu0 0
        %8169 = vmatpush1.bf16.msra.mxu0 0
        %8170 = vmatprep.subr.bf16.mxu0 0
        %8171 = vmatpush1.bf16.msra.mxu0 0
        %8172 = vmatprep.subr.bf16.mxu0 0
        %8173 = vmatpush1.bf16.msra.mxu0 0
        %8174 = vmatprep.subr.bf16.mxu0 0
        %8175 = vmatpush1.bf16.msra.mxu0 0
        %8176 = vmatprep.subr.bf16.mxu0 0
        %8177 = vmatpush1.bf16.msra.mxu0 0
        %8178 = vmatprep.subr.bf16.mxu0 0
        %8179 = vmatpush1.bf16.msra.mxu0 0
        %8180 = vmatprep.subr.bf16.mxu0 0
        %8181 = vmatpush1.bf16.msra.mxu0 0
        %8182 = vmatprep.subr.bf16.mxu0 0
        %8183 = vmatpush1.bf16.msra.mxu0 0
        %8184 = vmatprep.subr.bf16.mxu0 0
        %8185 = vmatpush1.bf16.msra.mxu0 0
        %8186 = vmatprep.subr.bf16.mxu0 0
        %8187 = vmatpush1.bf16.msra.mxu0 0
        %8188 = vmatprep.subr.bf16.mxu0 0
        %8189 = vmatpush1.bf16.msra.mxu0 0
        %8190 = vmatprep.subr.bf16.mxu0 0
        %8191 = vmatpush1.bf16.msra.mxu0 0
        %8192 = vmatprep.subr.bf16.mxu0 0
        %8193 = vmatpush1.bf16.msra.mxu0 0
        %8194 = vmatprep.subr.bf16.mxu0 0
        %8195 = vmatpush1.bf16.msra.mxu0 0
        %8196 = vmatprep.subr.bf16.mxu0 0
        %8197 = vmatpush1.bf16.msra.mxu0 0
        %8198 = vmatprep.mubr.bf16.mxu0 0
        %8199 = vmatmul.mubr.bf16.gmra.mrb[0].mxu0 %v7691
        %v8200 = vpop.f32.mrb[0].mxu0
        %v8201 = vadd.f32 %v4496, %v8200
        %v8202 = vpop.f32.mrb[0].mxu0
        %v8203 = vadd.f32 %v4500, %v8202
        %v8204 = vpop.f32.mrb[0].mxu0
        %v8205 = vadd.f32 %v4496, %v8204
        %v8206 = vpop.f32.mrb[0].mxu0
        %v8207 = vadd.f32 %v4500, %v8206
        %8208 = vmatprep.mubr.bf16.mxu0 0
        %8209 = vmatmul.mubr.bf16.gmra.mrb[0].mxu0 %v7694
        %v8210 = vpop.f32.mrb[0].mxu0
        %v8211 = vadd.f32 %v4496, %v8210
        %v8212 = vpop.f32.mrb[0].mxu0
        %v8213 = vadd.f32 %v4500, %v8212
        %v8214 = vpop.f32.mrb[0].mxu0
        %v8215 = vadd.f32 %v4496, %v8214
        %v8216 = vpop.f32.mrb[0].mxu0
        %v8217 = vadd.f32 %v4500, %v8216
        %8218 = vmatprep.mubr.bf16.mxu0 0
        %8219 = vmatmul.mubr.bf16.gmra.mrb[0].mxu0 %v7697
        %v8220 = vpop.f32.mrb[0].mxu0
        %v8221 = vadd.f32 %v4496, %v8220
        %v8222 = vpop.f32.mrb[0].mxu0
        %v8223 = vadd.f32 %v4500, %v8222
        %v8224 = vpop.f32.mrb[0].mxu0
        %v8225 = vadd.f32 %v4496, %v8224
        %v8226 = vpop.f32.mrb[0].mxu0
        %v8227 = vadd.f32 %v4500, %v8226
        %8228 = vmatprep.mubr.bf16.mxu0 0
        %8229 = vmatmul.mubr.bf16.gmra.mrb[0].mxu0 %v7700
        %v8230 = vpop.f32.mrb[0].mxu0
        %v8231 = vadd.f32 %v4496, %v8230
        %v8232 = vpop.f32.mrb[0].mxu0
        %v8233 = vadd.f32 %v4500, %v8232
        %v8234 = vpop.f32.mrb[0].mxu0
        %v8235 = vadd.f32 %v4496, %v8234
        %v8236 = vpop.f32.mrb[0].mxu0
        %v8237 = vadd.f32 %v4500, %v8236
        %8238 = vmatprep.mubr.bf16.mxu0 0
        %8239 = vmatmul.mubr.bf16.gmra.mrb[0].mxu0 %v7703
        %v8240 = vpop.f32.mrb[0].mxu0
        %v8241 = vadd.f32 %v4496, %v8240
        %v8242 = vpop.f32.mrb[0].mxu0
        %v8243 = vadd.f32 %v4500, %v8242
        %v8244 = vpop.f32.mrb[0].mxu0
        %v8245 = vadd.f32 %v4496, %v8244
        %v8246 = vpop.f32.mrb[0].mxu0
        %v8247 = vadd.f32 %v4500, %v8246
        %8248 = vmatprep.mubr.bf16.mxu0 0
        %8249 = vmatmul.mubr.bf16.gmra.mrb[0].mxu0 %v7706
        %v8250 = vpop.f32.mrb[0].mxu0
        %v8251 = vadd.f32 %v4496, %v8250
        %v8252 = vpop.f32.mrb[0].mxu0
        %v8253 = vadd.f32 %v4500, %v8252
        %v8254 = vpop.f32.mrb[0].mxu0
        %v8255 = vadd.f32 %v4496, %v8254
        %v8256 = vpop.f32.mrb[0].mxu0
        %v8257 = vadd.f32 %v4500, %v8256
        %8258 = vmatprep.mubr.bf16.mxu0 0
        %8259 = vmatmul.mubr.bf16.gmra.mrb[0].mxu0 %v7709
        %v8260 = vpop.f32.mrb[0].mxu0
        %v8261 = vadd.f32 %v4496, %v8260
        %v8262 = vpop.f32.mrb[0].mxu0
        %v8263 = vadd.f32 %v4500, %v8262
        %v8264 = vpop.f32.mrb[0].mxu0
        %v8265 = vadd.f32 %v4496, %v8264
        %v8266 = vpop.f32.mrb[0].mxu0
        %v8267 = vadd.f32 %v4500, %v8266
        %8268 = vmatprep.mubr.bf16.mxu0 0
        %8269 = vmatmul.mubr.bf16.gmra.mrb[0].mxu0 %v7712
        %v8270 = vpop.f32.mrb[0].mxu0
        %v8271 = vadd.f32 %v4496, %v8270
        %v8272 = vpop.f32.mrb[0].mxu0
        %v8273 = vadd.f32 %v4500, %v8272
        %v8274 = vpop.f32.mrb[0].mxu0
        %v8275 = vadd.f32 %v4496, %v8274
        %v8276 = vpop.f32.mrb[0].mxu0
        %v8277 = vadd.f32 %v4500, %v8276
        %8278 = vdwg.mxu0
        %8279 = vmatprep.subr.bf16.mxu0 %v4624
        %8280 = vmatpush1.bf16.msra.mxu0 %v4621
        %8281 = vmatprep.subr.bf16.mxu0 0
        %8282 = vmatpush1.bf16.msra.mxu0 0
        %8283 = vmatprep.subr.bf16.mxu0 0
        %8284 = vmatpush1.bf16.msra.mxu0 0
        %8285 = vmatprep.subr.bf16.mxu0 0
        %8286 = vmatpush1.bf16.msra.mxu0 0
        %8287 = vmatprep.subr.bf16.mxu0 0
        %8288 = vmatpush1.bf16.msra.mxu0 0
        %8289 = vmatprep.subr.bf16.mxu0 0
        %8290 = vmatpush1.bf16.msra.mxu0 0
        %8291 = vmatprep.subr.bf16.mxu0 0
        %8292 = vmatpush1.bf16.msra.mxu0 0
        %8293 = vmatprep.subr.bf16.mxu0 0
        %8294 = vmatpush1.bf16.msra.mxu0 0
        %8295 = vmatprep.subr.bf16.mxu0 0
        %8296 = vmatpush1.bf16.msra.mxu0 0
        %8297 = vmatprep.subr.bf16.mxu0 0
        %8298 = vmatpush1.bf16.msra.mxu0 0
        %8299 = vmatprep.subr.bf16.mxu0 0
        %8300 = vmatpush1.bf16.msra.mxu0 0
        %8301 = vmatprep.subr.bf16.mxu0 0
        %8302 = vmatpush1.bf16.msra.mxu0 0
        %8303 = vmatprep.subr.bf16.mxu0 0
        %8304 = vmatpush1.bf16.msra.mxu0 0
        %8305 = vmatprep.subr.bf16.mxu0 0
        %8306 = vmatpush1.bf16.msra.mxu0 0
        %8307 = vmatprep.subr.bf16.mxu0 0
        %8308 = vmatpush1.bf16.msra.mxu0 0
        %8309 = vmatprep.subr.bf16.mxu0 0
        %8310 = vmatpush1.bf16.msra.mxu0 0
        %8311 = vmatprep.mubr.bf16.mxu0 0
        %8312 = vmatmul.mubr.bf16.gmra.mrb[0].mxu0 %v7691
        %v8313 = vpop.f32.mrb[0].mxu0
        %v8314 = vadd.f32 %v4504, %v8313
        %v8315 = vpop.f32.mrb[0].mxu0
        %v8316 = vadd.f32 %v4508, %v8315
        %v8317 = vpop.f32.mrb[0].mxu0
        %v8318 = vadd.f32 %v4504, %v8317
        %v8319 = vpop.f32.mrb[0].mxu0
        %v8320 = vadd.f32 %v4508, %v8319
        %8321 = vmatprep.mubr.bf16.mxu0 0
        %8322 = vmatmul.mubr.bf16.gmra.mrb[0].mxu0 %v7694
        %v8323 = vpop.f32.mrb[0].mxu0
        %v8324 = vadd.f32 %v4504, %v8323
        %v8325 = vpop.f32.mrb[0].mxu0
        %v8326 = vadd.f32 %v4508, %v8325
        %v8327 = vpop.f32.mrb[0].mxu0
        %v8328 = vadd.f32 %v4504, %v8327
        %v8329 = vpop.f32.mrb[0].mxu0
        %v8330 = vadd.f32 %v4508, %v8329
        %8331 = vmatprep.mubr.bf16.mxu0 0
        %8332 = vmatmul.mubr.bf16.gmra.mrb[0].mxu0 %v7697
        %v8333 = vpop.f32.mrb[0].mxu0
        %v8334 = vadd.f32 %v4504, %v8333
        %v8335 = vpop.f32.mrb[0].mxu0
        %v8336 = vadd.f32 %v4508, %v8335
        %v8337 = vpop.f32.mrb[0].mxu0
        %v8338 = vadd.f32 %v4504, %v8337
        %v8339 = vpop.f32.mrb[0].mxu0
        %v8340 = vadd.f32 %v4508, %v8339
        %8341 = vmatprep.mubr.bf16.mxu0 0
        %8342 = vmatmul.mubr.bf16.gmra.mrb[0].mxu0 %v7700
        %v8343 = vpop.f32.mrb[0].mxu0
        %v8344 = vadd.f32 %v4504, %v8343
        %v8345 = vpop.f32.mrb[0].mxu0
        %v8346 = vadd.f32 %v4508, %v8345
        %v8347 = vpop.f32.mrb[0].mxu0
        %v8348 = vadd.f32 %v4504, %v8347
        %v8349 = vpop.f32.mrb[0].mxu0
        %v8350 = vadd.f32 %v4508, %v8349
        %8351 = vmatprep.mubr.bf16.mxu0 0
        %8352 = vmatmul.mubr.bf16.gmra.mrb[0].mxu0 %v7703
        %v8353 = vpop.f32.mrb[0].mxu0
        %v8354 = vadd.f32 %v4504, %v8353
        %v8355 = vpop.f32.mrb[0].mxu0
        %v8356 = vadd.f32 %v4508, %v8355
        %v8357 = vpop.f32.mrb[0].mxu0
        %v8358 = vadd.f32 %v4504, %v8357
        %v8359 = vpop.f32.mrb[0].mxu0
        %v8360 = vadd.f32 %v4508, %v8359
        %8361 = vmatprep.mubr.bf16.mxu0 0
        %8362 = vmatmul.mubr.bf16.gmra.mrb[0].mxu0 %v7706
        %v8363 = vpop.f32.mrb[0].mxu0
        %v8364 = vadd.f32 %v4504, %v8363
        %v8365 = vpop.f32.mrb[0].mxu0
        %v8366 = vadd.f32 %v4508, %v8365
        %v8367 = vpop.f32.mrb[0].mxu0
        %v8368 = vadd.f32 %v4504, %v8367
        %v8369 = vpop.f32.mrb[0].mxu0
        %v8370 = vadd.f32 %v4508, %v8369
        %8371 = vmatprep.mubr.bf16.mxu0 0
        %8372 = vmatmul.mubr.bf16.gmra.mrb[0].mxu0 %v7709
        %v8373 = vpop.f32.mrb[0].mxu0
        %v8374 = vadd.f32 %v4504, %v8373
        %v8375 = vpop.f32.mrb[0].mxu0
        %v8376 = vadd.f32 %v4508, %v8375
        %v8377 = vpop.f32.mrb[0].mxu0
        %v8378 = vadd.f32 %v4504, %v8377
        %v8379 = vpop.f32.mrb[0].mxu0
        %v8380 = vadd.f32 %v4508, %v8379
        %8381 = vmatprep.mubr.bf16.mxu0 0
        %8382 = vmatmul.mubr.bf16.gmra.mrb[0].mxu0 %v7712
        %v8383 = vpop.f32.mrb[0].mxu0
        %v8384 = vadd.f32 %v4504, %v8383
        %v8385 = vpop.f32.mrb[0].mxu0
        %v8386 = vadd.f32 %v4508, %v8385
        %v8387 = vpop.f32.mrb[0].mxu0
        %v8388 = vadd.f32 %v4504, %v8387
        %v8389 = vpop.f32.mrb[0].mxu0
        %v8390 = vadd.f32 %v4508, %v8389
        %8391 = vdwg.mxu0
        %8392 = vmatprep.subr.bf16.mxu0 %v4630
        %8393 = vmatpush1.bf16.msra.mxu0 %v4627
        %8394 = vmatprep.subr.bf16.mxu0 0
        %8395 = vmatpush1.bf16.msra.mxu0 0
        %8396 = vmatprep.subr.bf16.mxu0 0
        %8397 = vmatpush1.bf16.msra.mxu0 0
        %8398 = vmatprep.subr.bf16.mxu0 0
        %8399 = vmatpush1.bf16.msra.mxu0 0
        %8400 = vmatprep.subr.bf16.mxu0 0
        %8401 = vmatpush1.bf16.msra.mxu0 0
        %8402 = vmatprep.subr.bf16.mxu0 0
        %8403 = vmatpush1.bf16.msra.mxu0 0
        %8404 = vmatprep.subr.bf16.mxu0 0
        %8405 = vmatpush1.bf16.msra.mxu0 0
        %8406 = vmatprep.subr.bf16.mxu0 0
        %8407 = vmatpush1.bf16.msra.mxu0 0
        %8408 = vmatprep.subr.bf16.mxu0 0
        %8409 = vmatpush1.bf16.msra.mxu0 0
        %8410 = vmatprep.subr.bf16.mxu0 0
        %8411 = vmatpush1.bf16.msra.mxu0 0
        %8412 = vmatprep.subr.bf16.mxu0 0
        %8413 = vmatpush1.bf16.msra.mxu0 0
        %8414 = vmatprep.subr.bf16.mxu0 0
        %8415 = vmatpush1.bf16.msra.mxu0 0
        %8416 = vmatprep.subr.bf16.mxu0 0
        %8417 = vmatpush1.bf16.msra.mxu0 0
        %8418 = vmatprep.subr.bf16.mxu0 0
        %8419 = vmatpush1.bf16.msra.mxu0 0
        %8420 = vmatprep.subr.bf16.mxu0 0
        %8421 = vmatpush1.bf16.msra.mxu0 0
        %8422 = vmatprep.subr.bf16.mxu0 0
        %8423 = vmatpush1.bf16.msra.mxu0 0
        %8424 = vmatprep.mubr.bf16.mxu0 0
        %8425 = vmatmul.mubr.bf16.gmra.mrb[0].mxu0 %v7691
        %v8426 = vpop.f32.mrb[0].mxu0
        %v8427 = vadd.f32 %v4512, %v8426
        %v8428 = vpop.f32.mrb[0].mxu0
        %v8429 = vadd.f32 %v4516, %v8428
        %v8430 = vpop.f32.mrb[0].mxu0
        %v8431 = vadd.f32 %v4512, %v8430
        %v8432 = vpop.f32.mrb[0].mxu0
        %v8433 = vadd.f32 %v4516, %v8432
        %8434 = vmatprep.mubr.bf16.mxu0 0
        %8435 = vmatmul.mubr.bf16.gmra.mrb[0].mxu0 %v7694
        %v8436 = vpop.f32.mrb[0].mxu0
        %v8437 = vadd.f32 %v4512, %v8436
        %v8438 = vpop.f32.mrb[0].mxu0
        %v8439 = vadd.f32 %v4516, %v8438
        %v8440 = vpop.f32.mrb[0].mxu0
        %v8441 = vadd.f32 %v4512, %v8440
        %v8442 = vpop.f32.mrb[0].mxu0
        %v8443 = vadd.f32 %v4516, %v8442
        %8444 = vmatprep.mubr.bf16.mxu0 0
        %8445 = vmatmul.mubr.bf16.gmra.mrb[0].mxu0 %v7697
        %v8446 = vpop.f32.mrb[0].mxu0
        %v8447 = vadd.f32 %v4512, %v8446
        %v8448 = vpop.f32.mrb[0].mxu0
        %v8449 = vadd.f32 %v4516, %v8448
        %v8450 = vpop.f32.mrb[0].mxu0
        %v8451 = vadd.f32 %v4512, %v8450
        %v8452 = vpop.f32.mrb[0].mxu0
        %v8453 = vadd.f32 %v4516, %v8452
        %8454 = vmatprep.mubr.bf16.mxu0 0
        %8455 = vmatmul.mubr.bf16.gmra.mrb[0].mxu0 %v7700
        %v8456 = vpop.f32.mrb[0].mxu0
        %v8457 = vadd.f32 %v4512, %v8456
        %v8458 = vpop.f32.mrb[0].mxu0
        %v8459 = vadd.f32 %v4516, %v8458
        %v8460 = vpop.f32.mrb[0].mxu0
        %v8461 = vadd.f32 %v4512, %v8460
        %v8462 = vpop.f32.mrb[0].mxu0
        %v8463 = vadd.f32 %v4516, %v8462
        %8464 = vmatprep.mubr.bf16.mxu0 0
        %8465 = vmatmul.mubr.bf16.gmra.mrb[0].mxu0 %v7703
        %v8466 = vpop.f32.mrb[0].mxu0
        %v8467 = vadd.f32 %v4512, %v8466
        %v8468 = vpop.f32.mrb[0].mxu0
        %v8469 = vadd.f32 %v4516, %v8468
        %v8470 = vpop.f32.mrb[0].mxu0
        %v8471 = vadd.f32 %v4512, %v8470
        %v8472 = vpop.f32.mrb[0].mxu0
        %v8473 = vadd.f32 %v4516, %v8472
        %8474 = vmatprep.mubr.bf16.mxu0 0
        %8475 = vmatmul.mubr.bf16.gmra.mrb[0].mxu0 %v7706
        %v8476 = vpop.f32.mrb[0].mxu0
        %v8477 = vadd.f32 %v4512, %v8476
        %v8478 = vpop.f32.mrb[0].mxu0
        %v8479 = vadd.f32 %v4516, %v8478
        %v8480 = vpop.f32.mrb[0].mxu0
        %v8481 = vadd.f32 %v4512, %v8480
        %v8482 = vpop.f32.mrb[0].mxu0
        %v8483 = vadd.f32 %v4516, %v8482
        %8484 = vmatprep.mubr.bf16.mxu0 0
        %8485 = vmatmul.mubr.bf16.gmra.mrb[0].mxu0 %v7709
        %v8486 = vpop.f32.mrb[0].mxu0
        %v8487 = vadd.f32 %v4512, %v8486
        %v8488 = vpop.f32.mrb[0].mxu0
        %v8489 = vadd.f32 %v4516, %v8488
        %v8490 = vpop.f32.mrb[0].mxu0
        %v8491 = vadd.f32 %v4512, %v8490
        %v8492 = vpop.f32.mrb[0].mxu0
        %v8493 = vadd.f32 %v4516, %v8492
        %8494 = vmatprep.mubr.bf16.mxu0 0
        %8495 = vmatmul.mubr.bf16.gmra.mrb[0].mxu0 %v7712
        %v8496 = vpop.f32.mrb[0].mxu0
        %v8497 = vadd.f32 %v4512, %v8496
        %v8498 = vpop.f32.mrb[0].mxu0
        %v8499 = vadd.f32 %v4516, %v8498
        %v8500 = vpop.f32.mrb[0].mxu0
        %v8501 = vadd.f32 %v4512, %v8500
        %v8502 = vpop.f32.mrb[0].mxu0
        %v8503 = vadd.f32 %v4516, %v8502
        %8504 = vdwg.mxu0
        %8505 = vmatprep.subr.bf16.mxu0 %v4636
        %8506 = vmatpush1.bf16.msra.mxu0 %v4633
        %8507 = vmatprep.subr.bf16.mxu0 0
        %8508 = vmatpush1.bf16.msra.mxu0 0
        %8509 = vmatprep.subr.bf16.mxu0 0
        %8510 = vmatpush1.bf16.msra.mxu0 0
        %8511 = vmatprep.subr.bf16.mxu0 0
        %8512 = vmatpush1.bf16.msra.mxu0 0
        %8513 = vmatprep.subr.bf16.mxu0 0
        %8514 = vmatpush1.bf16.msra.mxu0 0
        %8515 = vmatprep.subr.bf16.mxu0 0
        %8516 = vmatpush1.bf16.msra.mxu0 0
        %8517 = vmatprep.subr.bf16.mxu0 0
        %8518 = vmatpush1.bf16.msra.mxu0 0
        %8519 = vmatprep.subr.bf16.mxu0 0
        %8520 = vmatpush1.bf16.msra.mxu0 0
        %8521 = vmatprep.subr.bf16.mxu0 0
        %8522 = vmatpush1.bf16.msra.mxu0 0
        %8523 = vmatprep.subr.bf16.mxu0 0
        %8524 = vmatpush1.bf16.msra.mxu0 0
        %8525 = vmatprep.subr.bf16.mxu0 0
        %8526 = vmatpush1.bf16.msra.mxu0 0
        %8527 = vmatprep.subr.bf16.mxu0 0
        %8528 = vmatpush1.bf16.msra.mxu0 0
        %8529 = vmatprep.subr.bf16.mxu0 0
        %8530 = vmatpush1.bf16.msra.mxu0 0
        %8531 = vmatprep.subr.bf16.mxu0 0
        %8532 = vmatpush1.bf16.msra.mxu0 0
        %8533 = vmatprep.subr.bf16.mxu0 0
        %8534 = vmatpush1.bf16.msra.mxu0 0
        %8535 = vmatprep.subr.bf16.mxu0 0
        %8536 = vmatpush1.bf16.msra.mxu0 0
        %8537 = vmatprep.mubr.bf16.mxu0 0
        %8538 = vmatmul.mubr.bf16.gmra.mrb[0].mxu0 %v7691
        %v8539 = vpop.f32.mrb[0].mxu0
        %v8540 = vadd.f32 %v4520, %v8539
        %v8541 = vpop.f32.mrb[0].mxu0
        %v8542 = vadd.f32 %v4524, %v8541
        %v8543 = vpop.f32.mrb[0].mxu0
        %v8544 = vadd.f32 %v4520, %v8543
        %v8545 = vpop.f32.mrb[0].mxu0
        %v8546 = vadd.f32 %v4524, %v8545
        %8547 = vmatprep.mubr.bf16.mxu0 0
        %8548 = vmatmul.mubr.bf16.gmra.mrb[0].mxu0 %v7694
        %v8549 = vpop.f32.mrb[0].mxu0
        %v8550 = vadd.f32 %v4520, %v8549
        %v8551 = vpop.f32.mrb[0].mxu0
        %v8552 = vadd.f32 %v4524, %v8551
        %v8553 = vpop.f32.mrb[0].mxu0
        %v8554 = vadd.f32 %v4520, %v8553
        %v8555 = vpop.f32.mrb[0].mxu0
        %v8556 = vadd.f32 %v4524, %v8555
        %8557 = vmatprep.mubr.bf16.mxu0 0
        %8558 = vmatmul.mubr.bf16.gmra.mrb[0].mxu0 %v7697
        %v8559 = vpop.f32.mrb[0].mxu0
        %v8560 = vadd.f32 %v4520, %v8559
        %v8561 = vpop.f32.mrb[0].mxu0
        %v8562 = vadd.f32 %v4524, %v8561
        %v8563 = vpop.f32.mrb[0].mxu0
        %v8564 = vadd.f32 %v4520, %v8563
        %v8565 = vpop.f32.mrb[0].mxu0
        %v8566 = vadd.f32 %v4524, %v8565
        %8567 = vmatprep.mubr.bf16.mxu0 0
        %8568 = vmatmul.mubr.bf16.gmra.mrb[0].mxu0 %v7700
        %v8569 = vpop.f32.mrb[0].mxu0
        %v8570 = vadd.f32 %v4520, %v8569
        %v8571 = vpop.f32.mrb[0].mxu0
        %v8572 = vadd.f32 %v4524, %v8571
        %v8573 = vpop.f32.mrb[0].mxu0
        %v8574 = vadd.f32 %v4520, %v8573
        %v8575 = vpop.f32.mrb[0].mxu0
        %v8576 = vadd.f32 %v4524, %v8575
        %8577 = vmatprep.mubr.bf16.mxu0 0
        %8578 = vmatmul.mubr.bf16.gmra.mrb[0].mxu0 %v7703
        %v8579 = vpop.f32.mrb[0].mxu0
        %v8580 = vadd.f32 %v4520, %v8579
        %v8581 = vpop.f32.mrb[0].mxu0
        %v8582 = vadd.f32 %v4524, %v8581
        %v8583 = vpop.f32.mrb[0].mxu0
        %v8584 = vadd.f32 %v4520, %v8583
        %v8585 = vpop.f32.mrb[0].mxu0
        %v8586 = vadd.f32 %v4524, %v8585
        %8587 = vmatprep.mubr.bf16.mxu0 0
        %8588 = vmatmul.mubr.bf16.gmra.mrb[0].mxu0 %v7706
        %v8589 = vpop.f32.mrb[0].mxu0
        %v8590 = vadd.f32 %v4520, %v8589
        %v8591 = vpop.f32.mrb[0].mxu0
        %v8592 = vadd.f32 %v4524, %v8591
        %v8593 = vpop.f32.mrb[0].mxu0
        %v8594 = vadd.f32 %v4520, %v8593
        %v8595 = vpop.f32.mrb[0].mxu0
        %v8596 = vadd.f32 %v4524, %v8595
        %8597 = vmatprep.mubr.bf16.mxu0 0
        %8598 = vmatmul.mubr.bf16.gmra.mrb[0].mxu0 %v7709
        %v8599 = vpop.f32.mrb[0].mxu0
        %v8600 = vadd.f32 %v4520, %v8599
        %v8601 = vpop.f32.mrb[0].mxu0
        %v8602 = vadd.f32 %v4524, %v8601
        %v8603 = vpop.f32.mrb[0].mxu0
        %v8604 = vadd.f32 %v4520, %v8603
        %v8605 = vpop.f32.mrb[0].mxu0
        %v8606 = vadd.f32 %v4524, %v8605
        %8607 = vmatprep.mubr.bf16.mxu0 0
        %8608 = vmatmul.mubr.bf16.gmra.mrb[0].mxu0 %v7712
        %v8609 = vpop.f32.mrb[0].mxu0
        %v8610 = vadd.f32 %v4520, %v8609
        %v8611 = vpop.f32.mrb[0].mxu0
        %v8612 = vadd.f32 %v4524, %v8611
        %v8613 = vpop.f32.mrb[0].mxu0
        %v8614 = vadd.f32 %v4520, %v8613
        %v8615 = vpop.f32.mrb[0].mxu0
        %v8616 = vadd.f32 %v4524, %v8615
        %8617 = vdwg.mxu0
        %v8618 = vmax.f32 %v7749, 0.0
        %v8619 = vmax.f32 %v7751, 0.0
        %v8620 = vmax.f32 %v7862, 0.0
        %v8621 = vmax.f32 %v7864, 0.0
        %v8622 = vmax.f32 %v7975, 0.0
        %v8623 = vmax.f32 %v7977, 0.0
        %v8624 = vmax.f32 %v8088, 0.0
        %v8625 = vmax.f32 %v8090, 0.0
        %v8626 = vmax.f32 %v8201, 0.0
        %v8627 = vmax.f32 %v8203, 0.0
        %v8628 = vmax.f32 %v8314, 0.0
        %v8629 = vmax.f32 %v8316, 0.0
        %v8630 = vmax.f32 %v8427, 0.0
        %v8631 = vmax.f32 %v8429, 0.0
        %v8632 = vmax.f32 %v8540, 0.0
        %v8633 = vmax.f32 %v8542, 0.0
        %v8634 = vmax.f32 %v7753, 0.0
        %v8635 = vmax.f32 %v7755, 0.0
        %v8636 = vmax.f32 %v7866, 0.0
        %v8637 = vmax.f32 %v7868, 0.0
        %v8638 = vmax.f32 %v7979, 0.0
        %v8639 = vmax.f32 %v7981, 0.0
        %v8640 = vmax.f32 %v8092, 0.0
        %v8641 = vmax.f32 %v8094, 0.0
        %v8642 = vmax.f32 %v8205, 0.0
        %v8643 = vmax.f32 %v8207, 0.0
        %v8644 = vmax.f32 %v8318, 0.0
        %v8645 = vmax.f32 %v8320, 0.0
        %v8646 = vmax.f32 %v8431, 0.0
        %v8647 = vmax.f32 %v8433, 0.0
        %v8648 = vmax.f32 %v8544, 0.0
        %v8649 = vmax.f32 %v8546, 0.0
        %v8650 = vmax.f32 %v7759, 0.0
        %v8651 = vmax.f32 %v7761, 0.0
        %v8652 = vmax.f32 %v7872, 0.0
        %v8653 = vmax.f32 %v7874, 0.0
        %v8654 = vmax.f32 %v7985, 0.0
        %v8655 = vmax.f32 %v7987, 0.0
        %v8656 = vmax.f32 %v8098, 0.0
        %v8657 = vmax.f32 %v8100, 0.0
        %v8658 = vmax.f32 %v8211, 0.0
        %v8659 = vmax.f32 %v8213, 0.0
        %v8660 = vmax.f32 %v8324, 0.0
        %v8661 = vmax.f32 %v8326, 0.0
        %v8662 = vmax.f32 %v8437, 0.0
        %v8663 = vmax.f32 %v8439, 0.0
        %v8664 = vmax.f32 %v8550, 0.0
        %v8665 = vmax.f32 %v8552, 0.0
        %v8666 = vmax.f32 %v7763, 0.0
        %v8667 = vmax.f32 %v7765, 0.0
        %v8668 = vmax.f32 %v7876, 0.0
        %v8669 = vmax.f32 %v7878, 0.0
        %v8670 = vmax.f32 %v7989, 0.0
        %v8671 = vmax.f32 %v7991, 0.0
        %v8672 = vmax.f32 %v8102, 0.0
        %v8673 = vmax.f32 %v8104, 0.0
        %v8674 = vmax.f32 %v8215, 0.0
        %v8675 = vmax.f32 %v8217, 0.0
        %v8676 = vmax.f32 %v8328, 0.0
        %v8677 = vmax.f32 %v8330, 0.0
        %v8678 = vmax.f32 %v8441, 0.0
        %v8679 = vmax.f32 %v8443, 0.0
        %v8680 = vmax.f32 %v8554, 0.0
        %v8681 = vmax.f32 %v8556, 0.0
        %v8682 = vmax.f32 %v7769, 0.0
        %v8683 = vmax.f32 %v7771, 0.0
        %v8684 = vmax.f32 %v7882, 0.0
        %v8685 = vmax.f32 %v7884, 0.0
        %v8686 = vmax.f32 %v7995, 0.0
        %v8687 = vmax.f32 %v7997, 0.0
        %v8688 = vmax.f32 %v8108, 0.0
        %v8689 = vmax.f32 %v8110, 0.0
        %v8690 = vmax.f32 %v8221, 0.0
        %v8691 = vmax.f32 %v8223, 0.0
        %v8692 = vmax.f32 %v8334, 0.0
        %v8693 = vmax.f32 %v8336, 0.0
        %v8694 = vmax.f32 %v8447, 0.0
        %v8695 = vmax.f32 %v8449, 0.0
        %v8696 = vmax.f32 %v8560, 0.0
        %v8697 = vmax.f32 %v8562, 0.0
        %v8698 = vmax.f32 %v7773, 0.0
        %v8699 = vmax.f32 %v7775, 0.0
        %v8700 = vmax.f32 %v7886, 0.0
        %v8701 = vmax.f32 %v7888, 0.0
        %v8702 = vmax.f32 %v7999, 0.0
        %v8703 = vmax.f32 %v8001, 0.0
        %v8704 = vmax.f32 %v8112, 0.0
        %v8705 = vmax.f32 %v8114, 0.0
        %v8706 = vmax.f32 %v8225, 0.0
        %v8707 = vmax.f32 %v8227, 0.0
        %v8708 = vmax.f32 %v8338, 0.0
        %v8709 = vmax.f32 %v8340, 0.0
        %v8710 = vmax.f32 %v8451, 0.0
        %v8711 = vmax.f32 %v8453, 0.0
        %v8712 = vmax.f32 %v8564, 0.0
        %v8713 = vmax.f32 %v8566, 0.0
        %v8714 = vmax.f32 %v7779, 0.0
        %v8715 = vmax.f32 %v7781, 0.0
        %v8716 = vmax.f32 %v7892, 0.0
        %v8717 = vmax.f32 %v7894, 0.0
        %v8718 = vmax.f32 %v8005, 0.0
        %v8719 = vmax.f32 %v8007, 0.0
        %v8720 = vmax.f32 %v8118, 0.0
        %v8721 = vmax.f32 %v8120, 0.0
        %v8722 = vmax.f32 %v8231, 0.0
        %v8723 = vmax.f32 %v8233, 0.0
        %v8724 = vmax.f32 %v8344, 0.0
        %v8725 = vmax.f32 %v8346, 0.0
        %v8726 = vmax.f32 %v8457, 0.0
        %v8727 = vmax.f32 %v8459, 0.0
        %v8728 = vmax.f32 %v8570, 0.0
        %v8729 = vmax.f32 %v8572, 0.0
        %v8730 = vmax.f32 %v7783, 0.0
        %v8731 = vmax.f32 %v7785, 0.0
        %v8732 = vmax.f32 %v7896, 0.0
        %v8733 = vmax.f32 %v7898, 0.0
        %v8734 = vmax.f32 %v8009, 0.0
        %v8735 = vmax.f32 %v8011, 0.0
        %v8736 = vmax.f32 %v8122, 0.0
        %v8737 = vmax.f32 %v8124, 0.0
        %v8738 = vmax.f32 %v8235, 0.0
        %v8739 = vmax.f32 %v8237, 0.0
        %v8740 = vmax.f32 %v8348, 0.0
        %v8741 = vmax.f32 %v8350, 0.0
        %v8742 = vmax.f32 %v8461, 0.0
        %v8743 = vmax.f32 %v8463, 0.0
        %v8744 = vmax.f32 %v8574, 0.0
        %v8745 = vmax.f32 %v8576, 0.0
        %v8746 = vmax.f32 %v7789, 0.0
        %v8747 = vmax.f32 %v7791, 0.0
        %v8748 = vmax.f32 %v7902, 0.0
        %v8749 = vmax.f32 %v7904, 0.0
        %v8750 = vmax.f32 %v8015, 0.0
        %v8751 = vmax.f32 %v8017, 0.0
        %v8752 = vmax.f32 %v8128, 0.0
        %v8753 = vmax.f32 %v8130, 0.0
        %v8754 = vmax.f32 %v8241, 0.0
        %v8755 = vmax.f32 %v8243, 0.0
        %v8756 = vmax.f32 %v8354, 0.0
        %v8757 = vmax.f32 %v8356, 0.0
        %v8758 = vmax.f32 %v8467, 0.0
        %v8759 = vmax.f32 %v8469, 0.0
        %v8760 = vmax.f32 %v8580, 0.0
        %v8761 = vmax.f32 %v8582, 0.0
        %v8762 = vmax.f32 %v7793, 0.0
        %v8763 = vmax.f32 %v7795, 0.0
        %v8764 = vmax.f32 %v7906, 0.0
        %v8765 = vmax.f32 %v7908, 0.0
        %v8766 = vmax.f32 %v8019, 0.0
        %v8767 = vmax.f32 %v8021, 0.0
        %v8768 = vmax.f32 %v8132, 0.0
        %v8769 = vmax.f32 %v8134, 0.0
        %v8770 = vmax.f32 %v8245, 0.0
        %v8771 = vmax.f32 %v8247, 0.0
        %v8772 = vmax.f32 %v8358, 0.0
        %v8773 = vmax.f32 %v8360, 0.0
        %v8774 = vmax.f32 %v8471, 0.0
        %v8775 = vmax.f32 %v8473, 0.0
        %v8776 = vmax.f32 %v8584, 0.0
        %v8777 = vmax.f32 %v8586, 0.0
        %v8778 = vmax.f32 %v7799, 0.0
        %v8779 = vmax.f32 %v7801, 0.0
        %v8780 = vmax.f32 %v7912, 0.0
        %v8781 = vmax.f32 %v7914, 0.0
        %v8782 = vmax.f32 %v8025, 0.0
        %v8783 = vmax.f32 %v8027, 0.0
        %v8784 = vmax.f32 %v8138, 0.0
        %v8785 = vmax.f32 %v8140, 0.0
        %v8786 = vmax.f32 %v8251, 0.0
        %v8787 = vmax.f32 %v8253, 0.0
        %v8788 = vmax.f32 %v8364, 0.0
        %v8789 = vmax.f32 %v8366, 0.0
        %v8790 = vmax.f32 %v8477, 0.0
        %v8791 = vmax.f32 %v8479, 0.0
        %v8792 = vmax.f32 %v8590, 0.0
        %v8793 = vmax.f32 %v8592, 0.0
        %v8794 = vmax.f32 %v7803, 0.0
        %v8795 = vmax.f32 %v7805, 0.0
        %v8796 = vmax.f32 %v7916, 0.0
        %v8797 = vmax.f32 %v7918, 0.0
        %v8798 = vmax.f32 %v8029, 0.0
        %v8799 = vmax.f32 %v8031, 0.0
        %v8800 = vmax.f32 %v8142, 0.0
        %v8801 = vmax.f32 %v8144, 0.0
        %v8802 = vmax.f32 %v8255, 0.0
        %v8803 = vmax.f32 %v8257, 0.0
        %v8804 = vmax.f32 %v8368, 0.0
        %v8805 = vmax.f32 %v8370, 0.0
        %v8806 = vmax.f32 %v8481, 0.0
        %v8807 = vmax.f32 %v8483, 0.0
        %v8808 = vmax.f32 %v8594, 0.0
        %v8809 = vmax.f32 %v8596, 0.0
        %v8810 = vmax.f32 %v7809, 0.0
        %v8811 = vmax.f32 %v7811, 0.0
        %v8812 = vmax.f32 %v7922, 0.0
        %v8813 = vmax.f32 %v7924, 0.0
        %v8814 = vmax.f32 %v8035, 0.0
        %v8815 = vmax.f32 %v8037, 0.0
        %v8816 = vmax.f32 %v8148, 0.0
        %v8817 = vmax.f32 %v8150, 0.0
        %v8818 = vmax.f32 %v8261, 0.0
        %v8819 = vmax.f32 %v8263, 0.0
        %v8820 = vmax.f32 %v8374, 0.0
        %v8821 = vmax.f32 %v8376, 0.0
        %v8822 = vmax.f32 %v8487, 0.0
        %v8823 = vmax.f32 %v8489, 0.0
        %v8824 = vmax.f32 %v8600, 0.0
        %v8825 = vmax.f32 %v8602, 0.0
        %v8826 = vmax.f32 %v7813, 0.0
        %v8827 = vmax.f32 %v7815, 0.0
        %v8828 = vmax.f32 %v7926, 0.0
        %v8829 = vmax.f32 %v7928, 0.0
        %v8830 = vmax.f32 %v8039, 0.0
        %v8831 = vmax.f32 %v8041, 0.0
        %v8832 = vmax.f32 %v8152, 0.0
        %v8833 = vmax.f32 %v8154, 0.0
        %v8834 = vmax.f32 %v8265, 0.0
        %v8835 = vmax.f32 %v8267, 0.0
        %v8836 = vmax.f32 %v8378, 0.0
        %v8837 = vmax.f32 %v8380, 0.0
        %v8838 = vmax.f32 %v8491, 0.0
        %v8839 = vmax.f32 %v8493, 0.0
        %v8840 = vmax.f32 %v8604, 0.0
        %v8841 = vmax.f32 %v8606, 0.0
        %v8842 = vmax.f32 %v7819, 0.0
        %v8843 = vmax.f32 %v7821, 0.0
        %v8844 = vmax.f32 %v7932, 0.0
        %v8845 = vmax.f32 %v7934, 0.0
        %v8846 = vmax.f32 %v8045, 0.0
        %v8847 = vmax.f32 %v8047, 0.0
        %v8848 = vmax.f32 %v8158, 0.0
        %v8849 = vmax.f32 %v8160, 0.0
        %v8850 = vmax.f32 %v8271, 0.0
        %v8851 = vmax.f32 %v8273, 0.0
        %v8852 = vmax.f32 %v8384, 0.0
        %v8853 = vmax.f32 %v8386, 0.0
        %v8854 = vmax.f32 %v8497, 0.0
        %v8855 = vmax.f32 %v8499, 0.0
        %v8856 = vmax.f32 %v8610, 0.0
        %v8857 = vmax.f32 %v8612, 0.0
        %v8858 = vmax.f32 %v7823, 0.0
        %v8859 = vmax.f32 %v7825, 0.0
        %v8860 = vmax.f32 %v7936, 0.0
        %v8861 = vmax.f32 %v7938, 0.0
        %v8862 = vmax.f32 %v8049, 0.0
        %v8863 = vmax.f32 %v8051, 0.0
        %v8864 = vmax.f32 %v8162, 0.0
        %v8865 = vmax.f32 %v8164, 0.0
        %v8866 = vmax.f32 %v8275, 0.0
        %v8867 = vmax.f32 %v8277, 0.0
        %v8868 = vmax.f32 %v8388, 0.0
        %v8869 = vmax.f32 %v8390, 0.0
        %v8870 = vmax.f32 %v8501, 0.0
        %v8871 = vmax.f32 %v8503, 0.0
        %v8872 = vmax.f32 %v8614, 0.0
        %v8873 = vmax.f32 %v8616, 0.0
        %v8874 = vpack.c.bf16 %v8634, %v8618
        %v8875 = vpack.c.bf16 %v8635, %v8619
        %v8876 = vpack.c.bf16 %v8636, %v8620
        %v8877 = vpack.c.bf16 %v8637, %v8621
        %v8878 = vpack.c.bf16 %v8638, %v8622
        %v8879 = vpack.c.bf16 %v8639, %v8623
        %v8880 = vpack.c.bf16 %v8640, %v8624
        %v8881 = vpack.c.bf16 %v8641, %v8625
        %v8882 = vpack.c.bf16 %v8642, %v8626
        %v8883 = vpack.c.bf16 %v8643, %v8627
        %v8884 = vpack.c.bf16 %v8644, %v8628
        %v8885 = vpack.c.bf16 %v8645, %v8629
        %v8886 = vpack.c.bf16 %v8646, %v8630
        %v8887 = vpack.c.bf16 %v8647, %v8631
        %v8888 = vpack.c.bf16 %v8648, %v8632
        %v8889 = vpack.c.bf16 %v8649, %v8633
        %v8890 = vpack.c.bf16 %v8666, %v8650
        %v8891 = vpack.c.bf16 %v8667, %v8651
        %v8892 = vpack.c.bf16 %v8668, %v8652
        %v8893 = vpack.c.bf16 %v8669, %v8653
        %v8894 = vpack.c.bf16 %v8670, %v8654
        %v8895 = vpack.c.bf16 %v8671, %v8655
        %v8896 = vpack.c.bf16 %v8672, %v8656
        %v8897 = vpack.c.bf16 %v8673, %v8657
        %v8898 = vpack.c.bf16 %v8674, %v8658
        %v8899 = vpack.c.bf16 %v8675, %v8659
        %v8900 = vpack.c.bf16 %v8676, %v8660
        %v8901 = vpack.c.bf16 %v8677, %v8661
        %v8902 = vpack.c.bf16 %v8678, %v8662
        %v8903 = vpack.c.bf16 %v8679, %v8663
        %v8904 = vpack.c.bf16 %v8680, %v8664
        %v8905 = vpack.c.bf16 %v8681, %v8665
        %v8906 = vpack.c.bf16 %v8698, %v8682
        %v8907 = vpack.c.bf16 %v8699, %v8683
        %v8908 = vpack.c.bf16 %v8700, %v8684
        %v8909 = vpack.c.bf16 %v8701, %v8685
        %v8910 = vpack.c.bf16 %v8702, %v8686
        %v8911 = vpack.c.bf16 %v8703, %v8687
        %v8912 = vpack.c.bf16 %v8704, %v8688
        %v8913 = vpack.c.bf16 %v8705, %v8689
        %v8914 = vpack.c.bf16 %v8706, %v8690
        %v8915 = vpack.c.bf16 %v8707, %v8691
        %v8916 = vpack.c.bf16 %v8708, %v8692
        %v8917 = vpack.c.bf16 %v8709, %v8693
        %v8918 = vpack.c.bf16 %v8710, %v8694
        %v8919 = vpack.c.bf16 %v8711, %v8695
        %v8920 = vpack.c.bf16 %v8712, %v8696
        %v8921 = vpack.c.bf16 %v8713, %v8697
        %v8922 = vpack.c.bf16 %v8730, %v8714
        %v8923 = vpack.c.bf16 %v8731, %v8715
        %v8924 = vpack.c.bf16 %v8732, %v8716
        %v8925 = vpack.c.bf16 %v8733, %v8717
        %v8926 = vpack.c.bf16 %v8734, %v8718
        %v8927 = vpack.c.bf16 %v8735, %v8719
        %v8928 = vpack.c.bf16 %v8736, %v8720
        %v8929 = vpack.c.bf16 %v8737, %v8721
        %v8930 = vpack.c.bf16 %v8738, %v8722
        %v8931 = vpack.c.bf16 %v8739, %v8723
        %v8932 = vpack.c.bf16 %v8740, %v8724
        %v8933 = vpack.c.bf16 %v8741, %v8725
        %v8934 = vpack.c.bf16 %v8742, %v8726
        %v8935 = vpack.c.bf16 %v8743, %v8727
        %v8936 = vpack.c.bf16 %v8744, %v8728
        %v8937 = vpack.c.bf16 %v8745, %v8729
        %v8938 = vpack.c.bf16 %v8762, %v8746
        %v8939 = vpack.c.bf16 %v8763, %v8747
        %v8940 = vpack.c.bf16 %v8764, %v8748
        %v8941 = vpack.c.bf16 %v8765, %v8749
        %v8942 = vpack.c.bf16 %v8766, %v8750
        %v8943 = vpack.c.bf16 %v8767, %v8751
        %v8944 = vpack.c.bf16 %v8768, %v8752
        %v8945 = vpack.c.bf16 %v8769, %v8753
        %v8946 = vpack.c.bf16 %v8770, %v8754
        %v8947 = vpack.c.bf16 %v8771, %v8755
        %v8948 = vpack.c.bf16 %v8772, %v8756
        %v8949 = vpack.c.bf16 %v8773, %v8757
        %v8950 = vpack.c.bf16 %v8774, %v8758
        %v8951 = vpack.c.bf16 %v8775, %v8759
        %v8952 = vpack.c.bf16 %v8776, %v8760
        %v8953 = vpack.c.bf16 %v8777, %v8761
        %v8954 = vpack.c.bf16 %v8794, %v8778
        %v8955 = vpack.c.bf16 %v8795, %v8779
        %v8956 = vpack.c.bf16 %v8796, %v8780
        %v8957 = vpack.c.bf16 %v8797, %v8781
        %v8958 = vpack.c.bf16 %v8798, %v8782
        %v8959 = vpack.c.bf16 %v8799, %v8783
        %v8960 = vpack.c.bf16 %v8800, %v8784
        %v8961 = vpack.c.bf16 %v8801, %v8785
        %v8962 = vpack.c.bf16 %v8802, %v8786
        %v8963 = vpack.c.bf16 %v8803, %v8787
        %v8964 = vpack.c.bf16 %v8804, %v8788
        %v8965 = vpack.c.bf16 %v8805, %v8789
        %v8966 = vpack.c.bf16 %v8806, %v8790
        %v8967 = vpack.c.bf16 %v8807, %v8791
        %v8968 = vpack.c.bf16 %v8808, %v8792
        %v8969 = vpack.c.bf16 %v8809, %v8793
        %v8970 = vpack.c.bf16 %v8826, %v8810
        %v8971 = vpack.c.bf16 %v8827, %v8811
        %v8972 = vpack.c.bf16 %v8828, %v8812
        %v8973 = vpack.c.bf16 %v8829, %v8813
        %v8974 = vpack.c.bf16 %v8830, %v8814
        %v8975 = vpack.c.bf16 %v8831, %v8815
        %v8976 = vpack.c.bf16 %v8832, %v8816
        %v8977 = vpack.c.bf16 %v8833, %v8817
        %v8978 = vpack.c.bf16 %v8834, %v8818
        %v8979 = vpack.c.bf16 %v8835, %v8819
        %v8980 = vpack.c.bf16 %v8836, %v8820
        %v8981 = vpack.c.bf16 %v8837, %v8821
        %v8982 = vpack.c.bf16 %v8838, %v8822
        %v8983 = vpack.c.bf16 %v8839, %v8823
        %v8984 = vpack.c.bf16 %v8840, %v8824
        %v8985 = vpack.c.bf16 %v8841, %v8825
        %v8986 = vpack.c.bf16 %v8858, %v8842
        %v8987 = vpack.c.bf16 %v8859, %v8843
        %v8988 = vpack.c.bf16 %v8860, %v8844
        %v8989 = vpack.c.bf16 %v8861, %v8845
        %v8990 = vpack.c.bf16 %v8862, %v8846
        %v8991 = vpack.c.bf16 %v8863, %v8847
        %v8992 = vpack.c.bf16 %v8864, %v8848
        %v8993 = vpack.c.bf16 %v8865, %v8849
        %v8994 = vpack.c.bf16 %v8866, %v8850
        %v8995 = vpack.c.bf16 %v8867, %v8851
        %v8996 = vpack.c.bf16 %v8868, %v8852
        %v8997 = vpack.c.bf16 %v8869, %v8853
        %v8998 = vpack.c.bf16 %v8870, %v8854
        %v8999 = vpack.c.bf16 %v8871, %v8855
        %v9000 = vpack.c.bf16 %v8872, %v8856
        %v9001 = vpack.c.bf16 %v8873, %v8857
        %9002 = vmatprep.subr.bf16.mxu0 %v5971
        %9003 = vmatpush1.bf16.xpose.msra.mxu0 %v5970
        %9004 = vmatprep.subr.bf16.mxu0 0
        %9005 = vmatpush1.bf16.xpose.msra.mxu0 0
        %9006 = vmatprep.subr.bf16.mxu0 0
        %9007 = vmatpush1.bf16.xpose.msra.mxu0 0
        %9008 = vmatprep.subr.bf16.mxu0 0
        %9009 = vmatpush1.bf16.xpose.msra.mxu0 0
        %9010 = vmatprep.subr.bf16.mxu0 0
        %9011 = vmatpush1.bf16.xpose.msra.mxu0 0
        %9012 = vmatprep.subr.bf16.mxu0 0
        %9013 = vmatpush1.bf16.xpose.msra.mxu0 0
        %9014 = vmatprep.subr.bf16.mxu0 0
        %9015 = vmatpush1.bf16.xpose.msra.mxu0 0
        %9016 = vmatprep.subr.bf16.mxu0 0
        %9017 = vmatpush1.bf16.xpose.msra.mxu0 0
        %9018 = vmatprep.subr.bf16.mxu0 0
        %9019 = vmatpush1.bf16.xpose.msra.mxu0 0
        %9020 = vmatprep.subr.bf16.mxu0 0
        %9021 = vmatpush1.bf16.xpose.msra.mxu0 0
        %9022 = vmatprep.subr.bf16.mxu0 0
        %9023 = vmatpush1.bf16.xpose.msra.mxu0 0
        %9024 = vmatprep.subr.bf16.mxu0 0
        %9025 = vmatpush1.bf16.xpose.msra.mxu0 0
        %9026 = vmatprep.subr.bf16.mxu0 0
        %9027 = vmatpush1.bf16.xpose.msra.mxu0 0
        %9028 = vmatprep.subr.bf16.mxu0 0
        %9029 = vmatpush1.bf16.xpose.msra.mxu0 0
        %9030 = vmatprep.subr.bf16.mxu0 0
        %9031 = vmatpush1.bf16.xpose.msra.mxu0 0
        %9032 = vmatprep.subr.bf16.mxu0 0
        %9033 = vmatpush1.bf16.xpose.msra.mxu0 0
        %9034 = vmatprep.mubr.bf16.mxu0 %v8875
        %9035 = vmatmul.mubr.bf16.gmra.mrb[0].mxu0 %v8874
        %v9036 = vpop.f32.mrb[0].mxu0
        %v9037 = vadd.f32 %v5929, %v9036
        %v9038 = vpop.f32.mrb[0].mxu0
        %v9039 = vpop.f32.mrb[0].mxu0
        %v9040 = vadd.f32 %v5929, %v9039
        %v9041 = vpop.f32.mrb[0].mxu0
        %9042 = vmatprep.mubr.bf16.mxu0 %v8891
        %9043 = vmatmul.mubr.bf16.gmra.mrb[0].mxu0 %v8890
        %v9044 = vpop.f32.mrb[0].mxu0
        %v9045 = vadd.f32 %v5929, %v9044
        %v9046 = vpop.f32.mrb[0].mxu0
        %v9047 = vpop.f32.mrb[0].mxu0
        %v9048 = vadd.f32 %v5929, %v9047
        %v9049 = vpop.f32.mrb[0].mxu0
        %9050 = vmatprep.mubr.bf16.mxu0 %v8907
        %9051 = vmatmul.mubr.bf16.gmra.mrb[0].mxu0 %v8906
        %v9052 = vpop.f32.mrb[0].mxu0
        %v9053 = vadd.f32 %v5929, %v9052
        %v9054 = vpop.f32.mrb[0].mxu0
        %v9055 = vpop.f32.mrb[0].mxu0
        %v9056 = vadd.f32 %v5929, %v9055
        %v9057 = vpop.f32.mrb[0].mxu0
        %9058 = vmatprep.mubr.bf16.mxu0 %v8923
        %9059 = vmatmul.mubr.bf16.gmra.mrb[0].mxu0 %v8922
        %v9060 = vpop.f32.mrb[0].mxu0
        %v9061 = vadd.f32 %v5929, %v9060
        %v9062 = vpop.f32.mrb[0].mxu0
        %v9063 = vpop.f32.mrb[0].mxu0
        %v9064 = vadd.f32 %v5929, %v9063
        %v9065 = vpop.f32.mrb[0].mxu0
        %9066 = vmatprep.mubr.bf16.mxu0 %v8939
        %9067 = vmatmul.mubr.bf16.gmra.mrb[0].mxu0 %v8938
        %v9068 = vpop.f32.mrb[0].mxu0
        %v9069 = vadd.f32 %v5929, %v9068
        %v9070 = vpop.f32.mrb[0].mxu0
        %v9071 = vpop.f32.mrb[0].mxu0
        %v9072 = vadd.f32 %v5929, %v9071
        %v9073 = vpop.f32.mrb[0].mxu0
        %9074 = vmatprep.mubr.bf16.mxu0 %v8955
        %9075 = vmatmul.mubr.bf16.gmra.mrb[0].mxu0 %v8954
        %v9076 = vpop.f32.mrb[0].mxu0
        %v9077 = vadd.f32 %v5929, %v9076
        %v9078 = vpop.f32.mrb[0].mxu0
        %v9079 = vpop.f32.mrb[0].mxu0
        %v9080 = vadd.f32 %v5929, %v9079
        %v9081 = vpop.f32.mrb[0].mxu0
        %9082 = vmatprep.mubr.bf16.mxu0 %v8971
        %9083 = vmatmul.mubr.bf16.gmra.mrb[0].mxu0 %v8970
        %v9084 = vpop.f32.mrb[0].mxu0
        %v9085 = vadd.f32 %v5929, %v9084
        %v9086 = vpop.f32.mrb[0].mxu0
        %v9087 = vpop.f32.mrb[0].mxu0
        %v9088 = vadd.f32 %v5929, %v9087
        %v9089 = vpop.f32.mrb[0].mxu0
        %9090 = vmatprep.mubr.bf16.mxu0 %v8987
        %9091 = vmatmul.mubr.bf16.gmra.mrb[0].mxu0 %v8986
        %v9092 = vpop.f32.mrb[0].mxu0
        %v9093 = vadd.f32 %v5929, %v9092
        %v9094 = vpop.f32.mrb[0].mxu0
        %v9095 = vpop.f32.mrb[0].mxu0
        %v9096 = vadd.f32 %v5929, %v9095
        %v9097 = vpop.f32.mrb[0].mxu0
        %9098 = vdwg.mxu0
        %9099 = vmatprep.subr.bf16.mxu0 %v5973
        %9100 = vmatpush1.bf16.xpose.msra.mxu0 %v5972
        %9101 = vmatprep.subr.bf16.mxu0 0
        %9102 = vmatpush1.bf16.xpose.msra.mxu0 0
        %9103 = vmatprep.subr.bf16.mxu0 0
        %9104 = vmatpush1.bf16.xpose.msra.mxu0 0
        %9105 = vmatprep.subr.bf16.mxu0 0
        %9106 = vmatpush1.bf16.xpose.msra.mxu0 0
        %9107 = vmatprep.subr.bf16.mxu0 0
        %9108 = vmatpush1.bf16.xpose.msra.mxu0 0
        %9109 = vmatprep.subr.bf16.mxu0 0
        %9110 = vmatpush1.bf16.xpose.msra.mxu0 0
        %9111 = vmatprep.subr.bf16.mxu0 0
        %9112 = vmatpush1.bf16.xpose.msra.mxu0 0
        %9113 = vmatprep.subr.bf16.mxu0 0
        %9114 = vmatpush1.bf16.xpose.msra.mxu0 0
        %9115 = vmatprep.subr.bf16.mxu0 0
        %9116 = vmatpush1.bf16.xpose.msra.mxu0 0
        %9117 = vmatprep.subr.bf16.mxu0 0
        %9118 = vmatpush1.bf16.xpose.msra.mxu0 0
        %9119 = vmatprep.subr.bf16.mxu0 0
        %9120 = vmatpush1.bf16.xpose.msra.mxu0 0
        %9121 = vmatprep.subr.bf16.mxu0 0
        %9122 = vmatpush1.bf16.xpose.msra.mxu0 0
        %9123 = vmatprep.subr.bf16.mxu0 0
        %9124 = vmatpush1.bf16.xpose.msra.mxu0 0
        %9125 = vmatprep.subr.bf16.mxu0 0
        %9126 = vmatpush1.bf16.xpose.msra.mxu0 0
        %9127 = vmatprep.subr.bf16.mxu0 0
        %9128 = vmatpush1.bf16.xpose.msra.mxu0 0
        %9129 = vmatprep.subr.bf16.mxu0 0
        %9130 = vmatpush1.bf16.xpose.msra.mxu0 0
        %9131 = vmatprep.mubr.bf16.mxu0 %v8877
        %9132 = vmatmul.mubr.bf16.gmra.mrb[0].mxu0 %v8876
        %v9133 = vpop.f32.mrb[0].mxu0
        %v9134 = vadd.f32 %v9037, %v9133
        %v9135 = vpop.f32.mrb[0].mxu0
        %v9136 = vpop.f32.mrb[0].mxu0
        %v9137 = vadd.f32 %v9040, %v9136
        %v9138 = vpop.f32.mrb[0].mxu0
        %9139 = vmatprep.mubr.bf16.mxu0 %v8893
        %9140 = vmatmul.mubr.bf16.gmra.mrb[0].mxu0 %v8892
        %v9141 = vpop.f32.mrb[0].mxu0
        %v9142 = vadd.f32 %v9045, %v9141
        %v9143 = vpop.f32.mrb[0].mxu0
        %v9144 = vpop.f32.mrb[0].mxu0
        %v9145 = vadd.f32 %v9048, %v9144
        %v9146 = vpop.f32.mrb[0].mxu0
        %9147 = vmatprep.mubr.bf16.mxu0 %v8909
        %9148 = vmatmul.mubr.bf16.gmra.mrb[0].mxu0 %v8908
        %v9149 = vpop.f32.mrb[0].mxu0
        %v9150 = vadd.f32 %v9053, %v9149
        %v9151 = vpop.f32.mrb[0].mxu0
        %v9152 = vpop.f32.mrb[0].mxu0
        %v9153 = vadd.f32 %v9056, %v9152
        %v9154 = vpop.f32.mrb[0].mxu0
        %9155 = vmatprep.mubr.bf16.mxu0 %v8925
        %9156 = vmatmul.mubr.bf16.gmra.mrb[0].mxu0 %v8924
        %v9157 = vpop.f32.mrb[0].mxu0
        %v9158 = vadd.f32 %v9061, %v9157
        %v9159 = vpop.f32.mrb[0].mxu0
        %v9160 = vpop.f32.mrb[0].mxu0
        %v9161 = vadd.f32 %v9064, %v9160
        %v9162 = vpop.f32.mrb[0].mxu0
        %9163 = vmatprep.mubr.bf16.mxu0 %v8941
        %9164 = vmatmul.mubr.bf16.gmra.mrb[0].mxu0 %v8940
        %v9165 = vpop.f32.mrb[0].mxu0
        %v9166 = vadd.f32 %v9069, %v9165
        %v9167 = vpop.f32.mrb[0].mxu0
        %v9168 = vpop.f32.mrb[0].mxu0
        %v9169 = vadd.f32 %v9072, %v9168
        %v9170 = vpop.f32.mrb[0].mxu0
        %9171 = vmatprep.mubr.bf16.mxu0 %v8957
        %9172 = vmatmul.mubr.bf16.gmra.mrb[0].mxu0 %v8956
        %v9173 = vpop.f32.mrb[0].mxu0
        %v9174 = vadd.f32 %v9077, %v9173
        %v9175 = vpop.f32.mrb[0].mxu0
        %v9176 = vpop.f32.mrb[0].mxu0
        %v9177 = vadd.f32 %v9080, %v9176
        %v9178 = vpop.f32.mrb[0].mxu0
        %9179 = vmatprep.mubr.bf16.mxu0 %v8973
        %9180 = vmatmul.mubr.bf16.gmra.mrb[0].mxu0 %v8972
        %v9181 = vpop.f32.mrb[0].mxu0
        %v9182 = vadd.f32 %v9085, %v9181
        %v9183 = vpop.f32.mrb[0].mxu0
        %v9184 = vpop.f32.mrb[0].mxu0
        %v9185 = vadd.f32 %v9088, %v9184
        %v9186 = vpop.f32.mrb[0].mxu0
        %9187 = vmatprep.mubr.bf16.mxu0 %v8989
        %9188 = vmatmul.mubr.bf16.gmra.mrb[0].mxu0 %v8988
        %v9189 = vpop.f32.mrb[0].mxu0
        %v9190 = vadd.f32 %v9093, %v9189
        %v9191 = vpop.f32.mrb[0].mxu0
        %v9192 = vpop.f32.mrb[0].mxu0
        %v9193 = vadd.f32 %v9096, %v9192
        %v9194 = vpop.f32.mrb[0].mxu0
        %9195 = vdwg.mxu0
        %9196 = vmatprep.subr.bf16.mxu0 %v5975
        %9197 = vmatpush1.bf16.xpose.msra.mxu0 %v5974
        %9198 = vmatprep.subr.bf16.mxu0 0
        %9199 = vmatpush1.bf16.xpose.msra.mxu0 0
        %9200 = vmatprep.subr.bf16.mxu0 0
        %9201 = vmatpush1.bf16.xpose.msra.mxu0 0
        %9202 = vmatprep.subr.bf16.mxu0 0
        %9203 = vmatpush1.bf16.xpose.msra.mxu0 0
        %9204 = vmatprep.subr.bf16.mxu0 0
        %9205 = vmatpush1.bf16.xpose.msra.mxu0 0
        %9206 = vmatprep.subr.bf16.mxu0 0
        %9207 = vmatpush1.bf16.xpose.msra.mxu0 0
        %9208 = vmatprep.subr.bf16.mxu0 0
        %9209 = vmatpush1.bf16.xpose.msra.mxu0 0
        %9210 = vmatprep.subr.bf16.mxu0 0
        %9211 = vmatpush1.bf16.xpose.msra.mxu0 0
        %9212 = vmatprep.subr.bf16.mxu0 0
        %9213 = vmatpush1.bf16.xpose.msra.mxu0 0
        %9214 = vmatprep.subr.bf16.mxu0 0
        %9215 = vmatpush1.bf16.xpose.msra.mxu0 0
        %9216 = vmatprep.subr.bf16.mxu0 0
        %9217 = vmatpush1.bf16.xpose.msra.mxu0 0
        %9218 = vmatprep.subr.bf16.mxu0 0
        %9219 = vmatpush1.bf16.xpose.msra.mxu0 0
        %9220 = vmatprep.subr.bf16.mxu0 0
        %9221 = vmatpush1.bf16.xpose.msra.mxu0 0
        %9222 = vmatprep.subr.bf16.mxu0 0
        %9223 = vmatpush1.bf16.xpose.msra.mxu0 0
        %9224 = vmatprep.subr.bf16.mxu0 0
        %9225 = vmatpush1.bf16.xpose.msra.mxu0 0
        %9226 = vmatprep.subr.bf16.mxu0 0
        %9227 = vmatpush1.bf16.xpose.msra.mxu0 0
        %9228 = vmatprep.mubr.bf16.mxu0 %v8879
        %9229 = vmatmul.mubr.bf16.gmra.mrb[0].mxu0 %v8878
        %v9230 = vpop.f32.mrb[0].mxu0
        %v9231 = vadd.f32 %v9134, %v9230
        %v9232 = vpop.f32.mrb[0].mxu0
        %v9233 = vpop.f32.mrb[0].mxu0
        %v9234 = vadd.f32 %v9137, %v9233
        %v9235 = vpop.f32.mrb[0].mxu0
        %9236 = vmatprep.mubr.bf16.mxu0 %v8895
        %9237 = vmatmul.mubr.bf16.gmra.mrb[0].mxu0 %v8894
        %v9238 = vpop.f32.mrb[0].mxu0
        %v9239 = vadd.f32 %v9142, %v9238
        %v9240 = vpop.f32.mrb[0].mxu0
        %v9241 = vpop.f32.mrb[0].mxu0
        %v9242 = vadd.f32 %v9145, %v9241
        %v9243 = vpop.f32.mrb[0].mxu0
        %9244 = vmatprep.mubr.bf16.mxu0 %v8911
        %9245 = vmatmul.mubr.bf16.gmra.mrb[0].mxu0 %v8910
        %v9246 = vpop.f32.mrb[0].mxu0
        %v9247 = vadd.f32 %v9150, %v9246
        %v9248 = vpop.f32.mrb[0].mxu0
        %v9249 = vpop.f32.mrb[0].mxu0
        %v9250 = vadd.f32 %v9153, %v9249
        %v9251 = vpop.f32.mrb[0].mxu0
        %9252 = vmatprep.mubr.bf16.mxu0 %v8927
        %9253 = vmatmul.mubr.bf16.gmra.mrb[0].mxu0 %v8926
        %v9254 = vpop.f32.mrb[0].mxu0
        %v9255 = vadd.f32 %v9158, %v9254
        %v9256 = vpop.f32.mrb[0].mxu0
        %v9257 = vpop.f32.mrb[0].mxu0
        %v9258 = vadd.f32 %v9161, %v9257
        %v9259 = vpop.f32.mrb[0].mxu0
        %9260 = vmatprep.mubr.bf16.mxu0 %v8943
        %9261 = vmatmul.mubr.bf16.gmra.mrb[0].mxu0 %v8942
        %v9262 = vpop.f32.mrb[0].mxu0
        %v9263 = vadd.f32 %v9166, %v9262
        %v9264 = vpop.f32.mrb[0].mxu0
        %v9265 = vpop.f32.mrb[0].mxu0
        %v9266 = vadd.f32 %v9169, %v9265
        %v9267 = vpop.f32.mrb[0].mxu0
        %9268 = vmatprep.mubr.bf16.mxu0 %v8959
        %9269 = vmatmul.mubr.bf16.gmra.mrb[0].mxu0 %v8958
        %v9270 = vpop.f32.mrb[0].mxu0
        %v9271 = vadd.f32 %v9174, %v9270
        %v9272 = vpop.f32.mrb[0].mxu0
        %v9273 = vpop.f32.mrb[0].mxu0
        %v9274 = vadd.f32 %v9177, %v9273
        %v9275 = vpop.f32.mrb[0].mxu0
        %9276 = vmatprep.mubr.bf16.mxu0 %v8975
        %9277 = vmatmul.mubr.bf16.gmra.mrb[0].mxu0 %v8974
        %v9278 = vpop.f32.mrb[0].mxu0
        %v9279 = vadd.f32 %v9182, %v9278
        %v9280 = vpop.f32.mrb[0].mxu0
        %v9281 = vpop.f32.mrb[0].mxu0
        %v9282 = vadd.f32 %v9185, %v9281
        %v9283 = vpop.f32.mrb[0].mxu0
        %9284 = vmatprep.mubr.bf16.mxu0 %v8991
        %9285 = vmatmul.mubr.bf16.gmra.mrb[0].mxu0 %v8990
        %v9286 = vpop.f32.mrb[0].mxu0
        %v9287 = vadd.f32 %v9190, %v9286
        %v9288 = vpop.f32.mrb[0].mxu0
        %v9289 = vpop.f32.mrb[0].mxu0
        %v9290 = vadd.f32 %v9193, %v9289
        %v9291 = vpop.f32.mrb[0].mxu0
        %9292 = vdwg.mxu0
        %9293 = vmatprep.subr.bf16.mxu0 %v5977
        %9294 = vmatpush1.bf16.xpose.msra.mxu0 %v5976
        %9295 = vmatprep.subr.bf16.mxu0 0
        %9296 = vmatpush1.bf16.xpose.msra.mxu0 0
        %9297 = vmatprep.subr.bf16.mxu0 0
        %9298 = vmatpush1.bf16.xpose.msra.mxu0 0
        %9299 = vmatprep.subr.bf16.mxu0 0
        %9300 = vmatpush1.bf16.xpose.msra.mxu0 0
        %9301 = vmatprep.subr.bf16.mxu0 0
        %9302 = vmatpush1.bf16.xpose.msra.mxu0 0
        %9303 = vmatprep.subr.bf16.mxu0 0
        %9304 = vmatpush1.bf16.xpose.msra.mxu0 0
        %9305 = vmatprep.subr.bf16.mxu0 0
        %9306 = vmatpush1.bf16.xpose.msra.mxu0 0
        %9307 = vmatprep.subr.bf16.mxu0 0
        %9308 = vmatpush1.bf16.xpose.msra.mxu0 0
        %9309 = vmatprep.subr.bf16.mxu0 0
        %9310 = vmatpush1.bf16.xpose.msra.mxu0 0
        %9311 = vmatprep.subr.bf16.mxu0 0
        %9312 = vmatpush1.bf16.xpose.msra.mxu0 0
        %9313 = vmatprep.subr.bf16.mxu0 0
        %9314 = vmatpush1.bf16.xpose.msra.mxu0 0
        %9315 = vmatprep.subr.bf16.mxu0 0
        %9316 = vmatpush1.bf16.xpose.msra.mxu0 0
        %9317 = vmatprep.subr.bf16.mxu0 0
        %9318 = vmatpush1.bf16.xpose.msra.mxu0 0
        %9319 = vmatprep.subr.bf16.mxu0 0
        %9320 = vmatpush1.bf16.xpose.msra.mxu0 0
        %9321 = vmatprep.subr.bf16.mxu0 0
        %9322 = vmatpush1.bf16.xpose.msra.mxu0 0
        %9323 = vmatprep.subr.bf16.mxu0 0
        %9324 = vmatpush1.bf16.xpose.msra.mxu0 0
        %9325 = vmatprep.mubr.bf16.mxu0 %v8881
        %9326 = vmatmul.mubr.bf16.gmra.mrb[0].mxu0 %v8880
        %v9327 = vpop.f32.mrb[0].mxu0
        %v9328 = vadd.f32 %v9231, %v9327
        %v9329 = vpop.f32.mrb[0].mxu0
        %v9330 = vpop.f32.mrb[0].mxu0
        %v9331 = vadd.f32 %v9234, %v9330
        %v9332 = vpop.f32.mrb[0].mxu0
        %9333 = vmatprep.mubr.bf16.mxu0 %v8897
        %9334 = vmatmul.mubr.bf16.gmra.mrb[0].mxu0 %v8896
        %v9335 = vpop.f32.mrb[0].mxu0
        %v9336 = vadd.f32 %v9239, %v9335
        %v9337 = vpop.f32.mrb[0].mxu0
        %v9338 = vpop.f32.mrb[0].mxu0
        %v9339 = vadd.f32 %v9242, %v9338
        %v9340 = vpop.f32.mrb[0].mxu0
        %9341 = vmatprep.mubr.bf16.mxu0 %v8913
        %9342 = vmatmul.mubr.bf16.gmra.mrb[0].mxu0 %v8912
        %v9343 = vpop.f32.mrb[0].mxu0
        %v9344 = vadd.f32 %v9247, %v9343
        %v9345 = vpop.f32.mrb[0].mxu0
        %v9346 = vpop.f32.mrb[0].mxu0
        %v9347 = vadd.f32 %v9250, %v9346
        %v9348 = vpop.f32.mrb[0].mxu0
        %9349 = vmatprep.mubr.bf16.mxu0 %v8929
        %9350 = vmatmul.mubr.bf16.gmra.mrb[0].mxu0 %v8928
        %v9351 = vpop.f32.mrb[0].mxu0
        %v9352 = vadd.f32 %v9255, %v9351
        %v9353 = vpop.f32.mrb[0].mxu0
        %v9354 = vpop.f32.mrb[0].mxu0
        %v9355 = vadd.f32 %v9258, %v9354
        %v9356 = vpop.f32.mrb[0].mxu0
        %9357 = vmatprep.mubr.bf16.mxu0 %v8945
        %9358 = vmatmul.mubr.bf16.gmra.mrb[0].mxu0 %v8944
        %v9359 = vpop.f32.mrb[0].mxu0
        %v9360 = vadd.f32 %v9263, %v9359
        %v9361 = vpop.f32.mrb[0].mxu0
        %v9362 = vpop.f32.mrb[0].mxu0
        %v9363 = vadd.f32 %v9266, %v9362
        %v9364 = vpop.f32.mrb[0].mxu0
        %9365 = vmatprep.mubr.bf16.mxu0 %v8961
        %9366 = vmatmul.mubr.bf16.gmra.mrb[0].mxu0 %v8960
        %v9367 = vpop.f32.mrb[0].mxu0
        %v9368 = vadd.f32 %v9271, %v9367
        %v9369 = vpop.f32.mrb[0].mxu0
        %v9370 = vpop.f32.mrb[0].mxu0
        %v9371 = vadd.f32 %v9274, %v9370
        %v9372 = vpop.f32.mrb[0].mxu0
        %9373 = vmatprep.mubr.bf16.mxu0 %v8977
        %9374 = vmatmul.mubr.bf16.gmra.mrb[0].mxu0 %v8976
        %v9375 = vpop.f32.mrb[0].mxu0
        %v9376 = vadd.f32 %v9279, %v9375
        %v9377 = vpop.f32.mrb[0].mxu0
        %v9378 = vpop.f32.mrb[0].mxu0
        %v9379 = vadd.f32 %v9282, %v9378
        %v9380 = vpop.f32.mrb[0].mxu0
        %9381 = vmatprep.mubr.bf16.mxu0 %v8993
        %9382 = vmatmul.mubr.bf16.gmra.mrb[0].mxu0 %v8992
        %v9383 = vpop.f32.mrb[0].mxu0
        %v9384 = vadd.f32 %v9287, %v9383
        %v9385 = vpop.f32.mrb[0].mxu0
        %v9386 = vpop.f32.mrb[0].mxu0
        %v9387 = vadd.f32 %v9290, %v9386
        %v9388 = vpop.f32.mrb[0].mxu0
        %9389 = vdwg.mxu0
        %9390 = vmatprep.subr.bf16.mxu0 %v5979
        %9391 = vmatpush1.bf16.xpose.msra.mxu0 %v5978
        %9392 = vmatprep.subr.bf16.mxu0 0
        %9393 = vmatpush1.bf16.xpose.msra.mxu0 0
        %9394 = vmatprep.subr.bf16.mxu0 0
        %9395 = vmatpush1.bf16.xpose.msra.mxu0 0
        %9396 = vmatprep.subr.bf16.mxu0 0
        %9397 = vmatpush1.bf16.xpose.msra.mxu0 0
        %9398 = vmatprep.subr.bf16.mxu0 0
        %9399 = vmatpush1.bf16.xpose.msra.mxu0 0
        %9400 = vmatprep.subr.bf16.mxu0 0
        %9401 = vmatpush1.bf16.xpose.msra.mxu0 0
        %9402 = vmatprep.subr.bf16.mxu0 0
        %9403 = vmatpush1.bf16.xpose.msra.mxu0 0
        %9404 = vmatprep.subr.bf16.mxu0 0
        %9405 = vmatpush1.bf16.xpose.msra.mxu0 0
        %9406 = vmatprep.subr.bf16.mxu0 0
        %9407 = vmatpush1.bf16.xpose.msra.mxu0 0
        %9408 = vmatprep.subr.bf16.mxu0 0
        %9409 = vmatpush1.bf16.xpose.msra.mxu0 0
        %9410 = vmatprep.subr.bf16.mxu0 0
        %9411 = vmatpush1.bf16.xpose.msra.mxu0 0
        %9412 = vmatprep.subr.bf16.mxu0 0
        %9413 = vmatpush1.bf16.xpose.msra.mxu0 0
        %9414 = vmatprep.subr.bf16.mxu0 0
        %9415 = vmatpush1.bf16.xpose.msra.mxu0 0
        %9416 = vmatprep.subr.bf16.mxu0 0
        %9417 = vmatpush1.bf16.xpose.msra.mxu0 0
        %9418 = vmatprep.subr.bf16.mxu0 0
        %9419 = vmatpush1.bf16.xpose.msra.mxu0 0
        %9420 = vmatprep.subr.bf16.mxu0 0
        %9421 = vmatpush1.bf16.xpose.msra.mxu0 0
        %9422 = vmatprep.mubr.bf16.mxu0 %v8883
        %9423 = vmatmul.mubr.bf16.gmra.mrb[0].mxu0 %v8882
        %v9424 = vpop.f32.mrb[0].mxu0
        %v9425 = vadd.f32 %v9328, %v9424
        %v9426 = vpop.f32.mrb[0].mxu0
        %v9427 = vpop.f32.mrb[0].mxu0
        %v9428 = vadd.f32 %v9331, %v9427
        %v9429 = vpop.f32.mrb[0].mxu0
        %9430 = vmatprep.mubr.bf16.mxu0 %v8899
        %9431 = vmatmul.mubr.bf16.gmra.mrb[0].mxu0 %v8898
        %v9432 = vpop.f32.mrb[0].mxu0
        %v9433 = vadd.f32 %v9336, %v9432
        %v9434 = vpop.f32.mrb[0].mxu0
        %v9435 = vpop.f32.mrb[0].mxu0
        %v9436 = vadd.f32 %v9339, %v9435
        %v9437 = vpop.f32.mrb[0].mxu0
        %9438 = vmatprep.mubr.bf16.mxu0 %v8915
        %9439 = vmatmul.mubr.bf16.gmra.mrb[0].mxu0 %v8914
        %v9440 = vpop.f32.mrb[0].mxu0
        %v9441 = vadd.f32 %v9344, %v9440
        %v9442 = vpop.f32.mrb[0].mxu0
        %v9443 = vpop.f32.mrb[0].mxu0
        %v9444 = vadd.f32 %v9347, %v9443
        %v9445 = vpop.f32.mrb[0].mxu0
        %9446 = vmatprep.mubr.bf16.mxu0 %v8931
        %9447 = vmatmul.mubr.bf16.gmra.mrb[0].mxu0 %v8930
        %v9448 = vpop.f32.mrb[0].mxu0
        %v9449 = vadd.f32 %v9352, %v9448
        %v9450 = vpop.f32.mrb[0].mxu0
        %v9451 = vpop.f32.mrb[0].mxu0
        %v9452 = vadd.f32 %v9355, %v9451
        %v9453 = vpop.f32.mrb[0].mxu0
        %9454 = vmatprep.mubr.bf16.mxu0 %v8947
        %9455 = vmatmul.mubr.bf16.gmra.mrb[0].mxu0 %v8946
        %v9456 = vpop.f32.mrb[0].mxu0
        %v9457 = vadd.f32 %v9360, %v9456
        %v9458 = vpop.f32.mrb[0].mxu0
        %v9459 = vpop.f32.mrb[0].mxu0
        %v9460 = vadd.f32 %v9363, %v9459
        %v9461 = vpop.f32.mrb[0].mxu0
        %9462 = vmatprep.mubr.bf16.mxu0 %v8963
        %9463 = vmatmul.mubr.bf16.gmra.mrb[0].mxu0 %v8962
        %v9464 = vpop.f32.mrb[0].mxu0
        %v9465 = vadd.f32 %v9368, %v9464
        %v9466 = vpop.f32.mrb[0].mxu0
        %v9467 = vpop.f32.mrb[0].mxu0
        %v9468 = vadd.f32 %v9371, %v9467
        %v9469 = vpop.f32.mrb[0].mxu0
        %9470 = vmatprep.mubr.bf16.mxu0 %v8979
        %9471 = vmatmul.mubr.bf16.gmra.mrb[0].mxu0 %v8978
        %v9472 = vpop.f32.mrb[0].mxu0
        %v9473 = vadd.f32 %v9376, %v9472
        %v9474 = vpop.f32.mrb[0].mxu0
        %v9475 = vpop.f32.mrb[0].mxu0
        %v9476 = vadd.f32 %v9379, %v9475
        %v9477 = vpop.f32.mrb[0].mxu0
        %9478 = vmatprep.mubr.bf16.mxu0 %v8995
        %9479 = vmatmul.mubr.bf16.gmra.mrb[0].mxu0 %v8994
        %v9480 = vpop.f32.mrb[0].mxu0
        %v9481 = vadd.f32 %v9384, %v9480
        %v9482 = vpop.f32.mrb[0].mxu0
        %v9483 = vpop.f32.mrb[0].mxu0
        %v9484 = vadd.f32 %v9387, %v9483
        %v9485 = vpop.f32.mrb[0].mxu0
        %9486 = vdwg.mxu0
        %9487 = vmatprep.subr.bf16.mxu0 %v5981
        %9488 = vmatpush1.bf16.xpose.msra.mxu0 %v5980
        %9489 = vmatprep.subr.bf16.mxu0 0
        %9490 = vmatpush1.bf16.xpose.msra.mxu0 0
        %9491 = vmatprep.subr.bf16.mxu0 0
        %9492 = vmatpush1.bf16.xpose.msra.mxu0 0
        %9493 = vmatprep.subr.bf16.mxu0 0
        %9494 = vmatpush1.bf16.xpose.msra.mxu0 0
        %9495 = vmatprep.subr.bf16.mxu0 0
        %9496 = vmatpush1.bf16.xpose.msra.mxu0 0
        %9497 = vmatprep.subr.bf16.mxu0 0
        %9498 = vmatpush1.bf16.xpose.msra.mxu0 0
        %9499 = vmatprep.subr.bf16.mxu0 0
        %9500 = vmatpush1.bf16.xpose.msra.mxu0 0
        %9501 = vmatprep.subr.bf16.mxu0 0
        %9502 = vmatpush1.bf16.xpose.msra.mxu0 0
        %9503 = vmatprep.subr.bf16.mxu0 0
        %9504 = vmatpush1.bf16.xpose.msra.mxu0 0
        %9505 = vmatprep.subr.bf16.mxu0 0
        %9506 = vmatpush1.bf16.xpose.msra.mxu0 0
        %9507 = vmatprep.subr.bf16.mxu0 0
        %9508 = vmatpush1.bf16.xpose.msra.mxu0 0
        %9509 = vmatprep.subr.bf16.mxu0 0
        %9510 = vmatpush1.bf16.xpose.msra.mxu0 0
        %9511 = vmatprep.subr.bf16.mxu0 0
        %9512 = vmatpush1.bf16.xpose.msra.mxu0 0
        %9513 = vmatprep.subr.bf16.mxu0 0
        %9514 = vmatpush1.bf16.xpose.msra.mxu0 0
        %9515 = vmatprep.subr.bf16.mxu0 0
        %9516 = vmatpush1.bf16.xpose.msra.mxu0 0
        %9517 = vmatprep.subr.bf16.mxu0 0
        %9518 = vmatpush1.bf16.xpose.msra.mxu0 0
        %9519 = vmatprep.mubr.bf16.mxu0 %v8885
        %9520 = vmatmul.mubr.bf16.gmra.mrb[0].mxu0 %v8884
        %v9521 = vpop.f32.mrb[0].mxu0
        %v9522 = vadd.f32 %v9425, %v9521
        %v9523 = vpop.f32.mrb[0].mxu0
        %v9524 = vpop.f32.mrb[0].mxu0
        %v9525 = vadd.f32 %v9428, %v9524
        %v9526 = vpop.f32.mrb[0].mxu0
        %9527 = vmatprep.mubr.bf16.mxu0 %v8901
        %9528 = vmatmul.mubr.bf16.gmra.mrb[0].mxu0 %v8900
        %v9529 = vpop.f32.mrb[0].mxu0
        %v9530 = vadd.f32 %v9433, %v9529
        %v9531 = vpop.f32.mrb[0].mxu0
        %v9532 = vpop.f32.mrb[0].mxu0
        %v9533 = vadd.f32 %v9436, %v9532
        %v9534 = vpop.f32.mrb[0].mxu0
        %9535 = vmatprep.mubr.bf16.mxu0 %v8917
        %9536 = vmatmul.mubr.bf16.gmra.mrb[0].mxu0 %v8916
        %v9537 = vpop.f32.mrb[0].mxu0
        %v9538 = vadd.f32 %v9441, %v9537
        %v9539 = vpop.f32.mrb[0].mxu0
        %v9540 = vpop.f32.mrb[0].mxu0
        %v9541 = vadd.f32 %v9444, %v9540
        %v9542 = vpop.f32.mrb[0].mxu0
        %9543 = vmatprep.mubr.bf16.mxu0 %v8933
        %9544 = vmatmul.mubr.bf16.gmra.mrb[0].mxu0 %v8932
        %v9545 = vpop.f32.mrb[0].mxu0
        %v9546 = vadd.f32 %v9449, %v9545
        %v9547 = vpop.f32.mrb[0].mxu0
        %v9548 = vpop.f32.mrb[0].mxu0
        %v9549 = vadd.f32 %v9452, %v9548
        %v9550 = vpop.f32.mrb[0].mxu0
        %9551 = vmatprep.mubr.bf16.mxu0 %v8949
        %9552 = vmatmul.mubr.bf16.gmra.mrb[0].mxu0 %v8948
        %v9553 = vpop.f32.mrb[0].mxu0
        %v9554 = vadd.f32 %v9457, %v9553
        %v9555 = vpop.f32.mrb[0].mxu0
        %v9556 = vpop.f32.mrb[0].mxu0
        %v9557 = vadd.f32 %v9460, %v9556
        %v9558 = vpop.f32.mrb[0].mxu0
        %9559 = vmatprep.mubr.bf16.mxu0 %v8965
        %9560 = vmatmul.mubr.bf16.gmra.mrb[0].mxu0 %v8964
        %v9561 = vpop.f32.mrb[0].mxu0
        %v9562 = vadd.f32 %v9465, %v9561
        %v9563 = vpop.f32.mrb[0].mxu0
        %v9564 = vpop.f32.mrb[0].mxu0
        %v9565 = vadd.f32 %v9468, %v9564
        %v9566 = vpop.f32.mrb[0].mxu0
        %9567 = vmatprep.mubr.bf16.mxu0 %v8981
        %9568 = vmatmul.mubr.bf16.gmra.mrb[0].mxu0 %v8980
        %v9569 = vpop.f32.mrb[0].mxu0
        %v9570 = vadd.f32 %v9473, %v9569
        %v9571 = vpop.f32.mrb[0].mxu0
        %v9572 = vpop.f32.mrb[0].mxu0
        %v9573 = vadd.f32 %v9476, %v9572
        %v9574 = vpop.f32.mrb[0].mxu0
        %9575 = vmatprep.mubr.bf16.mxu0 %v8997
        %9576 = vmatmul.mubr.bf16.gmra.mrb[0].mxu0 %v8996
        %v9577 = vpop.f32.mrb[0].mxu0
        %v9578 = vadd.f32 %v9481, %v9577
        %v9579 = vpop.f32.mrb[0].mxu0
        %v9580 = vpop.f32.mrb[0].mxu0
        %v9581 = vadd.f32 %v9484, %v9580
        %v9582 = vpop.f32.mrb[0].mxu0
        %9583 = vdwg.mxu0
        %9584 = vmatprep.subr.bf16.mxu0 %v5983
        %9585 = vmatpush1.bf16.xpose.msra.mxu0 %v5982
        %9586 = vmatprep.subr.bf16.mxu0 0
        %9587 = vmatpush1.bf16.xpose.msra.mxu0 0
        %9588 = vmatprep.subr.bf16.mxu0 0
        %9589 = vmatpush1.bf16.xpose.msra.mxu0 0
        %9590 = vmatprep.subr.bf16.mxu0 0
        %9591 = vmatpush1.bf16.xpose.msra.mxu0 0
        %9592 = vmatprep.subr.bf16.mxu0 0
        %9593 = vmatpush1.bf16.xpose.msra.mxu0 0
        %9594 = vmatprep.subr.bf16.mxu0 0
        %9595 = vmatpush1.bf16.xpose.msra.mxu0 0
        %9596 = vmatprep.subr.bf16.mxu0 0
        %9597 = vmatpush1.bf16.xpose.msra.mxu0 0
        %9598 = vmatprep.subr.bf16.mxu0 0
        %9599 = vmatpush1.bf16.xpose.msra.mxu0 0
        %9600 = vmatprep.subr.bf16.mxu0 0
        %9601 = vmatpush1.bf16.xpose.msra.mxu0 0
        %9602 = vmatprep.subr.bf16.mxu0 0
        %9603 = vmatpush1.bf16.xpose.msra.mxu0 0
        %9604 = vmatprep.subr.bf16.mxu0 0
        %9605 = vmatpush1.bf16.xpose.msra.mxu0 0
        %9606 = vmatprep.subr.bf16.mxu0 0
        %9607 = vmatpush1.bf16.xpose.msra.mxu0 0
        %9608 = vmatprep.subr.bf16.mxu0 0
        %9609 = vmatpush1.bf16.xpose.msra.mxu0 0
        %9610 = vmatprep.subr.bf16.mxu0 0
        %9611 = vmatpush1.bf16.xpose.msra.mxu0 0
        %9612 = vmatprep.subr.bf16.mxu0 0
        %9613 = vmatpush1.bf16.xpose.msra.mxu0 0
        %9614 = vmatprep.subr.bf16.mxu0 0
        %9615 = vmatpush1.bf16.xpose.msra.mxu0 0
        %9616 = vmatprep.mubr.bf16.mxu0 %v8887
        %9617 = vmatmul.mubr.bf16.gmra.mrb[0].mxu0 %v8886
        %v9618 = vpop.f32.mrb[0].mxu0
        %v9619 = vadd.f32 %v9522, %v9618
        %v9620 = vpop.f32.mrb[0].mxu0
        %v9621 = vpop.f32.mrb[0].mxu0
        %v9622 = vadd.f32 %v9525, %v9621
        %v9623 = vpop.f32.mrb[0].mxu0
        %9624 = vmatprep.mubr.bf16.mxu0 %v8903
        %9625 = vmatmul.mubr.bf16.gmra.mrb[0].mxu0 %v8902
        %v9626 = vpop.f32.mrb[0].mxu0
        %v9627 = vadd.f32 %v9530, %v9626
        %v9628 = vpop.f32.mrb[0].mxu0
        %v9629 = vpop.f32.mrb[0].mxu0
        %v9630 = vadd.f32 %v9533, %v9629
        %v9631 = vpop.f32.mrb[0].mxu0
        %9632 = vmatprep.mubr.bf16.mxu0 %v8919
        %9633 = vmatmul.mubr.bf16.gmra.mrb[0].mxu0 %v8918
        %v9634 = vpop.f32.mrb[0].mxu0
        %v9635 = vadd.f32 %v9538, %v9634
        %v9636 = vpop.f32.mrb[0].mxu0
        %v9637 = vpop.f32.mrb[0].mxu0
        %v9638 = vadd.f32 %v9541, %v9637
        %v9639 = vpop.f32.mrb[0].mxu0
        %9640 = vmatprep.mubr.bf16.mxu0 %v8935
        %9641 = vmatmul.mubr.bf16.gmra.mrb[0].mxu0 %v8934
        %v9642 = vpop.f32.mrb[0].mxu0
        %v9643 = vadd.f32 %v9546, %v9642
        %v9644 = vpop.f32.mrb[0].mxu0
        %v9645 = vpop.f32.mrb[0].mxu0
        %v9646 = vadd.f32 %v9549, %v9645
        %v9647 = vpop.f32.mrb[0].mxu0
        %9648 = vmatprep.mubr.bf16.mxu0 %v8951
        %9649 = vmatmul.mubr.bf16.gmra.mrb[0].mxu0 %v8950
        %v9650 = vpop.f32.mrb[0].mxu0
        %v9651 = vadd.f32 %v9554, %v9650
        %v9652 = vpop.f32.mrb[0].mxu0
        %v9653 = vpop.f32.mrb[0].mxu0
        %v9654 = vadd.f32 %v9557, %v9653
        %v9655 = vpop.f32.mrb[0].mxu0
        %9656 = vmatprep.mubr.bf16.mxu0 %v8967
        %9657 = vmatmul.mubr.bf16.gmra.mrb[0].mxu0 %v8966
        %v9658 = vpop.f32.mrb[0].mxu0
        %v9659 = vadd.f32 %v9562, %v9658
        %v9660 = vpop.f32.mrb[0].mxu0
        %v9661 = vpop.f32.mrb[0].mxu0
        %v9662 = vadd.f32 %v9565, %v9661
        %v9663 = vpop.f32.mrb[0].mxu0
        %9664 = vmatprep.mubr.bf16.mxu0 %v8983
        %9665 = vmatmul.mubr.bf16.gmra.mrb[0].mxu0 %v8982
        %v9666 = vpop.f32.mrb[0].mxu0
        %v9667 = vadd.f32 %v9570, %v9666
        %v9668 = vpop.f32.mrb[0].mxu0
        %v9669 = vpop.f32.mrb[0].mxu0
        %v9670 = vadd.f32 %v9573, %v9669
        %v9671 = vpop.f32.mrb[0].mxu0
        %9672 = vmatprep.mubr.bf16.mxu0 %v8999
        %9673 = vmatmul.mubr.bf16.gmra.mrb[0].mxu0 %v8998
        %v9674 = vpop.f32.mrb[0].mxu0
        %v9675 = vadd.f32 %v9578, %v9674
        %v9676 = vpop.f32.mrb[0].mxu0
        %v9677 = vpop.f32.mrb[0].mxu0
        %v9678 = vadd.f32 %v9581, %v9677
        %v9679 = vpop.f32.mrb[0].mxu0
        %9680 = vdwg.mxu0
        %9681 = vmatprep.subr.bf16.mxu0 %v5985
        %9682 = vmatpush1.bf16.xpose.msra.mxu0 %v5984
        %9683 = vmatprep.subr.bf16.mxu0 0
        %9684 = vmatpush1.bf16.xpose.msra.mxu0 0
        %9685 = vmatprep.subr.bf16.mxu0 0
        %9686 = vmatpush1.bf16.xpose.msra.mxu0 0
        %9687 = vmatprep.subr.bf16.mxu0 0
        %9688 = vmatpush1.bf16.xpose.msra.mxu0 0
        %9689 = vmatprep.subr.bf16.mxu0 0
        %9690 = vmatpush1.bf16.xpose.msra.mxu0 0
        %9691 = vmatprep.subr.bf16.mxu0 0
        %9692 = vmatpush1.bf16.xpose.msra.mxu0 0
        %9693 = vmatprep.subr.bf16.mxu0 0
        %9694 = vmatpush1.bf16.xpose.msra.mxu0 0
        %9695 = vmatprep.subr.bf16.mxu0 0
        %9696 = vmatpush1.bf16.xpose.msra.mxu0 0
        %9697 = vmatprep.subr.bf16.mxu0 0
        %9698 = vmatpush1.bf16.xpose.msra.mxu0 0
        %9699 = vmatprep.subr.bf16.mxu0 0
        %9700 = vmatpush1.bf16.xpose.msra.mxu0 0
        %9701 = vmatprep.subr.bf16.mxu0 0
        %9702 = vmatpush1.bf16.xpose.msra.mxu0 0
        %9703 = vmatprep.subr.bf16.mxu0 0
        %9704 = vmatpush1.bf16.xpose.msra.mxu0 0
        %9705 = vmatprep.subr.bf16.mxu0 0
        %9706 = vmatpush1.bf16.xpose.msra.mxu0 0
        %9707 = vmatprep.subr.bf16.mxu0 0
        %9708 = vmatpush1.bf16.xpose.msra.mxu0 0
        %9709 = vmatprep.subr.bf16.mxu0 0
        %9710 = vmatpush1.bf16.xpose.msra.mxu0 0
        %9711 = vmatprep.subr.bf16.mxu0 0
        %9712 = vmatpush1.bf16.xpose.msra.mxu0 0
        %9713 = vmatprep.mubr.bf16.mxu0 %v8889
        %9714 = vmatmul.mubr.bf16.gmra.mrb[0].mxu0 %v8888
        %v9715 = vpop.f32.mrb[0].mxu0
        %v9716 = vadd.f32 %v9619, %v9715
        %v9717 = vpop.f32.mrb[0].mxu0
        %v9718 = vpop.f32.mrb[0].mxu0
        %v9719 = vadd.f32 %v9622, %v9718
        %v9720 = vpop.f32.mrb[0].mxu0
        %9721 = vmatprep.mubr.bf16.mxu0 %v8905
        %9722 = vmatmul.mubr.bf16.gmra.mrb[0].mxu0 %v8904
        %v9723 = vpop.f32.mrb[0].mxu0
        %v9724 = vadd.f32 %v9627, %v9723
        %v9725 = vpop.f32.mrb[0].mxu0
        %v9726 = vpop.f32.mrb[0].mxu0
        %v9727 = vadd.f32 %v9630, %v9726
        %v9728 = vpop.f32.mrb[0].mxu0
        %9729 = vmatprep.mubr.bf16.mxu0 %v8921
        %9730 = vmatmul.mubr.bf16.gmra.mrb[0].mxu0 %v8920
        %v9731 = vpop.f32.mrb[0].mxu0
        %v9732 = vadd.f32 %v9635, %v9731
        %v9733 = vpop.f32.mrb[0].mxu0
        %v9734 = vpop.f32.mrb[0].mxu0
        %v9735 = vadd.f32 %v9638, %v9734
        %v9736 = vpop.f32.mrb[0].mxu0
        %9737 = vmatprep.mubr.bf16.mxu0 %v8937
        %9738 = vmatmul.mubr.bf16.gmra.mrb[0].mxu0 %v8936
        %v9739 = vpop.f32.mrb[0].mxu0
        %v9740 = vadd.f32 %v9643, %v9739
        %v9741 = vpop.f32.mrb[0].mxu0
        %v9742 = vpop.f32.mrb[0].mxu0
        %v9743 = vadd.f32 %v9646, %v9742
        %v9744 = vpop.f32.mrb[0].mxu0
        %9745 = vmatprep.mubr.bf16.mxu0 %v8953
        %9746 = vmatmul.mubr.bf16.gmra.mrb[0].mxu0 %v8952
        %v9747 = vpop.f32.mrb[0].mxu0
        %v9748 = vadd.f32 %v9651, %v9747
        %v9749 = vpop.f32.mrb[0].mxu0
        %v9750 = vpop.f32.mrb[0].mxu0
        %v9751 = vadd.f32 %v9654, %v9750
        %v9752 = vpop.f32.mrb[0].mxu0
        %9753 = vmatprep.mubr.bf16.mxu0 %v8969
        %9754 = vmatmul.mubr.bf16.gmra.mrb[0].mxu0 %v8968
        %v9755 = vpop.f32.mrb[0].mxu0
        %v9756 = vadd.f32 %v9659, %v9755
        %v9757 = vpop.f32.mrb[0].mxu0
        %v9758 = vpop.f32.mrb[0].mxu0
        %v9759 = vadd.f32 %v9662, %v9758
        %v9760 = vpop.f32.mrb[0].mxu0
        %9761 = vmatprep.mubr.bf16.mxu0 %v8985
        %9762 = vmatmul.mubr.bf16.gmra.mrb[0].mxu0 %v8984
        %v9763 = vpop.f32.mrb[0].mxu0
        %v9764 = vadd.f32 %v9667, %v9763
        %v9765 = vpop.f32.mrb[0].mxu0
        %v9766 = vpop.f32.mrb[0].mxu0
        %v9767 = vadd.f32 %v9670, %v9766
        %v9768 = vpop.f32.mrb[0].mxu0
        %9769 = vmatprep.mubr.bf16.mxu0 %v9001
        %9770 = vmatmul.mubr.bf16.gmra.mrb[0].mxu0 %v9000
        %v9771 = vpop.f32.mrb[0].mxu0
        %v9772 = vadd.f32 %v9675, %v9771
        %v9773 = vpop.f32.mrb[0].mxu0
        %v9774 = vpop.f32.mrb[0].mxu0
        %v9775 = vadd.f32 %v9678, %v9774
        %v9776 = vpop.f32.mrb[0].mxu0
        %9777 = vdwg.mxu0
        %v9778 = vadd.f32 %v7666, %v9716
        %v9779 = vadd.f32 %v7667, %v9719
        %v9780 = vadd.f32 %v7668, %v9724
        %v9781 = vadd.f32 %v7669, %v9727
        %v9782 = vadd.f32 %v7670, %v9732
        %v9783 = vadd.f32 %v7671, %v9735
        %v9784 = vadd.f32 %v7672, %v9740
        %v9785 = vadd.f32 %v7673, %v9743
        %v9786 = vadd.f32 %v7674, %v9748
        %v9787 = vadd.f32 %v7675, %v9751
        %v9788 = vadd.f32 %v7676, %v9756
        %v9789 = vadd.f32 %v7677, %v9759
        %v9790 = vadd.f32 %v7678, %v9764
        %v9791 = vadd.f32 %v7679, %v9767
        %v9792 = vadd.f32 %v7680, %v9772
        %v9793 = vadd.f32 %v7681, %v9775
        %v9794 = vsel %vm4203, %v9778, 0.0
        %9795 = vadd.xlane.f32.xlu0 %v9794
        %v9796 = vpop.xlane.xlu0 %9795
        %v9797 = vsel %vm4203, %v9779, 0.0
        %9798 = vadd.xlane.f32.xlu0 %v9797
        %v9799 = vpop.xlane.xlu0 %9798
        %v9800 = vsel %vm4203, %v9780, 0.0
        %9801 = vadd.xlane.f32.xlu0 %v9800
        %v9802 = vpop.xlane.xlu0 %9801
        %v9803 = vsel %vm4203, %v9781, 0.0
        %9804 = vadd.xlane.f32.xlu0 %v9803
        %v9805 = vpop.xlane.xlu0 %9804
        %v9806 = vsel %vm4203, %v9782, 0.0
        %9807 = vadd.xlane.f32.xlu0 %v9806
        %v9808 = vpop.xlane.xlu0 %9807
        %v9809 = vsel %vm4203, %v9783, 0.0
        %9810 = vadd.xlane.f32.xlu0 %v9809
        %v9811 = vpop.xlane.xlu0 %9810
        %v9812 = vsel %vm4203, %v9784, 0.0
        %9813 = vadd.xlane.f32.xlu0 %v9812
        %v9814 = vpop.xlane.xlu0 %9813
        %v9815 = vsel %vm4203, %v9785, 0.0
        %9816 = vadd.xlane.f32.xlu0 %v9815
        %v9817 = vpop.xlane.xlu0 %9816
        %v9818 = vsel %vm4203, %v9786, 0.0
        %9819 = vadd.xlane.f32.xlu0 %v9818
        %v9820 = vpop.xlane.xlu0 %9819
        %v9821 = vsel %vm4203, %v9787, 0.0
        %9822 = vadd.xlane.f32.xlu0 %v9821
        %v9823 = vpop.xlane.xlu0 %9822
        %v9824 = vsel %vm4203, %v9788, 0.0
        %9825 = vadd.xlane.f32.xlu0 %v9824
        %v9826 = vpop.xlane.xlu0 %9825
        %v9827 = vsel %vm4203, %v9789, 0.0
        %9828 = vadd.xlane.f32.xlu0 %v9827
        %v9829 = vpop.xlane.xlu0 %9828
        %v9830 = vsel %vm4203, %v9790, 0.0
        %9831 = vadd.xlane.f32.xlu0 %v9830
        %v9832 = vpop.xlane.xlu0 %9831
        %v9833 = vsel %vm4203, %v9791, 0.0
        %9834 = vadd.xlane.f32.xlu0 %v9833
        %v9835 = vpop.xlane.xlu0 %9834
        %v9836 = vsel %vm4203, %v9792, 0.0
        %9837 = vadd.xlane.f32.xlu0 %v9836
        %v9838 = vpop.xlane.xlu0 %9837
        %v9839 = vsel %vm4203, %v9793, 0.0
        %9840 = vadd.xlane.f32.xlu0 %v9839
        %v9841 = vpop.xlane.xlu0 %9840
        %v9842 = vmul.f32 %v9796, %v4252
        %v9843 = vmul.f32 %v9799, %v4252
        %v9844 = vmul.f32 %v9802, %v4252
        %v9845 = vmul.f32 %v9805, %v4252
        %v9846 = vmul.f32 %v9808, %v4252
        %v9847 = vmul.f32 %v9811, %v4252
        %v9848 = vmul.f32 %v9814, %v4252
        %v9849 = vmul.f32 %v9817, %v4252
        %v9850 = vmul.f32 %v9820, %v4252
        %v9851 = vmul.f32 %v9823, %v4252
        %v9852 = vmul.f32 %v9826, %v4252
        %v9853 = vmul.f32 %v9829, %v4252
        %v9854 = vmul.f32 %v9832, %v4252
        %v9855 = vmul.f32 %v9835, %v4252
        %v9856 = vmul.f32 %v9838, %v4252
        %v9857 = vmul.f32 %v9841, %v4252
        %v9858 = vsub.f32 %v9778, %v9842
        %v9859 = vsub.f32 %v9779, %v9843
        %v9860 = vsub.f32 %v9780, %v9844
        %v9861 = vsub.f32 %v9781, %v9845
        %v9862 = vsub.f32 %v9782, %v9846
        %v9863 = vsub.f32 %v9783, %v9847
        %v9864 = vsub.f32 %v9784, %v9848
        %v9865 = vsub.f32 %v9785, %v9849
        %v9866 = vsub.f32 %v9786, %v9850
        %v9867 = vsub.f32 %v9787, %v9851
        %v9868 = vsub.f32 %v9788, %v9852
        %v9869 = vsub.f32 %v9789, %v9853
        %v9870 = vsub.f32 %v9790, %v9854
        %v9871 = vsub.f32 %v9791, %v9855
        %v9872 = vsub.f32 %v9792, %v9856
        %v9873 = vsub.f32 %v9793, %v9857
        %v9874 = vmul.f32 %v9858, %v9858
        %v9875 = vmul.f32 %v9859, %v9859
        %v9876 = vmul.f32 %v9860, %v9860
        %v9877 = vmul.f32 %v9861, %v9861
        %v9878 = vmul.f32 %v9862, %v9862
        %v9879 = vmul.f32 %v9863, %v9863
        %v9880 = vmul.f32 %v9864, %v9864
        %v9881 = vmul.f32 %v9865, %v9865
        %v9882 = vmul.f32 %v9866, %v9866
        %v9883 = vmul.f32 %v9867, %v9867
        %v9884 = vmul.f32 %v9868, %v9868
        %v9885 = vmul.f32 %v9869, %v9869
        %v9886 = vmul.f32 %v9870, %v9870
        %v9887 = vmul.f32 %v9871, %v9871
        %v9888 = vmul.f32 %v9872, %v9872
        %v9889 = vmul.f32 %v9873, %v9873
        %v9890 = vsel %vm4203, %v9874, 0.0
        %9891 = vadd.xlane.f32.xlu0 %v9890
        %v9892 = vpop.xlane.xlu0 %9891
        %v9893 = vsel %vm4203, %v9875, 0.0
        %9894 = vadd.xlane.f32.xlu0 %v9893
        %v9895 = vpop.xlane.xlu0 %9894
        %v9896 = vsel %vm4203, %v9876, 0.0
        %9897 = vadd.xlane.f32.xlu0 %v9896
        %v9898 = vpop.xlane.xlu0 %9897
        %v9899 = vsel %vm4203, %v9877, 0.0
        %9900 = vadd.xlane.f32.xlu0 %v9899
        %v9901 = vpop.xlane.xlu0 %9900
        %v9902 = vsel %vm4203, %v9878, 0.0
        %9903 = vadd.xlane.f32.xlu0 %v9902
        %v9904 = vpop.xlane.xlu0 %9903
        %v9905 = vsel %vm4203, %v9879, 0.0
        %9906 = vadd.xlane.f32.xlu0 %v9905
        %v9907 = vpop.xlane.xlu0 %9906
        %v9908 = vsel %vm4203, %v9880, 0.0
        %9909 = vadd.xlane.f32.xlu0 %v9908
        %v9910 = vpop.xlane.xlu0 %9909
        %v9911 = vsel %vm4203, %v9881, 0.0
        %9912 = vadd.xlane.f32.xlu0 %v9911
        %v9913 = vpop.xlane.xlu0 %9912
        %v9914 = vsel %vm4203, %v9882, 0.0
        %9915 = vadd.xlane.f32.xlu0 %v9914
        %v9916 = vpop.xlane.xlu0 %9915
        %v9917 = vsel %vm4203, %v9883, 0.0
        %9918 = vadd.xlane.f32.xlu0 %v9917
        %v9919 = vpop.xlane.xlu0 %9918
        %v9920 = vsel %vm4203, %v9884, 0.0
        %9921 = vadd.xlane.f32.xlu0 %v9920
        %v9922 = vpop.xlane.xlu0 %9921
        %v9923 = vsel %vm4203, %v9885, 0.0
        %9924 = vadd.xlane.f32.xlu0 %v9923
        %v9925 = vpop.xlane.xlu0 %9924
        %v9926 = vsel %vm4203, %v9886, 0.0
        %9927 = vadd.xlane.f32.xlu0 %v9926
        %v9928 = vpop.xlane.xlu0 %9927
        %v9929 = vsel %vm4203, %v9887, 0.0
        %9930 = vadd.xlane.f32.xlu0 %v9929
        %v9931 = vpop.xlane.xlu0 %9930
        %v9932 = vsel %vm4203, %v9888, 0.0
        %9933 = vadd.xlane.f32.xlu0 %v9932
        %v9934 = vpop.xlane.xlu0 %9933
        %v9935 = vsel %vm4203, %v9889, 0.0
        %9936 = vadd.xlane.f32.xlu0 %v9935
        %v9937 = vpop.xlane.xlu0 %9936
        %v9938 = vmul.f32 %v9892, %v4252
        %v9939 = vmul.f32 %v9895, %v4252
        %v9940 = vmul.f32 %v9898, %v4252
        %v9941 = vmul.f32 %v9901, %v4252
        %v9942 = vmul.f32 %v9904, %v4252
        %v9943 = vmul.f32 %v9907, %v4252
        %v9944 = vmul.f32 %v9910, %v4252
        %v9945 = vmul.f32 %v9913, %v4252
        %v9946 = vmul.f32 %v9916, %v4252
        %v9947 = vmul.f32 %v9919, %v4252
        %v9948 = vmul.f32 %v9922, %v4252
        %v9949 = vmul.f32 %v9925, %v4252
        %v9950 = vmul.f32 %v9928, %v4252
        %v9951 = vmul.f32 %v9931, %v4252
        %v9952 = vmul.f32 %v9934, %v4252
        %v9953 = vmul.f32 %v9937, %v4252
        %v9954 = vadd.f32 %v9938, 1e-05
        %v9955 = vadd.f32 %v9939, 1e-05
        %v9956 = vadd.f32 %v9940, 1e-05
        %v9957 = vadd.f32 %v9941, 1e-05
        %v9958 = vadd.f32 %v9942, 1e-05
        %v9959 = vadd.f32 %v9943, 1e-05
        %v9960 = vadd.f32 %v9944, 1e-05
        %v9961 = vadd.f32 %v9945, 1e-05
        %v9962 = vadd.f32 %v9946, 1e-05
        %v9963 = vadd.f32 %v9947, 1e-05
        %v9964 = vadd.f32 %v9948, 1e-05
        %v9965 = vadd.f32 %v9949, 1e-05
        %v9966 = vadd.f32 %v9950, 1e-05
        %v9967 = vadd.f32 %v9951, 1e-05
        %v9968 = vadd.f32 %v9952, 1e-05
        %v9969 = vadd.f32 %v9953, 1e-05
        %v9970 = vrsqrt.pop %v9954
        %v9971 = vrsqrt.pop %v9955
        %v9972 = vrsqrt.pop %v9956
        %v9973 = vrsqrt.pop %v9957
        %v9974 = vrsqrt.pop %v9958
        %v9975 = vrsqrt.pop %v9959
        %v9976 = vrsqrt.pop %v9960
        %v9977 = vrsqrt.pop %v9961
        %v9978 = vrsqrt.pop %v9962
        %v9979 = vrsqrt.pop %v9963
        %v9980 = vrsqrt.pop %v9964
        %v9981 = vrsqrt.pop %v9965
        %v9982 = vrsqrt.pop %v9966
        %v9983 = vrsqrt.pop %v9967
        %v9984 = vrsqrt.pop %v9968
        %v9985 = vrsqrt.pop %v9969
        %v9986 = vmul.f32 %v9858, %v9970
        %v9987 = vmul.f32 %v9859, %v9971
        %v9988 = vmul.f32 %v9860, %v9972
        %v9989 = vmul.f32 %v9861, %v9973
        %v9990 = vmul.f32 %v9862, %v9974
        %v9991 = vmul.f32 %v9863, %v9975
        %v9992 = vmul.f32 %v9864, %v9976
        %v9993 = vmul.f32 %v9865, %v9977
        %v9994 = vmul.f32 %v9866, %v9978
        %v9995 = vmul.f32 %v9867, %v9979
        %v9996 = vmul.f32 %v9868, %v9980
        %v9997 = vmul.f32 %v9869, %v9981
        %v9998 = vmul.f32 %v9870, %v9982
        %v9999 = vmul.f32 %v9871, %v9983
        %v10000 = vmul.f32 %v9872, %v9984
        %v10001 = vmul.f32 %v9873, %v9985
        %v10002 = vmul.f32 %v9986, %v7005
        %v10003 = vmul.f32 %v9987, %v7005
        %v10004 = vmul.f32 %v9988, %v7005
        %v10005 = vmul.f32 %v9989, %v7005
        %v10006 = vmul.f32 %v9990, %v7005
        %v10007 = vmul.f32 %v9991, %v7005
        %v10008 = vmul.f32 %v9992, %v7005
        %v10009 = vmul.f32 %v9993, %v7005
        %v10010 = vmul.f32 %v9994, %v7005
        %v10011 = vmul.f32 %v9995, %v7005
        %v10012 = vmul.f32 %v9996, %v7005
        %v10013 = vmul.f32 %v9997, %v7005
        %v10014 = vmul.f32 %v9998, %v7005
        %v10015 = vmul.f32 %v9999, %v7005
        %v10016 = vmul.f32 %v10000, %v7005
        %v10017 = vmul.f32 %v10001, %v7005
        %v10018 = vadd.f32 %v10002, %v7025
        %v10019 = vadd.f32 %v10003, %v7025
        %v10020 = vadd.f32 %v10004, %v7025
        %v10021 = vadd.f32 %v10005, %v7025
        %v10022 = vadd.f32 %v10006, %v7025
        %v10023 = vadd.f32 %v10007, %v7025
        %v10024 = vadd.f32 %v10008, %v7025
        %v10025 = vadd.f32 %v10009, %v7025
        %v10026 = vadd.f32 %v10010, %v7025
        %v10027 = vadd.f32 %v10011, %v7025
        %v10028 = vadd.f32 %v10012, %v7025
        %v10029 = vadd.f32 %v10013, %v7025
        %v10030 = vadd.f32 %v10014, %v7025
        %v10031 = vadd.f32 %v10015, %v7025
        %v10032 = vadd.f32 %v10016, %v7025
        %v10033 = vadd.f32 %v10017, %v7025
        %v10034 = vsel %vm4203, %v10018, 0.0
        %10035 = vadd.xlane.f32.xlu0 %v10034
        %v10036 = vpop.xlane.xlu0 %10035
        %v10037 = vsel %vm4203, %v10019, 0.0
        %10038 = vadd.xlane.f32.xlu0 %v10037
        %v10039 = vpop.xlane.xlu0 %10038
        %v10040 = vsel %vm4203, %v10020, 0.0
        %10041 = vadd.xlane.f32.xlu0 %v10040
        %v10042 = vpop.xlane.xlu0 %10041
        %v10043 = vsel %vm4203, %v10021, 0.0
        %10044 = vadd.xlane.f32.xlu0 %v10043
        %v10045 = vpop.xlane.xlu0 %10044
        %v10046 = vsel %vm4203, %v10022, 0.0
        %10047 = vadd.xlane.f32.xlu0 %v10046
        %v10048 = vpop.xlane.xlu0 %10047
        %v10049 = vsel %vm4203, %v10023, 0.0
        %10050 = vadd.xlane.f32.xlu0 %v10049
        %v10051 = vpop.xlane.xlu0 %10050
        %v10052 = vsel %vm4203, %v10024, 0.0
        %10053 = vadd.xlane.f32.xlu0 %v10052
        %v10054 = vpop.xlane.xlu0 %10053
        %v10055 = vsel %vm4203, %v10025, 0.0
        %10056 = vadd.xlane.f32.xlu0 %v10055
        %v10057 = vpop.xlane.xlu0 %10056
        %v10058 = vsel %vm4203, %v10026, 0.0
        %10059 = vadd.xlane.f32.xlu0 %v10058
        %v10060 = vpop.xlane.xlu0 %10059
        %v10061 = vsel %vm4203, %v10027, 0.0
        %10062 = vadd.xlane.f32.xlu0 %v10061
        %v10063 = vpop.xlane.xlu0 %10062
        %v10064 = vsel %vm4203, %v10028, 0.0
        %10065 = vadd.xlane.f32.xlu0 %v10064
        %v10066 = vpop.xlane.xlu0 %10065
        %v10067 = vsel %vm4203, %v10029, 0.0
        %10068 = vadd.xlane.f32.xlu0 %v10067
        %v10069 = vpop.xlane.xlu0 %10068
        %v10070 = vsel %vm4203, %v10030, 0.0
        %10071 = vadd.xlane.f32.xlu0 %v10070
        %v10072 = vpop.xlane.xlu0 %10071
        %v10073 = vsel %vm4203, %v10031, 0.0
        %10074 = vadd.xlane.f32.xlu0 %v10073
        %v10075 = vpop.xlane.xlu0 %10074
        %v10076 = vsel %vm4203, %v10032, 0.0
        %10077 = vadd.xlane.f32.xlu0 %v10076
        %v10078 = vpop.xlane.xlu0 %10077
        %v10079 = vsel %vm4203, %v10033, 0.0
        %10080 = vadd.xlane.f32.xlu0 %v10079
        %v10081 = vpop.xlane.xlu0 %10080
        %v10082 = vmul.f32 %v10036, %v4252
        %v10083 = vmul.f32 %v10039, %v4252
        %v10084 = vmul.f32 %v10042, %v4252
        %v10085 = vmul.f32 %v10045, %v4252
        %v10086 = vmul.f32 %v10048, %v4252
        %v10087 = vmul.f32 %v10051, %v4252
        %v10088 = vmul.f32 %v10054, %v4252
        %v10089 = vmul.f32 %v10057, %v4252
        %v10090 = vmul.f32 %v10060, %v4252
        %v10091 = vmul.f32 %v10063, %v4252
        %v10092 = vmul.f32 %v10066, %v4252
        %v10093 = vmul.f32 %v10069, %v4252
        %v10094 = vmul.f32 %v10072, %v4252
        %v10095 = vmul.f32 %v10075, %v4252
        %v10096 = vmul.f32 %v10078, %v4252
        %v10097 = vmul.f32 %v10081, %v4252
        %v10098 = vsub.f32 %v10018, %v10082
        %v10099 = vsub.f32 %v10019, %v10083
        %v10100 = vsub.f32 %v10020, %v10084
        %v10101 = vsub.f32 %v10021, %v10085
        %v10102 = vsub.f32 %v10022, %v10086
        %v10103 = vsub.f32 %v10023, %v10087
        %v10104 = vsub.f32 %v10024, %v10088
        %v10105 = vsub.f32 %v10025, %v10089
        %v10106 = vsub.f32 %v10026, %v10090
        %v10107 = vsub.f32 %v10027, %v10091
        %v10108 = vsub.f32 %v10028, %v10092
        %v10109 = vsub.f32 %v10029, %v10093
        %v10110 = vsub.f32 %v10030, %v10094
        %v10111 = vsub.f32 %v10031, %v10095
        %v10112 = vsub.f32 %v10032, %v10096
        %v10113 = vsub.f32 %v10033, %v10097
        %v10114 = vmul.f32 %v10098, %v10098
        %v10115 = vmul.f32 %v10099, %v10099
        %v10116 = vmul.f32 %v10100, %v10100
        %v10117 = vmul.f32 %v10101, %v10101
        %v10118 = vmul.f32 %v10102, %v10102
        %v10119 = vmul.f32 %v10103, %v10103
        %v10120 = vmul.f32 %v10104, %v10104
        %v10121 = vmul.f32 %v10105, %v10105
        %v10122 = vmul.f32 %v10106, %v10106
        %v10123 = vmul.f32 %v10107, %v10107
        %v10124 = vmul.f32 %v10108, %v10108
        %v10125 = vmul.f32 %v10109, %v10109
        %v10126 = vmul.f32 %v10110, %v10110
        %v10127 = vmul.f32 %v10111, %v10111
        %v10128 = vmul.f32 %v10112, %v10112
        %v10129 = vmul.f32 %v10113, %v10113
        %v10130 = vsel %vm4203, %v10114, 0.0
        %10131 = vadd.xlane.f32.xlu0 %v10130
        %v10132 = vpop.xlane.xlu0 %10131
        %v10133 = vsel %vm4203, %v10115, 0.0
        %10134 = vadd.xlane.f32.xlu0 %v10133
        %v10135 = vpop.xlane.xlu0 %10134
        %v10136 = vsel %vm4203, %v10116, 0.0
        %10137 = vadd.xlane.f32.xlu0 %v10136
        %v10138 = vpop.xlane.xlu0 %10137
        %v10139 = vsel %vm4203, %v10117, 0.0
        %10140 = vadd.xlane.f32.xlu0 %v10139
        %v10141 = vpop.xlane.xlu0 %10140
        %v10142 = vsel %vm4203, %v10118, 0.0
        %10143 = vadd.xlane.f32.xlu0 %v10142
        %v10144 = vpop.xlane.xlu0 %10143
        %v10145 = vsel %vm4203, %v10119, 0.0
        %10146 = vadd.xlane.f32.xlu0 %v10145
        %v10147 = vpop.xlane.xlu0 %10146
        %v10148 = vsel %vm4203, %v10120, 0.0
        %10149 = vadd.xlane.f32.xlu0 %v10148
        %v10150 = vpop.xlane.xlu0 %10149
        %v10151 = vsel %vm4203, %v10121, 0.0
        %10152 = vadd.xlane.f32.xlu0 %v10151
        %v10153 = vpop.xlane.xlu0 %10152
        %v10154 = vsel %vm4203, %v10122, 0.0
        %10155 = vadd.xlane.f32.xlu0 %v10154
        %v10156 = vpop.xlane.xlu0 %10155
        %v10157 = vsel %vm4203, %v10123, 0.0
        %10158 = vadd.xlane.f32.xlu0 %v10157
        %v10159 = vpop.xlane.xlu0 %10158
        %v10160 = vsel %vm4203, %v10124, 0.0
        %10161 = vadd.xlane.f32.xlu0 %v10160
        %v10162 = vpop.xlane.xlu0 %10161
        %v10163 = vsel %vm4203, %v10125, 0.0
        %10164 = vadd.xlane.f32.xlu0 %v10163
        %v10165 = vpop.xlane.xlu0 %10164
        %v10166 = vsel %vm4203, %v10126, 0.0
        %10167 = vadd.xlane.f32.xlu0 %v10166
        %v10168 = vpop.xlane.xlu0 %10167
        %v10169 = vsel %vm4203, %v10127, 0.0
        %10170 = vadd.xlane.f32.xlu0 %v10169
        %v10171 = vpop.xlane.xlu0 %10170
        %v10172 = vsel %vm4203, %v10128, 0.0
        %10173 = vadd.xlane.f32.xlu0 %v10172
        %v10174 = vpop.xlane.xlu0 %10173
        %v10175 = vsel %vm4203, %v10129, 0.0
        %10176 = vadd.xlane.f32.xlu0 %v10175
        %v10177 = vpop.xlane.xlu0 %10176
        %v10178 = vrcp.pop 3.0
        %v10179 = vmul.f32 %v10132, %v10178
        %v10180 = vmul.f32 %v10135, %v10178
        %v10181 = vmul.f32 %v10138, %v10178
        %v10182 = vmul.f32 %v10141, %v10178
        %v10183 = vmul.f32 %v10144, %v10178
        %v10184 = vmul.f32 %v10147, %v10178
        %v10185 = vmul.f32 %v10150, %v10178
        %v10186 = vmul.f32 %v10153, %v10178
        %v10187 = vmul.f32 %v10156, %v10178
        %v10188 = vmul.f32 %v10159, %v10178
        %v10189 = vmul.f32 %v10162, %v10178
        %v10190 = vmul.f32 %v10165, %v10178
        %v10191 = vmul.f32 %v10168, %v10178
        %v10192 = vmul.f32 %v10171, %v10178
        %v10193 = vmul.f32 %v10174, %v10178
        %v10194 = vmul.f32 %v10177, %v10178
        %v10195 = vlaneseq
        %v10196 = vshrl.u32 %v10195, 7
        %v10197 = vsub.s32 0, %v10196
        %v10198 = vrot.slane %v227, %v10197
        %v10199 = vmul.f32 %v10198, %v10098
        %v10200 = vmul.f32 %v10198, %v10099
        %v10201 = vmul.f32 %v10198, %v10100
        %v10202 = vmul.f32 %v10198, %v10101
        %v10203 = vmul.f32 %v10198, %v10102
        %v10204 = vmul.f32 %v10198, %v10103
        %v10205 = vmul.f32 %v10198, %v10104
        %v10206 = vmul.f32 %v10198, %v10105
        %v10207 = vmul.f32 %v10198, %v10106
        %v10208 = vmul.f32 %v10198, %v10107
        %v10209 = vmul.f32 %v10198, %v10108
        %v10210 = vmul.f32 %v10198, %v10109
        %v10211 = vmul.f32 %v10198, %v10110
        %v10212 = vmul.f32 %v10198, %v10111
        %v10213 = vmul.f32 %v10198, %v10112
        %v10214 = vmul.f32 %v10198, %v10113
        %v10215 = vrsqrt.pop %v10179
        %v10216 = vmul.f32 %v10179, %v10215
        %vm10217 = vcmp.eq.f32.partialorder %v10179, inf
        %v10218 = vsel %vm10217, %v10179, %v10216
        %vm10219 = vcmp.eq.f32.partialorder %v10179, 0.0
        %v10220 = vand.u32 %v10179, 2147483648
        %v10221 = vsel %vm10219, %v10220, %v10218
        %v10222 = vrsqrt.pop %v10180
        %v10223 = vmul.f32 %v10180, %v10222
        %vm10224 = vcmp.eq.f32.partialorder %v10180, inf
        %v10225 = vsel %vm10224, %v10180, %v10223
        %vm10226 = vcmp.eq.f32.partialorder %v10180, 0.0
        %v10227 = vand.u32 %v10180, 2147483648
        %v10228 = vsel %vm10226, %v10227, %v10225
        %v10229 = vrsqrt.pop %v10181
        %v10230 = vmul.f32 %v10181, %v10229
        %vm10231 = vcmp.eq.f32.partialorder %v10181, inf
        %v10232 = vsel %vm10231, %v10181, %v10230
        %vm10233 = vcmp.eq.f32.partialorder %v10181, 0.0
        %v10234 = vand.u32 %v10181, 2147483648
        %v10235 = vsel %vm10233, %v10234, %v10232
        %v10236 = vrsqrt.pop %v10182
        %v10237 = vmul.f32 %v10182, %v10236
        %vm10238 = vcmp.eq.f32.partialorder %v10182, inf
        %v10239 = vsel %vm10238, %v10182, %v10237
        %vm10240 = vcmp.eq.f32.partialorder %v10182, 0.0
        %v10241 = vand.u32 %v10182, 2147483648
        %v10242 = vsel %vm10240, %v10241, %v10239
        %v10243 = vrsqrt.pop %v10183
        %v10244 = vmul.f32 %v10183, %v10243
        %vm10245 = vcmp.eq.f32.partialorder %v10183, inf
        %v10246 = vsel %vm10245, %v10183, %v10244
        %vm10247 = vcmp.eq.f32.partialorder %v10183, 0.0
        %v10248 = vand.u32 %v10183, 2147483648
        %v10249 = vsel %vm10247, %v10248, %v10246
        %v10250 = vrsqrt.pop %v10184
        %v10251 = vmul.f32 %v10184, %v10250
        %vm10252 = vcmp.eq.f32.partialorder %v10184, inf
        %v10253 = vsel %vm10252, %v10184, %v10251
        %vm10254 = vcmp.eq.f32.partialorder %v10184, 0.0
        %v10255 = vand.u32 %v10184, 2147483648
        %v10256 = vsel %vm10254, %v10255, %v10253
        %v10257 = vrsqrt.pop %v10185
        %v10258 = vmul.f32 %v10185, %v10257
        %vm10259 = vcmp.eq.f32.partialorder %v10185, inf
        %v10260 = vsel %vm10259, %v10185, %v10258
        %vm10261 = vcmp.eq.f32.partialorder %v10185, 0.0
        %v10262 = vand.u32 %v10185, 2147483648
        %v10263 = vsel %vm10261, %v10262, %v10260
        %v10264 = vrsqrt.pop %v10186
        %v10265 = vmul.f32 %v10186, %v10264
        %vm10266 = vcmp.eq.f32.partialorder %v10186, inf
        %v10267 = vsel %vm10266, %v10186, %v10265
        %vm10268 = vcmp.eq.f32.partialorder %v10186, 0.0
        %v10269 = vand.u32 %v10186, 2147483648
        %v10270 = vsel %vm10268, %v10269, %v10267
        %v10271 = vrsqrt.pop %v10187
        %v10272 = vmul.f32 %v10187, %v10271
        %vm10273 = vcmp.eq.f32.partialorder %v10187, inf
        %v10274 = vsel %vm10273, %v10187, %v10272
        %vm10275 = vcmp.eq.f32.partialorder %v10187, 0.0
        %v10276 = vand.u32 %v10187, 2147483648
        %v10277 = vsel %vm10275, %v10276, %v10274
        %v10278 = vrsqrt.pop %v10188
        %v10279 = vmul.f32 %v10188, %v10278
        %vm10280 = vcmp.eq.f32.partialorder %v10188, inf
        %v10281 = vsel %vm10280, %v10188, %v10279
        %vm10282 = vcmp.eq.f32.partialorder %v10188, 0.0
        %v10283 = vand.u32 %v10188, 2147483648
        %v10284 = vsel %vm10282, %v10283, %v10281
        %v10285 = vrsqrt.pop %v10189
        %v10286 = vmul.f32 %v10189, %v10285
        %vm10287 = vcmp.eq.f32.partialorder %v10189, inf
        %v10288 = vsel %vm10287, %v10189, %v10286
        %vm10289 = vcmp.eq.f32.partialorder %v10189, 0.0
        %v10290 = vand.u32 %v10189, 2147483648
        %v10291 = vsel %vm10289, %v10290, %v10288
        %v10292 = vrsqrt.pop %v10190
        %v10293 = vmul.f32 %v10190, %v10292
        %vm10294 = vcmp.eq.f32.partialorder %v10190, inf
        %v10295 = vsel %vm10294, %v10190, %v10293
        %vm10296 = vcmp.eq.f32.partialorder %v10190, 0.0
        %v10297 = vand.u32 %v10190, 2147483648
        %v10298 = vsel %vm10296, %v10297, %v10295
        %v10299 = vrsqrt.pop %v10191
        %v10300 = vmul.f32 %v10191, %v10299
        %vm10301 = vcmp.eq.f32.partialorder %v10191, inf
        %v10302 = vsel %vm10301, %v10191, %v10300
        %vm10303 = vcmp.eq.f32.partialorder %v10191, 0.0
        %v10304 = vand.u32 %v10191, 2147483648
        %v10305 = vsel %vm10303, %v10304, %v10302
        %v10306 = vrsqrt.pop %v10192
        %v10307 = vmul.f32 %v10192, %v10306
        %vm10308 = vcmp.eq.f32.partialorder %v10192, inf
        %v10309 = vsel %vm10308, %v10192, %v10307
        %vm10310 = vcmp.eq.f32.partialorder %v10192, 0.0
        %v10311 = vand.u32 %v10192, 2147483648
        %v10312 = vsel %vm10310, %v10311, %v10309
        %v10313 = vrsqrt.pop %v10193
        %v10314 = vmul.f32 %v10193, %v10313
        %vm10315 = vcmp.eq.f32.partialorder %v10193, inf
        %v10316 = vsel %vm10315, %v10193, %v10314
        %vm10317 = vcmp.eq.f32.partialorder %v10193, 0.0
        %v10318 = vand.u32 %v10193, 2147483648
        %v10319 = vsel %vm10317, %v10318, %v10316
        %v10320 = vrsqrt.pop %v10194
        %v10321 = vmul.f32 %v10194, %v10320
        %vm10322 = vcmp.eq.f32.partialorder %v10194, inf
        %v10323 = vsel %vm10322, %v10194, %v10321
        %vm10324 = vcmp.eq.f32.partialorder %v10194, 0.0
        %v10325 = vand.u32 %v10194, 2147483648
        %v10326 = vsel %vm10324, %v10325, %v10323
        %v10327 = vadd.f32 %v10221, 1e-06
        %v10328 = vadd.f32 %v10228, 1e-06
        %v10329 = vadd.f32 %v10235, 1e-06
        %v10330 = vadd.f32 %v10242, 1e-06
        %v10331 = vadd.f32 %v10249, 1e-06
        %v10332 = vadd.f32 %v10256, 1e-06
        %v10333 = vadd.f32 %v10263, 1e-06
        %v10334 = vadd.f32 %v10270, 1e-06
        %v10335 = vadd.f32 %v10277, 1e-06
        %v10336 = vadd.f32 %v10284, 1e-06
        %v10337 = vadd.f32 %v10291, 1e-06
        %v10338 = vadd.f32 %v10298, 1e-06
        %v10339 = vadd.f32 %v10305, 1e-06
        %v10340 = vadd.f32 %v10312, 1e-06
        %v10341 = vadd.f32 %v10319, 1e-06
        %v10342 = vadd.f32 %v10326, 1e-06
        %v10343 = vrcp.pop %v10327
        %v10344 = vmul.f32 %v10199, %v10343
        %v10345 = vrcp.pop %v10328
        %v10346 = vmul.f32 %v10200, %v10345
        %v10347 = vrcp.pop %v10329
        %v10348 = vmul.f32 %v10201, %v10347
        %v10349 = vrcp.pop %v10330
        %v10350 = vmul.f32 %v10202, %v10349
        %v10351 = vrcp.pop %v10331
        %v10352 = vmul.f32 %v10203, %v10351
        %v10353 = vrcp.pop %v10332
        %v10354 = vmul.f32 %v10204, %v10353
        %v10355 = vrcp.pop %v10333
        %v10356 = vmul.f32 %v10205, %v10355
        %v10357 = vrcp.pop %v10334
        %v10358 = vmul.f32 %v10206, %v10357
        %v10359 = vrcp.pop %v10335
        %v10360 = vmul.f32 %v10207, %v10359
        %v10361 = vrcp.pop %v10336
        %v10362 = vmul.f32 %v10208, %v10361
        %v10363 = vrcp.pop %v10337
        %v10364 = vmul.f32 %v10209, %v10363
        %v10365 = vrcp.pop %v10338
        %v10366 = vmul.f32 %v10210, %v10365
        %v10367 = vrcp.pop %v10339
        %v10368 = vmul.f32 %v10211, %v10367
        %v10369 = vrcp.pop %v10340
        %v10370 = vmul.f32 %v10212, %v10369
        %v10371 = vrcp.pop %v10341
        %v10372 = vmul.f32 %v10213, %v10371
        %v10373 = vrcp.pop %v10342
        %v10374 = vmul.f32 %v10214, %v10373
        %v10375 = vlaneseq
        %v10376 = vshrl.u32 %v10375, 7
        %v10377 = vsub.s32 0, %v10376
        %v10378 = vrot.slane %v228, %v10377
        %v10379 = vadd.f32 %v10344, %v10378
        %v10380 = vadd.f32 %v10346, %v10378
        %v10381 = vadd.f32 %v10348, %v10378
        %v10382 = vadd.f32 %v10350, %v10378
        %v10383 = vadd.f32 %v10352, %v10378
        %v10384 = vadd.f32 %v10354, %v10378
        %v10385 = vadd.f32 %v10356, %v10378
        %v10386 = vadd.f32 %v10358, %v10378
        %v10387 = vadd.f32 %v10360, %v10378
        %v10388 = vadd.f32 %v10362, %v10378
        %v10389 = vadd.f32 %v10364, %v10378
        %v10390 = vadd.f32 %v10366, %v10378
        %v10391 = vadd.f32 %v10368, %v10378
        %v10392 = vadd.f32 %v10370, %v10378
        %v10393 = vadd.f32 %v10372, %v10378
        %v10394 = vadd.f32 %v10374, %v10378
        %v10396 = vsel %vm4203, %v234, 0
        %v10399 = vsel %vm4203, %v10379, 0
        %v10402 = vsel %vm4203, %v10380, 0
        %v10405 = vsel %vm4203, %v10381, 0
        %v10408 = vsel %vm4203, %v10382, 0
        %v10411 = vsel %vm4203, %v10383, 0
        %v10414 = vsel %vm4203, %v10384, 0
        %v10417 = vsel %vm4203, %v10385, 0
        %v10420 = vsel %vm4203, %v10386, 0
        %v10423 = vsel %vm4203, %v10387, 0
        %v10426 = vsel %vm4203, %v10388, 0
        %v10429 = vsel %vm4203, %v10389, 0
        %v10432 = vsel %vm4203, %v10390, 0
        %v10435 = vsel %vm4203, %v10391, 0
        %v10438 = vsel %vm4203, %v10392, 0
        %v10441 = vsel %vm4203, %v10393, 0
        %v10444 = vsel %vm4203, %v10394, 0
        %10446 = vmatprep.subr.mxu0 0.0
        %10447 = vmatpush1.xpose.msra.mxu0 %v10399
        %10448 = vmatprep.subr.mxu0 0.0
        %10449 = vmatpush1.xpose.msra.mxu0 %v10402
        %10450 = vmatprep.subr.mxu0 0.0
        %10451 = vmatpush1.xpose.msra.mxu0 %v10405
        %10452 = vmatprep.subr.mxu0 0.0
        %10453 = vmatpush1.xpose.msra.mxu0 %v10408
        %10454 = vmatprep.subr.mxu0 0.0
        %10455 = vmatpush1.xpose.msra.mxu0 %v10411
        %10456 = vmatprep.subr.mxu0 0.0
        %10457 = vmatpush1.xpose.msra.mxu0 %v10414
        %10458 = vmatprep.subr.mxu0 0.0
        %10459 = vmatpush1.xpose.msra.mxu0 %v10417
        %10460 = vmatprep.subr.mxu0 0.0
        %10461 = vmatpush1.xpose.msra.mxu0 %v10420
        %10462 = vmatprep.subr.mxu0 0.0
        %10463 = vmatpush1.xpose.msra.mxu0 %v10423
        %10464 = vmatprep.subr.mxu0 0.0
        %10465 = vmatpush1.xpose.msra.mxu0 %v10426
        %10466 = vmatprep.subr.mxu0 0.0
        %10467 = vmatpush1.xpose.msra.mxu0 %v10429
        %10468 = vmatprep.subr.mxu0 0.0
        %10469 = vmatpush1.xpose.msra.mxu0 %v10432
        %10470 = vmatprep.subr.mxu0 0.0
        %10471 = vmatpush1.xpose.msra.mxu0 %v10435
        %10472 = vmatprep.subr.mxu0 0.0
        %10473 = vmatpush1.xpose.msra.mxu0 %v10438
        %10474 = vmatprep.subr.mxu0 0.0
        %10475 = vmatpush1.xpose.msra.mxu0 %v10441
        %10476 = vmatprep.subr.mxu0 0.0
        %10477 = vmatpush1.xpose.msra.mxu0 %v10444
        %10478 = vmatprep.subr.mxu0 0.0
        %10479 = vmatpush1.xpose.msra.mxu0 0.0
        %10480 = vmatprep.subr.mxu0 0.0
        %10481 = vmatpush1.xpose.msra.mxu0 0.0
        %10482 = vmatprep.subr.mxu0 0.0
        %10483 = vmatpush1.xpose.msra.mxu0 0.0
        %10484 = vmatprep.subr.mxu0 0.0
        %10485 = vmatpush1.xpose.msra.mxu0 0.0
        %10486 = vmatprep.subr.mxu0 0.0
        %10487 = vmatpush1.xpose.msra.mxu0 0.0
        %10488 = vmatprep.subr.mxu0 0.0
        %10489 = vmatpush1.xpose.msra.mxu0 0.0
        %10490 = vmatprep.subr.mxu0 0.0
        %10491 = vmatpush1.xpose.msra.mxu0 0.0
        %10492 = vmatprep.subr.mxu0 0.0
        %10493 = vmatpush1.xpose.msra.mxu0 0.0
        %10494 = vmatprep.subr.mxu0 0.0
        %10495 = vmatpush1.xpose.msra.mxu0 0.0
        %10496 = vmatprep.subr.mxu0 0.0
        %10497 = vmatpush1.xpose.msra.mxu0 0.0
        %10498 = vmatprep.subr.mxu0 0.0
        %10499 = vmatpush1.xpose.msra.mxu0 0.0
        %10500 = vmatprep.subr.mxu0 0.0
        %10501 = vmatpush1.xpose.msra.mxu0 0.0
        %10502 = vmatprep.subr.mxu0 0.0
        %10503 = vmatpush1.xpose.msra.mxu0 0.0
        %10504 = vmatprep.subr.mxu0 0.0
        %10505 = vmatpush1.xpose.msra.mxu0 0.0
        %10506 = vmatprep.subr.mxu0 0.0
        %10507 = vmatpush1.xpose.msra.mxu0 0.0
        %10508 = vmatprep.subr.mxu0 0.0
        %10509 = vmatpush1.xpose.msra.mxu0 0.0
        %10510 = vmatprep.mubr.f32.mxu0 0.0
        %10511 = vmatmul.mubr.f32.gmra.mrb[0].mxu0 %v10396
        %v10512 = vpop.f32.mrb[0].mxu0
        %v10513 = vadd.f32 0.0, %v10512
        %v10514 = vpop.f32.mrb[0].mxu0
        %10515 = vdwg.mxu0
        %10516 = vst [vmem:[%s207] sm:$0xf] %v10513
        %s10517 = sand.u32 %s120, 1
        %s10518 = scalar_lea.sflag [#allocation3], %s10517
        %s10519 = sand.u32 %s120, 1
        %s10520 = smul.addr %s10519, 4
        %s10521 = scalar_lea.vmem [#allocation2], %s10520
        // Predicated region
        $region37: #{encoder_forward.1} parent=35 // pred_check
          %p10522 = pneg %p130
        $region38: #{encoder_forward.1} parent=35 // pred_check_branch
          %10524 = sbr.rel (%p10522) target = $region40
        $region39: #{encoder_forward.1} parent=35 // pred_region
          %s10526 = ssub.s32 64, 64
          %10527 = vsyncadd %s10518, %s10526
          %s10528 = smul.addr %s18, 64
          %s10529 = scalar_lea.hbm %s4, %s10528
          %s10531 = sshll.u32 %s10521, 4
          %s10532 = int_to_ptr.vmem [resolvable:$true] %s10531
          %10534 = dma.vmem_to_hbm [thread:$0]  %s10532, 64, %s10529, %s10518
        $region40: #{encoder_forward.1} parent=35 // pred_fallthru
          _
      $region36: #{encoder_forward.1} parent=5 // pred_fallthru
        _
      %p10535 = scmp.le.s32.totalorder 2, %s13
      // Predicated region
      $region41: #{encoder_forward.1} parent=5 // pred_check
        %p10536 = pneg %p10535
      $region42: #{encoder_forward.1} parent=5 // pred_check_branch
        %10538 = sbr.rel (%p10536) target = $region44
      $region43: #{encoder_forward.1} parent=5 // pred_region
        %s10539 = ssub.s32 %s13, 2
        // Predicated region
        $region45: #{encoder_forward.1} parent=43 // pred_check
          %p10540 = pneg %p136
        $region46: #{encoder_forward.1} parent=43 // pred_check_branch
          %10542 = sbr.rel (%p10540) target = $region48
        $region47: #{encoder_forward.1} parent=43 // pred_region
          %s10543 = sand.u32 %s121, 1
          %s10544 = scalar_lea.sflag [#allocation3], %s10543
          %s10545 = sand.u32 %s121, 1
          %s10546 = smul.addr %s10545, 4
          %s10547 = scalar_lea.vmem [#allocation2], %s10546
          %10548 = dma.done %s10544, 64
        $region48: #{encoder_forward.1} parent=43 // pred_fallthru
          _
      $region44: #{encoder_forward.1} parent=5 // pred_fallthru
        _
    $region6: #{encoder_forward.1} parent=1 // loop_footer
      %s17 = sadd.s32 1, %s13
    $region7: #{encoder_forward.1} parent=1 // loop_footer_branch
      %12 = sbr.rel target = $region3
    $region8: #{encoder_forward.1} parent=1 // loop_exit
      _
    %10549 = vsyncpa [#allocation3], 1
    %s10550 = scalar_lea.sflag [#allocation3], 1
    %10551 = vsyncpa %s10550, 1

</llo_original>
